<compile_context>
chip_gen: v5e
topology: v5e:2x2
jax: 0.10.0
libtpu: 0.0.40
codegen_flags: <defaults>
</compile_context>

<pallas_src>
import math
import functools

import numpy as np
import jax
import jax.numpy as jnp
from jax import lax
from jax.experimental import pallas as pl
from jax.experimental.pallas import tpu as pltpu

PADW = 1  # width padding baked into the flat layout (all 3x3 convs use pad=1)


# ---------------------------------------------------------------------------
# compiler params (generation-aware VMEM limit)
# ---------------------------------------------------------------------------
_VMEM_LIMIT = None


def _compiler_params():
    global _VMEM_LIMIT
    if _VMEM_LIMIT is None:
        try:
            cap = int(pltpu.get_tpu_info().vmem_capacity_bytes)
        except Exception:
            cap = 64 * 1024 * 1024
        _VMEM_LIMIT = min(int(cap * 0.8), 112 * 1024 * 1024)
    return pltpu.CompilerParams(dimension_semantics=("parallel",),
                                vmem_limit_bytes=_VMEM_LIMIT)


# ---------------------------------------------------------------------------
# layout helpers (wrapper-side, cheap XLA glue)
# ---------------------------------------------------------------------------
def to_flat_padded(x_nchw):
    """[B,C,H,W] -> [B,C,H*(W+2)] with zero width-pad columns."""
    B, C, H, W = x_nchw.shape
    xp = jnp.pad(x_nchw, ((0, 0), (0, 0), (0, 0), (PADW, PADW)))
    return xp.reshape(B, C, H * (W + 2 * PADW))


def from_flat_padded(x_flat, H, W):
    """[B,C,H*(W+2)] -> [B,C,H,W] (drops the pad columns)."""
    B, C, _ = x_flat.shape
    return x_flat.reshape(B, C, H, W + 2 * PADW)[:, :, :, PADW:PADW + W]


def make_colmask(H, W):
    """[1, H*(W+2)] f32 mask: 1 at valid columns, 0 at pad columns."""
    col = jnp.arange(W + 2 * PADW)
    m = ((col >= PADW) & (col < PADW + W)).astype(jnp.float32)
    return jnp.tile(m, H)[None, :]


def make_upsample_matrix(Win):
    """[Win+2, 2*Win+2]: padded low-res row -> padded, interleaved 2x row
    (0.75/0.25 taps of bilinear align_corners=False, edge clamped)."""
    Wp_in, Wp_out = Win + 2, 2 * Win + 2
    U = np.zeros((Wp_in, Wp_out), np.float32)
    for w in range(2 * Win):
        j = w // 2
        o = max(j - 1, 0) if w % 2 == 0 else min(j + 1, Win - 1)
        U[1 + j, 1 + w] += 0.75
        U[1 + o, 1 + w] += 0.25
    return jnp.asarray(U)


# ---------------------------------------------------------------------------
# in-kernel helpers
# ---------------------------------------------------------------------------
def _zero_halo(xfs_ref, Wp, HWp):
    """Zero only the halo (top row + shift, bottom row + tail) of the padded
    image; the interior is fully overwritten afterwards."""
    C, L = xfs_ref.shape
    xfs_ref[:, :Wp + 1] = jnp.zeros((C, Wp + 1), xfs_ref.dtype)
    xfs_ref[:, Wp + 1 + HWp:] = jnp.zeros((C, L - (Wp + 1 + HWp)),
                                          xfs_ref.dtype)


def _fill_padded(xfs_ref, x2d, Wp, HWp):
    """x2d: [C, HWp] rows already width-padded with zero columns."""
    _zero_halo(xfs_ref, Wp, HWp)
    xfs_ref[:, Wp + 1:Wp + 1 + HWp] = x2d.astype(xfs_ref.dtype)


def _upsample_rows_into(dst_ref, dst_off, src2d, Hin, Wp_in, Wp_out, u):
    """2x bilinear (align_corners=False) upsample of a padded-flat image,
    written row by row starting at lane offset dst_off (rows of width Wp_out,
    pad columns zero via the u matrix)."""
    for r in range(2 * Hin):
        j = r // 2
        o = max(j - 1, 0) if r % 2 == 0 else min(j + 1, Hin - 1)
        rj = src2d[:, j * Wp_in:(j + 1) * Wp_in].astype(jnp.float32)
        ro = src2d[:, o * Wp_in:(o + 1) * Wp_in].astype(jnp.float32)
        v = (0.75 * rj + 0.25 * ro).astype(u.dtype)
        row = jnp.dot(v, u, preferred_element_type=jnp.float32)
        dst_ref[:, dst_off + r * Wp_out:dst_off + (r + 1) * Wp_out] = (
            row.astype(dst_ref.dtype))


def _conv3x3_acc(xfs_ref, w_ref, Wp, HWp):
    """9 accumulating MXU matmuls over lane-shifted windows of the padded
    image: acc[Cout, HWp] = sum_t w[t] @ xfs[:, off_t : off_t + HWp]."""
    acc = None
    for t in range(9):
        kh, kw = t // 3, t % 3
        off = kh * Wp + kw
        part = jnp.dot(w_ref[0, t], xfs_ref[:, off:off + HWp],
                       preferred_element_type=jnp.float32)
        acc = part if acc is None else acc + part
    return acc


# ---------------------------------------------------------------------------
# Pallas kernels
# ---------------------------------------------------------------------------
def _style_block_kernel(*refs, Hin, Win, upsample, has_res):
    """Fused StyleBlock: (upsample) + conv1 + conv2 + to_rgb/to_mask head."""
    it = iter(refs)
    x_ref = next(it)
    w1_ref, b1_ref = next(it), next(it)
    w2_ref, b2_ref = next(it), next(it)
    w4_ref, b4_ref = next(it), next(it)
    m_ref = next(it)
    u_ref = next(it) if upsample else None
    res_ref = next(it) if has_res else None
    xo_ref, rgbm_ref = next(it), next(it)
    xfs1, xfs2 = next(it), next(it)
    res_up = next(it) if (has_res and upsample) else None

    H = 2 * Hin if upsample else Hin
    W = 2 * Win if upsample else Win
    Wp = W + 2 * PADW
    Wp_in = Win + 2 * PADW
    HWp = H * Wp
    mask = m_ref[...]                                  # [1, HWp]

    # ---- conv1: padded input image (fused 2x bilinear upsample if needed) --
    if upsample:
        _zero_halo(xfs1, Wp, HWp)
        _upsample_rows_into(xfs1, Wp + 1, x_ref[0], Hin, Wp_in, Wp,
                            u_ref[...].astype(jnp.bfloat16))
    else:
        _fill_padded(xfs1, x_ref[0], Wp, HWp)
    a = _conv3x3_acc(xfs1, w1_ref, Wp, HWp) + b1_ref[...]
    a = jnp.maximum(a, 0.2 * a)                        # leaky_relu(0.2)
    a = a * mask                                       # keep pad columns zero

    # ---- conv2 (activation stays resident in VMEM) ----
    _fill_padded(xfs2, a.astype(jnp.bfloat16), Wp, HWp)
    a = _conv3x3_acc(xfs2, w2_ref, Wp, HWp) + b2_ref[...]
    a = jnp.maximum(a, 0.2 * a)
    a = a * mask
    x_bf = a.astype(jnp.bfloat16)
    xo_ref[0] = x_bf

    # ---- fused to_rgb (rows 0..2) + to_mask (row 3) 1x1 head ----
    head = jnp.dot(w4_ref[0], x_bf, preferred_element_type=jnp.float32)
    head = head + b4_ref[...]                          # [4, HWp]
    if has_res:
        if upsample:
            _upsample_rows_into(res_up, 0, res_ref[0], Hin, Wp_in, Wp,
                                u_ref[...])
            head = head + res_up[...]
        else:
            head = head + res_ref[0]
    rgbm_ref[0, 0:3, :] = head[0:3, :] * mask
    rgbm_ref[0, 3:4, :] = jax.nn.sigmoid(head[3:4, :]) * mask


def _input_conv_kernel(x_ref, w_ref, b_ref, m_ref, o_ref):
    """Plain (shared-weight) 1x1 conv + bias on the padded-flat layout."""
    acc = jnp.dot(w_ref[0], x_ref[0], preferred_element_type=jnp.float32)
    o_ref[0] = ((acc + b_ref[...]) * m_ref[...]).astype(o_ref.dtype)


# ---------------------------------------------------------------------------
# pallas_call wrappers
# ---------------------------------------------------------------------------
def input_layer(x_flat, w, b, H, W):
    """x_flat: [B, Cd, H*Wp] bf16; w: [C0, Cd, 1, 1]; b: [C0] -> bf16 out."""
    B, Cd, HWp = x_flat.shape
    C0 = w.shape[0]
    wf = w[:, :, 0, 0].astype(jnp.bfloat16)[None]      # [1, C0, Cd]
    return pl.pallas_call(
        _input_conv_kernel,
        out_shape=jax.ShapeDtypeStruct((B, C0, HWp), jnp.bfloat16),
        grid=(B,),
        in_specs=[
            pl.BlockSpec((1, Cd, HWp), lambda i: (i, 0, 0)),
            pl.BlockSpec((1, C0, Cd), lambda i: (0, 0, 0)),
            pl.BlockSpec((C0, 1), lambda i: (0, 0)),
            pl.BlockSpec((1, HWp), lambda i: (0, 0)),
        ],
        out_specs=pl.BlockSpec((1, C0, HWp), lambda i: (i, 0, 0)),
        compiler_params=_compiler_params(),
    )(x_flat, wf, b.reshape(C0, 1).astype(jnp.float32), make_colmask(H, W))


def style_block(x_flat, rgbm, bp, s1, s2, s_rgb, s_mask, Hin, Win):
    """One fused StyleBlock call.  x_flat: [B, Cin, Hin*(Win+2)] bf16;
    rgbm: [B, 4, Hin*(Win+2)] f32 or None."""
    B, Cin, _ = x_flat.shape
    upsample = bp["upsample"]
    has_res = rgbm is not None
    H, W = (2 * Hin, 2 * Win) if upsample else (Hin, Win)
    Wp = W + 2 * PADW
    Wp_in = Win + 2 * PADW
    HWp = H * Wp
    L = (H + 2) * Wp + 2                               # padded image + tail
    Cout = bp["conv1"]["weight"].shape[0]

    w1 = fold_weight3x3(bp["conv1"], s1)               # [B, 9, Cout, Cin]
    w2 = fold_weight3x3(bp["conv2"], s2)               # [B, 9, Cout, Cout]
    b1 = (bp["conv1"]["bias"] + bp["bias1"]).reshape(Cout, 1)
    b2 = (bp["conv2"]["bias"] + bp["bias2"]).reshape(Cout, 1)
    w4 = jnp.concatenate([fold_weight1x1(bp["to_rgb"], s_rgb),
                          fold_weight1x1(bp["to_mask"], s_mask)], axis=1)
    b4 = jnp.concatenate([bp["to_rgb"]["bias"] + bp["to_rgb_bias"],
                          bp["to_mask"]["bias"] + bp["to_mask_bias"]]
                         ).reshape(4, 1)

    in_specs = [
        pl.BlockSpec((1, Cin, Hin * Wp_in), lambda b: (b, 0, 0)),
        pl.BlockSpec((1, 9, Cout, Cin), lambda b: (b, 0, 0, 0)),
        pl.BlockSpec((Cout, 1), lambda b: (0, 0)),
        pl.BlockSpec((1, 9, Cout, Cout), lambda b: (b, 0, 0, 0)),
        pl.BlockSpec((Cout, 1), lambda b: (0, 0)),
        pl.BlockSpec((1, 4, Cout), lambda b: (b, 0, 0)),
        pl.BlockSpec((4, 1), lambda b: (0, 0)),
        pl.BlockSpec((1, HWp), lambda b: (0, 0)),
    ]
    args = [x_flat, w1, b1, w2, b2, w4, b4, make_colmask(H, W)]
    if upsample:
        in_specs.append(pl.BlockSpec((Wp_in, Wp), lambda b: (0, 0)))
        args.append(make_upsample_matrix(Win))
    if has_res:
        in_specs.append(pl.BlockSpec((1, 4, Hin * Wp_in), lambda b: (b, 0, 0)))
        args.append(rgbm)

    scratch = [pltpu.VMEM((Cin, L), jnp.bfloat16),      # padded conv1 input
               pltpu.VMEM((Cout, L), jnp.bfloat16)]     # padded conv2 input
    if has_res and upsample:
        scratch.append(pltpu.VMEM((4, HWp), jnp.float32))

    kernel = functools.partial(_style_block_kernel, Hin=Hin, Win=Win,
                               upsample=upsample, has_res=has_res)
    x_out, rgbm_out = pl.pallas_call(
        kernel,
        out_shape=(jax.ShapeDtypeStruct((B, Cout, HWp), jnp.bfloat16),
                   jax.ShapeDtypeStruct((B, 4, HWp), jnp.float32)),
        grid=(B,),
        in_specs=in_specs,
        out_specs=(pl.BlockSpec((1, Cout, HWp), lambda b: (b, 0, 0)),
                   pl.BlockSpec((1, 4, HWp), lambda b: (b, 0, 0))),
        scratch_shapes=scratch,
        compiler_params=_compiler_params(),
    )(*args)
    return x_out, rgbm_out, H, W


# ---------------------------------------------------------------------------
# parameters (deterministic, shapes/semantics match the PyTorch module)
# ---------------------------------------------------------------------------
def init_modconv(key, in_c, out_c, style_dim, k):
    std = math.sqrt(2.0 / (in_c * k * k))              # kaiming_normal fan_in
    w = jax.random.normal(key, (out_c, in_c, k, k), jnp.float32) * std
    return {
        "weight": w,
        "bias": jnp.zeros((out_c,), jnp.float32),
        "mod_w": jnp.ones((in_c, style_dim), jnp.float32),   # nn.init.ones_
        "mod_b": jnp.zeros((in_c,), jnp.float32),             # nn.init.zeros_
        "scale": 1.0 / math.sqrt(in_c * k * k),
        "k": k,
    }


def init_style_block(key, in_c, out_c, style_dim, upsample):
    k1, k2, k3, k4 = jax.random.split(key, 4)
    return {
        "upsample": upsample,
        "conv1": init_modconv(k1, in_c, out_c, style_dim, 3),
        "conv2": init_modconv(k2, out_c, out_c, style_dim, 3),
        "bias1": jnp.zeros((out_c,), jnp.float32),
        "bias2": jnp.zeros((out_c,), jnp.float32),
        "to_rgb": init_modconv(k3, out_c, 3, style_dim, 1),
        "to_rgb_bias": jnp.zeros((3,), jnp.float32),
        "to_mask": init_modconv(k4, out_c, 1, style_dim, 1),
        "to_mask_bias": jnp.zeros((1,), jnp.float32),
    }


def init_generator(key, content_dim, style_dim, num_channels):
    keys = jax.random.split(key, len(num_channels) + 1)
    in_w = jax.random.normal(keys[0], (num_channels[0], content_dim, 1, 1),
                             jnp.float32) * math.sqrt(1.0 / content_dim)
    in_b = jnp.zeros((num_channels[0],), jnp.float32)
    blocks = []
    for i in range(len(num_channels)):
        in_c = num_channels[max(0, i - 1)]
        out_c = num_channels[i]
        blocks.append(init_style_block(keys[i + 1], in_c, out_c, style_dim,
                                       i > 0))
    return {"input_w": in_w, "input_b": in_b, "blocks": blocks}


# ---------------------------------------------------------------------------
# wrapper-side style folding (hoists modulation + demod off the hot path)
# ---------------------------------------------------------------------------
def _modulation(p, style):
    return style @ p["mod_w"].T + p["mod_b"]           # [B, Cin]


def fold_weight3x3(p, style):
    """Per-sample modulated + demodulated weight -> [B, 9, Cout, Cin] bf16."""
    s = _modulation(p, style)
    w = p["scale"] * p["weight"]                        # [Co,Ci,3,3]
    wm = w[None] * s[:, None, :, None, None]            # [B,Co,Ci,3,3]
    d = lax.rsqrt(jnp.sum(wm * wm, axis=(2, 3, 4), keepdims=True) + 1e-8)
    wm = wm * d
    B, Co, Ci = wm.shape[0], wm.shape[1], wm.shape[2]
    wf = jnp.transpose(wm, (0, 3, 4, 1, 2)).reshape(B, 9, Co, Ci)
    return wf.astype(jnp.bfloat16)


def fold_weight1x1(p, style):
    """Per-sample modulated (no demod) 1x1 weight -> [B, Cout, Cin] bf16."""
    s = _modulation(p, style)
    w = p["scale"] * p["weight"][:, :, 0, 0]             # [Co,Ci]
    return (w[None] * s[:, None, :]).astype(jnp.bfloat16)


# ---------------------------------------------------------------------------
# forward pass
# ---------------------------------------------------------------------------
def generator_forward(params, content_nchw, style_vectors):
    B, Cd, H, W = content_nchw.shape
    x = to_flat_padded(content_nchw.astype(jnp.float32)).astype(jnp.bfloat16)
    x = input_layer(x, params["input_w"], params["input_b"], H, W)
    rgbm = None
    for i, bp in enumerate(params["blocks"]):
        idx = 4 * i
        x, rgbm, H, W = style_block(
            x, rgbm, bp,
            style_vectors[idx], style_vectors[idx + 1],
            style_vectors[idx + 2], style_vectors[idx + 3], H, W)
    out = from_flat_padded(rgbm, H, W)                  # [B, 4, H, W]
    return out[:, :3], out[:, 3:]


# ---------------------------------------------------------------------------
# pure-JAX reference (mirrors the PyTorch module; used only for validation)
# ---------------------------------------------------------------------------
def _up_axis2x(a, axis):
    n = a.shape[axis]
    sl = functools.partial(lax.slice_in_dim, a, axis=axis)
    prev = jnp.concatenate([sl(0, 1), sl(0, n - 1)], axis=axis)
    nxt = jnp.concatenate([sl(1, n), sl(n - 1, n)], axis=axis)
    even = 0.75 * a + 0.25 * prev
    odd = 0.75 * a + 0.25 * nxt
    out = jnp.stack([even, odd], axis=axis + 1)
    shape = list(a.shape)
    shape[axis] = 2 * n
    return out.reshape(shape)


def upsample2x_bilinear(x):                              # [B,C,H,W]
    return _up_axis2x(_up_axis2x(x, 2), 3)


def _ref_modconv(x, style, p, demodulate):
    s = style @ p["mod_w"].T + p["mod_b"]
    w = p["scale"] * p["weight"]
    wm = w[None] * s[:, None, :, None, None]
    if demodulate:
        d = lax.rsqrt(jnp.sum(wm * wm, axis=(2, 3, 4), keepdims=True) + 1e-8)
        wm = wm * d
    pad = (p["k"] - 1) // 2

    def one(xi, wi):
        return lax.conv_general_dilated(
            xi[None], wi, (1, 1), [(pad, pad), (pad, pad)],
            dimension_numbers=("NCHW", "OIHW", "NCHW"),
            precision=lax.Precision.HIGHEST)[0]

    out = jax.vmap(one)(x, wm)
    return out + p["bias"][None, :, None, None]


def reference_forward(params, content, styles):
    x = lax.conv_general_dilated(
        content, params["input_w"], (1, 1), [(0, 0), (0, 0)],
        dimension_numbers=("NCHW", "OIHW", "NCHW"),
        precision=lax.Precision.HIGHEST) + params["input_b"][None, :, None, None]
    rgb, mask = None, None
    for i, bp in enumerate(params["blocks"]):
        s1, s2, srgb, smask = styles[4 * i:4 * i + 4]
        if bp["upsample"]:
            x = upsample2x_bilinear(x)
            if rgb is not None:
                rgb = upsample2x_bilinear(rgb)
                mask = upsample2x_bilinear(mask)
        x = _ref_modconv(x, s1, bp["conv1"], True) + bp["bias1"][None, :, None, None]
        x = jnp.where(x >= 0, x, 0.2 * x)
        x = _ref_modconv(x, s2, bp["conv2"], True) + bp["bias2"][None, :, None, None]
        x = jnp.where(x >= 0, x, 0.2 * x)
        rgb_new = (_ref_modconv(x, srgb, bp["to_rgb"], False)
                   + bp["to_rgb_bias"][None, :, None, None])
        if rgb is not None:
            rgb_new = rgb_new + rgb
        mask_new = (_ref_modconv(x, smask, bp["to_mask"], False)
                    + bp["to_mask_bias"][None, :, None, None])
        if mask is not None:
            mask_new = mask_new + mask
        rgb, mask = rgb_new, jax.nn.sigmoid(mask_new)
    return rgb, mask


# ---------------------------------------------------------------------------
if __name__ == "__main__":
    key = jax.random.PRNGKey(0)
    content_dim, style_dim = 32, 32
    num_channels = [32, 16, 8]                           # 3 blocks -> 2 upsamples
    B, H, W = 2, 4, 4

    kp, kc, ks = jax.random.split(key, 3)
    params = init_generator(kp, content_dim, style_dim, num_channels)
    content = jax.random.normal(kc, (B, content_dim, H, W), jnp.float32)
    style_keys = jax.random.split(ks, 4 * len(num_channels))
    styles = [jax.random.normal(k, (B, style_dim), jnp.float32)
              for k in style_keys]

    fwd = jax.jit(lambda c, s: generator_forward(params, c, s))
    rgb, mask = fwd(content, styles)
    jax.block_until_ready((rgb, mask))

    up = 2 ** (len(num_channels) - 1)
    assert rgb.shape == (B, 3, H * up, W * up), rgb.shape
    assert mask.shape == (B, 1, H * up, W * up), mask.shape
    assert bool(jnp.all(jnp.isfinite(rgb))) and bool(jnp.all(jnp.isfinite(mask)))
    assert bool(jnp.all(mask >= 0.0)) and bool(jnp.all(mask <= 1.0))

    # numerical check against a pure-JAX (f32) rendering of the PyTorch math;
    # kernel path uses bf16 matmul operands, hence the loose tolerance.
    rgb_ref, mask_ref = reference_forward(params, content, styles)
    rgb_err = float(jnp.max(jnp.abs(rgb.astype(jnp.float32) - rgb_ref)))
    mask_err = float(jnp.max(jnp.abs(mask.astype(jnp.float32) - mask_ref)))
    rgb_tol = 0.1 * (float(jnp.max(jnp.abs(rgb_ref))) + 1.0)
    assert rgb_err <= rgb_tol, (rgb_err, rgb_tol)
    assert mask_err <= 0.1, mask_err
    print("KERNEL_OK")
</pallas_src>

<mosaic_0001>
module attributes {stable_mosaic.version = 11 : i64} {
  func.func @_input_conv_kernel(%arg0: i32, %arg1: memref<1x32x24xbf16, #tpu.memory_space<vmem>>, %arg2: memref<1x32x32xbf16, #tpu.memory_space<vmem>>, %arg3: memref<32x1xf32, #tpu.memory_space<vmem>>, %arg4: memref<1x24xf32, #tpu.memory_space<vmem>>, %arg5: memref<1x32x24xbf16, #tpu.memory_space<vmem>>) attributes {dimension_semantics = [#tpu.dimension_semantics<parallel>], iteration_bounds = array<i64: 2>, scalar_prefetch = 0 : i64, scratch_operands = 0 : i64, tpu.core_type = #tpu.core_type<tc>, window_params = [{transform_indices = @transform_0, window_bounds = array<i64: 1, 32, 24>}, {pipeline_mode = #tpu.pipeline_mode<synchronous>, transform_indices = @transform_1, window_bounds = array<i64: 1, 32, 32>}, {pipeline_mode = #tpu.pipeline_mode<synchronous>, transform_indices = @transform_2, window_bounds = array<i64: 32, 1>}, {pipeline_mode = #tpu.pipeline_mode<synchronous>, transform_indices = @transform_3, window_bounds = array<i64: 1, 24>}, {transform_indices = @transform_4, window_bounds = array<i64: 1, 32, 24>}]} {
    %c0 = arith.constant 0 : index
    %c0_0 = arith.constant 0 : index
    %c0_1 = arith.constant 0 : index
    %0 = vector.load %arg2[%c0, %c0_0, %c0_1] : memref<1x32x32xbf16, #tpu.memory_space<vmem>>, vector<1x32x32xbf16>
    %1 = vector.shape_cast %0 : vector<1x32x32xbf16> to vector<32x32xbf16>
    %c0_2 = arith.constant 0 : index
    %c0_3 = arith.constant 0 : index
    %c0_4 = arith.constant 0 : index
    %2 = vector.load %arg1[%c0_2, %c0_3, %c0_4] : memref<1x32x24xbf16, #tpu.memory_space<vmem>>, vector<1x32x24xbf16>
    %3 = vector.shape_cast %2 : vector<1x32x24xbf16> to vector<32x24xbf16>
    %cst = arith.constant dense<0.000000e+00> : vector<32x24xf32>
    %4 = tpu.matmul %1, %3, %cst {dimension_numbers = #tpu.dot_dimension_numbers<[1], [0], [0], [1], [0, 0, 1, 1], [], []>} : vector<32x32xbf16>, vector<32x24xbf16>, vector<32x24xf32> -> vector<32x24xf32>
    %c0_5 = arith.constant 0 : index
    %c0_6 = arith.constant 0 : index
    %5 = vector.load %arg3[%c0_5, %c0_6] : memref<32x1xf32, #tpu.memory_space<vmem>>, vector<32x1xf32>
    %6 = vector.broadcast %5 : vector<32x1xf32> to vector<32x24xf32>
    %7 = arith.addf %4, %6 : vector<32x24xf32>
    %c0_7 = arith.constant 0 : index
    %c0_8 = arith.constant 0 : index
    %8 = vector.load %arg4[%c0_7, %c0_8] : memref<1x24xf32, #tpu.memory_space<vmem>>, vector<1x24xf32>
    %9 = vector.broadcast %8 : vector<1x24xf32> to vector<32x24xf32>
    %10 = arith.mulf %7, %9 : vector<32x24xf32>
    %11 = arith.truncf %10 : vector<32x24xf32> to vector<32x24xbf16>
    %c0_9 = arith.constant 0 : index
    %c0_10 = arith.constant 0 : index
    %c0_11 = arith.constant 0 : index
    %12 = vector.load %arg5[%c0_9, %c0_10, %c0_11] : memref<1x32x24xbf16, #tpu.memory_space<vmem>>, vector<1x32x24xbf16>
    %13 = vector.shape_cast %12 : vector<1x32x24xbf16> to vector<32x24xbf16>
    %14 = vector.shape_cast %11 : vector<32x24xbf16> to vector<1x32x24xbf16>
    tpu.vector_store %arg5[%c0_9, %c0_10, %c0_11], %14 {strides = array<i32>} : memref<1x32x24xbf16, #tpu.memory_space<vmem>>, vector<1x32x24xbf16>,
    return
  }
  func.func @transform_0(%arg0: i32) -> (i32, i32, i32) {
    %c0_i32 = arith.constant 0 : i32
    %c0_i32_0 = arith.constant 0 : i32
    %c0_i32_1 = arith.constant 0 : i32
    return %arg0, %c0_i32, %c0_i32_0 : i32, i32, i32
  }
  func.func @transform_1(%arg0: i32) -> (i32, i32, i32) {
    %c0_i32 = arith.constant 0 : i32
    %c0_i32_0 = arith.constant 0 : i32
    %c0_i32_1 = arith.constant 0 : i32
    %c0_i32_2 = arith.constant 0 : i32
    return %c0_i32, %c0_i32_0, %c0_i32_1 : i32, i32, i32
  }
  func.func @transform_2(%arg0: i32) -> (i32, i32) {
    %c0_i32 = arith.constant 0 : i32
    %c0_i32_0 = arith.constant 0 : i32
    %c0_i32_1 = arith.constant 0 : i32
    return %c0_i32, %c0_i32_0 : i32, i32
  }
  func.func @transform_3(%arg0: i32) -> (i32, i32) {
    %c0_i32 = arith.constant 0 : i32
    %c0_i32_0 = arith.constant 0 : i32
    %c0_i32_1 = arith.constant 0 : i32
    return %c0_i32, %c0_i32_0 : i32, i32
  }
  func.func @transform_4(%arg0: i32) -> (i32, i32, i32) {
    %c0_i32 = arith.constant 0 : i32
    %c0_i32_0 = arith.constant 0 : i32
    %c0_i32_1 = arith.constant 0 : i32
    return %arg0, %c0_i32, %c0_i32_0 : i32, i32, i32
  }
}

module attributes {stable_mosaic.version = 11 : i64} {
  func.func @_style_block_kernel(%arg0: i32, %arg1: memref<1x32x24xbf16, #tpu.memory_space<vmem>>, %arg2: memref<1x9x32x32xbf16, #tpu.memory_space<vmem>>, %arg3: memref<32x1xf32, #tpu.memory_space<vmem>>, %arg4: memref<1x9x32x32xbf16, #tpu.memory_space<vmem>>, %arg5: memref<32x1xf32, #tpu.memory_space<vmem>>, %arg6: memref<1x4x32xbf16, #tpu.memory_space<vmem>>, %arg7: memref<4x1xf32, #tpu.memory_space<vmem>>, %arg8: memref<1x24xf32, #tpu.memory_space<vmem>>, %arg9: memref<1x32x24xbf16, #tpu.memory_space<vmem>>, %arg10: memref<1x4x24xf32, #tpu.memory_space<vmem>>, %arg11: memref<32x38xbf16, #tpu.memory_space<vmem>>, %arg12: memref<32x38xbf16, #tpu.memory_space<vmem>>) attributes {dimension_semantics = [#tpu.dimension_semantics<parallel>], iteration_bounds = array<i64: 2>, scalar_prefetch = 0 : i64, scratch_operands = 2 : i64, tpu.core_type = #tpu.core_type<tc>, window_params = [{transform_indices = @transform_0, window_bounds = array<i64: 1, 32, 24>}, {transform_indices = @transform_1, window_bounds = array<i64: 1, 9, 32, 32>}, {pipeline_mode = #tpu.pipeline_mode<synchronous>, transform_indices = @transform_2, window_bounds = array<i64: 32, 1>}, {transform_indices = @transform_3, window_bounds = array<i64: 1, 9, 32, 32>}, {pipeline_mode = #tpu.pipeline_mode<synchronous>, transform_indices = @transform_4, window_bounds = array<i64: 32, 1>}, {transform_indices = @transform_5, window_bounds = array<i64: 1, 4, 32>}, {pipeline_mode = #tpu.pipeline_mode<synchronous>, transform_indices = @transform_6, window_bounds = array<i64: 4, 1>}, {pipeline_mode = #tpu.pipeline_mode<synchronous>, transform_indices = @transform_7, window_bounds = array<i64: 1, 24>}, {transform_indices = @transform_8, window_bounds = array<i64: 1, 32, 24>}, {transform_indices = @transform_9, window_bounds = array<i64: 1, 4, 24>}]} {
    %c0 = arith.constant 0 : index
    %c0_0 = arith.constant 0 : index
    %0 = vector.load %arg8[%c0, %c0_0] : memref<1x24xf32, #tpu.memory_space<vmem>>, vector<1x24xf32>
    %c0_1 = arith.constant 0 : index
    %c0_2 = arith.constant 0 : index
    %c0_3 = arith.constant 0 : index
    %1 = vector.load %arg1[%c0_1, %c0_2, %c0_3] : memref<1x32x24xbf16, #tpu.memory_space<vmem>>, vector<1x32x24xbf16>
    %2 = vector.shape_cast %1 : vector<1x32x24xbf16> to vector<32x24xbf16>
    %cst = arith.constant 0.000000e+00 : bf16
    %3 = vector.broadcast %cst : bf16 to vector<32x7xbf16>
    %c0_4 = arith.constant 0 : index
    %c0_5 = arith.constant 0 : index
    %4 = vector.load %arg11[%c0_4, %c0_5] : memref<32x38xbf16, #tpu.memory_space<vmem>>, vector<32x7xbf16>
    tpu.vector_store %arg11[%c0_4, %c0_5], %3 {strides = array<i32>} : memref<32x38xbf16, #tpu.memory_space<vmem>>, vector<32x7xbf16>,
    %cst_6 = arith.constant 0.000000e+00 : bf16
    %5 = vector.broadcast %cst_6 : bf16 to vector<32x7xbf16>
    %c0_7 = arith.constant 0 : index
    %c31 = arith.constant 31 : index
    %6 = vector.load %arg11[%c0_7, %c31] : memref<32x38xbf16, #tpu.memory_space<vmem>>, vector<32x7xbf16>
    tpu.vector_store %arg11[%c0_7, %c31], %5 {strides = array<i32>} : memref<32x38xbf16, #tpu.memory_space<vmem>>, vector<32x7xbf16>,
    %c0_8 = arith.constant 0 : index
    %c7 = arith.constant 7 : index
    %7 = vector.load %arg11[%c0_8, %c7] : memref<32x38xbf16, #tpu.memory_space<vmem>>, vector<32x24xbf16>
    tpu.vector_store %arg11[%c0_8, %c7], %2 {strides = array<i32>} : memref<32x38xbf16, #tpu.memory_space<vmem>>, vector<32x24xbf16>,
    %c0_9 = arith.constant 0 : index
    %c0_10 = arith.constant 0 : index
    %c0_11 = arith.constant 0 : index
    %c0_12 = arith.constant 0 : index
    %8 = vector.load %arg2[%c0_9, %c0_10, %c0_11, %c0_12] : memref<1x9x32x32xbf16, #tpu.memory_space<vmem>>, vector<1x1x32x32xbf16>
    %9 = vector.shape_cast %8 : vector<1x1x32x32xbf16> to vector<32x32xbf16>
    %c0_13 = arith.constant 0 : index
    %c0_14 = arith.constant 0 : index
    %10 = vector.load %arg11[%c0_13, %c0_14] : memref<32x38xbf16, #tpu.memory_space<vmem>>, vector<32x24xbf16>
    %cst_15 = arith.constant dense<0.000000e+00> : vector<32x24xf32>
    %11 = tpu.matmul %9, %10, %cst_15 {dimension_numbers = #tpu.dot_dimension_numbers<[1], [0], [0], [1], [0, 0, 1, 1], [], []>} : vector<32x32xbf16>, vector<32x24xbf16>, vector<32x24xf32> -> vector<32x24xf32>
    %c0_16 = arith.constant 0 : index
    %c1 = arith.constant 1 : index
    %c0_17 = arith.constant 0 : index
    %c0_18 = arith.constant 0 : index
    %12 = vector.load %arg2[%c0_16, %c1, %c0_17, %c0_18] : memref<1x9x32x32xbf16, #tpu.memory_space<vmem>>, vector<1x1x32x32xbf16>
    %13 = vector.shape_cast %12 : vector<1x1x32x32xbf16> to vector<32x32xbf16>
    %c0_19 = arith.constant 0 : index
    %c1_20 = arith.constant 1 : index
    %14 = vector.load %arg11[%c0_19, %c1_20] : memref<32x38xbf16, #tpu.memory_space<vmem>>, vector<32x24xbf16>
    %cst_21 = arith.constant dense<0.000000e+00> : vector<32x24xf32>
    %15 = tpu.matmul %13, %14, %cst_21 {dimension_numbers = #tpu.dot_dimension_numbers<[1], [0], [0], [1], [0, 0, 1, 1], [], []>} : vector<32x32xbf16>, vector<32x24xbf16>, vector<32x24xf32> -> vector<32x24xf32>
    %16 = arith.addf %11, %15 : vector<32x24xf32>
    %c0_22 = arith.constant 0 : index
    %c2 = arith.constant 2 : index
    %c0_23 = arith.constant 0 : index
    %c0_24 = arith.constant 0 : index
    %17 = vector.load %arg2[%c0_22, %c2, %c0_23, %c0_24] : memref<1x9x32x32xbf16, #tpu.memory_space<vmem>>, vector<1x1x32x32xbf16>
    %18 = vector.shape_cast %17 : vector<1x1x32x32xbf16> to vector<32x32xbf16>
    %c0_25 = arith.constant 0 : index
    %c2_26 = arith.constant 2 : index
    %19 = vector.load %arg11[%c0_25, %c2_26] : memref<32x38xbf16, #tpu.memory_space<vmem>>, vector<32x24xbf16>
    %cst_27 = arith.constant dense<0.000000e+00> : vector<32x24xf32>
    %20 = tpu.matmul %18, %19, %cst_27 {dimension_numbers = #tpu.dot_dimension_numbers<[1], [0], [0], [1], [0, 0, 1, 1], [], []>} : vector<32x32xbf16>, vector<32x24xbf16>, vector<32x24xf32> -> vector<32x24xf32>
    %21 = arith.addf %16, %20 : vector<32x24xf32>
    %c0_28 = arith.constant 0 : index
    %c3 = arith.constant 3 : index
    %c0_29 = arith.constant 0 : index
    %c0_30 = arith.constant 0 : index
    %22 = vector.load %arg2[%c0_28, %c3, %c0_29, %c0_30] : memref<1x9x32x32xbf16, #tpu.memory_space<vmem>>, vector<1x1x32x32xbf16>
    %23 = vector.shape_cast %22 : vector<1x1x32x32xbf16> to vector<32x32xbf16>
    %c0_31 = arith.constant 0 : index
    %c6 = arith.constant 6 : index
    %24 = vector.load %arg11[%c0_31, %c6] : memref<32x38xbf16, #tpu.memory_space<vmem>>, vector<32x24xbf16>
    %cst_32 = arith.constant dense<0.000000e+00> : vector<32x24xf32>
    %25 = tpu.matmul %23, %24, %cst_32 {dimension_numbers = #tpu.dot_dimension_numbers<[1], [0], [0], [1], [0, 0, 1, 1], [], []>} : vector<32x32xbf16>, vector<32x24xbf16>, vector<32x24xf32> -> vector<32x24xf32>
    %26 = arith.addf %21, %25 : vector<32x24xf32>
    %c0_33 = arith.constant 0 : index
    %c4 = arith.constant 4 : index
    %c0_34 = arith.constant 0 : index
    %c0_35 = arith.constant 0 : index
    %27 = vector.load %arg2[%c0_33, %c4, %c0_34, %c0_35] : memref<1x9x32x32xbf16, #tpu.memory_space<vmem>>, vector<1x1x32x32xbf16>
    %28 = vector.shape_cast %27 : vector<1x1x32x32xbf16> to vector<32x32xbf16>
    %c0_36 = arith.constant 0 : index
    %c7_37 = arith.constant 7 : index
    %29 = vector.load %arg11[%c0_36, %c7_37] : memref<32x38xbf16, #tpu.memory_space<vmem>>, vector<32x24xbf16>
    %cst_38 = arith.constant dense<0.000000e+00> : vector<32x24xf32>
    %30 = tpu.matmul %28, %29, %cst_38 {dimension_numbers = #tpu.dot_dimension_numbers<[1], [0], [0], [1], [0, 0, 1, 1], [], []>} : vector<32x32xbf16>, vector<32x24xbf16>, vector<32x24xf32> -> vector<32x24xf32>
    %31 = arith.addf %26, %30 : vector<32x24xf32>
    %c0_39 = arith.constant 0 : index
    %c5 = arith.constant 5 : index
    %c0_40 = arith.constant 0 : index
    %c0_41 = arith.constant 0 : index
    %32 = vector.load %arg2[%c0_39, %c5, %c0_40, %c0_41] : memref<1x9x32x32xbf16, #tpu.memory_space<vmem>>, vector<1x1x32x32xbf16>
    %33 = vector.shape_cast %32 : vector<1x1x32x32xbf16> to vector<32x32xbf16>
    %c0_42 = arith.constant 0 : index
    %c8 = arith.constant 8 : index
    %34 = vector.load %arg11[%c0_42, %c8] : memref<32x38xbf16, #tpu.memory_space<vmem>>, vector<32x24xbf16>
    %cst_43 = arith.constant dense<0.000000e+00> : vector<32x24xf32>
    %35 = tpu.matmul %33, %34, %cst_43 {dimension_numbers = #tpu.dot_dimension_numbers<[1], [0], [0], [1], [0, 0, 1, 1], [], []>} : vector<32x32xbf16>, vector<32x24xbf16>, vector<32x24xf32> -> vector<32x24xf32>
    %36 = arith.addf %31, %35 : vector<32x24xf32>
    %c0_44 = arith.constant 0 : index
    %c6_45 = arith.constant 6 : index
    %c0_46 = arith.constant 0 : index
    %c0_47 = arith.constant 0 : index
    %37 = vector.load %arg2[%c0_44, %c6_45, %c0_46, %c0_47] : memref<1x9x32x32xbf16, #tpu.memory_space<vmem>>, vector<1x1x32x32xbf16>
    %38 = vector.shape_cast %37 : vector<1x1x32x32xbf16> to vector<32x32xbf16>
    %c0_48 = arith.constant 0 : index
    %c12 = arith.constant 12 : index
    %39 = vector.load %arg11[%c0_48, %c12] : memref<32x38xbf16, #tpu.memory_space<vmem>>, vector<32x24xbf16>
    %cst_49 = arith.constant dense<0.000000e+00> : vector<32x24xf32>
    %40 = tpu.matmul %38, %39, %cst_49 {dimension_numbers = #tpu.dot_dimension_numbers<[1], [0], [0], [1], [0, 0, 1, 1], [], []>} : vector<32x32xbf16>, vector<32x24xbf16>, vector<32x24xf32> -> vector<32x24xf32>
    %41 = arith.addf %36, %40 : vector<32x24xf32>
    %c0_50 = arith.constant 0 : index
    %c7_51 = arith.constant 7 : index
    %c0_52 = arith.constant 0 : index
    %c0_53 = arith.constant 0 : index
    %42 = vector.load %arg2[%c0_50, %c7_51, %c0_52, %c0_53] : memref<1x9x32x32xbf16, #tpu.memory_space<vmem>>, vector<1x1x32x32xbf16>
    %43 = vector.shape_cast %42 : vector<1x1x32x32xbf16> to vector<32x32xbf16>
    %c0_54 = arith.constant 0 : index
    %c13 = arith.constant 13 : index
    %44 = vector.load %arg11[%c0_54, %c13] : memref<32x38xbf16, #tpu.memory_space<vmem>>, vector<32x24xbf16>
    %cst_55 = arith.constant dense<0.000000e+00> : vector<32x24xf32>
    %45 = tpu.matmul %43, %44, %cst_55 {dimension_numbers = #tpu.dot_dimension_numbers<[1], [0], [0], [1], [0, 0, 1, 1], [], []>} : vector<32x32xbf16>, vector<32x24xbf16>, vector<32x24xf32> -> vector<32x24xf32>
    %46 = arith.addf %41, %45 : vector<32x24xf32>
    %c0_56 = arith.constant 0 : index
    %c8_57 = arith.constant 8 : index
    %c0_58 = arith.constant 0 : index
    %c0_59 = arith.constant 0 : index
    %47 = vector.load %arg2[%c0_56, %c8_57, %c0_58, %c0_59] : memref<1x9x32x32xbf16, #tpu.memory_space<vmem>>, vector<1x1x32x32xbf16>
    %48 = vector.shape_cast %47 : vector<1x1x32x32xbf16> to vector<32x32xbf16>
    %c0_60 = arith.constant 0 : index
    %c14 = arith.constant 14 : index
    %49 = vector.load %arg11[%c0_60, %c14] : memref<32x38xbf16, #tpu.memory_space<vmem>>, vector<32x24xbf16>
    %cst_61 = arith.constant dense<0.000000e+00> : vector<32x24xf32>
    %50 = tpu.matmul %48, %49, %cst_61 {dimension_numbers = #tpu.dot_dimension_numbers<[1], [0], [0], [1], [0, 0, 1, 1], [], []>} : vector<32x32xbf16>, vector<32x24xbf16>, vector<32x24xf32> -> vector<32x24xf32>
    %51 = arith.addf %46, %50 : vector<32x24xf32>
    %c0_62 = arith.constant 0 : index
    %c0_63 = arith.constant 0 : index
    %52 = vector.load %arg3[%c0_62, %c0_63] : memref<32x1xf32, #tpu.memory_space<vmem>>, vector<32x1xf32>
    %53 = vector.broadcast %52 : vector<32x1xf32> to vector<32x24xf32>
    %54 = arith.addf %51, %53 : vector<32x24xf32>
    %cst_64 = arith.constant 2.000000e-01 : f32
    %55 = vector.broadcast %cst_64 : f32 to vector<32x24xf32>
    %56 = arith.mulf %55, %54 : vector<32x24xf32>
    %57 = arith.maximumf %54, %56 : vector<32x24xf32>
    %58 = vector.broadcast %0 : vector<1x24xf32> to vector<32x24xf32>
    %59 = arith.mulf %57, %58 : vector<32x24xf32>
    %60 = arith.truncf %59 : vector<32x24xf32> to vector<32x24xbf16>
    %cst_65 = arith.constant 0.000000e+00 : bf16
    %61 = vector.broadcast %cst_65 : bf16 to vector<32x7xbf16>
    %c0_66 = arith.constant 0 : index
    %c0_67 = arith.constant 0 : index
    %62 = vector.load %arg12[%c0_66, %c0_67] : memref<32x38xbf16, #tpu.memory_space<vmem>>, vector<32x7xbf16>
    tpu.vector_store %arg12[%c0_66, %c0_67], %61 {strides = array<i32>} : memref<32x38xbf16, #tpu.memory_space<vmem>>, vector<32x7xbf16>,
    %cst_68 = arith.constant 0.000000e+00 : bf16
    %63 = vector.broadcast %cst_68 : bf16 to vector<32x7xbf16>
    %c0_69 = arith.constant 0 : index
    %c31_70 = arith.constant 31 : index
    %64 = vector.load %arg12[%c0_69, %c31_70] : memref<32x38xbf16, #tpu.memory_space<vmem>>, vector<32x7xbf16>
    tpu.vector_store %arg12[%c0_69, %c31_70], %63 {strides = array<i32>} : memref<32x38xbf16, #tpu.memory_space<vmem>>, vector<32x7xbf16>,
    %c0_71 = arith.constant 0 : index
    %c7_72 = arith.constant 7 : index
    %65 = vector.load %arg12[%c0_71, %c7_72] : memref<32x38xbf16, #tpu.memory_space<vmem>>, vector<32x24xbf16>
    tpu.vector_store %arg12[%c0_71, %c7_72], %60 {strides = array<i32>} : memref<32x38xbf16, #tpu.memory_space<vmem>>, vector<32x24xbf16>,
    %c0_73 = arith.constant 0 : index
    %c0_74 = arith.constant 0 : index
    %c0_75 = arith.constant 0 : index
    %c0_76 = arith.constant 0 : index
    %66 = vector.load %arg4[%c0_73, %c0_74, %c0_75, %c0_76] : memref<1x9x32x32xbf16, #tpu.memory_space<vmem>>, vector<1x1x32x32xbf16>
    %67 = vector.shape_cast %66 : vector<1x1x32x32xbf16> to vector<32x32xbf16>
    %c0_77 = arith.constant 0 : index
    %c0_78 = arith.constant 0 : index
    %68 = vector.load %arg12[%c0_77, %c0_78] : memref<32x38xbf16, #tpu.memory_space<vmem>>, vector<32x24xbf16>
    %cst_79 = arith.constant dense<0.000000e+00> : vector<32x24xf32>
    %69 = tpu.matmul %67, %68, %cst_79 {dimension_numbers = #tpu.dot_dimension_numbers<[1], [0], [0], [1], [0, 0, 1, 1], [], []>} : vector<32x32xbf16>, vector<32x24xbf16>, vector<32x24xf32> -> vector<32x24xf32>
    %c0_80 = arith.constant 0 : index
    %c1_81 = arith.constant 1 : index
    %c0_82 = arith.constant 0 : index
    %c0_83 = arith.constant 0 : index
    %70 = vector.load %arg4[%c0_80, %c1_81, %c0_82, %c0_83] : memref<1x9x32x32xbf16, #tpu.memory_space<vmem>>, vector<1x1x32x32xbf16>
    %71 = vector.shape_cast %70 : vector<1x1x32x32xbf16> to vector<32x32xbf16>
    %c0_84 = arith.constant 0 : index
    %c1_85 = arith.constant 1 : index
    %72 = vector.load %arg12[%c0_84, %c1_85] : memref<32x38xbf16, #tpu.memory_space<vmem>>, vector<32x24xbf16>
    %cst_86 = arith.constant dense<0.000000e+00> : vector<32x24xf32>
    %73 = tpu.matmul %71, %72, %cst_86 {dimension_numbers = #tpu.dot_dimension_numbers<[1], [0], [0], [1], [0, 0, 1, 1], [], []>} : vector<32x32xbf16>, vector<32x24xbf16>, vector<32x24xf32> -> vector<32x24xf32>
    %74 = arith.addf %69, %73 : vector<32x24xf32>
    %c0_87 = arith.constant 0 : index
    %c2_88 = arith.constant 2 : index
    %c0_89 = arith.constant 0 : index
    %c0_90 = arith.constant 0 : index
    %75 = vector.load %arg4[%c0_87, %c2_88, %c0_89, %c0_90] : memref<1x9x32x32xbf16, #tpu.memory_space<vmem>>, vector<1x1x32x32xbf16>
    %76 = vector.shape_cast %75 : vector<1x1x32x32xbf16> to vector<32x32xbf16>
    %c0_91 = arith.constant 0 : index
    %c2_92 = arith.constant 2 : index
    %77 = vector.load %arg12[%c0_91, %c2_92] : memref<32x38xbf16, #tpu.memory_space<vmem>>, vector<32x24xbf16>
    %cst_93 = arith.constant dense<0.000000e+00> : vector<32x24xf32>
    %78 = tpu.matmul %76, %77, %cst_93 {dimension_numbers = #tpu.dot_dimension_numbers<[1], [0], [0], [1], [0, 0, 1, 1], [], []>} : vector<32x32xbf16>, vector<32x24xbf16>, vector<32x24xf32> -> vector<32x24xf32>
    %79 = arith.addf %74, %78 : vector<32x24xf32>
    %c0_94 = arith.constant 0 : index
    %c3_95 = arith.constant 3 : index
    %c0_96 = arith.constant 0 : index
    %c0_97 = arith.constant 0 : index
    %80 = vector.load %arg4[%c0_94, %c3_95, %c0_96, %c0_97] : memref<1x9x32x32xbf16, #tpu.memory_space<vmem>>, vector<1x1x32x32xbf16>
    %81 = vector.shape_cast %80 : vector<1x1x32x32xbf16> to vector<32x32xbf16>
    %c0_98 = arith.constant 0 : index
    %c6_99 = arith.constant 6 : index
    %82 = vector.load %arg12[%c0_98, %c6_99] : memref<32x38xbf16, #tpu.memory_space<vmem>>, vector<32x24xbf16>
    %cst_100 = arith.constant dense<0.000000e+00> : vector<32x24xf32>
    %83 = tpu.matmul %81, %82, %cst_100 {dimension_numbers = #tpu.dot_dimension_numbers<[1], [0], [0], [1], [0, 0, 1, 1], [], []>} : vector<32x32xbf16>, vector<32x24xbf16>, vector<32x24xf32> -> vector<32x24xf32>
    %84 = arith.addf %79, %83 : vector<32x24xf32>
    %c0_101 = arith.constant 0 : index
    %c4_102 = arith.constant 4 : index
    %c0_103 = arith.constant 0 : index
    %c0_104 = arith.constant 0 : index
    %85 = vector.load %arg4[%c0_101, %c4_102, %c0_103, %c0_104] : memref<1x9x32x32xbf16, #tpu.memory_space<vmem>>, vector<1x1x32x32xbf16>
    %86 = vector.shape_cast %85 : vector<1x1x32x32xbf16> to vector<32x32xbf16>
    %c0_105 = arith.constant 0 : index
    %c7_106 = arith.constant 7 : index
    %87 = vector.load %arg12[%c0_105, %c7_106] : memref<32x38xbf16, #tpu.memory_space<vmem>>, vector<32x24xbf16>
    %cst_107 = arith.constant dense<0.000000e+00> : vector<32x24xf32>
    %88 = tpu.matmul %86, %87, %cst_107 {dimension_numbers = #tpu.dot_dimension_numbers<[1], [0], [0], [1], [0, 0, 1, 1], [], []>} : vector<32x32xbf16>, vector<32x24xbf16>, vector<32x24xf32> -> vector<32x24xf32>
    %89 = arith.addf %84, %88 : vector<32x24xf32>
    %c0_108 = arith.constant 0 : index
    %c5_109 = arith.constant 5 : index
    %c0_110 = arith.constant 0 : index
    %c0_111 = arith.constant 0 : index
    %90 = vector.load %arg4[%c0_108, %c5_109, %c0_110, %c0_111] : memref<1x9x32x32xbf16, #tpu.memory_space<vmem>>, vector<1x1x32x32xbf16>
    %91 = vector.shape_cast %90 : vector<1x1x32x32xbf16> to vector<32x32xbf16>
    %c0_112 = arith.constant 0 : index
    %c8_113 = arith.constant 8 : index
    %92 = vector.load %arg12[%c0_112, %c8_113] : memref<32x38xbf16, #tpu.memory_space<vmem>>, vector<32x24xbf16>
    %cst_114 = arith.constant dense<0.000000e+00> : vector<32x24xf32>
    %93 = tpu.matmul %91, %92, %cst_114 {dimension_numbers = #tpu.dot_dimension_numbers<[1], [0], [0], [1], [0, 0, 1, 1], [], []>} : vector<32x32xbf16>, vector<32x24xbf16>, vector<32x24xf32> -> vector<32x24xf32>
    %94 = arith.addf %89, %93 : vector<32x24xf32>
    %c0_115 = arith.constant 0 : index
    %c6_116 = arith.constant 6 : index
    %c0_117 = arith.constant 0 : index
    %c0_118 = arith.constant 0 : index
    %95 = vector.load %arg4[%c0_115, %c6_116, %c0_117, %c0_118] : memref<1x9x32x32xbf16, #tpu.memory_space<vmem>>, vector<1x1x32x32xbf16>
    %96 = vector.shape_cast %95 : vector<1x1x32x32xbf16> to vector<32x32xbf16>
    %c0_119 = arith.constant 0 : index
    %c12_120 = arith.constant 12 : index
    %97 = vector.load %arg12[%c0_119, %c12_120] : memref<32x38xbf16, #tpu.memory_space<vmem>>, vector<32x24xbf16>
    %cst_121 = arith.constant dense<0.000000e+00> : vector<32x24xf32>
    %98 = tpu.matmul %96, %97, %cst_121 {dimension_numbers = #tpu.dot_dimension_numbers<[1], [0], [0], [1], [0, 0, 1, 1], [], []>} : vector<32x32xbf16>, vector<32x24xbf16>, vector<32x24xf32> -> vector<32x24xf32>
    %99 = arith.addf %94, %98 : vector<32x24xf32>
    %c0_122 = arith.constant 0 : index
    %c7_123 = arith.constant 7 : index
    %c0_124 = arith.constant 0 : index
    %c0_125 = arith.constant 0 : index
    %100 = vector.load %arg4[%c0_122, %c7_123, %c0_124, %c0_125] : memref<1x9x32x32xbf16, #tpu.memory_space<vmem>>, vector<1x1x32x32xbf16>
    %101 = vector.shape_cast %100 : vector<1x1x32x32xbf16> to vector<32x32xbf16>
    %c0_126 = arith.constant 0 : index
    %c13_127 = arith.constant 13 : index
    %102 = vector.load %arg12[%c0_126, %c13_127] : memref<32x38xbf16, #tpu.memory_space<vmem>>, vector<32x24xbf16>
    %cst_128 = arith.constant dense<0.000000e+00> : vector<32x24xf32>
    %103 = tpu.matmul %101, %102, %cst_128 {dimension_numbers = #tpu.dot_dimension_numbers<[1], [0], [0], [1], [0, 0, 1, 1], [], []>} : vector<32x32xbf16>, vector<32x24xbf16>, vector<32x24xf32> -> vector<32x24xf32>
    %104 = arith.addf %99, %103 : vector<32x24xf32>
    %c0_129 = arith.constant 0 : index
    %c8_130 = arith.constant 8 : index
    %c0_131 = arith.constant 0 : index
    %c0_132 = arith.constant 0 : index
    %105 = vector.load %arg4[%c0_129, %c8_130, %c0_131, %c0_132] : memref<1x9x32x32xbf16, #tpu.memory_space<vmem>>, vector<1x1x32x32xbf16>
    %106 = vector.shape_cast %105 : vector<1x1x32x32xbf16> to vector<32x32xbf16>
    %c0_133 = arith.constant 0 : index
    %c14_134 = arith.constant 14 : index
    %107 = vector.load %arg12[%c0_133, %c14_134] : memref<32x38xbf16, #tpu.memory_space<vmem>>, vector<32x24xbf16>
    %cst_135 = arith.constant dense<0.000000e+00> : vector<32x24xf32>
    %108 = tpu.matmul %106, %107, %cst_135 {dimension_numbers = #tpu.dot_dimension_numbers<[1], [0], [0], [1], [0, 0, 1, 1], [], []>} : vector<32x32xbf16>, vector<32x24xbf16>, vector<32x24xf32> -> vector<32x24xf32>
    %109 = arith.addf %104, %108 : vector<32x24xf32>
    %c0_136 = arith.constant 0 : index
    %c0_137 = arith.constant 0 : index
    %110 = vector.load %arg5[%c0_136, %c0_137] : memref<32x1xf32, #tpu.memory_space<vmem>>, vector<32x1xf32>
    %111 = vector.broadcast %110 : vector<32x1xf32> to vector<32x24xf32>
    %112 = arith.addf %109, %111 : vector<32x24xf32>
    %cst_138 = arith.constant 2.000000e-01 : f32
    %113 = vector.broadcast %cst_138 : f32 to vector<32x24xf32>
    %114 = arith.mulf %113, %112 : vector<32x24xf32>
    %115 = arith.maximumf %112, %114 : vector<32x24xf32>
    %116 = vector.broadcast %0 : vector<1x24xf32> to vector<32x24xf32>
    %117 = arith.mulf %115, %116 : vector<32x24xf32>
    %118 = arith.truncf %117 : vector<32x24xf32> to vector<32x24xbf16>
    %c0_139 = arith.constant 0 : index
    %c0_140 = arith.constant 0 : index
    %c0_141 = arith.constant 0 : index
    %119 = vector.load %arg9[%c0_139, %c0_140, %c0_141] : memref<1x32x24xbf16, #tpu.memory_space<vmem>>, vector<1x32x24xbf16>
    %120 = vector.shape_cast %119 : vector<1x32x24xbf16> to vector<32x24xbf16>
    %121 = vector.shape_cast %118 : vector<32x24xbf16> to vector<1x32x24xbf16>
    tpu.vector_store %arg9[%c0_139, %c0_140, %c0_141], %121 {strides = array<i32>} : memref<1x32x24xbf16, #tpu.memory_space<vmem>>, vector<1x32x24xbf16>,
    %c0_142 = arith.constant 0 : index
    %c0_143 = arith.constant 0 : index
    %c0_144 = arith.constant 0 : index
    %122 = vector.load %arg6[%c0_142, %c0_143, %c0_144] : memref<1x4x32xbf16, #tpu.memory_space<vmem>>, vector<1x4x32xbf16>
    %123 = vector.shape_cast %122 : vector<1x4x32xbf16> to vector<4x32xbf16>
    %cst_145 = arith.constant dense<0.000000e+00> : vector<4x24xf32>
    %124 = tpu.matmul %123, %118, %cst_145 {dimension_numbers = #tpu.dot_dimension_numbers<[1], [0], [0], [1], [0, 0, 1, 1], [], []>} : vector<4x32xbf16>, vector<32x24xbf16>, vector<4x24xf32> -> vector<4x24xf32>
    %c0_146 = arith.constant 0 : index
    %c0_147 = arith.constant 0 : index
    %125 = vector.load %arg7[%c0_146, %c0_147] : memref<4x1xf32, #tpu.memory_space<vmem>>, vector<4x1xf32>
    %126 = vector.broadcast %125 : vector<4x1xf32> to vector<4x24xf32>
    %127 = arith.addf %124, %126 : vector<4x24xf32>
    %128 = vector.extract_strided_slice %127 {offsets = [0, 0], sizes = [3, 24], strides = [1, 1]} : vector<4x24xf32> to vector<3x24xf32>
    %129 = vector.broadcast %0 : vector<1x24xf32> to vector<3x24xf32>
    %130 = arith.mulf %128, %129 : vector<3x24xf32>
    %c0_148 = arith.constant 0 : index
    %c0_149 = arith.constant 0 : index
    %c0_150 = arith.constant 0 : index
    %131 = vector.load %arg10[%c0_148, %c0_149, %c0_150] : memref<1x4x24xf32, #tpu.memory_space<vmem>>, vector<1x3x24xf32>
    %132 = vector.shape_cast %131 : vector<1x3x24xf32> to vector<3x24xf32>
    %133 = vector.shape_cast %130 : vector<3x24xf32> to vector<1x3x24xf32>
    tpu.vector_store %arg10[%c0_148, %c0_149, %c0_150], %133 {strides = array<i32>} : memref<1x4x24xf32, #tpu.memory_space<vmem>>, vector<1x3x24xf32>,
    %134 = vector.extract_strided_slice %127 {offsets = [3, 0], sizes = [1, 24], strides = [1, 1]} : vector<4x24xf32> to vector<1x24xf32>
    %135 = arith.negf %134 : vector<1x24xf32>
    %136 = math.exp %135 : vector<1x24xf32>
    %cst_151 = arith.constant 1.000000e+00 : f32
    %137 = vector.broadcast %cst_151 : f32 to vector<1x24xf32>
    %138 = arith.addf %137, %136 : vector<1x24xf32>
    %139 = arith.divf %137, %138 : vector<1x24xf32>
    %140 = arith.mulf %139, %0 : vector<1x24xf32>
    %c0_152 = arith.constant 0 : index
    %c3_153 = arith.constant 3 : index
    %c0_154 = arith.constant 0 : index
    %141 = vector.load %arg10[%c0_152, %c3_153, %c0_154] : memref<1x4x24xf32, #tpu.memory_space<vmem>>, vector<1x1x24xf32>
    %142 = vector.shape_cast %141 : vector<1x1x24xf32> to vector<1x24xf32>
    %143 = vector.shape_cast %140 : vector<1x24xf32> to vector<1x1x24xf32>
    tpu.vector_store %arg10[%c0_152, %c3_153, %c0_154], %143 {strides = array<i32>} : memref<1x4x24xf32, #tpu.memory_space<vmem>>, vector<1x1x24xf32>,
    return
  }
  func.func @transform_0(%arg0: i32) -> (i32, i32, i32) {
    %c0_i32 = arith.constant 0 : i32
    %c0_i32_0 = arith.constant 0 : i32
    %c0_i32_1 = arith.constant 0 : i32
    return %arg0, %c0_i32, %c0_i32_0 : i32, i32, i32
  }
  func.func @transform_1(%arg0: i32) -> (i32, i32, i32, i32) {
    %c0_i32 = arith.constant 0 : i32
    %c0_i32_0 = arith.constant 0 : i32
    %c0_i32_1 = arith.constant 0 : i32
    %c0_i32_2 = arith.constant 0 : i32
    return %arg0, %c0_i32, %c0_i32_0, %c0_i32_1 : i32, i32, i32, i32
  }
  func.func @transform_2(%arg0: i32) -> (i32, i32) {
    %c0_i32 = arith.constant 0 : i32
    %c0_i32_0 = arith.constant 0 : i32
    %c0_i32_1 = arith.constant 0 : i32
    return %c0_i32, %c0_i32_0 : i32, i32
  }
  func.func @transform_3(%arg0: i32) -> (i32, i32, i32, i32) {
    %c0_i32 = arith.constant 0 : i32
    %c0_i32_0 = arith.constant 0 : i32
    %c0_i32_1 = arith.constant 0 : i32
    %c0_i32_2 = arith.constant 0 : i32
    return %arg0, %c0_i32, %c0_i32_0, %c0_i32_1 : i32, i32, i32, i32
  }
  func.func @transform_4(%arg0: i32) -> (i32, i32) {
    %c0_i32 = arith.constant 0 : i32
    %c0_i32_0 = arith.constant 0 : i32
    %c0_i32_1 = arith.constant 0 : i32
    return %c0_i32, %c0_i32_0 : i32, i32
  }
  func.func @transform_5(%arg0: i32) -> (i32, i32, i32) {
    %c0_i32 = arith.constant 0 : i32
    %c0_i32_0 = arith.constant 0 : i32
    %c0_i32_1 = arith.constant 0 : i32
    return %arg0, %c0_i32, %c0_i32_0 : i32, i32, i32
  }
  func.func @transform_6(%arg0: i32) -> (i32, i32) {
    %c0_i32 = arith.constant 0 : i32
    %c0_i32_0 = arith.constant 0 : i32
    %c0_i32_1 = arith.constant 0 : i32
    return %c0_i32, %c0_i32_0 : i32, i32
  }
  func.func @transform_7(%arg0: i32) -> (i32, i32) {
    %c0_i32 = arith.constant 0 : i32
    %c0_i32_0 = arith.constant 0 : i32
    %c0_i32_1 = arith.constant 0 : i32
    return %c0_i32, %c0_i32_0 : i32, i32
  }
  func.func @transform_8(%arg0: i32) -> (i32, i32, i32) {
    %c0_i32 = arith.constant 0 : i32
    %c0_i32_0 = arith.constant 0 : i32
    %c0_i32_1 = arith.constant 0 : i32
    return %arg0, %c0_i32, %c0_i32_0 : i32, i32, i32
  }
  func.func @transform_9(%arg0: i32) -> (i32, i32, i32) {
    %c0_i32 = arith.constant 0 : i32
    %c0_i32_0 = arith.constant 0 : i32
    %c0_i32_1 = arith.constant 0 : i32
    return %arg0, %c0_i32, %c0_i32_0 : i32, i32, i32
  }
}

module attributes {stable_mosaic.version = 11 : i64} {
  func.func @_style_block_kernel(%arg0: i32, %arg1: memref<1x32x24xbf16, #tpu.memory_space<vmem>>, %arg2: memref<1x9x16x32xbf16, #tpu.memory_space<vmem>>, %arg3: memref<16x1xf32, #tpu.memory_space<vmem>>, %arg4: memref<1x9x16x16xbf16, #tpu.memory_space<vmem>>, %arg5: memref<16x1xf32, #tpu.memory_space<vmem>>, %arg6: memref<1x4x16xbf16, #tpu.memory_space<vmem>>, %arg7: memref<4x1xf32, #tpu.memory_space<vmem>>, %arg8: memref<1x80xf32, #tpu.memory_space<vmem>>, %arg9: memref<6x10xf32, #tpu.memory_space<vmem>>, %arg10: memref<1x4x24xf32, #tpu.memory_space<vmem>>, %arg11: memref<1x16x80xbf16, #tpu.memory_space<vmem>>, %arg12: memref<1x4x80xf32, #tpu.memory_space<vmem>>, %arg13: memref<32x102xbf16, #tpu.memory_space<vmem>>, %arg14: memref<16x102xbf16, #tpu.memory_space<vmem>>, %arg15: memref<4x80xf32, #tpu.memory_space<vmem>>) attributes {dimension_semantics = [#tpu.dimension_semantics<parallel>], iteration_bounds = array<i64: 2>, scalar_prefetch = 0 : i64, scratch_operands = 3 : i64, tpu.core_type = #tpu.core_type<tc>, window_params = [{transform_indices = @transform_0, window_bounds = array<i64: 1, 32, 24>}, {transform_indices = @transform_1, window_bounds = array<i64: 1, 9, 16, 32>}, {pipeline_mode = #tpu.pipeline_mode<synchronous>, transform_indices = @transform_2, window_bounds = array<i64: 16, 1>}, {transform_indices = @transform_3, window_bounds = array<i64: 1, 9, 16, 16>}, {pipeline_mode = #tpu.pipeline_mode<synchronous>, transform_indices = @transform_4, window_bounds = array<i64: 16, 1>}, {transform_indices = @transform_5, window_bounds = array<i64: 1, 4, 16>}, {pipeline_mode = #tpu.pipeline_mode<synchronous>, transform_indices = @transform_6, window_bounds = array<i64: 4, 1>}, {pipeline_mode = #tpu.pipeline_mode<synchronous>, transform_indices = @transform_7, window_bounds = array<i64: 1, 80>}, {pipeline_mode = #tpu.pipeline_mode<synchronous>, transform_indices = @transform_8, window_bounds = array<i64: 6, 10>}, {transform_indices = @transform_9, window_bounds = array<i64: 1, 4, 24>}, {transform_indices = @transform_10, window_bounds = array<i64: 1, 16, 80>}, {transform_indices = @transform_11, window_bounds = array<i64: 1, 4, 80>}]} {
    %c0 = arith.constant 0 : index
    %c0_0 = arith.constant 0 : index
    %0 = vector.load %arg8[%c0, %c0_0] : memref<1x80xf32, #tpu.memory_space<vmem>>, vector<1x80xf32>
    %cst = arith.constant 0.000000e+00 : bf16
    %1 = vector.broadcast %cst : bf16 to vector<32x11xbf16>
    %c0_1 = arith.constant 0 : index
    %c0_2 = arith.constant 0 : index
    %2 = vector.load %arg13[%c0_1, %c0_2] : memref<32x102xbf16, #tpu.memory_space<vmem>>, vector<32x11xbf16>
    tpu.vector_store %arg13[%c0_1, %c0_2], %1 {strides = array<i32>} : memref<32x102xbf16, #tpu.memory_space<vmem>>, vector<32x11xbf16>,
    %cst_3 = arith.constant 0.000000e+00 : bf16
    %3 = vector.broadcast %cst_3 : bf16 to vector<32x11xbf16>
    %c0_4 = arith.constant 0 : index
    %c91 = arith.constant 91 : index
    %4 = vector.load %arg13[%c0_4, %c91] : memref<32x102xbf16, #tpu.memory_space<vmem>>, vector<32x11xbf16>
    tpu.vector_store %arg13[%c0_4, %c91], %3 {strides = array<i32>} : memref<32x102xbf16, #tpu.memory_space<vmem>>, vector<32x11xbf16>,
    %c0_5 = arith.constant 0 : index
    %c0_6 = arith.constant 0 : index
    %c0_7 = arith.constant 0 : index
    %5 = vector.load %arg1[%c0_5, %c0_6, %c0_7] : memref<1x32x24xbf16, #tpu.memory_space<vmem>>, vector<1x32x24xbf16>
    %6 = vector.shape_cast %5 : vector<1x32x24xbf16> to vector<32x24xbf16>
    %c0_8 = arith.constant 0 : index
    %c0_9 = arith.constant 0 : index
    %7 = vector.load %arg9[%c0_8, %c0_9] : memref<6x10xf32, #tpu.memory_space<vmem>>, vector<6x10xf32>
    %8 = arith.truncf %7 : vector<6x10xf32> to vector<6x10xbf16>
    %9 = vector.extract_strided_slice %6 {offsets = [0, 0], sizes = [32, 6], strides = [1, 1]} : vector<32x24xbf16> to vector<32x6xbf16>
    %10 = arith.extf %9 : vector<32x6xbf16> to vector<32x6xf32>
    %11 = vector.extract_strided_slice %6 {offsets = [0, 0], sizes = [32, 6], strides = [1, 1]} : vector<32x24xbf16> to vector<32x6xbf16>
    %12 = arith.extf %11 : vector<32x6xbf16> to vector<32x6xf32>
    %cst_10 = arith.constant 7.500000e-01 : f32
    %13 = vector.broadcast %cst_10 : f32 to vector<32x6xf32>
    %14 = arith.mulf %13, %10 : vector<32x6xf32>
    %cst_11 = arith.constant 2.500000e-01 : f32
    %15 = vector.broadcast %cst_11 : f32 to vector<32x6xf32>
    %16 = arith.mulf %15, %12 : vector<32x6xf32>
    %17 = arith.addf %14, %16 : vector<32x6xf32>
    %18 = arith.truncf %17 : vector<32x6xf32> to vector<32x6xbf16>
    %cst_12 = arith.constant dense<0.000000e+00> : vector<32x10xf32>
    %19 = tpu.matmul %18, %8, %cst_12 {dimension_numbers = #tpu.dot_dimension_numbers<[1], [0], [0], [1], [0, 0, 1, 1], [], []>} : vector<32x6xbf16>, vector<6x10xbf16>, vector<32x10xf32> -> vector<32x10xf32>
    %20 = arith.truncf %19 : vector<32x10xf32> to vector<32x10xbf16>
    %c0_13 = arith.constant 0 : index
    %c11 = arith.constant 11 : index
    %21 = vector.load %arg13[%c0_13, %c11] : memref<32x102xbf16, #tpu.memory_space<vmem>>, vector<32x10xbf16>
    tpu.vector_store %arg13[%c0_13, %c11], %20 {strides = array<i32>} : memref<32x102xbf16, #tpu.memory_space<vmem>>, vector<32x10xbf16>,
    %22 = vector.extract_strided_slice %6 {offsets = [0, 0], sizes = [32, 6], strides = [1, 1]} : vector<32x24xbf16> to vector<32x6xbf16>
    %23 = arith.extf %22 : vector<32x6xbf16> to vector<32x6xf32>
    %24 = vector.extract_strided_slice %6 {offsets = [0, 6], sizes = [32, 6], strides = [1, 1]} : vector<32x24xbf16> to vector<32x6xbf16>
    %25 = arith.extf %24 : vector<32x6xbf16> to vector<32x6xf32>
    %cst_14 = arith.constant 7.500000e-01 : f32
    %26 = vector.broadcast %cst_14 : f32 to vector<32x6xf32>
    %27 = arith.mulf %26, %23 : vector<32x6xf32>
    %cst_15 = arith.constant 2.500000e-01 : f32
    %28 = vector.broadcast %cst_15 : f32 to vector<32x6xf32>
    %29 = arith.mulf %28, %25 : vector<32x6xf32>
    %30 = arith.addf %27, %29 : vector<32x6xf32>
    %31 = arith.truncf %30 : vector<32x6xf32> to vector<32x6xbf16>
    %cst_16 = arith.constant dense<0.000000e+00> : vector<32x10xf32>
    %32 = tpu.matmul %31, %8, %cst_16 {dimension_numbers = #tpu.dot_dimension_numbers<[1], [0], [0], [1], [0, 0, 1, 1], [], []>} : vector<32x6xbf16>, vector<6x10xbf16>, vector<32x10xf32> -> vector<32x10xf32>
    %33 = arith.truncf %32 : vector<32x10xf32> to vector<32x10xbf16>
    %c0_17 = arith.constant 0 : index
    %c21 = arith.constant 21 : index
    %34 = vector.load %arg13[%c0_17, %c21] : memref<32x102xbf16, #tpu.memory_space<vmem>>, vector<32x10xbf16>
    tpu.vector_store %arg13[%c0_17, %c21], %33 {strides = array<i32>} : memref<32x102xbf16, #tpu.memory_space<vmem>>, vector<32x10xbf16>,
    %35 = vector.extract_strided_slice %6 {offsets = [0, 6], sizes = [32, 6], strides = [1, 1]} : vector<32x24xbf16> to vector<32x6xbf16>
    %36 = arith.extf %35 : vector<32x6xbf16> to vector<32x6xf32>
    %37 = vector.extract_strided_slice %6 {offsets = [0, 0], sizes = [32, 6], strides = [1, 1]} : vector<32x24xbf16> to vector<32x6xbf16>
    %38 = arith.extf %37 : vector<32x6xbf16> to vector<32x6xf32>
    %cst_18 = arith.constant 7.500000e-01 : f32
    %39 = vector.broadcast %cst_18 : f32 to vector<32x6xf32>
    %40 = arith.mulf %39, %36 : vector<32x6xf32>
    %cst_19 = arith.constant 2.500000e-01 : f32
    %41 = vector.broadcast %cst_19 : f32 to vector<32x6xf32>
    %42 = arith.mulf %41, %38 : vector<32x6xf32>
    %43 = arith.addf %40, %42 : vector<32x6xf32>
    %44 = arith.truncf %43 : vector<32x6xf32> to vector<32x6xbf16>
    %cst_20 = arith.constant dense<0.000000e+00> : vector<32x10xf32>
    %45 = tpu.matmul %44, %8, %cst_20 {dimension_numbers = #tpu.dot_dimension_numbers<[1], [0], [0], [1], [0, 0, 1, 1], [], []>} : vector<32x6xbf16>, vector<6x10xbf16>, vector<32x10xf32> -> vector<32x10xf32>
    %46 = arith.truncf %45 : vector<32x10xf32> to vector<32x10xbf16>
    %c0_21 = arith.constant 0 : index
    %c31 = arith.constant 31 : index
    %47 = vector.load %arg13[%c0_21, %c31] : memref<32x102xbf16, #tpu.memory_space<vmem>>, vector<32x10xbf16>
    tpu.vector_store %arg13[%c0_21, %c31], %46 {strides = array<i32>} : memref<32x102xbf16, #tpu.memory_space<vmem>>, vector<32x10xbf16>,
    %48 = vector.extract_strided_slice %6 {offsets = [0, 6], sizes = [32, 6], strides = [1, 1]} : vector<32x24xbf16> to vector<32x6xbf16>
    %49 = arith.extf %48 : vector<32x6xbf16> to vector<32x6xf32>
    %50 = vector.extract_strided_slice %6 {offsets = [0, 12], sizes = [32, 6], strides = [1, 1]} : vector<32x24xbf16> to vector<32x6xbf16>
    %51 = arith.extf %50 : vector<32x6xbf16> to vector<32x6xf32>
    %cst_22 = arith.constant 7.500000e-01 : f32
    %52 = vector.broadcast %cst_22 : f32 to vector<32x6xf32>
    %53 = arith.mulf %52, %49 : vector<32x6xf32>
    %cst_23 = arith.constant 2.500000e-01 : f32
    %54 = vector.broadcast %cst_23 : f32 to vector<32x6xf32>
    %55 = arith.mulf %54, %51 : vector<32x6xf32>
    %56 = arith.addf %53, %55 : vector<32x6xf32>
    %57 = arith.truncf %56 : vector<32x6xf32> to vector<32x6xbf16>
    %cst_24 = arith.constant dense<0.000000e+00> : vector<32x10xf32>
    %58 = tpu.matmul %57, %8, %cst_24 {dimension_numbers = #tpu.dot_dimension_numbers<[1], [0], [0], [1], [0, 0, 1, 1], [], []>} : vector<32x6xbf16>, vector<6x10xbf16>, vector<32x10xf32> -> vector<32x10xf32>
    %59 = arith.truncf %58 : vector<32x10xf32> to vector<32x10xbf16>
    %c0_25 = arith.constant 0 : index
    %c41 = arith.constant 41 : index
    %60 = vector.load %arg13[%c0_25, %c41] : memref<32x102xbf16, #tpu.memory_space<vmem>>, vector<32x10xbf16>
    tpu.vector_store %arg13[%c0_25, %c41], %59 {strides = array<i32>} : memref<32x102xbf16, #tpu.memory_space<vmem>>, vector<32x10xbf16>,
    %61 = vector.extract_strided_slice %6 {offsets = [0, 12], sizes = [32, 6], strides = [1, 1]} : vector<32x24xbf16> to vector<32x6xbf16>
    %62 = arith.extf %61 : vector<32x6xbf16> to vector<32x6xf32>
    %63 = vector.extract_strided_slice %6 {offsets = [0, 6], sizes = [32, 6], strides = [1, 1]} : vector<32x24xbf16> to vector<32x6xbf16>
    %64 = arith.extf %63 : vector<32x6xbf16> to vector<32x6xf32>
    %cst_26 = arith.constant 7.500000e-01 : f32
    %65 = vector.broadcast %cst_26 : f32 to vector<32x6xf32>
    %66 = arith.mulf %65, %62 : vector<32x6xf32>
    %cst_27 = arith.constant 2.500000e-01 : f32
    %67 = vector.broadcast %cst_27 : f32 to vector<32x6xf32>
    %68 = arith.mulf %67, %64 : vector<32x6xf32>
    %69 = arith.addf %66, %68 : vector<32x6xf32>
    %70 = arith.truncf %69 : vector<32x6xf32> to vector<32x6xbf16>
    %cst_28 = arith.constant dense<0.000000e+00> : vector<32x10xf32>
    %71 = tpu.matmul %70, %8, %cst_28 {dimension_numbers = #tpu.dot_dimension_numbers<[1], [0], [0], [1], [0, 0, 1, 1], [], []>} : vector<32x6xbf16>, vector<6x10xbf16>, vector<32x10xf32> -> vector<32x10xf32>
    %72 = arith.truncf %71 : vector<32x10xf32> to vector<32x10xbf16>
    %c0_29 = arith.constant 0 : index
    %c51 = arith.constant 51 : index
    %73 = vector.load %arg13[%c0_29, %c51] : memref<32x102xbf16, #tpu.memory_space<vmem>>, vector<32x10xbf16>
    tpu.vector_store %arg13[%c0_29, %c51], %72 {strides = array<i32>} : memref<32x102xbf16, #tpu.memory_space<vmem>>, vector<32x10xbf16>,
    %74 = vector.extract_strided_slice %6 {offsets = [0, 12], sizes = [32, 6], strides = [1, 1]} : vector<32x24xbf16> to vector<32x6xbf16>
    %75 = arith.extf %74 : vector<32x6xbf16> to vector<32x6xf32>
    %76 = vector.extract_strided_slice %6 {offsets = [0, 18], sizes = [32, 6], strides = [1, 1]} : vector<32x24xbf16> to vector<32x6xbf16>
    %77 = arith.extf %76 : vector<32x6xbf16> to vector<32x6xf32>
    %cst_30 = arith.constant 7.500000e-01 : f32
    %78 = vector.broadcast %cst_30 : f32 to vector<32x6xf32>
    %79 = arith.mulf %78, %75 : vector<32x6xf32>
    %cst_31 = arith.constant 2.500000e-01 : f32
    %80 = vector.broadcast %cst_31 : f32 to vector<32x6xf32>
    %81 = arith.mulf %80, %77 : vector<32x6xf32>
    %82 = arith.addf %79, %81 : vector<32x6xf32>
    %83 = arith.truncf %82 : vector<32x6xf32> to vector<32x6xbf16>
    %cst_32 = arith.constant dense<0.000000e+00> : vector<32x10xf32>
    %84 = tpu.matmul %83, %8, %cst_32 {dimension_numbers = #tpu.dot_dimension_numbers<[1], [0], [0], [1], [0, 0, 1, 1], [], []>} : vector<32x6xbf16>, vector<6x10xbf16>, vector<32x10xf32> -> vector<32x10xf32>
    %85 = arith.truncf %84 : vector<32x10xf32> to vector<32x10xbf16>
    %c0_33 = arith.constant 0 : index
    %c61 = arith.constant 61 : index
    %86 = vector.load %arg13[%c0_33, %c61] : memref<32x102xbf16, #tpu.memory_space<vmem>>, vector<32x10xbf16>
    tpu.vector_store %arg13[%c0_33, %c61], %85 {strides = array<i32>} : memref<32x102xbf16, #tpu.memory_space<vmem>>, vector<32x10xbf16>,
    %87 = vector.extract_strided_slice %6 {offsets = [0, 18], sizes = [32, 6], strides = [1, 1]} : vector<32x24xbf16> to vector<32x6xbf16>
    %88 = arith.extf %87 : vector<32x6xbf16> to vector<32x6xf32>
    %89 = vector.extract_strided_slice %6 {offsets = [0, 12], sizes = [32, 6], strides = [1, 1]} : vector<32x24xbf16> to vector<32x6xbf16>
    %90 = arith.extf %89 : vector<32x6xbf16> to vector<32x6xf32>
    %cst_34 = arith.constant 7.500000e-01 : f32
    %91 = vector.broadcast %cst_34 : f32 to vector<32x6xf32>
    %92 = arith.mulf %91, %88 : vector<32x6xf32>
    %cst_35 = arith.constant 2.500000e-01 : f32
    %93 = vector.broadcast %cst_35 : f32 to vector<32x6xf32>
    %94 = arith.mulf %93, %90 : vector<32x6xf32>
    %95 = arith.addf %92, %94 : vector<32x6xf32>
    %96 = arith.truncf %95 : vector<32x6xf32> to vector<32x6xbf16>
    %cst_36 = arith.constant dense<0.000000e+00> : vector<32x10xf32>
    %97 = tpu.matmul %96, %8, %cst_36 {dimension_numbers = #tpu.dot_dimension_numbers<[1], [0], [0], [1], [0, 0, 1, 1], [], []>} : vector<32x6xbf16>, vector<6x10xbf16>, vector<32x10xf32> -> vector<32x10xf32>
    %98 = arith.truncf %97 : vector<32x10xf32> to vector<32x10xbf16>
    %c0_37 = arith.constant 0 : index
    %c71 = arith.constant 71 : index
    %99 = vector.load %arg13[%c0_37, %c71] : memref<32x102xbf16, #tpu.memory_space<vmem>>, vector<32x10xbf16>
    tpu.vector_store %arg13[%c0_37, %c71], %98 {strides = array<i32>} : memref<32x102xbf16, #tpu.memory_space<vmem>>, vector<32x10xbf16>,
    %100 = vector.extract_strided_slice %6 {offsets = [0, 18], sizes = [32, 6], strides = [1, 1]} : vector<32x24xbf16> to vector<32x6xbf16>
    %101 = arith.extf %100 : vector<32x6xbf16> to vector<32x6xf32>
    %102 = vector.extract_strided_slice %6 {offsets = [0, 18], sizes = [32, 6], strides = [1, 1]} : vector<32x24xbf16> to vector<32x6xbf16>
    %103 = arith.extf %102 : vector<32x6xbf16> to vector<32x6xf32>
    %cst_38 = arith.constant 7.500000e-01 : f32
    %104 = vector.broadcast %cst_38 : f32 to vector<32x6xf32>
    %105 = arith.mulf %104, %101 : vector<32x6xf32>
    %cst_39 = arith.constant 2.500000e-01 : f32
    %106 = vector.broadcast %cst_39 : f32 to vector<32x6xf32>
    %107 = arith.mulf %106, %103 : vector<32x6xf32>
    %108 = arith.addf %105, %107 : vector<32x6xf32>
    %109 = arith.truncf %108 : vector<32x6xf32> to vector<32x6xbf16>
    %cst_40 = arith.constant dense<0.000000e+00> : vector<32x10xf32>
    %110 = tpu.matmul %109, %8, %cst_40 {dimension_numbers = #tpu.dot_dimension_numbers<[1], [0], [0], [1], [0, 0, 1, 1], [], []>} : vector<32x6xbf16>, vector<6x10xbf16>, vector<32x10xf32> -> vector<32x10xf32>
    %111 = arith.truncf %110 : vector<32x10xf32> to vector<32x10xbf16>
    %c0_41 = arith.constant 0 : index
    %c81 = arith.constant 81 : index
    %112 = vector.load %arg13[%c0_41, %c81] : memref<32x102xbf16, #tpu.memory_space<vmem>>, vector<32x10xbf16>
    tpu.vector_store %arg13[%c0_41, %c81], %111 {strides = array<i32>} : memref<32x102xbf16, #tpu.memory_space<vmem>>, vector<32x10xbf16>,
    %c0_42 = arith.constant 0 : index
    %c0_43 = arith.constant 0 : index
    %c0_44 = arith.constant 0 : index
    %c0_45 = arith.constant 0 : index
    %113 = vector.load %arg2[%c0_42, %c0_43, %c0_44, %c0_45] : memref<1x9x16x32xbf16, #tpu.memory_space<vmem>>, vector<1x1x16x32xbf16>
    %114 = vector.shape_cast %113 : vector<1x1x16x32xbf16> to vector<16x32xbf16>
    %c0_46 = arith.constant 0 : index
    %c0_47 = arith.constant 0 : index
    %115 = vector.load %arg13[%c0_46, %c0_47] : memref<32x102xbf16, #tpu.memory_space<vmem>>, vector<32x80xbf16>
    %cst_48 = arith.constant dense<0.000000e+00> : vector<16x80xf32>
    %116 = tpu.matmul %114, %115, %cst_48 {dimension_numbers = #tpu.dot_dimension_numbers<[1], [0], [0], [1], [0, 0, 1, 1], [], []>} : vector<16x32xbf16>, vector<32x80xbf16>, vector<16x80xf32> -> vector<16x80xf32>
    %c0_49 = arith.constant 0 : index
    %c1 = arith.constant 1 : index
    %c0_50 = arith.constant 0 : index
    %c0_51 = arith.constant 0 : index
    %117 = vector.load %arg2[%c0_49, %c1, %c0_50, %c0_51] : memref<1x9x16x32xbf16, #tpu.memory_space<vmem>>, vector<1x1x16x32xbf16>
    %118 = vector.shape_cast %117 : vector<1x1x16x32xbf16> to vector<16x32xbf16>
    %c0_52 = arith.constant 0 : index
    %c1_53 = arith.constant 1 : index
    %119 = vector.load %arg13[%c0_52, %c1_53] : memref<32x102xbf16, #tpu.memory_space<vmem>>, vector<32x80xbf16>
    %cst_54 = arith.constant dense<0.000000e+00> : vector<16x80xf32>
    %120 = tpu.matmul %118, %119, %cst_54 {dimension_numbers = #tpu.dot_dimension_numbers<[1], [0], [0], [1], [0, 0, 1, 1], [], []>} : vector<16x32xbf16>, vector<32x80xbf16>, vector<16x80xf32> -> vector<16x80xf32>
    %121 = arith.addf %116, %120 : vector<16x80xf32>
    %c0_55 = arith.constant 0 : index
    %c2 = arith.constant 2 : index
    %c0_56 = arith.constant 0 : index
    %c0_57 = arith.constant 0 : index
    %122 = vector.load %arg2[%c0_55, %c2, %c0_56, %c0_57] : memref<1x9x16x32xbf16, #tpu.memory_space<vmem>>, vector<1x1x16x32xbf16>
    %123 = vector.shape_cast %122 : vector<1x1x16x32xbf16> to vector<16x32xbf16>
    %c0_58 = arith.constant 0 : index
    %c2_59 = arith.constant 2 : index
    %124 = vector.load %arg13[%c0_58, %c2_59] : memref<32x102xbf16, #tpu.memory_space<vmem>>, vector<32x80xbf16>
    %cst_60 = arith.constant dense<0.000000e+00> : vector<16x80xf32>
    %125 = tpu.matmul %123, %124, %cst_60 {dimension_numbers = #tpu.dot_dimension_numbers<[1], [0], [0], [1], [0, 0, 1, 1], [], []>} : vector<16x32xbf16>, vector<32x80xbf16>, vector<16x80xf32> -> vector<16x80xf32>
    %126 = arith.addf %121, %125 : vector<16x80xf32>
    %c0_61 = arith.constant 0 : index
    %c3 = arith.constant 3 : index
    %c0_62 = arith.constant 0 : index
    %c0_63 = arith.constant 0 : index
    %127 = vector.load %arg2[%c0_61, %c3, %c0_62, %c0_63] : memref<1x9x16x32xbf16, #tpu.memory_space<vmem>>, vector<1x1x16x32xbf16>
    %128 = vector.shape_cast %127 : vector<1x1x16x32xbf16> to vector<16x32xbf16>
    %c0_64 = arith.constant 0 : index
    %c10 = arith.constant 10 : index
    %129 = vector.load %arg13[%c0_64, %c10] : memref<32x102xbf16, #tpu.memory_space<vmem>>, vector<32x80xbf16>
    %cst_65 = arith.constant dense<0.000000e+00> : vector<16x80xf32>
    %130 = tpu.matmul %128, %129, %cst_65 {dimension_numbers = #tpu.dot_dimension_numbers<[1], [0], [0], [1], [0, 0, 1, 1], [], []>} : vector<16x32xbf16>, vector<32x80xbf16>, vector<16x80xf32> -> vector<16x80xf32>
    %131 = arith.addf %126, %130 : vector<16x80xf32>
    %c0_66 = arith.constant 0 : index
    %c4 = arith.constant 4 : index
    %c0_67 = arith.constant 0 : index
    %c0_68 = arith.constant 0 : index
    %132 = vector.load %arg2[%c0_66, %c4, %c0_67, %c0_68] : memref<1x9x16x32xbf16, #tpu.memory_space<vmem>>, vector<1x1x16x32xbf16>
    %133 = vector.shape_cast %132 : vector<1x1x16x32xbf16> to vector<16x32xbf16>
    %c0_69 = arith.constant 0 : index
    %c11_70 = arith.constant 11 : index
    %134 = vector.load %arg13[%c0_69, %c11_70] : memref<32x102xbf16, #tpu.memory_space<vmem>>, vector<32x80xbf16>
    %cst_71 = arith.constant dense<0.000000e+00> : vector<16x80xf32>
    %135 = tpu.matmul %133, %134, %cst_71 {dimension_numbers = #tpu.dot_dimension_numbers<[1], [0], [0], [1], [0, 0, 1, 1], [], []>} : vector<16x32xbf16>, vector<32x80xbf16>, vector<16x80xf32> -> vector<16x80xf32>
    %136 = arith.addf %131, %135 : vector<16x80xf32>
    %c0_72 = arith.constant 0 : index
    %c5 = arith.constant 5 : index
    %c0_73 = arith.constant 0 : index
    %c0_74 = arith.constant 0 : index
    %137 = vector.load %arg2[%c0_72, %c5, %c0_73, %c0_74] : memref<1x9x16x32xbf16, #tpu.memory_space<vmem>>, vector<1x1x16x32xbf16>
    %138 = vector.shape_cast %137 : vector<1x1x16x32xbf16> to vector<16x32xbf16>
    %c0_75 = arith.constant 0 : index
    %c12 = arith.constant 12 : index
    %139 = vector.load %arg13[%c0_75, %c12] : memref<32x102xbf16, #tpu.memory_space<vmem>>, vector<32x80xbf16>
    %cst_76 = arith.constant dense<0.000000e+00> : vector<16x80xf32>
    %140 = tpu.matmul %138, %139, %cst_76 {dimension_numbers = #tpu.dot_dimension_numbers<[1], [0], [0], [1], [0, 0, 1, 1], [], []>} : vector<16x32xbf16>, vector<32x80xbf16>, vector<16x80xf32> -> vector<16x80xf32>
    %141 = arith.addf %136, %140 : vector<16x80xf32>
    %c0_77 = arith.constant 0 : index
    %c6 = arith.constant 6 : index
    %c0_78 = arith.constant 0 : index
    %c0_79 = arith.constant 0 : index
    %142 = vector.load %arg2[%c0_77, %c6, %c0_78, %c0_79] : memref<1x9x16x32xbf16, #tpu.memory_space<vmem>>, vector<1x1x16x32xbf16>
    %143 = vector.shape_cast %142 : vector<1x1x16x32xbf16> to vector<16x32xbf16>
    %c0_80 = arith.constant 0 : index
    %c20 = arith.constant 20 : index
    %144 = vector.load %arg13[%c0_80, %c20] : memref<32x102xbf16, #tpu.memory_space<vmem>>, vector<32x80xbf16>
    %cst_81 = arith.constant dense<0.000000e+00> : vector<16x80xf32>
    %145 = tpu.matmul %143, %144, %cst_81 {dimension_numbers = #tpu.dot_dimension_numbers<[1], [0], [0], [1], [0, 0, 1, 1], [], []>} : vector<16x32xbf16>, vector<32x80xbf16>, vector<16x80xf32> -> vector<16x80xf32>
    %146 = arith.addf %141, %145 : vector<16x80xf32>
    %c0_82 = arith.constant 0 : index
    %c7 = arith.constant 7 : index
    %c0_83 = arith.constant 0 : index
    %c0_84 = arith.constant 0 : index
    %147 = vector.load %arg2[%c0_82, %c7, %c0_83, %c0_84] : memref<1x9x16x32xbf16, #tpu.memory_space<vmem>>, vector<1x1x16x32xbf16>
    %148 = vector.shape_cast %147 : vector<1x1x16x32xbf16> to vector<16x32xbf16>
    %c0_85 = arith.constant 0 : index
    %c21_86 = arith.constant 21 : index
    %149 = vector.load %arg13[%c0_85, %c21_86] : memref<32x102xbf16, #tpu.memory_space<vmem>>, vector<32x80xbf16>
    %cst_87 = arith.constant dense<0.000000e+00> : vector<16x80xf32>
    %150 = tpu.matmul %148, %149, %cst_87 {dimension_numbers = #tpu.dot_dimension_numbers<[1], [0], [0], [1], [0, 0, 1, 1], [], []>} : vector<16x32xbf16>, vector<32x80xbf16>, vector<16x80xf32> -> vector<16x80xf32>
    %151 = arith.addf %146, %150 : vector<16x80xf32>
    %c0_88 = arith.constant 0 : index
    %c8 = arith.constant 8 : index
    %c0_89 = arith.constant 0 : index
    %c0_90 = arith.constant 0 : index
    %152 = vector.load %arg2[%c0_88, %c8, %c0_89, %c0_90] : memref<1x9x16x32xbf16, #tpu.memory_space<vmem>>, vector<1x1x16x32xbf16>
    %153 = vector.shape_cast %152 : vector<1x1x16x32xbf16> to vector<16x32xbf16>
    %c0_91 = arith.constant 0 : index
    %c22 = arith.constant 22 : index
    %154 = vector.load %arg13[%c0_91, %c22] : memref<32x102xbf16, #tpu.memory_space<vmem>>, vector<32x80xbf16>
    %cst_92 = arith.constant dense<0.000000e+00> : vector<16x80xf32>
    %155 = tpu.matmul %153, %154, %cst_92 {dimension_numbers = #tpu.dot_dimension_numbers<[1], [0], [0], [1], [0, 0, 1, 1], [], []>} : vector<16x32xbf16>, vector<32x80xbf16>, vector<16x80xf32> -> vector<16x80xf32>
    %156 = arith.addf %151, %155 : vector<16x80xf32>
    %c0_93 = arith.constant 0 : index
    %c0_94 = arith.constant 0 : index
    %157 = vector.load %arg3[%c0_93, %c0_94] : memref<16x1xf32, #tpu.memory_space<vmem>>, vector<16x1xf32>
    %158 = vector.broadcast %157 : vector<16x1xf32> to vector<16x80xf32>
    %159 = arith.addf %156, %158 : vector<16x80xf32>
    %cst_95 = arith.constant 2.000000e-01 : f32
    %160 = vector.broadcast %cst_95 : f32 to vector<16x80xf32>
    %161 = arith.mulf %160, %159 : vector<16x80xf32>
    %162 = arith.maximumf %159, %161 : vector<16x80xf32>
    %163 = vector.broadcast %0 : vector<1x80xf32> to vector<16x80xf32>
    %164 = arith.mulf %162, %163 : vector<16x80xf32>
    %165 = arith.truncf %164 : vector<16x80xf32> to vector<16x80xbf16>
    %cst_96 = arith.constant 0.000000e+00 : bf16
    %166 = vector.broadcast %cst_96 : bf16 to vector<16x11xbf16>
    %c0_97 = arith.constant 0 : index
    %c0_98 = arith.constant 0 : index
    %167 = vector.load %arg14[%c0_97, %c0_98] : memref<16x102xbf16, #tpu.memory_space<vmem>>, vector<16x11xbf16>
    tpu.vector_store %arg14[%c0_97, %c0_98], %166 {strides = array<i32>} : memref<16x102xbf16, #tpu.memory_space<vmem>>, vector<16x11xbf16>,
    %cst_99 = arith.constant 0.000000e+00 : bf16
    %168 = vector.broadcast %cst_99 : bf16 to vector<16x11xbf16>
    %c0_100 = arith.constant 0 : index
    %c91_101 = arith.constant 91 : index
    %169 = vector.load %arg14[%c0_100, %c91_101] : memref<16x102xbf16, #tpu.memory_space<vmem>>, vector<16x11xbf16>
    tpu.vector_store %arg14[%c0_100, %c91_101], %168 {strides = array<i32>} : memref<16x102xbf16, #tpu.memory_space<vmem>>, vector<16x11xbf16>,
    %c0_102 = arith.constant 0 : index
    %c11_103 = arith.constant 11 : index
    %170 = vector.load %arg14[%c0_102, %c11_103] : memref<16x102xbf16, #tpu.memory_space<vmem>>, vector<16x80xbf16>
    tpu.vector_store %arg14[%c0_102, %c11_103], %165 {strides = array<i32>} : memref<16x102xbf16, #tpu.memory_space<vmem>>, vector<16x80xbf16>,
    %c0_104 = arith.constant 0 : index
    %c0_105 = arith.constant 0 : index
    %c0_106 = arith.constant 0 : index
    %c0_107 = arith.constant 0 : index
    %171 = vector.load %arg4[%c0_104, %c0_105, %c0_106, %c0_107] : memref<1x9x16x16xbf16, #tpu.memory_space<vmem>>, vector<1x1x16x16xbf16>
    %172 = vector.shape_cast %171 : vector<1x1x16x16xbf16> to vector<16x16xbf16>
    %c0_108 = arith.constant 0 : index
    %c0_109 = arith.constant 0 : index
    %173 = vector.load %arg14[%c0_108, %c0_109] : memref<16x102xbf16, #tpu.memory_space<vmem>>, vector<16x80xbf16>
    %cst_110 = arith.constant dense<0.000000e+00> : vector<16x80xf32>
    %174 = tpu.matmul %172, %173, %cst_110 {dimension_numbers = #tpu.dot_dimension_numbers<[1], [0], [0], [1], [0, 0, 1, 1], [], []>} : vector<16x16xbf16>, vector<16x80xbf16>, vector<16x80xf32> -> vector<16x80xf32>
    %c0_111 = arith.constant 0 : index
    %c1_112 = arith.constant 1 : index
    %c0_113 = arith.constant 0 : index
    %c0_114 = arith.constant 0 : index
    %175 = vector.load %arg4[%c0_111, %c1_112, %c0_113, %c0_114] : memref<1x9x16x16xbf16, #tpu.memory_space<vmem>>, vector<1x1x16x16xbf16>
    %176 = vector.shape_cast %175 : vector<1x1x16x16xbf16> to vector<16x16xbf16>
    %c0_115 = arith.constant 0 : index
    %c1_116 = arith.constant 1 : index
    %177 = vector.load %arg14[%c0_115, %c1_116] : memref<16x102xbf16, #tpu.memory_space<vmem>>, vector<16x80xbf16>
    %cst_117 = arith.constant dense<0.000000e+00> : vector<16x80xf32>
    %178 = tpu.matmul %176, %177, %cst_117 {dimension_numbers = #tpu.dot_dimension_numbers<[1], [0], [0], [1], [0, 0, 1, 1], [], []>} : vector<16x16xbf16>, vector<16x80xbf16>, vector<16x80xf32> -> vector<16x80xf32>
    %179 = arith.addf %174, %178 : vector<16x80xf32>
    %c0_118 = arith.constant 0 : index
    %c2_119 = arith.constant 2 : index
    %c0_120 = arith.constant 0 : index
    %c0_121 = arith.constant 0 : index
    %180 = vector.load %arg4[%c0_118, %c2_119, %c0_120, %c0_121] : memref<1x9x16x16xbf16, #tpu.memory_space<vmem>>, vector<1x1x16x16xbf16>
    %181 = vector.shape_cast %180 : vector<1x1x16x16xbf16> to vector<16x16xbf16>
    %c0_122 = arith.constant 0 : index
    %c2_123 = arith.constant 2 : index
    %182 = vector.load %arg14[%c0_122, %c2_123] : memref<16x102xbf16, #tpu.memory_space<vmem>>, vector<16x80xbf16>
    %cst_124 = arith.constant dense<0.000000e+00> : vector<16x80xf32>
    %183 = tpu.matmul %181, %182, %cst_124 {dimension_numbers = #tpu.dot_dimension_numbers<[1], [0], [0], [1], [0, 0, 1, 1], [], []>} : vector<16x16xbf16>, vector<16x80xbf16>, vector<16x80xf32> -> vector<16x80xf32>
    %184 = arith.addf %179, %183 : vector<16x80xf32>
    %c0_125 = arith.constant 0 : index
    %c3_126 = arith.constant 3 : index
    %c0_127 = arith.constant 0 : index
    %c0_128 = arith.constant 0 : index
    %185 = vector.load %arg4[%c0_125, %c3_126, %c0_127, %c0_128] : memref<1x9x16x16xbf16, #tpu.memory_space<vmem>>, vector<1x1x16x16xbf16>
    %186 = vector.shape_cast %185 : vector<1x1x16x16xbf16> to vector<16x16xbf16>
    %c0_129 = arith.constant 0 : index
    %c10_130 = arith.constant 10 : index
    %187 = vector.load %arg14[%c0_129, %c10_130] : memref<16x102xbf16, #tpu.memory_space<vmem>>, vector<16x80xbf16>
    %cst_131 = arith.constant dense<0.000000e+00> : vector<16x80xf32>
    %188 = tpu.matmul %186, %187, %cst_131 {dimension_numbers = #tpu.dot_dimension_numbers<[1], [0], [0], [1], [0, 0, 1, 1], [], []>} : vector<16x16xbf16>, vector<16x80xbf16>, vector<16x80xf32> -> vector<16x80xf32>
    %189 = arith.addf %184, %188 : vector<16x80xf32>
    %c0_132 = arith.constant 0 : index
    %c4_133 = arith.constant 4 : index
    %c0_134 = arith.constant 0 : index
    %c0_135 = arith.constant 0 : index
    %190 = vector.load %arg4[%c0_132, %c4_133, %c0_134, %c0_135] : memref<1x9x16x16xbf16, #tpu.memory_space<vmem>>, vector<1x1x16x16xbf16>
    %191 = vector.shape_cast %190 : vector<1x1x16x16xbf16> to vector<16x16xbf16>
    %c0_136 = arith.constant 0 : index
    %c11_137 = arith.constant 11 : index
    %192 = vector.load %arg14[%c0_136, %c11_137] : memref<16x102xbf16, #tpu.memory_space<vmem>>, vector<16x80xbf16>
    %cst_138 = arith.constant dense<0.000000e+00> : vector<16x80xf32>
    %193 = tpu.matmul %191, %192, %cst_138 {dimension_numbers = #tpu.dot_dimension_numbers<[1], [0], [0], [1], [0, 0, 1, 1], [], []>} : vector<16x16xbf16>, vector<16x80xbf16>, vector<16x80xf32> -> vector<16x80xf32>
    %194 = arith.addf %189, %193 : vector<16x80xf32>
    %c0_139 = arith.constant 0 : index
    %c5_140 = arith.constant 5 : index
    %c0_141 = arith.constant 0 : index
    %c0_142 = arith.constant 0 : index
    %195 = vector.load %arg4[%c0_139, %c5_140, %c0_141, %c0_142] : memref<1x9x16x16xbf16, #tpu.memory_space<vmem>>, vector<1x1x16x16xbf16>
    %196 = vector.shape_cast %195 : vector<1x1x16x16xbf16> to vector<16x16xbf16>
    %c0_143 = arith.constant 0 : index
    %c12_144 = arith.constant 12 : index
    %197 = vector.load %arg14[%c0_143, %c12_144] : memref<16x102xbf16, #tpu.memory_space<vmem>>, vector<16x80xbf16>
    %cst_145 = arith.constant dense<0.000000e+00> : vector<16x80xf32>
    %198 = tpu.matmul %196, %197, %cst_145 {dimension_numbers = #tpu.dot_dimension_numbers<[1], [0], [0], [1], [0, 0, 1, 1], [], []>} : vector<16x16xbf16>, vector<16x80xbf16>, vector<16x80xf32> -> vector<16x80xf32>
    %199 = arith.addf %194, %198 : vector<16x80xf32>
    %c0_146 = arith.constant 0 : index
    %c6_147 = arith.constant 6 : index
    %c0_148 = arith.constant 0 : index
    %c0_149 = arith.constant 0 : index
    %200 = vector.load %arg4[%c0_146, %c6_147, %c0_148, %c0_149] : memref<1x9x16x16xbf16, #tpu.memory_space<vmem>>, vector<1x1x16x16xbf16>
    %201 = vector.shape_cast %200 : vector<1x1x16x16xbf16> to vector<16x16xbf16>
    %c0_150 = arith.constant 0 : index
    %c20_151 = arith.constant 20 : index
    %202 = vector.load %arg14[%c0_150, %c20_151] : memref<16x102xbf16, #tpu.memory_space<vmem>>, vector<16x80xbf16>
    %cst_152 = arith.constant dense<0.000000e+00> : vector<16x80xf32>
    %203 = tpu.matmul %201, %202, %cst_152 {dimension_numbers = #tpu.dot_dimension_numbers<[1], [0], [0], [1], [0, 0, 1, 1], [], []>} : vector<16x16xbf16>, vector<16x80xbf16>, vector<16x80xf32> -> vector<16x80xf32>
    %204 = arith.addf %199, %203 : vector<16x80xf32>
    %c0_153 = arith.constant 0 : index
    %c7_154 = arith.constant 7 : index
    %c0_155 = arith.constant 0 : index
    %c0_156 = arith.constant 0 : index
    %205 = vector.load %arg4[%c0_153, %c7_154, %c0_155, %c0_156] : memref<1x9x16x16xbf16, #tpu.memory_space<vmem>>, vector<1x1x16x16xbf16>
    %206 = vector.shape_cast %205 : vector<1x1x16x16xbf16> to vector<16x16xbf16>
    %c0_157 = arith.constant 0 : index
    %c21_158 = arith.constant 21 : index
    %207 = vector.load %arg14[%c0_157, %c21_158] : memref<16x102xbf16, #tpu.memory_space<vmem>>, vector<16x80xbf16>
    %cst_159 = arith.constant dense<0.000000e+00> : vector<16x80xf32>
    %208 = tpu.matmul %206, %207, %cst_159 {dimension_numbers = #tpu.dot_dimension_numbers<[1], [0], [0], [1], [0, 0, 1, 1], [], []>} : vector<16x16xbf16>, vector<16x80xbf16>, vector<16x80xf32> -> vector<16x80xf32>
    %209 = arith.addf %204, %208 : vector<16x80xf32>
    %c0_160 = arith.constant 0 : index
    %c8_161 = arith.constant 8 : index
    %c0_162 = arith.constant 0 : index
    %c0_163 = arith.constant 0 : index
    %210 = vector.load %arg4[%c0_160, %c8_161, %c0_162, %c0_163] : memref<1x9x16x16xbf16, #tpu.memory_space<vmem>>, vector<1x1x16x16xbf16>
    %211 = vector.shape_cast %210 : vector<1x1x16x16xbf16> to vector<16x16xbf16>
    %c0_164 = arith.constant 0 : index
    %c22_165 = arith.constant 22 : index
    %212 = vector.load %arg14[%c0_164, %c22_165] : memref<16x102xbf16, #tpu.memory_space<vmem>>, vector<16x80xbf16>
    %cst_166 = arith.constant dense<0.000000e+00> : vector<16x80xf32>
    %213 = tpu.matmul %211, %212, %cst_166 {dimension_numbers = #tpu.dot_dimension_numbers<[1], [0], [0], [1], [0, 0, 1, 1], [], []>} : vector<16x16xbf16>, vector<16x80xbf16>, vector<16x80xf32> -> vector<16x80xf32>
    %214 = arith.addf %209, %213 : vector<16x80xf32>
    %c0_167 = arith.constant 0 : index
    %c0_168 = arith.constant 0 : index
    %215 = vector.load %arg5[%c0_167, %c0_168] : memref<16x1xf32, #tpu.memory_space<vmem>>, vector<16x1xf32>
    %216 = vector.broadcast %215 : vector<16x1xf32> to vector<16x80xf32>
    %217 = arith.addf %214, %216 : vector<16x80xf32>
    %cst_169 = arith.constant 2.000000e-01 : f32
    %218 = vector.broadcast %cst_169 : f32 to vector<16x80xf32>
    %219 = arith.mulf %218, %217 : vector<16x80xf32>
    %220 = arith.maximumf %217, %219 : vector<16x80xf32>
    %221 = vector.broadcast %0 : vector<1x80xf32> to vector<16x80xf32>
    %222 = arith.mulf %220, %221 : vector<16x80xf32>
    %223 = arith.truncf %222 : vector<16x80xf32> to vector<16x80xbf16>
    %c0_170 = arith.constant 0 : index
    %c0_171 = arith.constant 0 : index
    %c0_172 = arith.constant 0 : index
    %224 = vector.load %arg11[%c0_170, %c0_171, %c0_172] : memref<1x16x80xbf16, #tpu.memory_space<vmem>>, vector<1x16x80xbf16>
    %225 = vector.shape_cast %224 : vector<1x16x80xbf16> to vector<16x80xbf16>
    %226 = vector.shape_cast %223 : vector<16x80xbf16> to vector<1x16x80xbf16>
    tpu.vector_store %arg11[%c0_170, %c0_171, %c0_172], %226 {strides = array<i32>} : memref<1x16x80xbf16, #tpu.memory_space<vmem>>, vector<1x16x80xbf16>,
    %c0_173 = arith.constant 0 : index
    %c0_174 = arith.constant 0 : index
    %c0_175 = arith.constant 0 : index
    %227 = vector.load %arg6[%c0_173, %c0_174, %c0_175] : memref<1x4x16xbf16, #tpu.memory_space<vmem>>, vector<1x4x16xbf16>
    %228 = vector.shape_cast %227 : vector<1x4x16xbf16> to vector<4x16xbf16>
    %cst_176 = arith.constant dense<0.000000e+00> : vector<4x80xf32>
    %229 = tpu.matmul %228, %223, %cst_176 {dimension_numbers = #tpu.dot_dimension_numbers<[1], [0], [0], [1], [0, 0, 1, 1], [], []>} : vector<4x16xbf16>, vector<16x80xbf16>, vector<4x80xf32> -> vector<4x80xf32>
    %c0_177 = arith.constant 0 : index
    %c0_178 = arith.constant 0 : index
    %230 = vector.load %arg7[%c0_177, %c0_178] : memref<4x1xf32, #tpu.memory_space<vmem>>, vector<4x1xf32>
    %231 = vector.broadcast %230 : vector<4x1xf32> to vector<4x80xf32>
    %232 = arith.addf %229, %231 : vector<4x80xf32>
    %c0_179 = arith.constant 0 : index
    %c0_180 = arith.constant 0 : index
    %c0_181 = arith.constant 0 : index
    %233 = vector.load %arg10[%c0_179, %c0_180, %c0_181] : memref<1x4x24xf32, #tpu.memory_space<vmem>>, vector<1x4x24xf32>
    %234 = vector.shape_cast %233 : vector<1x4x24xf32> to vector<4x24xf32>
    %c0_182 = arith.constant 0 : index
    %c0_183 = arith.constant 0 : index
    %235 = vector.load %arg9[%c0_182, %c0_183] : memref<6x10xf32, #tpu.memory_space<vmem>>, vector<6x10xf32>
    %236 = vector.extract_strided_slice %234 {offsets = [0, 0], sizes = [4, 6], strides = [1, 1]} : vector<4x24xf32> to vector<4x6xf32>
    %237 = vector.extract_strided_slice %234 {offsets = [0, 0], sizes = [4, 6], strides = [1, 1]} : vector<4x24xf32> to vector<4x6xf32>
    %cst_184 = arith.constant 7.500000e-01 : f32
    %238 = vector.broadcast %cst_184 : f32 to vector<4x6xf32>
    %239 = arith.mulf %238, %236 : vector<4x6xf32>
    %cst_185 = arith.constant 2.500000e-01 : f32
    %240 = vector.broadcast %cst_185 : f32 to vector<4x6xf32>
    %241 = arith.mulf %240, %237 : vector<4x6xf32>
    %242 = arith.addf %239, %241 : vector<4x6xf32>
    %cst_186 = arith.constant dense<0.000000e+00> : vector<4x10xf32>
    %243 = tpu.matmul %242, %235, %cst_186 {dimension_numbers = #tpu.dot_dimension_numbers<[1], [0], [0], [1], [0, 0, 1, 1], [], []>} : vector<4x6xf32>, vector<6x10xf32>, vector<4x10xf32> -> vector<4x10xf32>
    %c0_187 = arith.constant 0 : index
    %c0_188 = arith.constant 0 : index
    %244 = vector.load %arg15[%c0_187, %c0_188] : memref<4x80xf32, #tpu.memory_space<vmem>>, vector<4x10xf32>
    tpu.vector_store %arg15[%c0_187, %c0_188], %243 {strides = array<i32>} : memref<4x80xf32, #tpu.memory_space<vmem>>, vector<4x10xf32>,
    %245 = vector.extract_strided_slice %234 {offsets = [0, 0], sizes = [4, 6], strides = [1, 1]} : vector<4x24xf32> to vector<4x6xf32>
    %246 = vector.extract_strided_slice %234 {offsets = [0, 6], sizes = [4, 6], strides = [1, 1]} : vector<4x24xf32> to vector<4x6xf32>
    %cst_189 = arith.constant 7.500000e-01 : f32
    %247 = vector.broadcast %cst_189 : f32 to vector<4x6xf32>
    %248 = arith.mulf %247, %245 : vector<4x6xf32>
    %cst_190 = arith.constant 2.500000e-01 : f32
    %249 = vector.broadcast %cst_190 : f32 to vector<4x6xf32>
    %250 = arith.mulf %249, %246 : vector<4x6xf32>
    %251 = arith.addf %248, %250 : vector<4x6xf32>
    %cst_191 = arith.constant dense<0.000000e+00> : vector<4x10xf32>
    %252 = tpu.matmul %251, %235, %cst_191 {dimension_numbers = #tpu.dot_dimension_numbers<[1], [0], [0], [1], [0, 0, 1, 1], [], []>} : vector<4x6xf32>, vector<6x10xf32>, vector<4x10xf32> -> vector<4x10xf32>
    %c0_192 = arith.constant 0 : index
    %c10_193 = arith.constant 10 : index
    %253 = vector.load %arg15[%c0_192, %c10_193] : memref<4x80xf32, #tpu.memory_space<vmem>>, vector<4x10xf32>
    tpu.vector_store %arg15[%c0_192, %c10_193], %252 {strides = array<i32>} : memref<4x80xf32, #tpu.memory_space<vmem>>, vector<4x10xf32>,
    %254 = vector.extract_strided_slice %234 {offsets = [0, 6], sizes = [4, 6], strides = [1, 1]} : vector<4x24xf32> to vector<4x6xf32>
    %255 = vector.extract_strided_slice %234 {offsets = [0, 0], sizes = [4, 6], strides = [1, 1]} : vector<4x24xf32> to vector<4x6xf32>
    %cst_194 = arith.constant 7.500000e-01 : f32
    %256 = vector.broadcast %cst_194 : f32 to vector<4x6xf32>
    %257 = arith.mulf %256, %254 : vector<4x6xf32>
    %cst_195 = arith.constant 2.500000e-01 : f32
    %258 = vector.broadcast %cst_195 : f32 to vector<4x6xf32>
    %259 = arith.mulf %258, %255 : vector<4x6xf32>
    %260 = arith.addf %257, %259 : vector<4x6xf32>
    %cst_196 = arith.constant dense<0.000000e+00> : vector<4x10xf32>
    %261 = tpu.matmul %260, %235, %cst_196 {dimension_numbers = #tpu.dot_dimension_numbers<[1], [0], [0], [1], [0, 0, 1, 1], [], []>} : vector<4x6xf32>, vector<6x10xf32>, vector<4x10xf32> -> vector<4x10xf32>
    %c0_197 = arith.constant 0 : index
    %c20_198 = arith.constant 20 : index
    %262 = vector.load %arg15[%c0_197, %c20_198] : memref<4x80xf32, #tpu.memory_space<vmem>>, vector<4x10xf32>
    tpu.vector_store %arg15[%c0_197, %c20_198], %261 {strides = array<i32>} : memref<4x80xf32, #tpu.memory_space<vmem>>, vector<4x10xf32>,
    %263 = vector.extract_strided_slice %234 {offsets = [0, 6], sizes = [4, 6], strides = [1, 1]} : vector<4x24xf32> to vector<4x6xf32>
    %264 = vector.extract_strided_slice %234 {offsets = [0, 12], sizes = [4, 6], strides = [1, 1]} : vector<4x24xf32> to vector<4x6xf32>
    %cst_199 = arith.constant 7.500000e-01 : f32
    %265 = vector.broadcast %cst_199 : f32 to vector<4x6xf32>
    %266 = arith.mulf %265, %263 : vector<4x6xf32>
    %cst_200 = arith.constant 2.500000e-01 : f32
    %267 = vector.broadcast %cst_200 : f32 to vector<4x6xf32>
    %268 = arith.mulf %267, %264 : vector<4x6xf32>
    %269 = arith.addf %266, %268 : vector<4x6xf32>
    %cst_201 = arith.constant dense<0.000000e+00> : vector<4x10xf32>
    %270 = tpu.matmul %269, %235, %cst_201 {dimension_numbers = #tpu.dot_dimension_numbers<[1], [0], [0], [1], [0, 0, 1, 1], [], []>} : vector<4x6xf32>, vector<6x10xf32>, vector<4x10xf32> -> vector<4x10xf32>
    %c0_202 = arith.constant 0 : index
    %c30 = arith.constant 30 : index
    %271 = vector.load %arg15[%c0_202, %c30] : memref<4x80xf32, #tpu.memory_space<vmem>>, vector<4x10xf32>
    tpu.vector_store %arg15[%c0_202, %c30], %270 {strides = array<i32>} : memref<4x80xf32, #tpu.memory_space<vmem>>, vector<4x10xf32>,
    %272 = vector.extract_strided_slice %234 {offsets = [0, 12], sizes = [4, 6], strides = [1, 1]} : vector<4x24xf32> to vector<4x6xf32>
    %273 = vector.extract_strided_slice %234 {offsets = [0, 6], sizes = [4, 6], strides = [1, 1]} : vector<4x24xf32> to vector<4x6xf32>
    %cst_203 = arith.constant 7.500000e-01 : f32
    %274 = vector.broadcast %cst_203 : f32 to vector<4x6xf32>
    %275 = arith.mulf %274, %272 : vector<4x6xf32>
    %cst_204 = arith.constant 2.500000e-01 : f32
    %276 = vector.broadcast %cst_204 : f32 to vector<4x6xf32>
    %277 = arith.mulf %276, %273 : vector<4x6xf32>
    %278 = arith.addf %275, %277 : vector<4x6xf32>
    %cst_205 = arith.constant dense<0.000000e+00> : vector<4x10xf32>
    %279 = tpu.matmul %278, %235, %cst_205 {dimension_numbers = #tpu.dot_dimension_numbers<[1], [0], [0], [1], [0, 0, 1, 1], [], []>} : vector<4x6xf32>, vector<6x10xf32>, vector<4x10xf32> -> vector<4x10xf32>
    %c0_206 = arith.constant 0 : index
    %c40 = arith.constant 40 : index
    %280 = vector.load %arg15[%c0_206, %c40] : memref<4x80xf32, #tpu.memory_space<vmem>>, vector<4x10xf32>
    tpu.vector_store %arg15[%c0_206, %c40], %279 {strides = array<i32>} : memref<4x80xf32, #tpu.memory_space<vmem>>, vector<4x10xf32>,
    %281 = vector.extract_strided_slice %234 {offsets = [0, 12], sizes = [4, 6], strides = [1, 1]} : vector<4x24xf32> to vector<4x6xf32>
    %282 = vector.extract_strided_slice %234 {offsets = [0, 18], sizes = [4, 6], strides = [1, 1]} : vector<4x24xf32> to vector<4x6xf32>
    %cst_207 = arith.constant 7.500000e-01 : f32
    %283 = vector.broadcast %cst_207 : f32 to vector<4x6xf32>
    %284 = arith.mulf %283, %281 : vector<4x6xf32>
    %cst_208 = arith.constant 2.500000e-01 : f32
    %285 = vector.broadcast %cst_208 : f32 to vector<4x6xf32>
    %286 = arith.mulf %285, %282 : vector<4x6xf32>
    %287 = arith.addf %284, %286 : vector<4x6xf32>
    %cst_209 = arith.constant dense<0.000000e+00> : vector<4x10xf32>
    %288 = tpu.matmul %287, %235, %cst_209 {dimension_numbers = #tpu.dot_dimension_numbers<[1], [0], [0], [1], [0, 0, 1, 1], [], []>} : vector<4x6xf32>, vector<6x10xf32>, vector<4x10xf32> -> vector<4x10xf32>
    %c0_210 = arith.constant 0 : index
    %c50 = arith.constant 50 : index
    %289 = vector.load %arg15[%c0_210, %c50] : memref<4x80xf32, #tpu.memory_space<vmem>>, vector<4x10xf32>
    tpu.vector_store %arg15[%c0_210, %c50], %288 {strides = array<i32>} : memref<4x80xf32, #tpu.memory_space<vmem>>, vector<4x10xf32>,
    %290 = vector.extract_strided_slice %234 {offsets = [0, 18], sizes = [4, 6], strides = [1, 1]} : vector<4x24xf32> to vector<4x6xf32>
    %291 = vector.extract_strided_slice %234 {offsets = [0, 12], sizes = [4, 6], strides = [1, 1]} : vector<4x24xf32> to vector<4x6xf32>
    %cst_211 = arith.constant 7.500000e-01 : f32
    %292 = vector.broadcast %cst_211 : f32 to vector<4x6xf32>
    %293 = arith.mulf %292, %290 : vector<4x6xf32>
    %cst_212 = arith.constant 2.500000e-01 : f32
    %294 = vector.broadcast %cst_212 : f32 to vector<4x6xf32>
    %295 = arith.mulf %294, %291 : vector<4x6xf32>
    %296 = arith.addf %293, %295 : vector<4x6xf32>
    %cst_213 = arith.constant dense<0.000000e+00> : vector<4x10xf32>
    %297 = tpu.matmul %296, %235, %cst_213 {dimension_numbers = #tpu.dot_dimension_numbers<[1], [0], [0], [1], [0, 0, 1, 1], [], []>} : vector<4x6xf32>, vector<6x10xf32>, vector<4x10xf32> -> vector<4x10xf32>
    %c0_214 = arith.constant 0 : index
    %c60 = arith.constant 60 : index
    %298 = vector.load %arg15[%c0_214, %c60] : memref<4x80xf32, #tpu.memory_space<vmem>>, vector<4x10xf32>
    tpu.vector_store %arg15[%c0_214, %c60], %297 {strides = array<i32>} : memref<4x80xf32, #tpu.memory_space<vmem>>, vector<4x10xf32>,
    %299 = vector.extract_strided_slice %234 {offsets = [0, 18], sizes = [4, 6], strides = [1, 1]} : vector<4x24xf32> to vector<4x6xf32>
    %300 = vector.extract_strided_slice %234 {offsets = [0, 18], sizes = [4, 6], strides = [1, 1]} : vector<4x24xf32> to vector<4x6xf32>
    %cst_215 = arith.constant 7.500000e-01 : f32
    %301 = vector.broadcast %cst_215 : f32 to vector<4x6xf32>
    %302 = arith.mulf %301, %299 : vector<4x6xf32>
    %cst_216 = arith.constant 2.500000e-01 : f32
    %303 = vector.broadcast %cst_216 : f32 to vector<4x6xf32>
    %304 = arith.mulf %303, %300 : vector<4x6xf32>
    %305 = arith.addf %302, %304 : vector<4x6xf32>
    %cst_217 = arith.constant dense<0.000000e+00> : vector<4x10xf32>
    %306 = tpu.matmul %305, %235, %cst_217 {dimension_numbers = #tpu.dot_dimension_numbers<[1], [0], [0], [1], [0, 0, 1, 1], [], []>} : vector<4x6xf32>, vector<6x10xf32>, vector<4x10xf32> -> vector<4x10xf32>
    %c0_218 = arith.constant 0 : index
    %c70 = arith.constant 70 : index
    %307 = vector.load %arg15[%c0_218, %c70] : memref<4x80xf32, #tpu.memory_space<vmem>>, vector<4x10xf32>
    tpu.vector_store %arg15[%c0_218, %c70], %306 {strides = array<i32>} : memref<4x80xf32, #tpu.memory_space<vmem>>, vector<4x10xf32>,
    %c0_219 = arith.constant 0 : index
    %c0_220 = arith.constant 0 : index
    %308 = vector.load %arg15[%c0_219, %c0_220] : memref<4x80xf32, #tpu.memory_space<vmem>>, vector<4x80xf32>
    %309 = arith.addf %232, %308 : vector<4x80xf32>
    %310 = vector.extract_strided_slice %309 {offsets = [0, 0], sizes = [3, 80], strides = [1, 1]} : vector<4x80xf32> to vector<3x80xf32>
    %311 = vector.broadcast %0 : vector<1x80xf32> to vector<3x80xf32>
    %312 = arith.mulf %310, %311 : vector<3x80xf32>
    %c0_221 = arith.constant 0 : index
    %c0_222 = arith.constant 0 : index
    %c0_223 = arith.constant 0 : index
    %313 = vector.load %arg12[%c0_221, %c0_222, %c0_223] : memref<1x4x80xf32, #tpu.memory_space<vmem>>, vector<1x3x80xf32>
    %314 = vector.shape_cast %313 : vector<1x3x80xf32> to vector<3x80xf32>
    %315 = vector.shape_cast %312 : vector<3x80xf32> to vector<1x3x80xf32>
    tpu.vector_store %arg12[%c0_221, %c0_222, %c0_223], %315 {strides = array<i32>} : memref<1x4x80xf32, #tpu.memory_space<vmem>>, vector<1x3x80xf32>,
    %316 = vector.extract_strided_slice %309 {offsets = [3, 0], sizes = [1, 80], strides = [1, 1]} : vector<4x80xf32> to vector<1x80xf32>
    %317 = arith.negf %316 : vector<1x80xf32>
    %318 = math.exp %317 : vector<1x80xf32>
    %cst_224 = arith.constant 1.000000e+00 : f32
    %319 = vector.broadcast %cst_224 : f32 to vector<1x80xf32>
    %320 = arith.addf %319, %318 : vector<1x80xf32>
    %321 = arith.divf %319, %320 : vector<1x80xf32>
    %322 = arith.mulf %321, %0 : vector<1x80xf32>
    %c0_225 = arith.constant 0 : index
    %c3_226 = arith.constant 3 : index
    %c0_227 = arith.constant 0 : index
    %323 = vector.load %arg12[%c0_225, %c3_226, %c0_227] : memref<1x4x80xf32, #tpu.memory_space<vmem>>, vector<1x1x80xf32>
    %324 = vector.shape_cast %323 : vector<1x1x80xf32> to vector<1x80xf32>
    %325 = vector.shape_cast %322 : vector<1x80xf32> to vector<1x1x80xf32>
    tpu.vector_store %arg12[%c0_225, %c3_226, %c0_227], %325 {strides = array<i32>} : memref<1x4x80xf32, #tpu.memory_space<vmem>>, vector<1x1x80xf32>,
    return
  }
  func.func @transform_0(%arg0: i32) -> (i32, i32, i32) {
    %c0_i32 = arith.constant 0 : i32
    %c0_i32_0 = arith.constant 0 : i32
    %c0_i32_1 = arith.constant 0 : i32
    return %arg0, %c0_i32, %c0_i32_0 : i32, i32, i32
  }
  func.func @transform_1(%arg0: i32) -> (i32, i32, i32, i32) {
    %c0_i32 = arith.constant 0 : i32
    %c0_i32_0 = arith.constant 0 : i32
    %c0_i32_1 = arith.constant 0 : i32
    %c0_i32_2 = arith.constant 0 : i32
    return %arg0, %c0_i32, %c0_i32_0, %c0_i32_1 : i32, i32, i32, i32
  }
  func.func @transform_2(%arg0: i32) -> (i32, i32) {
    %c0_i32 = arith.constant 0 : i32
    %c0_i32_0 = arith.constant 0 : i32
    %c0_i32_1 = arith.constant 0 : i32
    return %c0_i32, %c0_i32_0 : i32, i32
  }
  func.func @transform_3(%arg0: i32) -> (i32, i32, i32, i32) {
    %c0_i32 = arith.constant 0 : i32
    %c0_i32_0 = arith.constant 0 : i32
    %c0_i32_1 = arith.constant 0 : i32
    %c0_i32_2 = arith.constant 0 : i32
    return %arg0, %c0_i32, %c0_i32_0, %c0_i32_1 : i32, i32, i32, i32
  }
  func.func @transform_4(%arg0: i32) -> (i32, i32) {
    %c0_i32 = arith.constant 0 : i32
    %c0_i32_0 = arith.constant 0 : i32
    %c0_i32_1 = arith.constant 0 : i32
    return %c0_i32, %c0_i32_0 : i32, i32
  }
  func.func @transform_5(%arg0: i32) -> (i32, i32, i32) {
    %c0_i32 = arith.constant 0 : i32
    %c0_i32_0 = arith.constant 0 : i32
    %c0_i32_1 = arith.constant 0 : i32
    return %arg0, %c0_i32, %c0_i32_0 : i32, i32, i32
  }
  func.func @transform_6(%arg0: i32) -> (i32, i32) {
    %c0_i32 = arith.constant 0 : i32
    %c0_i32_0 = arith.constant 0 : i32
    %c0_i32_1 = arith.constant 0 : i32
    return %c0_i32, %c0_i32_0 : i32, i32
  }
  func.func @transform_7(%arg0: i32) -> (i32, i32) {
    %c0_i32 = arith.constant 0 : i32
    %c0_i32_0 = arith.constant 0 : i32
    %c0_i32_1 = arith.constant 0 : i32
    return %c0_i32, %c0_i32_0 : i32, i32
  }
  func.func @transform_8(%arg0: i32) -> (i32, i32) {
    %c0_i32 = arith.constant 0 : i32
    %c0_i32_0 = arith.constant 0 : i32
    %c0_i32_1 = arith.constant 0 : i32
    return %c0_i32, %c0_i32_0 : i32, i32
  }
  func.func @transform_9(%arg0: i32) -> (i32, i32, i32) {
    %c0_i32 = arith.constant 0 : i32
    %c0_i32_0 = arith.constant 0 : i32
    %c0_i32_1 = arith.constant 0 : i32
    return %arg0, %c0_i32, %c0_i32_0 : i32, i32, i32
  }
  func.func @transform_10(%arg0: i32) -> (i32, i32, i32) {
    %c0_i32 = arith.constant 0 : i32
    %c0_i32_0 = arith.constant 0 : i32
    %c0_i32_1 = arith.constant 0 : i32
    return %arg0, %c0_i32, %c0_i32_0 : i32, i32, i32
  }
  func.func @transform_11(%arg0: i32) -> (i32, i32, i32) {
    %c0_i32 = arith.constant 0 : i32
    %c0_i32_0 = arith.constant 0 : i32
    %c0_i32_1 = arith.constant 0 : i32
    return %arg0, %c0_i32, %c0_i32_0 : i32, i32, i32
  }
}

module attributes {stable_mosaic.version = 11 : i64} {
  func.func @_style_block_kernel(%arg0: i32, %arg1: memref<1x16x80xbf16, #tpu.memory_space<vmem>>, %arg2: memref<1x9x8x16xbf16, #tpu.memory_space<vmem>>, %arg3: memref<8x1xf32, #tpu.memory_space<vmem>>, %arg4: memref<1x9x8x8xbf16, #tpu.memory_space<vmem>>, %arg5: memref<8x1xf32, #tpu.memory_space<vmem>>, %arg6: memref<1x4x8xbf16, #tpu.memory_space<vmem>>, %arg7: memref<4x1xf32, #tpu.memory_space<vmem>>, %arg8: memref<1x288xf32, #tpu.memory_space<vmem>>, %arg9: memref<10x18xf32, #tpu.memory_space<vmem>>, %arg10: memref<1x4x80xf32, #tpu.memory_space<vmem>>, %arg11: memref<1x8x288xbf16, #tpu.memory_space<vmem>>, %arg12: memref<1x4x288xf32, #tpu.memory_space<vmem>>, %arg13: memref<16x326xbf16, #tpu.memory_space<vmem>>, %arg14: memref<8x326xbf16, #tpu.memory_space<vmem>>, %arg15: memref<4x288xf32, #tpu.memory_space<vmem>>) attributes {dimension_semantics = [#tpu.dimension_semantics<parallel>], iteration_bounds = array<i64: 2>, scalar_prefetch = 0 : i64, scratch_operands = 3 : i64, tpu.core_type = #tpu.core_type<tc>, window_params = [{transform_indices = @transform_0, window_bounds = array<i64: 1, 16, 80>}, {transform_indices = @transform_1, window_bounds = array<i64: 1, 9, 8, 16>}, {pipeline_mode = #tpu.pipeline_mode<synchronous>, transform_indices = @transform_2, window_bounds = array<i64: 8, 1>}, {transform_indices = @transform_3, window_bounds = array<i64: 1, 9, 8, 8>}, {pipeline_mode = #tpu.pipeline_mode<synchronous>, transform_indices = @transform_4, window_bounds = array<i64: 8, 1>}, {transform_indices = @transform_5, window_bounds = array<i64: 1, 4, 8>}, {pipeline_mode = #tpu.pipeline_mode<synchronous>, transform_indices = @transform_6, window_bounds = array<i64: 4, 1>}, {pipeline_mode = #tpu.pipeline_mode<synchronous>, transform_indices = @transform_7, window_bounds = array<i64: 1, 288>}, {pipeline_mode = #tpu.pipeline_mode<synchronous>, transform_indices = @transform_8, window_bounds = array<i64: 10, 18>}, {transform_indices = @transform_9, window_bounds = array<i64: 1, 4, 80>}, {transform_indices = @transform_10, window_bounds = array<i64: 1, 8, 288>}, {transform_indices = @transform_11, window_bounds = array<i64: 1, 4, 288>}]} {
    %c0 = arith.constant 0 : index
    %c0_0 = arith.constant 0 : index
    %0 = vector.load %arg8[%c0, %c0_0] : memref<1x288xf32, #tpu.memory_space<vmem>>, vector<1x288xf32>
    %cst = arith.constant 0.000000e+00 : bf16
    %1 = vector.broadcast %cst : bf16 to vector<16x19xbf16>
    %c0_1 = arith.constant 0 : index
    %c0_2 = arith.constant 0 : index
    %2 = vector.load %arg13[%c0_1, %c0_2] : memref<16x326xbf16, #tpu.memory_space<vmem>>, vector<16x19xbf16>
    tpu.vector_store %arg13[%c0_1, %c0_2], %1 {strides = array<i32>} : memref<16x326xbf16, #tpu.memory_space<vmem>>, vector<16x19xbf16>,
    %cst_3 = arith.constant 0.000000e+00 : bf16
    %3 = vector.broadcast %cst_3 : bf16 to vector<16x19xbf16>
    %c0_4 = arith.constant 0 : index
    %c307 = arith.constant 307 : index
    %4 = vector.load %arg13[%c0_4, %c307] : memref<16x326xbf16, #tpu.memory_space<vmem>>, vector<16x19xbf16>
    tpu.vector_store %arg13[%c0_4, %c307], %3 {strides = array<i32>} : memref<16x326xbf16, #tpu.memory_space<vmem>>, vector<16x19xbf16>,
    %c0_5 = arith.constant 0 : index
    %c0_6 = arith.constant 0 : index
    %c0_7 = arith.constant 0 : index
    %5 = vector.load %arg1[%c0_5, %c0_6, %c0_7] : memref<1x16x80xbf16, #tpu.memory_space<vmem>>, vector<1x16x80xbf16>
    %6 = vector.shape_cast %5 : vector<1x16x80xbf16> to vector<16x80xbf16>
    %c0_8 = arith.constant 0 : index
    %c0_9 = arith.constant 0 : index
    %7 = vector.load %arg9[%c0_8, %c0_9] : memref<10x18xf32, #tpu.memory_space<vmem>>, vector<10x18xf32>
    %8 = arith.truncf %7 : vector<10x18xf32> to vector<10x18xbf16>
    %9 = vector.extract_strided_slice %6 {offsets = [0, 0], sizes = [16, 10], strides = [1, 1]} : vector<16x80xbf16> to vector<16x10xbf16>
    %10 = arith.extf %9 : vector<16x10xbf16> to vector<16x10xf32>
    %11 = vector.extract_strided_slice %6 {offsets = [0, 0], sizes = [16, 10], strides = [1, 1]} : vector<16x80xbf16> to vector<16x10xbf16>
    %12 = arith.extf %11 : vector<16x10xbf16> to vector<16x10xf32>
    %cst_10 = arith.constant 7.500000e-01 : f32
    %13 = vector.broadcast %cst_10 : f32 to vector<16x10xf32>
    %14 = arith.mulf %13, %10 : vector<16x10xf32>
    %cst_11 = arith.constant 2.500000e-01 : f32
    %15 = vector.broadcast %cst_11 : f32 to vector<16x10xf32>
    %16 = arith.mulf %15, %12 : vector<16x10xf32>
    %17 = arith.addf %14, %16 : vector<16x10xf32>
    %18 = arith.truncf %17 : vector<16x10xf32> to vector<16x10xbf16>
    %cst_12 = arith.constant dense<0.000000e+00> : vector<16x18xf32>
    %19 = tpu.matmul %18, %8, %cst_12 {dimension_numbers = #tpu.dot_dimension_numbers<[1], [0], [0], [1], [0, 0, 1, 1], [], []>} : vector<16x10xbf16>, vector<10x18xbf16>, vector<16x18xf32> -> vector<16x18xf32>
    %20 = arith.truncf %19 : vector<16x18xf32> to vector<16x18xbf16>
    %c0_13 = arith.constant 0 : index
    %c19 = arith.constant 19 : index
    %21 = vector.load %arg13[%c0_13, %c19] : memref<16x326xbf16, #tpu.memory_space<vmem>>, vector<16x18xbf16>
    tpu.vector_store %arg13[%c0_13, %c19], %20 {strides = array<i32>} : memref<16x326xbf16, #tpu.memory_space<vmem>>, vector<16x18xbf16>,
    %22 = vector.extract_strided_slice %6 {offsets = [0, 0], sizes = [16, 10], strides = [1, 1]} : vector<16x80xbf16> to vector<16x10xbf16>
    %23 = arith.extf %22 : vector<16x10xbf16> to vector<16x10xf32>
    %24 = vector.extract_strided_slice %6 {offsets = [0, 10], sizes = [16, 10], strides = [1, 1]} : vector<16x80xbf16> to vector<16x10xbf16>
    %25 = arith.extf %24 : vector<16x10xbf16> to vector<16x10xf32>
    %cst_14 = arith.constant 7.500000e-01 : f32
    %26 = vector.broadcast %cst_14 : f32 to vector<16x10xf32>
    %27 = arith.mulf %26, %23 : vector<16x10xf32>
    %cst_15 = arith.constant 2.500000e-01 : f32
    %28 = vector.broadcast %cst_15 : f32 to vector<16x10xf32>
    %29 = arith.mulf %28, %25 : vector<16x10xf32>
    %30 = arith.addf %27, %29 : vector<16x10xf32>
    %31 = arith.truncf %30 : vector<16x10xf32> to vector<16x10xbf16>
    %cst_16 = arith.constant dense<0.000000e+00> : vector<16x18xf32>
    %32 = tpu.matmul %31, %8, %cst_16 {dimension_numbers = #tpu.dot_dimension_numbers<[1], [0], [0], [1], [0, 0, 1, 1], [], []>} : vector<16x10xbf16>, vector<10x18xbf16>, vector<16x18xf32> -> vector<16x18xf32>
    %33 = arith.truncf %32 : vector<16x18xf32> to vector<16x18xbf16>
    %c0_17 = arith.constant 0 : index
    %c37 = arith.constant 37 : index
    %34 = vector.load %arg13[%c0_17, %c37] : memref<16x326xbf16, #tpu.memory_space<vmem>>, vector<16x18xbf16>
    tpu.vector_store %arg13[%c0_17, %c37], %33 {strides = array<i32>} : memref<16x326xbf16, #tpu.memory_space<vmem>>, vector<16x18xbf16>,
    %35 = vector.extract_strided_slice %6 {offsets = [0, 10], sizes = [16, 10], strides = [1, 1]} : vector<16x80xbf16> to vector<16x10xbf16>
    %36 = arith.extf %35 : vector<16x10xbf16> to vector<16x10xf32>
    %37 = vector.extract_strided_slice %6 {offsets = [0, 0], sizes = [16, 10], strides = [1, 1]} : vector<16x80xbf16> to vector<16x10xbf16>
    %38 = arith.extf %37 : vector<16x10xbf16> to vector<16x10xf32>
    %cst_18 = arith.constant 7.500000e-01 : f32
    %39 = vector.broadcast %cst_18 : f32 to vector<16x10xf32>
    %40 = arith.mulf %39, %36 : vector<16x10xf32>
    %cst_19 = arith.constant 2.500000e-01 : f32
    %41 = vector.broadcast %cst_19 : f32 to vector<16x10xf32>
    %42 = arith.mulf %41, %38 : vector<16x10xf32>
    %43 = arith.addf %40, %42 : vector<16x10xf32>
    %44 = arith.truncf %43 : vector<16x10xf32> to vector<16x10xbf16>
    %cst_20 = arith.constant dense<0.000000e+00> : vector<16x18xf32>
    %45 = tpu.matmul %44, %8, %cst_20 {dimension_numbers = #tpu.dot_dimension_numbers<[1], [0], [0], [1], [0, 0, 1, 1], [], []>} : vector<16x10xbf16>, vector<10x18xbf16>, vector<16x18xf32> -> vector<16x18xf32>
    %46 = arith.truncf %45 : vector<16x18xf32> to vector<16x18xbf16>
    %c0_21 = arith.constant 0 : index
    %c55 = arith.constant 55 : index
    %47 = vector.load %arg13[%c0_21, %c55] : memref<16x326xbf16, #tpu.memory_space<vmem>>, vector<16x18xbf16>
    tpu.vector_store %arg13[%c0_21, %c55], %46 {strides = array<i32>} : memref<16x326xbf16, #tpu.memory_space<vmem>>, vector<16x18xbf16>,
    %48 = vector.extract_strided_slice %6 {offsets = [0, 10], sizes = [16, 10], strides = [1, 1]} : vector<16x80xbf16> to vector<16x10xbf16>
    %49 = arith.extf %48 : vector<16x10xbf16> to vector<16x10xf32>
    %50 = vector.extract_strided_slice %6 {offsets = [0, 20], sizes = [16, 10], strides = [1, 1]} : vector<16x80xbf16> to vector<16x10xbf16>
    %51 = arith.extf %50 : vector<16x10xbf16> to vector<16x10xf32>
    %cst_22 = arith.constant 7.500000e-01 : f32
    %52 = vector.broadcast %cst_22 : f32 to vector<16x10xf32>
    %53 = arith.mulf %52, %49 : vector<16x10xf32>
    %cst_23 = arith.constant 2.500000e-01 : f32
    %54 = vector.broadcast %cst_23 : f32 to vector<16x10xf32>
    %55 = arith.mulf %54, %51 : vector<16x10xf32>
    %56 = arith.addf %53, %55 : vector<16x10xf32>
    %57 = arith.truncf %56 : vector<16x10xf32> to vector<16x10xbf16>
    %cst_24 = arith.constant dense<0.000000e+00> : vector<16x18xf32>
    %58 = tpu.matmul %57, %8, %cst_24 {dimension_numbers = #tpu.dot_dimension_numbers<[1], [0], [0], [1], [0, 0, 1, 1], [], []>} : vector<16x10xbf16>, vector<10x18xbf16>, vector<16x18xf32> -> vector<16x18xf32>
    %59 = arith.truncf %58 : vector<16x18xf32> to vector<16x18xbf16>
    %c0_25 = arith.constant 0 : index
    %c73 = arith.constant 73 : index
    %60 = vector.load %arg13[%c0_25, %c73] : memref<16x326xbf16, #tpu.memory_space<vmem>>, vector<16x18xbf16>
    tpu.vector_store %arg13[%c0_25, %c73], %59 {strides = array<i32>} : memref<16x326xbf16, #tpu.memory_space<vmem>>, vector<16x18xbf16>,
    %61 = vector.extract_strided_slice %6 {offsets = [0, 20], sizes = [16, 10], strides = [1, 1]} : vector<16x80xbf16> to vector<16x10xbf16>
    %62 = arith.extf %61 : vector<16x10xbf16> to vector<16x10xf32>
    %63 = vector.extract_strided_slice %6 {offsets = [0, 10], sizes = [16, 10], strides = [1, 1]} : vector<16x80xbf16> to vector<16x10xbf16>
    %64 = arith.extf %63 : vector<16x10xbf16> to vector<16x10xf32>
    %cst_26 = arith.constant 7.500000e-01 : f32
    %65 = vector.broadcast %cst_26 : f32 to vector<16x10xf32>
    %66 = arith.mulf %65, %62 : vector<16x10xf32>
    %cst_27 = arith.constant 2.500000e-01 : f32
    %67 = vector.broadcast %cst_27 : f32 to vector<16x10xf32>
    %68 = arith.mulf %67, %64 : vector<16x10xf32>
    %69 = arith.addf %66, %68 : vector<16x10xf32>
    %70 = arith.truncf %69 : vector<16x10xf32> to vector<16x10xbf16>
    %cst_28 = arith.constant dense<0.000000e+00> : vector<16x18xf32>
    %71 = tpu.matmul %70, %8, %cst_28 {dimension_numbers = #tpu.dot_dimension_numbers<[1], [0], [0], [1], [0, 0, 1, 1], [], []>} : vector<16x10xbf16>, vector<10x18xbf16>, vector<16x18xf32> -> vector<16x18xf32>
    %72 = arith.truncf %71 : vector<16x18xf32> to vector<16x18xbf16>
    %c0_29 = arith.constant 0 : index
    %c91 = arith.constant 91 : index
    %73 = vector.load %arg13[%c0_29, %c91] : memref<16x326xbf16, #tpu.memory_space<vmem>>, vector<16x18xbf16>
    tpu.vector_store %arg13[%c0_29, %c91], %72 {strides = array<i32>} : memref<16x326xbf16, #tpu.memory_space<vmem>>, vector<16x18xbf16>,
    %74 = vector.extract_strided_slice %6 {offsets = [0, 20], sizes = [16, 10], strides = [1, 1]} : vector<16x80xbf16> to vector<16x10xbf16>
    %75 = arith.extf %74 : vector<16x10xbf16> to vector<16x10xf32>
    %76 = vector.extract_strided_slice %6 {offsets = [0, 30], sizes = [16, 10], strides = [1, 1]} : vector<16x80xbf16> to vector<16x10xbf16>
    %77 = arith.extf %76 : vector<16x10xbf16> to vector<16x10xf32>
    %cst_30 = arith.constant 7.500000e-01 : f32
    %78 = vector.broadcast %cst_30 : f32 to vector<16x10xf32>
    %79 = arith.mulf %78, %75 : vector<16x10xf32>
    %cst_31 = arith.constant 2.500000e-01 : f32
    %80 = vector.broadcast %cst_31 : f32 to vector<16x10xf32>
    %81 = arith.mulf %80, %77 : vector<16x10xf32>
    %82 = arith.addf %79, %81 : vector<16x10xf32>
    %83 = arith.truncf %82 : vector<16x10xf32> to vector<16x10xbf16>
    %cst_32 = arith.constant dense<0.000000e+00> : vector<16x18xf32>
    %84 = tpu.matmul %83, %8, %cst_32 {dimension_numbers = #tpu.dot_dimension_numbers<[1], [0], [0], [1], [0, 0, 1, 1], [], []>} : vector<16x10xbf16>, vector<10x18xbf16>, vector<16x18xf32> -> vector<16x18xf32>
    %85 = arith.truncf %84 : vector<16x18xf32> to vector<16x18xbf16>
    %c0_33 = arith.constant 0 : index
    %c109 = arith.constant 109 : index
    %86 = vector.load %arg13[%c0_33, %c109] : memref<16x326xbf16, #tpu.memory_space<vmem>>, vector<16x18xbf16>
    tpu.vector_store %arg13[%c0_33, %c109], %85 {strides = array<i32>} : memref<16x326xbf16, #tpu.memory_space<vmem>>, vector<16x18xbf16>,
    %87 = vector.extract_strided_slice %6 {offsets = [0, 30], sizes = [16, 10], strides = [1, 1]} : vector<16x80xbf16> to vector<16x10xbf16>
    %88 = arith.extf %87 : vector<16x10xbf16> to vector<16x10xf32>
    %89 = vector.extract_strided_slice %6 {offsets = [0, 20], sizes = [16, 10], strides = [1, 1]} : vector<16x80xbf16> to vector<16x10xbf16>
    %90 = arith.extf %89 : vector<16x10xbf16> to vector<16x10xf32>
    %cst_34 = arith.constant 7.500000e-01 : f32
    %91 = vector.broadcast %cst_34 : f32 to vector<16x10xf32>
    %92 = arith.mulf %91, %88 : vector<16x10xf32>
    %cst_35 = arith.constant 2.500000e-01 : f32
    %93 = vector.broadcast %cst_35 : f32 to vector<16x10xf32>
    %94 = arith.mulf %93, %90 : vector<16x10xf32>
    %95 = arith.addf %92, %94 : vector<16x10xf32>
    %96 = arith.truncf %95 : vector<16x10xf32> to vector<16x10xbf16>
    %cst_36 = arith.constant dense<0.000000e+00> : vector<16x18xf32>
    %97 = tpu.matmul %96, %8, %cst_36 {dimension_numbers = #tpu.dot_dimension_numbers<[1], [0], [0], [1], [0, 0, 1, 1], [], []>} : vector<16x10xbf16>, vector<10x18xbf16>, vector<16x18xf32> -> vector<16x18xf32>
    %98 = arith.truncf %97 : vector<16x18xf32> to vector<16x18xbf16>
    %c0_37 = arith.constant 0 : index
    %c127 = arith.constant 127 : index
    %99 = vector.load %arg13[%c0_37, %c127] : memref<16x326xbf16, #tpu.memory_space<vmem>>, vector<16x18xbf16>
    tpu.vector_store %arg13[%c0_37, %c127], %98 {strides = array<i32>} : memref<16x326xbf16, #tpu.memory_space<vmem>>, vector<16x18xbf16>,
    %100 = vector.extract_strided_slice %6 {offsets = [0, 30], sizes = [16, 10], strides = [1, 1]} : vector<16x80xbf16> to vector<16x10xbf16>
    %101 = arith.extf %100 : vector<16x10xbf16> to vector<16x10xf32>
    %102 = vector.extract_strided_slice %6 {offsets = [0, 40], sizes = [16, 10], strides = [1, 1]} : vector<16x80xbf16> to vector<16x10xbf16>
    %103 = arith.extf %102 : vector<16x10xbf16> to vector<16x10xf32>
    %cst_38 = arith.constant 7.500000e-01 : f32
    %104 = vector.broadcast %cst_38 : f32 to vector<16x10xf32>
    %105 = arith.mulf %104, %101 : vector<16x10xf32>
    %cst_39 = arith.constant 2.500000e-01 : f32
    %106 = vector.broadcast %cst_39 : f32 to vector<16x10xf32>
    %107 = arith.mulf %106, %103 : vector<16x10xf32>
    %108 = arith.addf %105, %107 : vector<16x10xf32>
    %109 = arith.truncf %108 : vector<16x10xf32> to vector<16x10xbf16>
    %cst_40 = arith.constant dense<0.000000e+00> : vector<16x18xf32>
    %110 = tpu.matmul %109, %8, %cst_40 {dimension_numbers = #tpu.dot_dimension_numbers<[1], [0], [0], [1], [0, 0, 1, 1], [], []>} : vector<16x10xbf16>, vector<10x18xbf16>, vector<16x18xf32> -> vector<16x18xf32>
    %111 = arith.truncf %110 : vector<16x18xf32> to vector<16x18xbf16>
    %c0_41 = arith.constant 0 : index
    %c145 = arith.constant 145 : index
    %112 = vector.load %arg13[%c0_41, %c145] : memref<16x326xbf16, #tpu.memory_space<vmem>>, vector<16x18xbf16>
    tpu.vector_store %arg13[%c0_41, %c145], %111 {strides = array<i32>} : memref<16x326xbf16, #tpu.memory_space<vmem>>, vector<16x18xbf16>,
    %113 = vector.extract_strided_slice %6 {offsets = [0, 40], sizes = [16, 10], strides = [1, 1]} : vector<16x80xbf16> to vector<16x10xbf16>
    %114 = arith.extf %113 : vector<16x10xbf16> to vector<16x10xf32>
    %115 = vector.extract_strided_slice %6 {offsets = [0, 30], sizes = [16, 10], strides = [1, 1]} : vector<16x80xbf16> to vector<16x10xbf16>
    %116 = arith.extf %115 : vector<16x10xbf16> to vector<16x10xf32>
    %cst_42 = arith.constant 7.500000e-01 : f32
    %117 = vector.broadcast %cst_42 : f32 to vector<16x10xf32>
    %118 = arith.mulf %117, %114 : vector<16x10xf32>
    %cst_43 = arith.constant 2.500000e-01 : f32
    %119 = vector.broadcast %cst_43 : f32 to vector<16x10xf32>
    %120 = arith.mulf %119, %116 : vector<16x10xf32>
    %121 = arith.addf %118, %120 : vector<16x10xf32>
    %122 = arith.truncf %121 : vector<16x10xf32> to vector<16x10xbf16>
    %cst_44 = arith.constant dense<0.000000e+00> : vector<16x18xf32>
    %123 = tpu.matmul %122, %8, %cst_44 {dimension_numbers = #tpu.dot_dimension_numbers<[1], [0], [0], [1], [0, 0, 1, 1], [], []>} : vector<16x10xbf16>, vector<10x18xbf16>, vector<16x18xf32> -> vector<16x18xf32>
    %124 = arith.truncf %123 : vector<16x18xf32> to vector<16x18xbf16>
    %c0_45 = arith.constant 0 : index
    %c163 = arith.constant 163 : index
    %125 = vector.load %arg13[%c0_45, %c163] : memref<16x326xbf16, #tpu.memory_space<vmem>>, vector<16x18xbf16>
    tpu.vector_store %arg13[%c0_45, %c163], %124 {strides = array<i32>} : memref<16x326xbf16, #tpu.memory_space<vmem>>, vector<16x18xbf16>,
    %126 = vector.extract_strided_slice %6 {offsets = [0, 40], sizes = [16, 10], strides = [1, 1]} : vector<16x80xbf16> to vector<16x10xbf16>
    %127 = arith.extf %126 : vector<16x10xbf16> to vector<16x10xf32>
    %128 = vector.extract_strided_slice %6 {offsets = [0, 50], sizes = [16, 10], strides = [1, 1]} : vector<16x80xbf16> to vector<16x10xbf16>
    %129 = arith.extf %128 : vector<16x10xbf16> to vector<16x10xf32>
    %cst_46 = arith.constant 7.500000e-01 : f32
    %130 = vector.broadcast %cst_46 : f32 to vector<16x10xf32>
    %131 = arith.mulf %130, %127 : vector<16x10xf32>
    %cst_47 = arith.constant 2.500000e-01 : f32
    %132 = vector.broadcast %cst_47 : f32 to vector<16x10xf32>
    %133 = arith.mulf %132, %129 : vector<16x10xf32>
    %134 = arith.addf %131, %133 : vector<16x10xf32>
    %135 = arith.truncf %134 : vector<16x10xf32> to vector<16x10xbf16>
    %cst_48 = arith.constant dense<0.000000e+00> : vector<16x18xf32>
    %136 = tpu.matmul %135, %8, %cst_48 {dimension_numbers = #tpu.dot_dimension_numbers<[1], [0], [0], [1], [0, 0, 1, 1], [], []>} : vector<16x10xbf16>, vector<10x18xbf16>, vector<16x18xf32> -> vector<16x18xf32>
    %137 = arith.truncf %136 : vector<16x18xf32> to vector<16x18xbf16>
    %c0_49 = arith.constant 0 : index
    %c181 = arith.constant 181 : index
    %138 = vector.load %arg13[%c0_49, %c181] : memref<16x326xbf16, #tpu.memory_space<vmem>>, vector<16x18xbf16>
    tpu.vector_store %arg13[%c0_49, %c181], %137 {strides = array<i32>} : memref<16x326xbf16, #tpu.memory_space<vmem>>, vector<16x18xbf16>,
    %139 = vector.extract_strided_slice %6 {offsets = [0, 50], sizes = [16, 10], strides = [1, 1]} : vector<16x80xbf16> to vector<16x10xbf16>
    %140 = arith.extf %139 : vector<16x10xbf16> to vector<16x10xf32>
    %141 = vector.extract_strided_slice %6 {offsets = [0, 40], sizes = [16, 10], strides = [1, 1]} : vector<16x80xbf16> to vector<16x10xbf16>
    %142 = arith.extf %141 : vector<16x10xbf16> to vector<16x10xf32>
    %cst_50 = arith.constant 7.500000e-01 : f32
    %143 = vector.broadcast %cst_50 : f32 to vector<16x10xf32>
    %144 = arith.mulf %143, %140 : vector<16x10xf32>
    %cst_51 = arith.constant 2.500000e-01 : f32
    %145 = vector.broadcast %cst_51 : f32 to vector<16x10xf32>
    %146 = arith.mulf %145, %142 : vector<16x10xf32>
    %147 = arith.addf %144, %146 : vector<16x10xf32>
    %148 = arith.truncf %147 : vector<16x10xf32> to vector<16x10xbf16>
    %cst_52 = arith.constant dense<0.000000e+00> : vector<16x18xf32>
    %149 = tpu.matmul %148, %8, %cst_52 {dimension_numbers = #tpu.dot_dimension_numbers<[1], [0], [0], [1], [0, 0, 1, 1], [], []>} : vector<16x10xbf16>, vector<10x18xbf16>, vector<16x18xf32> -> vector<16x18xf32>
    %150 = arith.truncf %149 : vector<16x18xf32> to vector<16x18xbf16>
    %c0_53 = arith.constant 0 : index
    %c199 = arith.constant 199 : index
    %151 = vector.load %arg13[%c0_53, %c199] : memref<16x326xbf16, #tpu.memory_space<vmem>>, vector<16x18xbf16>
    tpu.vector_store %arg13[%c0_53, %c199], %150 {strides = array<i32>} : memref<16x326xbf16, #tpu.memory_space<vmem>>, vector<16x18xbf16>,
    %152 = vector.extract_strided_slice %6 {offsets = [0, 50], sizes = [16, 10], strides = [1, 1]} : vector<16x80xbf16> to vector<16x10xbf16>
    %153 = arith.extf %152 : vector<16x10xbf16> to vector<16x10xf32>
    %154 = vector.extract_strided_slice %6 {offsets = [0, 60], sizes = [16, 10], strides = [1, 1]} : vector<16x80xbf16> to vector<16x10xbf16>
    %155 = arith.extf %154 : vector<16x10xbf16> to vector<16x10xf32>
    %cst_54 = arith.constant 7.500000e-01 : f32
    %156 = vector.broadcast %cst_54 : f32 to vector<16x10xf32>
    %157 = arith.mulf %156, %153 : vector<16x10xf32>
    %cst_55 = arith.constant 2.500000e-01 : f32
    %158 = vector.broadcast %cst_55 : f32 to vector<16x10xf32>
    %159 = arith.mulf %158, %155 : vector<16x10xf32>
    %160 = arith.addf %157, %159 : vector<16x10xf32>
    %161 = arith.truncf %160 : vector<16x10xf32> to vector<16x10xbf16>
    %cst_56 = arith.constant dense<0.000000e+00> : vector<16x18xf32>
    %162 = tpu.matmul %161, %8, %cst_56 {dimension_numbers = #tpu.dot_dimension_numbers<[1], [0], [0], [1], [0, 0, 1, 1], [], []>} : vector<16x10xbf16>, vector<10x18xbf16>, vector<16x18xf32> -> vector<16x18xf32>
    %163 = arith.truncf %162 : vector<16x18xf32> to vector<16x18xbf16>
    %c0_57 = arith.constant 0 : index
    %c217 = arith.constant 217 : index
    %164 = vector.load %arg13[%c0_57, %c217] : memref<16x326xbf16, #tpu.memory_space<vmem>>, vector<16x18xbf16>
    tpu.vector_store %arg13[%c0_57, %c217], %163 {strides = array<i32>} : memref<16x326xbf16, #tpu.memory_space<vmem>>, vector<16x18xbf16>,
    %165 = vector.extract_strided_slice %6 {offsets = [0, 60], sizes = [16, 10], strides = [1, 1]} : vector<16x80xbf16> to vector<16x10xbf16>
    %166 = arith.extf %165 : vector<16x10xbf16> to vector<16x10xf32>
    %167 = vector.extract_strided_slice %6 {offsets = [0, 50], sizes = [16, 10], strides = [1, 1]} : vector<16x80xbf16> to vector<16x10xbf16>
    %168 = arith.extf %167 : vector<16x10xbf16> to vector<16x10xf32>
    %cst_58 = arith.constant 7.500000e-01 : f32
    %169 = vector.broadcast %cst_58 : f32 to vector<16x10xf32>
    %170 = arith.mulf %169, %166 : vector<16x10xf32>
    %cst_59 = arith.constant 2.500000e-01 : f32
    %171 = vector.broadcast %cst_59 : f32 to vector<16x10xf32>
    %172 = arith.mulf %171, %168 : vector<16x10xf32>
    %173 = arith.addf %170, %172 : vector<16x10xf32>
    %174 = arith.truncf %173 : vector<16x10xf32> to vector<16x10xbf16>
    %cst_60 = arith.constant dense<0.000000e+00> : vector<16x18xf32>
    %175 = tpu.matmul %174, %8, %cst_60 {dimension_numbers = #tpu.dot_dimension_numbers<[1], [0], [0], [1], [0, 0, 1, 1], [], []>} : vector<16x10xbf16>, vector<10x18xbf16>, vector<16x18xf32> -> vector<16x18xf32>
    %176 = arith.truncf %175 : vector<16x18xf32> to vector<16x18xbf16>
    %c0_61 = arith.constant 0 : index
    %c235 = arith.constant 235 : index
    %177 = vector.load %arg13[%c0_61, %c235] : memref<16x326xbf16, #tpu.memory_space<vmem>>, vector<16x18xbf16>
    tpu.vector_store %arg13[%c0_61, %c235], %176 {strides = array<i32>} : memref<16x326xbf16, #tpu.memory_space<vmem>>, vector<16x18xbf16>,
    %178 = vector.extract_strided_slice %6 {offsets = [0, 60], sizes = [16, 10], strides = [1, 1]} : vector<16x80xbf16> to vector<16x10xbf16>
    %179 = arith.extf %178 : vector<16x10xbf16> to vector<16x10xf32>
    %180 = vector.extract_strided_slice %6 {offsets = [0, 70], sizes = [16, 10], strides = [1, 1]} : vector<16x80xbf16> to vector<16x10xbf16>
    %181 = arith.extf %180 : vector<16x10xbf16> to vector<16x10xf32>
    %cst_62 = arith.constant 7.500000e-01 : f32
    %182 = vector.broadcast %cst_62 : f32 to vector<16x10xf32>
    %183 = arith.mulf %182, %179 : vector<16x10xf32>
    %cst_63 = arith.constant 2.500000e-01 : f32
    %184 = vector.broadcast %cst_63 : f32 to vector<16x10xf32>
    %185 = arith.mulf %184, %181 : vector<16x10xf32>
    %186 = arith.addf %183, %185 : vector<16x10xf32>
    %187 = arith.truncf %186 : vector<16x10xf32> to vector<16x10xbf16>
    %cst_64 = arith.constant dense<0.000000e+00> : vector<16x18xf32>
    %188 = tpu.matmul %187, %8, %cst_64 {dimension_numbers = #tpu.dot_dimension_numbers<[1], [0], [0], [1], [0, 0, 1, 1], [], []>} : vector<16x10xbf16>, vector<10x18xbf16>, vector<16x18xf32> -> vector<16x18xf32>
    %189 = arith.truncf %188 : vector<16x18xf32> to vector<16x18xbf16>
    %c0_65 = arith.constant 0 : index
    %c253 = arith.constant 253 : index
    %190 = vector.load %arg13[%c0_65, %c253] : memref<16x326xbf16, #tpu.memory_space<vmem>>, vector<16x18xbf16>
    tpu.vector_store %arg13[%c0_65, %c253], %189 {strides = array<i32>} : memref<16x326xbf16, #tpu.memory_space<vmem>>, vector<16x18xbf16>,
    %191 = vector.extract_strided_slice %6 {offsets = [0, 70], sizes = [16, 10], strides = [1, 1]} : vector<16x80xbf16> to vector<16x10xbf16>
    %192 = arith.extf %191 : vector<16x10xbf16> to vector<16x10xf32>
    %193 = vector.extract_strided_slice %6 {offsets = [0, 60], sizes = [16, 10], strides = [1, 1]} : vector<16x80xbf16> to vector<16x10xbf16>
    %194 = arith.extf %193 : vector<16x10xbf16> to vector<16x10xf32>
    %cst_66 = arith.constant 7.500000e-01 : f32
    %195 = vector.broadcast %cst_66 : f32 to vector<16x10xf32>
    %196 = arith.mulf %195, %192 : vector<16x10xf32>
    %cst_67 = arith.constant 2.500000e-01 : f32
    %197 = vector.broadcast %cst_67 : f32 to vector<16x10xf32>
    %198 = arith.mulf %197, %194 : vector<16x10xf32>
    %199 = arith.addf %196, %198 : vector<16x10xf32>
    %200 = arith.truncf %199 : vector<16x10xf32> to vector<16x10xbf16>
    %cst_68 = arith.constant dense<0.000000e+00> : vector<16x18xf32>
    %201 = tpu.matmul %200, %8, %cst_68 {dimension_numbers = #tpu.dot_dimension_numbers<[1], [0], [0], [1], [0, 0, 1, 1], [], []>} : vector<16x10xbf16>, vector<10x18xbf16>, vector<16x18xf32> -> vector<16x18xf32>
    %202 = arith.truncf %201 : vector<16x18xf32> to vector<16x18xbf16>
    %c0_69 = arith.constant 0 : index
    %c271 = arith.constant 271 : index
    %203 = vector.load %arg13[%c0_69, %c271] : memref<16x326xbf16, #tpu.memory_space<vmem>>, vector<16x18xbf16>
    tpu.vector_store %arg13[%c0_69, %c271], %202 {strides = array<i32>} : memref<16x326xbf16, #tpu.memory_space<vmem>>, vector<16x18xbf16>,
    %204 = vector.extract_strided_slice %6 {offsets = [0, 70], sizes = [16, 10], strides = [1, 1]} : vector<16x80xbf16> to vector<16x10xbf16>
    %205 = arith.extf %204 : vector<16x10xbf16> to vector<16x10xf32>
    %206 = vector.extract_strided_slice %6 {offsets = [0, 70], sizes = [16, 10], strides = [1, 1]} : vector<16x80xbf16> to vector<16x10xbf16>
    %207 = arith.extf %206 : vector<16x10xbf16> to vector<16x10xf32>
    %cst_70 = arith.constant 7.500000e-01 : f32
    %208 = vector.broadcast %cst_70 : f32 to vector<16x10xf32>
    %209 = arith.mulf %208, %205 : vector<16x10xf32>
    %cst_71 = arith.constant 2.500000e-01 : f32
    %210 = vector.broadcast %cst_71 : f32 to vector<16x10xf32>
    %211 = arith.mulf %210, %207 : vector<16x10xf32>
    %212 = arith.addf %209, %211 : vector<16x10xf32>
    %213 = arith.truncf %212 : vector<16x10xf32> to vector<16x10xbf16>
    %cst_72 = arith.constant dense<0.000000e+00> : vector<16x18xf32>
    %214 = tpu.matmul %213, %8, %cst_72 {dimension_numbers = #tpu.dot_dimension_numbers<[1], [0], [0], [1], [0, 0, 1, 1], [], []>} : vector<16x10xbf16>, vector<10x18xbf16>, vector<16x18xf32> -> vector<16x18xf32>
    %215 = arith.truncf %214 : vector<16x18xf32> to vector<16x18xbf16>
    %c0_73 = arith.constant 0 : index
    %c289 = arith.constant 289 : index
    %216 = vector.load %arg13[%c0_73, %c289] : memref<16x326xbf16, #tpu.memory_space<vmem>>, vector<16x18xbf16>
    tpu.vector_store %arg13[%c0_73, %c289], %215 {strides = array<i32>} : memref<16x326xbf16, #tpu.memory_space<vmem>>, vector<16x18xbf16>,
    %c0_74 = arith.constant 0 : index
    %c0_75 = arith.constant 0 : index
    %c0_76 = arith.constant 0 : index
    %c0_77 = arith.constant 0 : index
    %217 = vector.load %arg2[%c0_74, %c0_75, %c0_76, %c0_77] : memref<1x9x8x16xbf16, #tpu.memory_space<vmem>>, vector<1x1x8x16xbf16>
    %218 = vector.shape_cast %217 : vector<1x1x8x16xbf16> to vector<8x16xbf16>
    %c0_78 = arith.constant 0 : index
    %c0_79 = arith.constant 0 : index
    %219 = vector.load %arg13[%c0_78, %c0_79] : memref<16x326xbf16, #tpu.memory_space<vmem>>, vector<16x288xbf16>
    %cst_80 = arith.constant dense<0.000000e+00> : vector<8x288xf32>
    %220 = tpu.matmul %218, %219, %cst_80 {dimension_numbers = #tpu.dot_dimension_numbers<[1], [0], [0], [1], [0, 0, 1, 1], [], []>} : vector<8x16xbf16>, vector<16x288xbf16>, vector<8x288xf32> -> vector<8x288xf32>
    %c0_81 = arith.constant 0 : index
    %c1 = arith.constant 1 : index
    %c0_82 = arith.constant 0 : index
    %c0_83 = arith.constant 0 : index
    %221 = vector.load %arg2[%c0_81, %c1, %c0_82, %c0_83] : memref<1x9x8x16xbf16, #tpu.memory_space<vmem>>, vector<1x1x8x16xbf16>
    %222 = vector.shape_cast %221 : vector<1x1x8x16xbf16> to vector<8x16xbf16>
    %c0_84 = arith.constant 0 : index
    %c1_85 = arith.constant 1 : index
    %223 = vector.load %arg13[%c0_84, %c1_85] : memref<16x326xbf16, #tpu.memory_space<vmem>>, vector<16x288xbf16>
    %cst_86 = arith.constant dense<0.000000e+00> : vector<8x288xf32>
    %224 = tpu.matmul %222, %223, %cst_86 {dimension_numbers = #tpu.dot_dimension_numbers<[1], [0], [0], [1], [0, 0, 1, 1], [], []>} : vector<8x16xbf16>, vector<16x288xbf16>, vector<8x288xf32> -> vector<8x288xf32>
    %225 = arith.addf %220, %224 : vector<8x288xf32>
    %c0_87 = arith.constant 0 : index
    %c2 = arith.constant 2 : index
    %c0_88 = arith.constant 0 : index
    %c0_89 = arith.constant 0 : index
    %226 = vector.load %arg2[%c0_87, %c2, %c0_88, %c0_89] : memref<1x9x8x16xbf16, #tpu.memory_space<vmem>>, vector<1x1x8x16xbf16>
    %227 = vector.shape_cast %226 : vector<1x1x8x16xbf16> to vector<8x16xbf16>
    %c0_90 = arith.constant 0 : index
    %c2_91 = arith.constant 2 : index
    %228 = vector.load %arg13[%c0_90, %c2_91] : memref<16x326xbf16, #tpu.memory_space<vmem>>, vector<16x288xbf16>
    %cst_92 = arith.constant dense<0.000000e+00> : vector<8x288xf32>
    %229 = tpu.matmul %227, %228, %cst_92 {dimension_numbers = #tpu.dot_dimension_numbers<[1], [0], [0], [1], [0, 0, 1, 1], [], []>} : vector<8x16xbf16>, vector<16x288xbf16>, vector<8x288xf32> -> vector<8x288xf32>
    %230 = arith.addf %225, %229 : vector<8x288xf32>
    %c0_93 = arith.constant 0 : index
    %c3 = arith.constant 3 : index
    %c0_94 = arith.constant 0 : index
    %c0_95 = arith.constant 0 : index
    %231 = vector.load %arg2[%c0_93, %c3, %c0_94, %c0_95] : memref<1x9x8x16xbf16, #tpu.memory_space<vmem>>, vector<1x1x8x16xbf16>
    %232 = vector.shape_cast %231 : vector<1x1x8x16xbf16> to vector<8x16xbf16>
    %c0_96 = arith.constant 0 : index
    %c18 = arith.constant 18 : index
    %233 = vector.load %arg13[%c0_96, %c18] : memref<16x326xbf16, #tpu.memory_space<vmem>>, vector<16x288xbf16>
    %cst_97 = arith.constant dense<0.000000e+00> : vector<8x288xf32>
    %234 = tpu.matmul %232, %233, %cst_97 {dimension_numbers = #tpu.dot_dimension_numbers<[1], [0], [0], [1], [0, 0, 1, 1], [], []>} : vector<8x16xbf16>, vector<16x288xbf16>, vector<8x288xf32> -> vector<8x288xf32>
    %235 = arith.addf %230, %234 : vector<8x288xf32>
    %c0_98 = arith.constant 0 : index
    %c4 = arith.constant 4 : index
    %c0_99 = arith.constant 0 : index
    %c0_100 = arith.constant 0 : index
    %236 = vector.load %arg2[%c0_98, %c4, %c0_99, %c0_100] : memref<1x9x8x16xbf16, #tpu.memory_space<vmem>>, vector<1x1x8x16xbf16>
    %237 = vector.shape_cast %236 : vector<1x1x8x16xbf16> to vector<8x16xbf16>
    %c0_101 = arith.constant 0 : index
    %c19_102 = arith.constant 19 : index
    %238 = vector.load %arg13[%c0_101, %c19_102] : memref<16x326xbf16, #tpu.memory_space<vmem>>, vector<16x288xbf16>
    %cst_103 = arith.constant dense<0.000000e+00> : vector<8x288xf32>
    %239 = tpu.matmul %237, %238, %cst_103 {dimension_numbers = #tpu.dot_dimension_numbers<[1], [0], [0], [1], [0, 0, 1, 1], [], []>} : vector<8x16xbf16>, vector<16x288xbf16>, vector<8x288xf32> -> vector<8x288xf32>
    %240 = arith.addf %235, %239 : vector<8x288xf32>
    %c0_104 = arith.constant 0 : index
    %c5 = arith.constant 5 : index
    %c0_105 = arith.constant 0 : index
    %c0_106 = arith.constant 0 : index
    %241 = vector.load %arg2[%c0_104, %c5, %c0_105, %c0_106] : memref<1x9x8x16xbf16, #tpu.memory_space<vmem>>, vector<1x1x8x16xbf16>
    %242 = vector.shape_cast %241 : vector<1x1x8x16xbf16> to vector<8x16xbf16>
    %c0_107 = arith.constant 0 : index
    %c20 = arith.constant 20 : index
    %243 = vector.load %arg13[%c0_107, %c20] : memref<16x326xbf16, #tpu.memory_space<vmem>>, vector<16x288xbf16>
    %cst_108 = arith.constant dense<0.000000e+00> : vector<8x288xf32>
    %244 = tpu.matmul %242, %243, %cst_108 {dimension_numbers = #tpu.dot_dimension_numbers<[1], [0], [0], [1], [0, 0, 1, 1], [], []>} : vector<8x16xbf16>, vector<16x288xbf16>, vector<8x288xf32> -> vector<8x288xf32>
    %245 = arith.addf %240, %244 : vector<8x288xf32>
    %c0_109 = arith.constant 0 : index
    %c6 = arith.constant 6 : index
    %c0_110 = arith.constant 0 : index
    %c0_111 = arith.constant 0 : index
    %246 = vector.load %arg2[%c0_109, %c6, %c0_110, %c0_111] : memref<1x9x8x16xbf16, #tpu.memory_space<vmem>>, vector<1x1x8x16xbf16>
    %247 = vector.shape_cast %246 : vector<1x1x8x16xbf16> to vector<8x16xbf16>
    %c0_112 = arith.constant 0 : index
    %c36 = arith.constant 36 : index
    %248 = vector.load %arg13[%c0_112, %c36] : memref<16x326xbf16, #tpu.memory_space<vmem>>, vector<16x288xbf16>
    %cst_113 = arith.constant dense<0.000000e+00> : vector<8x288xf32>
    %249 = tpu.matmul %247, %248, %cst_113 {dimension_numbers = #tpu.dot_dimension_numbers<[1], [0], [0], [1], [0, 0, 1, 1], [], []>} : vector<8x16xbf16>, vector<16x288xbf16>, vector<8x288xf32> -> vector<8x288xf32>
    %250 = arith.addf %245, %249 : vector<8x288xf32>
    %c0_114 = arith.constant 0 : index
    %c7 = arith.constant 7 : index
    %c0_115 = arith.constant 0 : index
    %c0_116 = arith.constant 0 : index
    %251 = vector.load %arg2[%c0_114, %c7, %c0_115, %c0_116] : memref<1x9x8x16xbf16, #tpu.memory_space<vmem>>, vector<1x1x8x16xbf16>
    %252 = vector.shape_cast %251 : vector<1x1x8x16xbf16> to vector<8x16xbf16>
    %c0_117 = arith.constant 0 : index
    %c37_118 = arith.constant 37 : index
    %253 = vector.load %arg13[%c0_117, %c37_118] : memref<16x326xbf16, #tpu.memory_space<vmem>>, vector<16x288xbf16>
    %cst_119 = arith.constant dense<0.000000e+00> : vector<8x288xf32>
    %254 = tpu.matmul %252, %253, %cst_119 {dimension_numbers = #tpu.dot_dimension_numbers<[1], [0], [0], [1], [0, 0, 1, 1], [], []>} : vector<8x16xbf16>, vector<16x288xbf16>, vector<8x288xf32> -> vector<8x288xf32>
    %255 = arith.addf %250, %254 : vector<8x288xf32>
    %c0_120 = arith.constant 0 : index
    %c8 = arith.constant 8 : index
    %c0_121 = arith.constant 0 : index
    %c0_122 = arith.constant 0 : index
    %256 = vector.load %arg2[%c0_120, %c8, %c0_121, %c0_122] : memref<1x9x8x16xbf16, #tpu.memory_space<vmem>>, vector<1x1x8x16xbf16>
    %257 = vector.shape_cast %256 : vector<1x1x8x16xbf16> to vector<8x16xbf16>
    %c0_123 = arith.constant 0 : index
    %c38 = arith.constant 38 : index
    %258 = vector.load %arg13[%c0_123, %c38] : memref<16x326xbf16, #tpu.memory_space<vmem>>, vector<16x288xbf16>
    %cst_124 = arith.constant dense<0.000000e+00> : vector<8x288xf32>
    %259 = tpu.matmul %257, %258, %cst_124 {dimension_numbers = #tpu.dot_dimension_numbers<[1], [0], [0], [1], [0, 0, 1, 1], [], []>} : vector<8x16xbf16>, vector<16x288xbf16>, vector<8x288xf32> -> vector<8x288xf32>
    %260 = arith.addf %255, %259 : vector<8x288xf32>
    %c0_125 = arith.constant 0 : index
    %c0_126 = arith.constant 0 : index
    %261 = vector.load %arg3[%c0_125, %c0_126] : memref<8x1xf32, #tpu.memory_space<vmem>>, vector<8x1xf32>
    %262 = vector.broadcast %261 : vector<8x1xf32> to vector<8x288xf32>
    %263 = arith.addf %260, %262 : vector<8x288xf32>
    %cst_127 = arith.constant 2.000000e-01 : f32
    %264 = vector.broadcast %cst_127 : f32 to vector<8x288xf32>
    %265 = arith.mulf %264, %263 : vector<8x288xf32>
    %266 = arith.maximumf %263, %265 : vector<8x288xf32>
    %267 = vector.broadcast %0 : vector<1x288xf32> to vector<8x288xf32>
    %268 = arith.mulf %266, %267 : vector<8x288xf32>
    %269 = arith.truncf %268 : vector<8x288xf32> to vector<8x288xbf16>
    %cst_128 = arith.constant 0.000000e+00 : bf16
    %270 = vector.broadcast %cst_128 : bf16 to vector<8x19xbf16>
    %c0_129 = arith.constant 0 : index
    %c0_130 = arith.constant 0 : index
    %271 = vector.load %arg14[%c0_129, %c0_130] : memref<8x326xbf16, #tpu.memory_space<vmem>>, vector<8x19xbf16>
    tpu.vector_store %arg14[%c0_129, %c0_130], %270 {strides = array<i32>} : memref<8x326xbf16, #tpu.memory_space<vmem>>, vector<8x19xbf16>,
    %cst_131 = arith.constant 0.000000e+00 : bf16
    %272 = vector.broadcast %cst_131 : bf16 to vector<8x19xbf16>
    %c0_132 = arith.constant 0 : index
    %c307_133 = arith.constant 307 : index
    %273 = vector.load %arg14[%c0_132, %c307_133] : memref<8x326xbf16, #tpu.memory_space<vmem>>, vector<8x19xbf16>
    tpu.vector_store %arg14[%c0_132, %c307_133], %272 {strides = array<i32>} : memref<8x326xbf16, #tpu.memory_space<vmem>>, vector<8x19xbf16>,
    %c0_134 = arith.constant 0 : index
    %c19_135 = arith.constant 19 : index
    %274 = vector.load %arg14[%c0_134, %c19_135] : memref<8x326xbf16, #tpu.memory_space<vmem>>, vector<8x288xbf16>
    tpu.vector_store %arg14[%c0_134, %c19_135], %269 {strides = array<i32>} : memref<8x326xbf16, #tpu.memory_space<vmem>>, vector<8x288xbf16>,
    %c0_136 = arith.constant 0 : index
    %c0_137 = arith.constant 0 : index
    %c0_138 = arith.constant 0 : index
    %c0_139 = arith.constant 0 : index
    %275 = vector.load %arg4[%c0_136, %c0_137, %c0_138, %c0_139] : memref<1x9x8x8xbf16, #tpu.memory_space<vmem>>, vector<1x1x8x8xbf16>
    %276 = vector.shape_cast %275 : vector<1x1x8x8xbf16> to vector<8x8xbf16>
    %c0_140 = arith.constant 0 : index
    %c0_141 = arith.constant 0 : index
    %277 = vector.load %arg14[%c0_140, %c0_141] : memref<8x326xbf16, #tpu.memory_space<vmem>>, vector<8x288xbf16>
    %cst_142 = arith.constant dense<0.000000e+00> : vector<8x288xf32>
    %278 = tpu.matmul %276, %277, %cst_142 {dimension_numbers = #tpu.dot_dimension_numbers<[1], [0], [0], [1], [0, 0, 1, 1], [], []>} : vector<8x8xbf16>, vector<8x288xbf16>, vector<8x288xf32> -> vector<8x288xf32>
    %c0_143 = arith.constant 0 : index
    %c1_144 = arith.constant 1 : index
    %c0_145 = arith.constant 0 : index
    %c0_146 = arith.constant 0 : index
    %279 = vector.load %arg4[%c0_143, %c1_144, %c0_145, %c0_146] : memref<1x9x8x8xbf16, #tpu.memory_space<vmem>>, vector<1x1x8x8xbf16>
    %280 = vector.shape_cast %279 : vector<1x1x8x8xbf16> to vector<8x8xbf16>
    %c0_147 = arith.constant 0 : index
    %c1_148 = arith.constant 1 : index
    %281 = vector.load %arg14[%c0_147, %c1_148] : memref<8x326xbf16, #tpu.memory_space<vmem>>, vector<8x288xbf16>
    %cst_149 = arith.constant dense<0.000000e+00> : vector<8x288xf32>
    %282 = tpu.matmul %280, %281, %cst_149 {dimension_numbers = #tpu.dot_dimension_numbers<[1], [0], [0], [1], [0, 0, 1, 1], [], []>} : vector<8x8xbf16>, vector<8x288xbf16>, vector<8x288xf32> -> vector<8x288xf32>
    %283 = arith.addf %278, %282 : vector<8x288xf32>
    %c0_150 = arith.constant 0 : index
    %c2_151 = arith.constant 2 : index
    %c0_152 = arith.constant 0 : index
    %c0_153 = arith.constant 0 : index
    %284 = vector.load %arg4[%c0_150, %c2_151, %c0_152, %c0_153] : memref<1x9x8x8xbf16, #tpu.memory_space<vmem>>, vector<1x1x8x8xbf16>
    %285 = vector.shape_cast %284 : vector<1x1x8x8xbf16> to vector<8x8xbf16>
    %c0_154 = arith.constant 0 : index
    %c2_155 = arith.constant 2 : index
    %286 = vector.load %arg14[%c0_154, %c2_155] : memref<8x326xbf16, #tpu.memory_space<vmem>>, vector<8x288xbf16>
    %cst_156 = arith.constant dense<0.000000e+00> : vector<8x288xf32>
    %287 = tpu.matmul %285, %286, %cst_156 {dimension_numbers = #tpu.dot_dimension_numbers<[1], [0], [0], [1], [0, 0, 1, 1], [], []>} : vector<8x8xbf16>, vector<8x288xbf16>, vector<8x288xf32> -> vector<8x288xf32>
    %288 = arith.addf %283, %287 : vector<8x288xf32>
    %c0_157 = arith.constant 0 : index
    %c3_158 = arith.constant 3 : index
    %c0_159 = arith.constant 0 : index
    %c0_160 = arith.constant 0 : index
    %289 = vector.load %arg4[%c0_157, %c3_158, %c0_159, %c0_160] : memref<1x9x8x8xbf16, #tpu.memory_space<vmem>>, vector<1x1x8x8xbf16>
    %290 = vector.shape_cast %289 : vector<1x1x8x8xbf16> to vector<8x8xbf16>
    %c0_161 = arith.constant 0 : index
    %c18_162 = arith.constant 18 : index
    %291 = vector.load %arg14[%c0_161, %c18_162] : memref<8x326xbf16, #tpu.memory_space<vmem>>, vector<8x288xbf16>
    %cst_163 = arith.constant dense<0.000000e+00> : vector<8x288xf32>
    %292 = tpu.matmul %290, %291, %cst_163 {dimension_numbers = #tpu.dot_dimension_numbers<[1], [0], [0], [1], [0, 0, 1, 1], [], []>} : vector<8x8xbf16>, vector<8x288xbf16>, vector<8x288xf32> -> vector<8x288xf32>
    %293 = arith.addf %288, %292 : vector<8x288xf32>
    %c0_164 = arith.constant 0 : index
    %c4_165 = arith.constant 4 : index
    %c0_166 = arith.constant 0 : index
    %c0_167 = arith.constant 0 : index
    %294 = vector.load %arg4[%c0_164, %c4_165, %c0_166, %c0_167] : memref<1x9x8x8xbf16, #tpu.memory_space<vmem>>, vector<1x1x8x8xbf16>
    %295 = vector.shape_cast %294 : vector<1x1x8x8xbf16> to vector<8x8xbf16>
    %c0_168 = arith.constant 0 : index
    %c19_169 = arith.constant 19 : index
    %296 = vector.load %arg14[%c0_168, %c19_169] : memref<8x326xbf16, #tpu.memory_space<vmem>>, vector<8x288xbf16>
    %cst_170 = arith.constant dense<0.000000e+00> : vector<8x288xf32>
    %297 = tpu.matmul %295, %296, %cst_170 {dimension_numbers = #tpu.dot_dimension_numbers<[1], [0], [0], [1], [0, 0, 1, 1], [], []>} : vector<8x8xbf16>, vector<8x288xbf16>, vector<8x288xf32> -> vector<8x288xf32>
    %298 = arith.addf %293, %297 : vector<8x288xf32>
    %c0_171 = arith.constant 0 : index
    %c5_172 = arith.constant 5 : index
    %c0_173 = arith.constant 0 : index
    %c0_174 = arith.constant 0 : index
    %299 = vector.load %arg4[%c0_171, %c5_172, %c0_173, %c0_174] : memref<1x9x8x8xbf16, #tpu.memory_space<vmem>>, vector<1x1x8x8xbf16>
    %300 = vector.shape_cast %299 : vector<1x1x8x8xbf16> to vector<8x8xbf16>
    %c0_175 = arith.constant 0 : index
    %c20_176 = arith.constant 20 : index
    %301 = vector.load %arg14[%c0_175, %c20_176] : memref<8x326xbf16, #tpu.memory_space<vmem>>, vector<8x288xbf16>
    %cst_177 = arith.constant dense<0.000000e+00> : vector<8x288xf32>
    %302 = tpu.matmul %300, %301, %cst_177 {dimension_numbers = #tpu.dot_dimension_numbers<[1], [0], [0], [1], [0, 0, 1, 1], [], []>} : vector<8x8xbf16>, vector<8x288xbf16>, vector<8x288xf32> -> vector<8x288xf32>
    %303 = arith.addf %298, %302 : vector<8x288xf32>
    %c0_178 = arith.constant 0 : index
    %c6_179 = arith.constant 6 : index
    %c0_180 = arith.constant 0 : index
    %c0_181 = arith.constant 0 : index
    %304 = vector.load %arg4[%c0_178, %c6_179, %c0_180, %c0_181] : memref<1x9x8x8xbf16, #tpu.memory_space<vmem>>, vector<1x1x8x8xbf16>
    %305 = vector.shape_cast %304 : vector<1x1x8x8xbf16> to vector<8x8xbf16>
    %c0_182 = arith.constant 0 : index
    %c36_183 = arith.constant 36 : index
    %306 = vector.load %arg14[%c0_182, %c36_183] : memref<8x326xbf16, #tpu.memory_space<vmem>>, vector<8x288xbf16>
    %cst_184 = arith.constant dense<0.000000e+00> : vector<8x288xf32>
    %307 = tpu.matmul %305, %306, %cst_184 {dimension_numbers = #tpu.dot_dimension_numbers<[1], [0], [0], [1], [0, 0, 1, 1], [], []>} : vector<8x8xbf16>, vector<8x288xbf16>, vector<8x288xf32> -> vector<8x288xf32>
    %308 = arith.addf %303, %307 : vector<8x288xf32>
    %c0_185 = arith.constant 0 : index
    %c7_186 = arith.constant 7 : index
    %c0_187 = arith.constant 0 : index
    %c0_188 = arith.constant 0 : index
    %309 = vector.load %arg4[%c0_185, %c7_186, %c0_187, %c0_188] : memref<1x9x8x8xbf16, #tpu.memory_space<vmem>>, vector<1x1x8x8xbf16>
    %310 = vector.shape_cast %309 : vector<1x1x8x8xbf16> to vector<8x8xbf16>
    %c0_189 = arith.constant 0 : index
    %c37_190 = arith.constant 37 : index
    %311 = vector.load %arg14[%c0_189, %c37_190] : memref<8x326xbf16, #tpu.memory_space<vmem>>, vector<8x288xbf16>
    %cst_191 = arith.constant dense<0.000000e+00> : vector<8x288xf32>
    %312 = tpu.matmul %310, %311, %cst_191 {dimension_numbers = #tpu.dot_dimension_numbers<[1], [0], [0], [1], [0, 0, 1, 1], [], []>} : vector<8x8xbf16>, vector<8x288xbf16>, vector<8x288xf32> -> vector<8x288xf32>
    %313 = arith.addf %308, %312 : vector<8x288xf32>
    %c0_192 = arith.constant 0 : index
    %c8_193 = arith.constant 8 : index
    %c0_194 = arith.constant 0 : index
    %c0_195 = arith.constant 0 : index
    %314 = vector.load %arg4[%c0_192, %c8_193, %c0_194, %c0_195] : memref<1x9x8x8xbf16, #tpu.memory_space<vmem>>, vector<1x1x8x8xbf16>
    %315 = vector.shape_cast %314 : vector<1x1x8x8xbf16> to vector<8x8xbf16>
    %c0_196 = arith.constant 0 : index
    %c38_197 = arith.constant 38 : index
    %316 = vector.load %arg14[%c0_196, %c38_197] : memref<8x326xbf16, #tpu.memory_space<vmem>>, vector<8x288xbf16>
    %cst_198 = arith.constant dense<0.000000e+00> : vector<8x288xf32>
    %317 = tpu.matmul %315, %316, %cst_198 {dimension_numbers = #tpu.dot_dimension_numbers<[1], [0], [0], [1], [0, 0, 1, 1], [], []>} : vector<8x8xbf16>, vector<8x288xbf16>, vector<8x288xf32> -> vector<8x288xf32>
    %318 = arith.addf %313, %317 : vector<8x288xf32>
    %c0_199 = arith.constant 0 : index
    %c0_200 = arith.constant 0 : index
    %319 = vector.load %arg5[%c0_199, %c0_200] : memref<8x1xf32, #tpu.memory_space<vmem>>, vector<8x1xf32>
    %320 = vector.broadcast %319 : vector<8x1xf32> to vector<8x288xf32>
    %321 = arith.addf %318, %320 : vector<8x288xf32>
    %cst_201 = arith.constant 2.000000e-01 : f32
    %322 = vector.broadcast %cst_201 : f32 to vector<8x288xf32>
    %323 = arith.mulf %322, %321 : vector<8x288xf32>
    %324 = arith.maximumf %321, %323 : vector<8x288xf32>
    %325 = vector.broadcast %0 : vector<1x288xf32> to vector<8x288xf32>
    %326 = arith.mulf %324, %325 : vector<8x288xf32>
    %327 = arith.truncf %326 : vector<8x288xf32> to vector<8x288xbf16>
    %c0_202 = arith.constant 0 : index
    %c0_203 = arith.constant 0 : index
    %c0_204 = arith.constant 0 : index
    %328 = vector.load %arg11[%c0_202, %c0_203, %c0_204] : memref<1x8x288xbf16, #tpu.memory_space<vmem>>, vector<1x8x288xbf16>
    %329 = vector.shape_cast %328 : vector<1x8x288xbf16> to vector<8x288xbf16>
    %330 = vector.shape_cast %327 : vector<8x288xbf16> to vector<1x8x288xbf16>
    tpu.vector_store %arg11[%c0_202, %c0_203, %c0_204], %330 {strides = array<i32>} : memref<1x8x288xbf16, #tpu.memory_space<vmem>>, vector<1x8x288xbf16>,
    %c0_205 = arith.constant 0 : index
    %c0_206 = arith.constant 0 : index
    %c0_207 = arith.constant 0 : index
    %331 = vector.load %arg6[%c0_205, %c0_206, %c0_207] : memref<1x4x8xbf16, #tpu.memory_space<vmem>>, vector<1x4x8xbf16>
    %332 = vector.shape_cast %331 : vector<1x4x8xbf16> to vector<4x8xbf16>
    %cst_208 = arith.constant dense<0.000000e+00> : vector<4x288xf32>
    %333 = tpu.matmul %332, %327, %cst_208 {dimension_numbers = #tpu.dot_dimension_numbers<[1], [0], [0], [1], [0, 0, 1, 1], [], []>} : vector<4x8xbf16>, vector<8x288xbf16>, vector<4x288xf32> -> vector<4x288xf32>
    %c0_209 = arith.constant 0 : index
    %c0_210 = arith.constant 0 : index
    %334 = vector.load %arg7[%c0_209, %c0_210] : memref<4x1xf32, #tpu.memory_space<vmem>>, vector<4x1xf32>
    %335 = vector.broadcast %334 : vector<4x1xf32> to vector<4x288xf32>
    %336 = arith.addf %333, %335 : vector<4x288xf32>
    %c0_211 = arith.constant 0 : index
    %c0_212 = arith.constant 0 : index
    %c0_213 = arith.constant 0 : index
    %337 = vector.load %arg10[%c0_211, %c0_212, %c0_213] : memref<1x4x80xf32, #tpu.memory_space<vmem>>, vector<1x4x80xf32>
    %338 = vector.shape_cast %337 : vector<1x4x80xf32> to vector<4x80xf32>
    %c0_214 = arith.constant 0 : index
    %c0_215 = arith.constant 0 : index
    %339 = vector.load %arg9[%c0_214, %c0_215] : memref<10x18xf32, #tpu.memory_space<vmem>>, vector<10x18xf32>
    %340 = vector.extract_strided_slice %338 {offsets = [0, 0], sizes = [4, 10], strides = [1, 1]} : vector<4x80xf32> to vector<4x10xf32>
    %341 = vector.extract_strided_slice %338 {offsets = [0, 0], sizes = [4, 10], strides = [1, 1]} : vector<4x80xf32> to vector<4x10xf32>
    %cst_216 = arith.constant 7.500000e-01 : f32
    %342 = vector.broadcast %cst_216 : f32 to vector<4x10xf32>
    %343 = arith.mulf %342, %340 : vector<4x10xf32>
    %cst_217 = arith.constant 2.500000e-01 : f32
    %344 = vector.broadcast %cst_217 : f32 to vector<4x10xf32>
    %345 = arith.mulf %344, %341 : vector<4x10xf32>
    %346 = arith.addf %343, %345 : vector<4x10xf32>
    %cst_218 = arith.constant dense<0.000000e+00> : vector<4x18xf32>
    %347 = tpu.matmul %346, %339, %cst_218 {dimension_numbers = #tpu.dot_dimension_numbers<[1], [0], [0], [1], [0, 0, 1, 1], [], []>} : vector<4x10xf32>, vector<10x18xf32>, vector<4x18xf32> -> vector<4x18xf32>
    %c0_219 = arith.constant 0 : index
    %c0_220 = arith.constant 0 : index
    %348 = vector.load %arg15[%c0_219, %c0_220] : memref<4x288xf32, #tpu.memory_space<vmem>>, vector<4x18xf32>
    tpu.vector_store %arg15[%c0_219, %c0_220], %347 {strides = array<i32>} : memref<4x288xf32, #tpu.memory_space<vmem>>, vector<4x18xf32>,
    %349 = vector.extract_strided_slice %338 {offsets = [0, 0], sizes = [4, 10], strides = [1, 1]} : vector<4x80xf32> to vector<4x10xf32>
    %350 = vector.extract_strided_slice %338 {offsets = [0, 10], sizes = [4, 10], strides = [1, 1]} : vector<4x80xf32> to vector<4x10xf32>
    %cst_221 = arith.constant 7.500000e-01 : f32
    %351 = vector.broadcast %cst_221 : f32 to vector<4x10xf32>
    %352 = arith.mulf %351, %349 : vector<4x10xf32>
    %cst_222 = arith.constant 2.500000e-01 : f32
    %353 = vector.broadcast %cst_222 : f32 to vector<4x10xf32>
    %354 = arith.mulf %353, %350 : vector<4x10xf32>
    %355 = arith.addf %352, %354 : vector<4x10xf32>
    %cst_223 = arith.constant dense<0.000000e+00> : vector<4x18xf32>
    %356 = tpu.matmul %355, %339, %cst_223 {dimension_numbers = #tpu.dot_dimension_numbers<[1], [0], [0], [1], [0, 0, 1, 1], [], []>} : vector<4x10xf32>, vector<10x18xf32>, vector<4x18xf32> -> vector<4x18xf32>
    %c0_224 = arith.constant 0 : index
    %c18_225 = arith.constant 18 : index
    %357 = vector.load %arg15[%c0_224, %c18_225] : memref<4x288xf32, #tpu.memory_space<vmem>>, vector<4x18xf32>
    tpu.vector_store %arg15[%c0_224, %c18_225], %356 {strides = array<i32>} : memref<4x288xf32, #tpu.memory_space<vmem>>, vector<4x18xf32>,
    %358 = vector.extract_strided_slice %338 {offsets = [0, 10], sizes = [4, 10], strides = [1, 1]} : vector<4x80xf32> to vector<4x10xf32>
    %359 = vector.extract_strided_slice %338 {offsets = [0, 0], sizes = [4, 10], strides = [1, 1]} : vector<4x80xf32> to vector<4x10xf32>
    %cst_226 = arith.constant 7.500000e-01 : f32
    %360 = vector.broadcast %cst_226 : f32 to vector<4x10xf32>
    %361 = arith.mulf %360, %358 : vector<4x10xf32>
    %cst_227 = arith.constant 2.500000e-01 : f32
    %362 = vector.broadcast %cst_227 : f32 to vector<4x10xf32>
    %363 = arith.mulf %362, %359 : vector<4x10xf32>
    %364 = arith.addf %361, %363 : vector<4x10xf32>
    %cst_228 = arith.constant dense<0.000000e+00> : vector<4x18xf32>
    %365 = tpu.matmul %364, %339, %cst_228 {dimension_numbers = #tpu.dot_dimension_numbers<[1], [0], [0], [1], [0, 0, 1, 1], [], []>} : vector<4x10xf32>, vector<10x18xf32>, vector<4x18xf32> -> vector<4x18xf32>
    %c0_229 = arith.constant 0 : index
    %c36_230 = arith.constant 36 : index
    %366 = vector.load %arg15[%c0_229, %c36_230] : memref<4x288xf32, #tpu.memory_space<vmem>>, vector<4x18xf32>
    tpu.vector_store %arg15[%c0_229, %c36_230], %365 {strides = array<i32>} : memref<4x288xf32, #tpu.memory_space<vmem>>, vector<4x18xf32>,
    %367 = vector.extract_strided_slice %338 {offsets = [0, 10], sizes = [4, 10], strides = [1, 1]} : vector<4x80xf32> to vector<4x10xf32>
    %368 = vector.extract_strided_slice %338 {offsets = [0, 20], sizes = [4, 10], strides = [1, 1]} : vector<4x80xf32> to vector<4x10xf32>
    %cst_231 = arith.constant 7.500000e-01 : f32
    %369 = vector.broadcast %cst_231 : f32 to vector<4x10xf32>
    %370 = arith.mulf %369, %367 : vector<4x10xf32>
    %cst_232 = arith.constant 2.500000e-01 : f32
    %371 = vector.broadcast %cst_232 : f32 to vector<4x10xf32>
    %372 = arith.mulf %371, %368 : vector<4x10xf32>
    %373 = arith.addf %370, %372 : vector<4x10xf32>
    %cst_233 = arith.constant dense<0.000000e+00> : vector<4x18xf32>
    %374 = tpu.matmul %373, %339, %cst_233 {dimension_numbers = #tpu.dot_dimension_numbers<[1], [0], [0], [1], [0, 0, 1, 1], [], []>} : vector<4x10xf32>, vector<10x18xf32>, vector<4x18xf32> -> vector<4x18xf32>
    %c0_234 = arith.constant 0 : index
    %c54 = arith.constant 54 : index
    %375 = vector.load %arg15[%c0_234, %c54] : memref<4x288xf32, #tpu.memory_space<vmem>>, vector<4x18xf32>
    tpu.vector_store %arg15[%c0_234, %c54], %374 {strides = array<i32>} : memref<4x288xf32, #tpu.memory_space<vmem>>, vector<4x18xf32>,
    %376 = vector.extract_strided_slice %338 {offsets = [0, 20], sizes = [4, 10], strides = [1, 1]} : vector<4x80xf32> to vector<4x10xf32>
    %377 = vector.extract_strided_slice %338 {offsets = [0, 10], sizes = [4, 10], strides = [1, 1]} : vector<4x80xf32> to vector<4x10xf32>
    %cst_235 = arith.constant 7.500000e-01 : f32
    %378 = vector.broadcast %cst_235 : f32 to vector<4x10xf32>
    %379 = arith.mulf %378, %376 : vector<4x10xf32>
    %cst_236 = arith.constant 2.500000e-01 : f32
    %380 = vector.broadcast %cst_236 : f32 to vector<4x10xf32>
    %381 = arith.mulf %380, %377 : vector<4x10xf32>
    %382 = arith.addf %379, %381 : vector<4x10xf32>
    %cst_237 = arith.constant dense<0.000000e+00> : vector<4x18xf32>
    %383 = tpu.matmul %382, %339, %cst_237 {dimension_numbers = #tpu.dot_dimension_numbers<[1], [0], [0], [1], [0, 0, 1, 1], [], []>} : vector<4x10xf32>, vector<10x18xf32>, vector<4x18xf32> -> vector<4x18xf32>
    %c0_238 = arith.constant 0 : index
    %c72 = arith.constant 72 : index
    %384 = vector.load %arg15[%c0_238, %c72] : memref<4x288xf32, #tpu.memory_space<vmem>>, vector<4x18xf32>
    tpu.vector_store %arg15[%c0_238, %c72], %383 {strides = array<i32>} : memref<4x288xf32, #tpu.memory_space<vmem>>, vector<4x18xf32>,
    %385 = vector.extract_strided_slice %338 {offsets = [0, 20], sizes = [4, 10], strides = [1, 1]} : vector<4x80xf32> to vector<4x10xf32>
    %386 = vector.extract_strided_slice %338 {offsets = [0, 30], sizes = [4, 10], strides = [1, 1]} : vector<4x80xf32> to vector<4x10xf32>
    %cst_239 = arith.constant 7.500000e-01 : f32
    %387 = vector.broadcast %cst_239 : f32 to vector<4x10xf32>
    %388 = arith.mulf %387, %385 : vector<4x10xf32>
    %cst_240 = arith.constant 2.500000e-01 : f32
    %389 = vector.broadcast %cst_240 : f32 to vector<4x10xf32>
    %390 = arith.mulf %389, %386 : vector<4x10xf32>
    %391 = arith.addf %388, %390 : vector<4x10xf32>
    %cst_241 = arith.constant dense<0.000000e+00> : vector<4x18xf32>
    %392 = tpu.matmul %391, %339, %cst_241 {dimension_numbers = #tpu.dot_dimension_numbers<[1], [0], [0], [1], [0, 0, 1, 1], [], []>} : vector<4x10xf32>, vector<10x18xf32>, vector<4x18xf32> -> vector<4x18xf32>
    %c0_242 = arith.constant 0 : index
    %c90 = arith.constant 90 : index
    %393 = vector.load %arg15[%c0_242, %c90] : memref<4x288xf32, #tpu.memory_space<vmem>>, vector<4x18xf32>
    tpu.vector_store %arg15[%c0_242, %c90], %392 {strides = array<i32>} : memref<4x288xf32, #tpu.memory_space<vmem>>, vector<4x18xf32>,
    %394 = vector.extract_strided_slice %338 {offsets = [0, 30], sizes = [4, 10], strides = [1, 1]} : vector<4x80xf32> to vector<4x10xf32>
    %395 = vector.extract_strided_slice %338 {offsets = [0, 20], sizes = [4, 10], strides = [1, 1]} : vector<4x80xf32> to vector<4x10xf32>
    %cst_243 = arith.constant 7.500000e-01 : f32
    %396 = vector.broadcast %cst_243 : f32 to vector<4x10xf32>
    %397 = arith.mulf %396, %394 : vector<4x10xf32>
    %cst_244 = arith.constant 2.500000e-01 : f32
    %398 = vector.broadcast %cst_244 : f32 to vector<4x10xf32>
    %399 = arith.mulf %398, %395 : vector<4x10xf32>
    %400 = arith.addf %397, %399 : vector<4x10xf32>
    %cst_245 = arith.constant dense<0.000000e+00> : vector<4x18xf32>
    %401 = tpu.matmul %400, %339, %cst_245 {dimension_numbers = #tpu.dot_dimension_numbers<[1], [0], [0], [1], [0, 0, 1, 1], [], []>} : vector<4x10xf32>, vector<10x18xf32>, vector<4x18xf32> -> vector<4x18xf32>
    %c0_246 = arith.constant 0 : index
    %c108 = arith.constant 108 : index
    %402 = vector.load %arg15[%c0_246, %c108] : memref<4x288xf32, #tpu.memory_space<vmem>>, vector<4x18xf32>
    tpu.vector_store %arg15[%c0_246, %c108], %401 {strides = array<i32>} : memref<4x288xf32, #tpu.memory_space<vmem>>, vector<4x18xf32>,
    %403 = vector.extract_strided_slice %338 {offsets = [0, 30], sizes = [4, 10], strides = [1, 1]} : vector<4x80xf32> to vector<4x10xf32>
    %404 = vector.extract_strided_slice %338 {offsets = [0, 40], sizes = [4, 10], strides = [1, 1]} : vector<4x80xf32> to vector<4x10xf32>
    %cst_247 = arith.constant 7.500000e-01 : f32
    %405 = vector.broadcast %cst_247 : f32 to vector<4x10xf32>
    %406 = arith.mulf %405, %403 : vector<4x10xf32>
    %cst_248 = arith.constant 2.500000e-01 : f32
    %407 = vector.broadcast %cst_248 : f32 to vector<4x10xf32>
    %408 = arith.mulf %407, %404 : vector<4x10xf32>
    %409 = arith.addf %406, %408 : vector<4x10xf32>
    %cst_249 = arith.constant dense<0.000000e+00> : vector<4x18xf32>
    %410 = tpu.matmul %409, %339, %cst_249 {dimension_numbers = #tpu.dot_dimension_numbers<[1], [0], [0], [1], [0, 0, 1, 1], [], []>} : vector<4x10xf32>, vector<10x18xf32>, vector<4x18xf32> -> vector<4x18xf32>
    %c0_250 = arith.constant 0 : index
    %c126 = arith.constant 126 : index
    %411 = vector.load %arg15[%c0_250, %c126] : memref<4x288xf32, #tpu.memory_space<vmem>>, vector<4x18xf32>
    tpu.vector_store %arg15[%c0_250, %c126], %410 {strides = array<i32>} : memref<4x288xf32, #tpu.memory_space<vmem>>, vector<4x18xf32>,
    %412 = vector.extract_strided_slice %338 {offsets = [0, 40], sizes = [4, 10], strides = [1, 1]} : vector<4x80xf32> to vector<4x10xf32>
    %413 = vector.extract_strided_slice %338 {offsets = [0, 30], sizes = [4, 10], strides = [1, 1]} : vector<4x80xf32> to vector<4x10xf32>
    %cst_251 = arith.constant 7.500000e-01 : f32
    %414 = vector.broadcast %cst_251 : f32 to vector<4x10xf32>
    %415 = arith.mulf %414, %412 : vector<4x10xf32>
    %cst_252 = arith.constant 2.500000e-01 : f32
    %416 = vector.broadcast %cst_252 : f32 to vector<4x10xf32>
    %417 = arith.mulf %416, %413 : vector<4x10xf32>
    %418 = arith.addf %415, %417 : vector<4x10xf32>
    %cst_253 = arith.constant dense<0.000000e+00> : vector<4x18xf32>
    %419 = tpu.matmul %418, %339, %cst_253 {dimension_numbers = #tpu.dot_dimension_numbers<[1], [0], [0], [1], [0, 0, 1, 1], [], []>} : vector<4x10xf32>, vector<10x18xf32>, vector<4x18xf32> -> vector<4x18xf32>
    %c0_254 = arith.constant 0 : index
    %c144 = arith.constant 144 : index
    %420 = vector.load %arg15[%c0_254, %c144] : memref<4x288xf32, #tpu.memory_space<vmem>>, vector<4x18xf32>
    tpu.vector_store %arg15[%c0_254, %c144], %419 {strides = array<i32>} : memref<4x288xf32, #tpu.memory_space<vmem>>, vector<4x18xf32>,
    %421 = vector.extract_strided_slice %338 {offsets = [0, 40], sizes = [4, 10], strides = [1, 1]} : vector<4x80xf32> to vector<4x10xf32>
    %422 = vector.extract_strided_slice %338 {offsets = [0, 50], sizes = [4, 10], strides = [1, 1]} : vector<4x80xf32> to vector<4x10xf32>
    %cst_255 = arith.constant 7.500000e-01 : f32
    %423 = vector.broadcast %cst_255 : f32 to vector<4x10xf32>
    %424 = arith.mulf %423, %421 : vector<4x10xf32>
    %cst_256 = arith.constant 2.500000e-01 : f32
    %425 = vector.broadcast %cst_256 : f32 to vector<4x10xf32>
    %426 = arith.mulf %425, %422 : vector<4x10xf32>
    %427 = arith.addf %424, %426 : vector<4x10xf32>
    %cst_257 = arith.constant dense<0.000000e+00> : vector<4x18xf32>
    %428 = tpu.matmul %427, %339, %cst_257 {dimension_numbers = #tpu.dot_dimension_numbers<[1], [0], [0], [1], [0, 0, 1, 1], [], []>} : vector<4x10xf32>, vector<10x18xf32>, vector<4x18xf32> -> vector<4x18xf32>
    %c0_258 = arith.constant 0 : index
    %c162 = arith.constant 162 : index
    %429 = vector.load %arg15[%c0_258, %c162] : memref<4x288xf32, #tpu.memory_space<vmem>>, vector<4x18xf32>
    tpu.vector_store %arg15[%c0_258, %c162], %428 {strides = array<i32>} : memref<4x288xf32, #tpu.memory_space<vmem>>, vector<4x18xf32>,
    %430 = vector.extract_strided_slice %338 {offsets = [0, 50], sizes = [4, 10], strides = [1, 1]} : vector<4x80xf32> to vector<4x10xf32>
    %431 = vector.extract_strided_slice %338 {offsets = [0, 40], sizes = [4, 10], strides = [1, 1]} : vector<4x80xf32> to vector<4x10xf32>
    %cst_259 = arith.constant 7.500000e-01 : f32
    %432 = vector.broadcast %cst_259 : f32 to vector<4x10xf32>
    %433 = arith.mulf %432, %430 : vector<4x10xf32>
    %cst_260 = arith.constant 2.500000e-01 : f32
    %434 = vector.broadcast %cst_260 : f32 to vector<4x10xf32>
    %435 = arith.mulf %434, %431 : vector<4x10xf32>
    %436 = arith.addf %433, %435 : vector<4x10xf32>
    %cst_261 = arith.constant dense<0.000000e+00> : vector<4x18xf32>
    %437 = tpu.matmul %436, %339, %cst_261 {dimension_numbers = #tpu.dot_dimension_numbers<[1], [0], [0], [1], [0, 0, 1, 1], [], []>} : vector<4x10xf32>, vector<10x18xf32>, vector<4x18xf32> -> vector<4x18xf32>
    %c0_262 = arith.constant 0 : index
    %c180 = arith.constant 180 : index
    %438 = vector.load %arg15[%c0_262, %c180] : memref<4x288xf32, #tpu.memory_space<vmem>>, vector<4x18xf32>
    tpu.vector_store %arg15[%c0_262, %c180], %437 {strides = array<i32>} : memref<4x288xf32, #tpu.memory_space<vmem>>, vector<4x18xf32>,
    %439 = vector.extract_strided_slice %338 {offsets = [0, 50], sizes = [4, 10], strides = [1, 1]} : vector<4x80xf32> to vector<4x10xf32>
    %440 = vector.extract_strided_slice %338 {offsets = [0, 60], sizes = [4, 10], strides = [1, 1]} : vector<4x80xf32> to vector<4x10xf32>
    %cst_263 = arith.constant 7.500000e-01 : f32
    %441 = vector.broadcast %cst_263 : f32 to vector<4x10xf32>
    %442 = arith.mulf %441, %439 : vector<4x10xf32>
    %cst_264 = arith.constant 2.500000e-01 : f32
    %443 = vector.broadcast %cst_264 : f32 to vector<4x10xf32>
    %444 = arith.mulf %443, %440 : vector<4x10xf32>
    %445 = arith.addf %442, %444 : vector<4x10xf32>
    %cst_265 = arith.constant dense<0.000000e+00> : vector<4x18xf32>
    %446 = tpu.matmul %445, %339, %cst_265 {dimension_numbers = #tpu.dot_dimension_numbers<[1], [0], [0], [1], [0, 0, 1, 1], [], []>} : vector<4x10xf32>, vector<10x18xf32>, vector<4x18xf32> -> vector<4x18xf32>
    %c0_266 = arith.constant 0 : index
    %c198 = arith.constant 198 : index
    %447 = vector.load %arg15[%c0_266, %c198] : memref<4x288xf32, #tpu.memory_space<vmem>>, vector<4x18xf32>
    tpu.vector_store %arg15[%c0_266, %c198], %446 {strides = array<i32>} : memref<4x288xf32, #tpu.memory_space<vmem>>, vector<4x18xf32>,
    %448 = vector.extract_strided_slice %338 {offsets = [0, 60], sizes = [4, 10], strides = [1, 1]} : vector<4x80xf32> to vector<4x10xf32>
    %449 = vector.extract_strided_slice %338 {offsets = [0, 50], sizes = [4, 10], strides = [1, 1]} : vector<4x80xf32> to vector<4x10xf32>
    %cst_267 = arith.constant 7.500000e-01 : f32
    %450 = vector.broadcast %cst_267 : f32 to vector<4x10xf32>
    %451 = arith.mulf %450, %448 : vector<4x10xf32>
    %cst_268 = arith.constant 2.500000e-01 : f32
    %452 = vector.broadcast %cst_268 : f32 to vector<4x10xf32>
    %453 = arith.mulf %452, %449 : vector<4x10xf32>
    %454 = arith.addf %451, %453 : vector<4x10xf32>
    %cst_269 = arith.constant dense<0.000000e+00> : vector<4x18xf32>
    %455 = tpu.matmul %454, %339, %cst_269 {dimension_numbers = #tpu.dot_dimension_numbers<[1], [0], [0], [1], [0, 0, 1, 1], [], []>} : vector<4x10xf32>, vector<10x18xf32>, vector<4x18xf32> -> vector<4x18xf32>
    %c0_270 = arith.constant 0 : index
    %c216 = arith.constant 216 : index
    %456 = vector.load %arg15[%c0_270, %c216] : memref<4x288xf32, #tpu.memory_space<vmem>>, vector<4x18xf32>
    tpu.vector_store %arg15[%c0_270, %c216], %455 {strides = array<i32>} : memref<4x288xf32, #tpu.memory_space<vmem>>, vector<4x18xf32>,
    %457 = vector.extract_strided_slice %338 {offsets = [0, 60], sizes = [4, 10], strides = [1, 1]} : vector<4x80xf32> to vector<4x10xf32>
    %458 = vector.extract_strided_slice %338 {offsets = [0, 70], sizes = [4, 10], strides = [1, 1]} : vector<4x80xf32> to vector<4x10xf32>
    %cst_271 = arith.constant 7.500000e-01 : f32
    %459 = vector.broadcast %cst_271 : f32 to vector<4x10xf32>
    %460 = arith.mulf %459, %457 : vector<4x10xf32>
    %cst_272 = arith.constant 2.500000e-01 : f32
    %461 = vector.broadcast %cst_272 : f32 to vector<4x10xf32>
    %462 = arith.mulf %461, %458 : vector<4x10xf32>
    %463 = arith.addf %460, %462 : vector<4x10xf32>
    %cst_273 = arith.constant dense<0.000000e+00> : vector<4x18xf32>
    %464 = tpu.matmul %463, %339, %cst_273 {dimension_numbers = #tpu.dot_dimension_numbers<[1], [0], [0], [1], [0, 0, 1, 1], [], []>} : vector<4x10xf32>, vector<10x18xf32>, vector<4x18xf32> -> vector<4x18xf32>
    %c0_274 = arith.constant 0 : index
    %c234 = arith.constant 234 : index
    %465 = vector.load %arg15[%c0_274, %c234] : memref<4x288xf32, #tpu.memory_space<vmem>>, vector<4x18xf32>
    tpu.vector_store %arg15[%c0_274, %c234], %464 {strides = array<i32>} : memref<4x288xf32, #tpu.memory_space<vmem>>, vector<4x18xf32>,
    %466 = vector.extract_strided_slice %338 {offsets = [0, 70], sizes = [4, 10], strides = [1, 1]} : vector<4x80xf32> to vector<4x10xf32>
    %467 = vector.extract_strided_slice %338 {offsets = [0, 60], sizes = [4, 10], strides = [1, 1]} : vector<4x80xf32> to vector<4x10xf32>
    %cst_275 = arith.constant 7.500000e-01 : f32
    %468 = vector.broadcast %cst_275 : f32 to vector<4x10xf32>
    %469 = arith.mulf %468, %466 : vector<4x10xf32>
    %cst_276 = arith.constant 2.500000e-01 : f32
    %470 = vector.broadcast %cst_276 : f32 to vector<4x10xf32>
    %471 = arith.mulf %470, %467 : vector<4x10xf32>
    %472 = arith.addf %469, %471 : vector<4x10xf32>
    %cst_277 = arith.constant dense<0.000000e+00> : vector<4x18xf32>
    %473 = tpu.matmul %472, %339, %cst_277 {dimension_numbers = #tpu.dot_dimension_numbers<[1], [0], [0], [1], [0, 0, 1, 1], [], []>} : vector<4x10xf32>, vector<10x18xf32>, vector<4x18xf32> -> vector<4x18xf32>
    %c0_278 = arith.constant 0 : index
    %c252 = arith.constant 252 : index
    %474 = vector.load %arg15[%c0_278, %c252] : memref<4x288xf32, #tpu.memory_space<vmem>>, vector<4x18xf32>
    tpu.vector_store %arg15[%c0_278, %c252], %473 {strides = array<i32>} : memref<4x288xf32, #tpu.memory_space<vmem>>, vector<4x18xf32>,
    %475 = vector.extract_strided_slice %338 {offsets = [0, 70], sizes = [4, 10], strides = [1, 1]} : vector<4x80xf32> to vector<4x10xf32>
    %476 = vector.extract_strided_slice %338 {offsets = [0, 70], sizes = [4, 10], strides = [1, 1]} : vector<4x80xf32> to vector<4x10xf32>
    %cst_279 = arith.constant 7.500000e-01 : f32
    %477 = vector.broadcast %cst_279 : f32 to vector<4x10xf32>
    %478 = arith.mulf %477, %475 : vector<4x10xf32>
    %cst_280 = arith.constant 2.500000e-01 : f32
    %479 = vector.broadcast %cst_280 : f32 to vector<4x10xf32>
    %480 = arith.mulf %479, %476 : vector<4x10xf32>
    %481 = arith.addf %478, %480 : vector<4x10xf32>
    %cst_281 = arith.constant dense<0.000000e+00> : vector<4x18xf32>
    %482 = tpu.matmul %481, %339, %cst_281 {dimension_numbers = #tpu.dot_dimension_numbers<[1], [0], [0], [1], [0, 0, 1, 1], [], []>} : vector<4x10xf32>, vector<10x18xf32>, vector<4x18xf32> -> vector<4x18xf32>
    %c0_282 = arith.constant 0 : index
    %c270 = arith.constant 270 : index
    %483 = vector.load %arg15[%c0_282, %c270] : memref<4x288xf32, #tpu.memory_space<vmem>>, vector<4x18xf32>
    tpu.vector_store %arg15[%c0_282, %c270], %482 {strides = array<i32>} : memref<4x288xf32, #tpu.memory_space<vmem>>, vector<4x18xf32>,
    %c0_283 = arith.constant 0 : index
    %c0_284 = arith.constant 0 : index
    %484 = vector.load %arg15[%c0_283, %c0_284] : memref<4x288xf32, #tpu.memory_space<vmem>>, vector<4x288xf32>
    %485 = arith.addf %336, %484 : vector<4x288xf32>
    %486 = vector.extract_strided_slice %485 {offsets = [0, 0], sizes = [3, 288], strides = [1, 1]} : vector<4x288xf32> to vector<3x288xf32>
    %487 = vector.broadcast %0 : vector<1x288xf32> to vector<3x288xf32>
    %488 = arith.mulf %486, %487 : vector<3x288xf32>
    %c0_285 = arith.constant 0 : index
    %c0_286 = arith.constant 0 : index
    %c0_287 = arith.constant 0 : index
    %489 = vector.load %arg12[%c0_285, %c0_286, %c0_287] : memref<1x4x288xf32, #tpu.memory_space<vmem>>, vector<1x3x288xf32>
    %490 = vector.shape_cast %489 : vector<1x3x288xf32> to vector<3x288xf32>
    %491 = vector.shape_cast %488 : vector<3x288xf32> to vector<1x3x288xf32>
    tpu.vector_store %arg12[%c0_285, %c0_286, %c0_287], %491 {strides = array<i32>} : memref<1x4x288xf32, #tpu.memory_space<vmem>>, vector<1x3x288xf32>,
    %492 = vector.extract_strided_slice %485 {offsets = [3, 0], sizes = [1, 288], strides = [1, 1]} : vector<4x288xf32> to vector<1x288xf32>
    %493 = arith.negf %492 : vector<1x288xf32>
    %494 = math.exp %493 : vector<1x288xf32>
    %cst_288 = arith.constant 1.000000e+00 : f32
    %495 = vector.broadcast %cst_288 : f32 to vector<1x288xf32>
    %496 = arith.addf %495, %494 : vector<1x288xf32>
    %497 = arith.divf %495, %496 : vector<1x288xf32>
    %498 = arith.mulf %497, %0 : vector<1x288xf32>
    %c0_289 = arith.constant 0 : index
    %c3_290 = arith.constant 3 : index
    %c0_291 = arith.constant 0 : index
    %499 = vector.load %arg12[%c0_289, %c3_290, %c0_291] : memref<1x4x288xf32, #tpu.memory_space<vmem>>, vector<1x1x288xf32>
    %500 = vector.shape_cast %499 : vector<1x1x288xf32> to vector<1x288xf32>
    %501 = vector.shape_cast %498 : vector<1x288xf32> to vector<1x1x288xf32>
    tpu.vector_store %arg12[%c0_289, %c3_290, %c0_291], %501 {strides = array<i32>} : memref<1x4x288xf32, #tpu.memory_space<vmem>>, vector<1x1x288xf32>,
    return
  }
  func.func @transform_0(%arg0: i32) -> (i32, i32, i32) {
    %c0_i32 = arith.constant 0 : i32
    %c0_i32_0 = arith.constant 0 : i32
    %c0_i32_1 = arith.constant 0 : i32
    return %arg0, %c0_i32, %c0_i32_0 : i32, i32, i32
  }
  func.func @transform_1(%arg0: i32) -> (i32, i32, i32, i32) {
    %c0_i32 = arith.constant 0 : i32
    %c0_i32_0 = arith.constant 0 : i32
    %c0_i32_1 = arith.constant 0 : i32
    %c0_i32_2 = arith.constant 0 : i32
    return %arg0, %c0_i32, %c0_i32_0, %c0_i32_1 : i32, i32, i32, i32
  }
  func.func @transform_2(%arg0: i32) -> (i32, i32) {
    %c0_i32 = arith.constant 0 : i32
    %c0_i32_0 = arith.constant 0 : i32
    %c0_i32_1 = arith.constant 0 : i32
    return %c0_i32, %c0_i32_0 : i32, i32
  }
  func.func @transform_3(%arg0: i32) -> (i32, i32, i32, i32) {
    %c0_i32 = arith.constant 0 : i32
    %c0_i32_0 = arith.constant 0 : i32
    %c0_i32_1 = arith.constant 0 : i32
    %c0_i32_2 = arith.constant 0 : i32
    return %arg0, %c0_i32, %c0_i32_0, %c0_i32_1 : i32, i32, i32, i32
  }
  func.func @transform_4(%arg0: i32) -> (i32, i32) {
    %c0_i32 = arith.constant 0 : i32
    %c0_i32_0 = arith.constant 0 : i32
    %c0_i32_1 = arith.constant 0 : i32
    return %c0_i32, %c0_i32_0 : i32, i32
  }
  func.func @transform_5(%arg0: i32) -> (i32, i32, i32) {
    %c0_i32 = arith.constant 0 : i32
    %c0_i32_0 = arith.constant 0 : i32
    %c0_i32_1 = arith.constant 0 : i32
    return %arg0, %c0_i32, %c0_i32_0 : i32, i32, i32
  }
  func.func @transform_6(%arg0: i32) -> (i32, i32) {
    %c0_i32 = arith.constant 0 : i32
    %c0_i32_0 = arith.constant 0 : i32
    %c0_i32_1 = arith.constant 0 : i32
    return %c0_i32, %c0_i32_0 : i32, i32
  }
  func.func @transform_7(%arg0: i32) -> (i32, i32) {
    %c0_i32 = arith.constant 0 : i32
    %c0_i32_0 = arith.constant 0 : i32
    %c0_i32_1 = arith.constant 0 : i32
    return %c0_i32, %c0_i32_0 : i32, i32
  }
  func.func @transform_8(%arg0: i32) -> (i32, i32) {
    %c0_i32 = arith.constant 0 : i32
    %c0_i32_0 = arith.constant 0 : i32
    %c0_i32_1 = arith.constant 0 : i32
    return %c0_i32, %c0_i32_0 : i32, i32
  }
  func.func @transform_9(%arg0: i32) -> (i32, i32, i32) {
    %c0_i32 = arith.constant 0 : i32
    %c0_i32_0 = arith.constant 0 : i32
    %c0_i32_1 = arith.constant 0 : i32
    return %arg0, %c0_i32, %c0_i32_0 : i32, i32, i32
  }
  func.func @transform_10(%arg0: i32) -> (i32, i32, i32) {
    %c0_i32 = arith.constant 0 : i32
    %c0_i32_0 = arith.constant 0 : i32
    %c0_i32_1 = arith.constant 0 : i32
    return %arg0, %c0_i32, %c0_i32_0 : i32, i32, i32
  }
  func.func @transform_11(%arg0: i32) -> (i32, i32, i32) {
    %c0_i32 = arith.constant 0 : i32
    %c0_i32_0 = arith.constant 0 : i32
    %c0_i32_1 = arith.constant 0 : i32
    return %arg0, %c0_i32, %c0_i32_0 : i32, i32, i32
  }
}

</mosaic_0001>

<llo_original>
// kernel: tile.23
$region0: #{tile.23}
  #allocation0 [shape = 's32[1]{0}', space=sflag, size = 0x4, scoped, tag = 'scoped memory for tile.23']
  %s0 = inlined_call_operand.vmem [shape: f32[6], index: 0, kind: input, shape index: {}]
  %s1 = inlined_call_operand.vmem [shape: f32[4,6], index: 1, kind: output, shape index: {}]
  // Predicated region
  $region2: #{tile.23} parent=0 // pred_check
    _
  $region3: #{tile.23} parent=0 // pred_check_branch
    %3 = sbr.rel (0) target = $region5
  $region4: #{tile.23} parent=0 // pred_region
    _
  $region5: #{tile.23} parent=0 // pred_fallthru
    _
  %v4 = vld [vmem:[%s0] ss:$0 sm:$0xff]
  %5 = vst [vmem:[%s1] sm:$0xf] %v4

// kernel: tile.24
$region0: #{tile.24}
  %s0 = inlined_call_operand.vmem [shape: f32[4,6], index: 0, kind: input, shape index: {}]
  %s1 = inlined_call_operand.vmem [shape: f32[1,24], index: 1, kind: output, shape index: {}]
  $region1: #{tile.24} parent=0
    #allocation0 [shape = 'u8[4096]{0}', space=vmem, size = 0x1000, scoped, tag = 'scoped mem for output reshape']
    #allocation1 [shape = 'u8[4096]{0}', space=vmem, size = 0x1000, scoped, tag = 'scoped mem for input reshape']
    %s3 = ssub.s32 16, 1
    %v4 = vld [vmem:[%s0] sm:%s3]
    %5 = vst [vmem:[#allocation1] sm:%s3] %v4
    %v6 = vld [vmem:[#allocation1] sm:$0x1]
    %vm7 = vcmask 48128
    %8 = vst.msk [vmem:[#allocation0] sm:$0x1] %vm7, %v6
    %s9 = scalar_lea.vmem [#allocation1], 3
    %v10 = vld [vmem:[%s9] sm:$0x1]
    %11 = vrot.lane.b32.xlu0 %v10, 18
    %v12 = vpop.permute.xlu0 %11
    %vm13 = vcmask 195728
    %14 = vst.msk [vmem:[#allocation0] sm:$0x1] %vm13, %v12
    %s15 = scalar_lea.vmem [#allocation1], 2
    %v16 = vld [vmem:[%s15] sm:$0x1]
    %17 = vrot.lane.b32.xlu0 %v16, 12
    %v18 = vpop.permute.xlu0 %17
    %vm19 = vcmask 146528
    %20 = vst.msk [vmem:[#allocation0] sm:$0x1] %vm19, %v18
    %s21 = scalar_lea.vmem [#allocation1], 1
    %v22 = vld [vmem:[%s21] sm:$0x1]
    %23 = vrot.lane.b32.xlu0 %v22, 6
    %v24 = vpop.permute.xlu0 %23
    %vm25 = vcmask 97328
    %26 = vst.msk [vmem:[#allocation0] sm:$0x1] %vm25, %v24
    %s28 = ssub.s32 2, 1
    %v29 = vld [vmem:[#allocation0] sm:%s28]
    %s31 = ssub.s32 2, 1
    %32 = vst [vmem:[%s1] sm:%s31] %v29

// kernel: mul.138
$region0: #{mul.138}
  #allocation0 [shape = 's32[1]{0}', space=sflag, size = 0x4, scoped, tag = 'scoped memory for mul.138']
  %s0 = inlined_call_operand.vmem [shape: f32[32], index: 0, kind: input, shape index: {}]
  %s1 = inlined_call_operand.vmem [shape: f32[2,1,32], index: 1, kind: output, shape index: {}]
  // Predicated region
  $region2: #{mul.138} parent=0 // pred_check
    _
  $region3: #{mul.138} parent=0 // pred_check_branch
    %3 = sbr.rel (0) target = $region5
  $region4: #{mul.138} parent=0 // pred_region
    _
  $region5: #{mul.138} parent=0 // pred_fallthru
    _
  %v4 = vld [vmem:[%s0] ss:$0 sm:$0xff]
  %5 = vst [vmem:[%s1] sm:$0x3] %v4

// kernel: mul.173
$region0: #{mul.173}
  #allocation0 [shape = 's32[1]{0}', space=sflag, size = 0x4, scoped, tag = 'scoped memory for mul.173']
  %s0 = inlined_call_operand.vmem [shape: f32[16], index: 0, kind: input, shape index: {}]
  %s1 = inlined_call_operand.vmem [shape: f32[2,1,16], index: 1, kind: output, shape index: {}]
  // Predicated region
  $region2: #{mul.173} parent=0 // pred_check
    _
  $region3: #{mul.173} parent=0 // pred_check_branch
    %3 = sbr.rel (0) target = $region5
  $region4: #{mul.173} parent=0 // pred_region
    _
  $region5: #{mul.173} parent=0 // pred_fallthru
    _
  %v4 = vld [vmem:[%s0] ss:$0 sm:$0xff]
  %5 = vst [vmem:[%s1] sm:$0x3] %v4

// kernel: tile.33
$region0: #{tile.33}
  #allocation0 [shape = 's32[1]{0}', space=sflag, size = 0x4, scoped, tag = 'scoped memory for tile.33']
  %s0 = inlined_call_operand.vmem [shape: f32[10], index: 0, kind: input, shape index: {}]
  %s1 = inlined_call_operand.vmem [shape: f32[8,10], index: 1, kind: output, shape index: {}]
  // Predicated region
  $region2: #{tile.33} parent=0 // pred_check
    _
  $region3: #{tile.33} parent=0 // pred_check_branch
    %3 = sbr.rel (0) target = $region5
  $region4: #{tile.33} parent=0 // pred_region
    _
  $region5: #{tile.33} parent=0 // pred_fallthru
    _
  %v4 = vld [vmem:[%s0] ss:$0 sm:$0xff]
  %5 = vst [vmem:[%s1] sm:$0xff] %v4

// kernel: tile.34
$region0: #{tile.34}
  %s0 = inlined_call_operand.vmem [shape: f32[8,10], index: 0, kind: input, shape index: {}]
  %s1 = inlined_call_operand.vmem [shape: f32[1,80], index: 1, kind: output, shape index: {}]
  $region1: #{tile.34} parent=0
    #allocation0 [shape = 'u8[4096]{0}', space=vmem, size = 0x1000, scoped, tag = 'scoped mem for output reshape']
    %v2 = vld [vmem:[%s0] sm:$0x1]
    %vm3 = vcmask 80896
    %4 = vst.msk [vmem:[#allocation0] sm:$0x1] %vm3, %v2
    %s5 = scalar_lea.vmem %s0, 7
    %v6 = vld [vmem:[%s5] sm:$0x1]
    %7 = vrot.lane.b32.xlu0 %v6, 70
    %v8 = vpop.permute.xlu0 %7
    %vm9 = vcmask 654896
    %10 = vst.msk [vmem:[#allocation0] sm:$0x1] %vm9, %v8
    %s11 = scalar_lea.vmem %s0, 6
    %v12 = vld [vmem:[%s11] sm:$0x1]
    %13 = vrot.lane.b32.xlu0 %v12, 60
    %v14 = vpop.permute.xlu0 %13
    %vm15 = vcmask 572896
    %16 = vst.msk [vmem:[#allocation0] sm:$0x1] %vm15, %v14
    %s17 = scalar_lea.vmem %s0, 5
    %v18 = vld [vmem:[%s17] sm:$0x1]
    %19 = vrot.lane.b32.xlu0 %v18, 50
    %v20 = vpop.permute.xlu0 %19
    %vm21 = vcmask 490896
    %22 = vst.msk [vmem:[#allocation0] sm:$0x1] %vm21, %v20
    %s23 = scalar_lea.vmem %s0, 4
    %v24 = vld [vmem:[%s23] sm:$0x1]
    %25 = vrot.lane.b32.xlu0 %v24, 40
    %v26 = vpop.permute.xlu0 %25
    %vm27 = vcmask 408896
    %28 = vst.msk [vmem:[#allocation0] sm:$0x1] %vm27, %v26
    %s29 = scalar_lea.vmem %s0, 3
    %v30 = vld [vmem:[%s29] sm:$0x1]
    %31 = vrot.lane.b32.xlu0 %v30, 30
    %v32 = vpop.permute.xlu0 %31
    %vm33 = vcmask 326896
    %34 = vst.msk [vmem:[#allocation0] sm:$0x1] %vm33, %v32
    %s35 = scalar_lea.vmem %s0, 2
    %v36 = vld [vmem:[%s35] sm:$0x1]
    %37 = vrot.lane.b32.xlu0 %v36, 20
    %v38 = vpop.permute.xlu0 %37
    %vm39 = vcmask 244896
    %40 = vst.msk [vmem:[#allocation0] sm:$0x1] %vm39, %v38
    %s41 = scalar_lea.vmem %s0, 1
    %v42 = vld [vmem:[%s41] sm:$0x1]
    %43 = vrot.lane.b32.xlu0 %v42, 10
    %v44 = vpop.permute.xlu0 %43
    %vm45 = vcmask 162896
    %46 = vst.msk [vmem:[#allocation0] sm:$0x1] %vm45, %v44
    %s48 = ssub.s32 2, 1
    %v49 = vld [vmem:[#allocation0] sm:%s48]
    %s51 = ssub.s32 2, 1
    %52 = vst [vmem:[%s1] sm:%s51] %v49

// kernel: tile.38
$region0: #{tile.38}
  #allocation0 [shape = 's32[1]{0}', space=sflag, size = 0x4, scoped, tag = 'scoped memory for tile.38']
  %s0 = inlined_call_operand.vmem [shape: f32[18], index: 0, kind: input, shape index: {}]
  %s1 = inlined_call_operand.vmem [shape: f32[16,18], index: 1, kind: output, shape index: {}]
  // Predicated region
  $region2: #{tile.38} parent=0 // pred_check
    _
  $region3: #{tile.38} parent=0 // pred_check_branch
    %3 = sbr.rel (0) target = $region5
  $region4: #{tile.38} parent=0 // pred_region
    _
  $region5: #{tile.38} parent=0 // pred_fallthru
    _
  %v4 = vld [vmem:[%s0] ss:$0 sm:$0xff]
  %5 = vst [vmem:[%s1] sm:$0xff] %v4
  %s6 = scalar_lea.vmem %s1, 8
  %7 = vst [vmem:[%s6] sm:$0xff] %v4

// kernel: tile.39
$region0: #{tile.39}
  %s0 = inlined_call_operand.vmem [shape: f32[16,18], index: 0, kind: input, shape index: {}]
  %s1 = inlined_call_operand.vmem [shape: f32[1,288], index: 1, kind: output, shape index: {}]
  $region1: #{tile.39} parent=0
    #allocation0 [shape = 'u8[12288]{0}', space=vmem, size = 0x3000, scoped, tag = 'scoped mem for output reshape']
    %v2 = vld [vmem:[%s0] sm:$0x1]
    %vm3 = vcmask 146432
    %4 = vst.msk [vmem:[#allocation0] sm:$0x1] %vm3, %v2
    %s5 = scalar_lea.vmem %s0, 7
    %v6 = vld [vmem:[%s5] sm:$0x1]
    %s7 = scalar_lea.vmem %s0, 7
    %v8 = vld [vmem:[%s7] sm:$0x1]
    %vm9 = vcmask 15360
    %v10 = vsel %vm9, %v8, %v6
    %11 = vrot.lane.b32.xlu0 %v10, 126
    %v12 = vpop.permute.xlu0 %11
    %vm13 = vcmask 130048
    %s14 = scalar_lea.vmem [#allocation0], 8
    %15 = vst.msk [vmem:[%s14] sm:$0x1] %vm13, %v12
    %vm16 = vcmask 1048560
    %17 = vst.msk [vmem:[#allocation0] sm:$0x1] %vm16, %v12
    %s18 = scalar_lea.vmem %s0, 14
    %v19 = vld [vmem:[%s18] sm:$0x1]
    %s20 = scalar_lea.vmem %s0, 14
    %v21 = vld [vmem:[%s20] sm:$0x1]
    %vm22 = vcmask 31744
    %v23 = vsel %vm22, %v21, %v19
    %24 = vrot.lane.b32.xlu0 %v23, 124
    %v25 = vpop.permute.xlu0 %24
    %vm26 = vcmask 113664
    %s27 = scalar_lea.vmem [#allocation0], 16
    %28 = vst.msk [vmem:[%s27] sm:$0x1] %vm26, %v25
    %vm29 = vcmask 1048544
    %s30 = scalar_lea.vmem [#allocation0], 8
    %31 = vst.msk [vmem:[%s30] sm:$0x1] %vm29, %v25
    %s32 = scalar_lea.vmem %s0, 6
    %v33 = vld [vmem:[%s32] sm:$0x1]
    %34 = vrot.lane.b32.xlu0 %v33, 108
    %v35 = vpop.permute.xlu0 %34
    %vm36 = vcmask 1032032
    %37 = vst.msk [vmem:[#allocation0] sm:$0x1] %vm36, %v35
    %s38 = scalar_lea.vmem %s0, 13
    %v39 = vld [vmem:[%s38] sm:$0x1]
    %40 = vrot.lane.b32.xlu0 %v39, 106
    %v41 = vpop.permute.xlu0 %40
    %vm42 = vcmask 1015632
    %s43 = scalar_lea.vmem [#allocation0], 8
    %44 = vst.msk [vmem:[%s43] sm:$0x1] %vm42, %v41
    %s45 = scalar_lea.vmem %s0, 5
    %v46 = vld [vmem:[%s45] sm:$0x1]
    %47 = vrot.lane.b32.xlu0 %v46, 90
    %v48 = vpop.permute.xlu0 %47
    %vm49 = vcmask 884432
    %50 = vst.msk [vmem:[#allocation0] sm:$0x1] %vm49, %v48
    %s51 = scalar_lea.vmem %s0, 12
    %v52 = vld [vmem:[%s51] sm:$0x1]
    %53 = vrot.lane.b32.xlu0 %v52, 88
    %v54 = vpop.permute.xlu0 %53
    %vm55 = vcmask 868032
    %s56 = scalar_lea.vmem [#allocation0], 8
    %57 = vst.msk [vmem:[%s56] sm:$0x1] %vm55, %v54
    %s58 = scalar_lea.vmem %s0, 4
    %v59 = vld [vmem:[%s58] sm:$0x1]
    %60 = vrot.lane.b32.xlu0 %v59, 72
    %v61 = vpop.permute.xlu0 %60
    %vm62 = vcmask 736832
    %63 = vst.msk [vmem:[#allocation0] sm:$0x1] %vm62, %v61
    %s64 = scalar_lea.vmem %s0, 11
    %v65 = vld [vmem:[%s64] sm:$0x1]
    %66 = vrot.lane.b32.xlu0 %v65, 70
    %v67 = vpop.permute.xlu0 %66
    %vm68 = vcmask 720432
    %s69 = scalar_lea.vmem [#allocation0], 8
    %70 = vst.msk [vmem:[%s69] sm:$0x1] %vm68, %v67
    %s71 = scalar_lea.vmem %s0, 3
    %v72 = vld [vmem:[%s71] sm:$0x1]
    %73 = vrot.lane.b32.xlu0 %v72, 54
    %v74 = vpop.permute.xlu0 %73
    %vm75 = vcmask 589232
    %76 = vst.msk [vmem:[#allocation0] sm:$0x1] %vm75, %v74
    %s77 = scalar_lea.vmem %s0, 10
    %v78 = vld [vmem:[%s77] sm:$0x1]
    %79 = vrot.lane.b32.xlu0 %v78, 52
    %v80 = vpop.permute.xlu0 %79
    %vm81 = vcmask 572832
    %s82 = scalar_lea.vmem [#allocation0], 8
    %83 = vst.msk [vmem:[%s82] sm:$0x1] %vm81, %v80
    %s84 = scalar_lea.vmem %s0, 2
    %v85 = vld [vmem:[%s84] sm:$0x1]
    %86 = vrot.lane.b32.xlu0 %v85, 36
    %v87 = vpop.permute.xlu0 %86
    %vm88 = vcmask 441632
    %89 = vst.msk [vmem:[#allocation0] sm:$0x1] %vm88, %v87
    %s90 = scalar_lea.vmem %s0, 9
    %v91 = vld [vmem:[%s90] sm:$0x1]
    %92 = vrot.lane.b32.xlu0 %v91, 34
    %v93 = vpop.permute.xlu0 %92
    %vm94 = vcmask 425232
    %s95 = scalar_lea.vmem [#allocation0], 8
    %96 = vst.msk [vmem:[%s95] sm:$0x1] %vm94, %v93
    %s97 = scalar_lea.vmem %s0, 1
    %v98 = vld [vmem:[%s97] sm:$0x1]
    %99 = vrot.lane.b32.xlu0 %v98, 18
    %v100 = vpop.permute.xlu0 %99
    %vm101 = vcmask 294032
    %102 = vst.msk [vmem:[#allocation0] sm:$0x1] %vm101, %v100
    %s103 = scalar_lea.vmem %s0, 8
    %v104 = vld [vmem:[%s103] sm:$0x1]
    %105 = vrot.lane.b32.xlu0 %v104, 16
    %v106 = vpop.permute.xlu0 %105
    %vm107 = vcmask 277632
    %s108 = scalar_lea.vmem [#allocation0], 8
    %109 = vst.msk [vmem:[%s108] sm:$0x1] %vm107, %v106
    %s110 = scalar_lea.vmem %s0, 15
    %v111 = vld [vmem:[%s110] sm:$0x1]
    %112 = vrot.lane.b32.xlu0 %v111, 14
    %v113 = vpop.permute.xlu0 %112
    %vm114 = vcmask 261232
    %s115 = scalar_lea.vmem [#allocation0], 16
    %116 = vst.msk [vmem:[%s115] sm:$0x1] %vm114, %v113
    %s118 = ssub.s32 2, 1
    %v119 = vld [vmem:[#allocation0] sm:%s118]
    %s121 = ssub.s32 2, 1
    %122 = vst [vmem:[%s1] sm:%s121] %v119
    %s123 = scalar_lea.vmem [#allocation0], 8
    %v124 = vld [vmem:[%s123] sm:%s118]
    %s126 = ssub.s32 2, 1
    %s127 = scalar_lea.vmem %s1, 1
    %128 = vst [vmem:[%s127] sm:%s126] %v124
    %s129 = scalar_lea.vmem [#allocation0], 16
    %v130 = vld [vmem:[%s129] sm:%s118]
    %s132 = ssub.s32 2, 1
    %s133 = scalar_lea.vmem %s1, 2
    %134 = vst [vmem:[%s133] sm:%s132] %v130

// kernel: mul.208
$region0: #{mul.208}
  #allocation0 [shape = 's32[1]{0}', space=sflag, size = 0x4, scoped, tag = 'scoped memory for mul.208']
  %s0 = inlined_call_operand.vmem [shape: f32[8], index: 0, kind: input, shape index: {}]
  %s1 = inlined_call_operand.vmem [shape: f32[2,1,8], index: 1, kind: output, shape index: {}]
  // Predicated region
  $region2: #{mul.208} parent=0 // pred_check
    _
  $region3: #{mul.208} parent=0 // pred_check_branch
    %3 = sbr.rel (0) target = $region5
  $region4: #{mul.208} parent=0 // pred_region
    _
  $region5: #{mul.208} parent=0 // pred_fallthru
    _
  %v4 = vld [vmem:[%s0] ss:$0 sm:$0xff]
  %5 = vst [vmem:[%s1] sm:$0x3] %v4

// kernel: _lambda_.4
$region0: #{_lambda_.4}
  #allocation0 [shape = 'u32[]', space=smem, size = 0x4, offset = 0x4, fixed_abs, tag = 'smem constant byte address 0x4 - core index']
  #allocation1 [shape = 'u32[72,128]{1,0:T(1,128)}', space=vmem, size = 0x9000, scoped, tag = 'internal scratch']
  %s0 = inlined_call_operand.vmem [shape: bf16[2,32,24], index: 0, kind: input, shape index: {}]
  %s1 = inlined_call_operand.vmem [shape: bf16[1,32,32], index: 1, kind: input, shape index: {}]
  %s2 = inlined_call_operand.vmem [shape: f32[32,1], index: 2, kind: input, shape index: {}]
  %s3 = inlined_call_operand.vmem [shape: f32[1,24], index: 3, kind: input, shape index: {}]
  %s4 = inlined_call_operand.vmem [shape: bf16[2,32,24], index: 4, kind: output, shape index: {}]
  %s5 = sld [smem:[#allocation0]]
  $region49: #{_lambda_.4} parent=0
    _
  %s7 = ssub.s32 1, %s5
  %s8 = scalar_select 0, %s7, %s5
  loop: start=0, step=1, limit=4
  $region2: #{_lambda_.4} parent=0 // loop_pre_header
    _
  $region3: #{_lambda_.4} parent=0 // loop_header
    %s10 = sphi 0, %s14
    %p11 = scmp.ge.s32.totalorder %s10, 4
    %s20 = sphi 0, %s22
    %s23 = sphi 0, %s20
    %s24 = sphi 0, %s23
    %s40 = sphi 0, %s24
    %s44 = sphi 0, %s44
    %s46 = sphi 0, %s44
    %s47 = sphi 0, %s46
    %s61 = sphi 0, %s47
    %s65 = sphi 0, %s65
    %s67 = sphi 0, %s65
    %s68 = sphi 0, %s67
    %s82 = sphi 0, %s68
    %s86 = sphi 0, %s86
    %s88 = sphi 0, %s86
    %s89 = sphi 0, %s88
    %s103 = sphi 0, %s89
    %s109 = sphi 0, %s111
    %s112 = sphi 0, %s109
    %s113 = sphi 0, %s112
    %s129 = sphi 0, %s113
  $region4: #{_lambda_.4} parent=0 // loop_header_branch
    %13 = sbr.rel (%p11) target = $region8
  $region5: #{_lambda_.4} parent=0 // loop_body
    %s15 = ssub.s32 %s10, 1
    %s16 = ssub.s32 %s10, 2
    %s17 = sadd.s32 %s10, 1
    %s18 = ssub.s32 %s10, %s17
    %p19 = scmp.eq.s32.totalorder %s18, 0
    %s21 = sadd.s32 %s20, 1
    %s22 = scalar_select %p19, %s20, %s21
    %p25 = pneg %p19
    %p26 = scmp.eq.s32.totalorder %s10, 1
    %p27 = por %p25, %p26
    %p28 = scmp.ne.s32.totalorder %s20, %s23
    %p29 = scmp.eq.s32.totalorder %s10, 0
    %p30 = por %p28, %p29
    %p31 = scmp.ne.s32.totalorder %s20, %s23
    %p32 = scmp.eq.s32.totalorder %s15, 1
    %p33 = por %p31, %p32
    %p34 = scmp.ne.s32.totalorder %s23, %s24
    %p35 = scmp.eq.s32.totalorder %s15, 0
    %p36 = por %p34, %p35
    %p37 = scmp.ne.s32.totalorder %s23, %s24
    %p38 = scmp.eq.s32.totalorder %s16, 1
    %p39 = por %p37, %p38
    %p41 = scmp.ne.s32.totalorder %s24, %s40
    %p42 = scmp.eq.s32.totalorder %s16, 0
    %p43 = por %p41, %p42
    %s45 = sadd.s32 %s44, 1
    %p48 = scmp.eq.s32.totalorder %s10, 1
    %p49 = scmp.ne.s32.totalorder %s44, %s46
    %p50 = scmp.eq.s32.totalorder %s10, 0
    %p51 = por %p49, %p50
    %p52 = scmp.ne.s32.totalorder %s44, %s46
    %p53 = scmp.eq.s32.totalorder %s15, 1
    %p54 = por %p52, %p53
    %p55 = scmp.ne.s32.totalorder %s46, %s47
    %p56 = scmp.eq.s32.totalorder %s15, 0
    %p57 = por %p55, %p56
    %p58 = scmp.ne.s32.totalorder %s46, %s47
    %p59 = scmp.eq.s32.totalorder %s16, 1
    %p60 = por %p58, %p59
    %p62 = scmp.ne.s32.totalorder %s47, %s61
    %p63 = scmp.eq.s32.totalorder %s16, 0
    %p64 = por %p62, %p63
    %s66 = sadd.s32 %s65, 1
    %p69 = scmp.eq.s32.totalorder %s10, 1
    %p70 = scmp.ne.s32.totalorder %s65, %s67
    %p71 = scmp.eq.s32.totalorder %s10, 0
    %p72 = por %p70, %p71
    %p73 = scmp.ne.s32.totalorder %s65, %s67
    %p74 = scmp.eq.s32.totalorder %s15, 1
    %p75 = por %p73, %p74
    %p76 = scmp.ne.s32.totalorder %s67, %s68
    %p77 = scmp.eq.s32.totalorder %s15, 0
    %p78 = por %p76, %p77
    %p79 = scmp.ne.s32.totalorder %s67, %s68
    %p80 = scmp.eq.s32.totalorder %s16, 1
    %p81 = por %p79, %p80
    %p83 = scmp.ne.s32.totalorder %s68, %s82
    %p84 = scmp.eq.s32.totalorder %s16, 0
    %p85 = por %p83, %p84
    %s87 = sadd.s32 %s86, 1
    %p90 = scmp.eq.s32.totalorder %s10, 1
    %p91 = scmp.ne.s32.totalorder %s86, %s88
    %p92 = scmp.eq.s32.totalorder %s10, 0
    %p93 = por %p91, %p92
    %p94 = scmp.ne.s32.totalorder %s86, %s88
    %p95 = scmp.eq.s32.totalorder %s15, 1
    %p96 = por %p94, %p95
    %p97 = scmp.ne.s32.totalorder %s88, %s89
    %p98 = scmp.eq.s32.totalorder %s15, 0
    %p99 = por %p97, %p98
    %p100 = scmp.ne.s32.totalorder %s88, %s89
    %p101 = scmp.eq.s32.totalorder %s16, 1
    %p102 = por %p100, %p101
    %p104 = scmp.ne.s32.totalorder %s89, %s103
    %p105 = scmp.eq.s32.totalorder %s16, 0
    %p106 = por %p104, %p105
    %s107 = ssub.s32 %s10, %s17
    %p108 = scmp.eq.s32.totalorder %s107, 0
    %s110 = sadd.s32 %s109, 1
    %s111 = scalar_select %p108, %s109, %s110
    %p114 = pneg %p108
    %p115 = scmp.eq.s32.totalorder %s10, 1
    %p116 = por %p114, %p115
    %p117 = scmp.ne.s32.totalorder %s109, %s112
    %p118 = scmp.eq.s32.totalorder %s10, 0
    %p119 = por %p117, %p118
    %p120 = scmp.ne.s32.totalorder %s109, %s112
    %p121 = scmp.eq.s32.totalorder %s15, 1
    %p122 = por %p120, %p121
    %p123 = scmp.ne.s32.totalorder %s112, %s113
    %p124 = scmp.eq.s32.totalorder %s15, 0
    %p125 = por %p123, %p124
    %p126 = scmp.ne.s32.totalorder %s112, %s113
    %p127 = scmp.eq.s32.totalorder %s16, 1
    %p128 = por %p126, %p127
    %p130 = scmp.ne.s32.totalorder %s113, %s129
    %p131 = scmp.eq.s32.totalorder %s16, 0
    %p132 = por %p130, %p131
    %p133 = scmp.le.s32.totalorder 1, %s10
    %p134 = scmp.lt.s32.totalorder %s10, 3
    %p135 = pnand %p133, %p134
    %p136 = pneg %p135
    // Predicated region
    $region9: #{_lambda_.4} parent=5 // pred_check
      _
    $region10: #{_lambda_.4} parent=5 // pred_check_branch
      %138 = sbr.rel (%p135) target = $region12
    $region11: #{_lambda_.4} parent=5 // pred_region
      %s139 = ssub.s32 %s10, 1
      // Predicated region
      $region13: #{_lambda_.4} parent=11 // pred_check
        %p140 = pneg %p57
      $region14: #{_lambda_.4} parent=11 // pred_check_branch
        %142 = sbr.rel (%p140) target = $region16
      $region15: #{_lambda_.4} parent=11 // pred_region
        _
      $region16: #{_lambda_.4} parent=11 // pred_fallthru
        _
      // Predicated region
      $region17: #{_lambda_.4} parent=11 // pred_check
        %p143 = pneg %p78
      $region18: #{_lambda_.4} parent=11 // pred_check_branch
        %145 = sbr.rel (%p143) target = $region20
      $region19: #{_lambda_.4} parent=11 // pred_region
        _
      $region20: #{_lambda_.4} parent=11 // pred_fallthru
        _
      // Predicated region
      $region21: #{_lambda_.4} parent=11 // pred_check
        %p146 = pneg %p99
      $region22: #{_lambda_.4} parent=11 // pred_check_branch
        %148 = sbr.rel (%p146) target = $region24
      $region23: #{_lambda_.4} parent=11 // pred_region
        _
      $region24: #{_lambda_.4} parent=11 // pred_fallthru
        _
    $region12: #{_lambda_.4} parent=5 // pred_fallthru
      _
    %p149 = scmp.lt.s32.totalorder %s10, 2
    // Predicated region
    $region25: #{_lambda_.4} parent=5 // pred_check
      %p150 = pneg %p149
    $region26: #{_lambda_.4} parent=5 // pred_check_branch
      %152 = sbr.rel (%p150) target = $region28
    $region27: #{_lambda_.4} parent=5 // pred_region
      // Predicated region
      $region29: #{_lambda_.4} parent=27 // pred_check
        %p153 = pneg %p30
      $region30: #{_lambda_.4} parent=27 // pred_check_branch
        %155 = sbr.rel (%p153) target = $region32
      $region31: #{_lambda_.4} parent=27 // pred_region
        %p156 = scmp.lt.s32.totalorder %s10, 1
        %s157 = scalar_select %p156, %s10, 1
        %s158 = smul.addr %s157, 4
        %s159 = smul.addr %s158, 4
        %s160 = scalar_lea.vmem %s0, %s159
      $region32: #{_lambda_.4} parent=27 // pred_fallthru
        _
    $region28: #{_lambda_.4} parent=5 // pred_fallthru
      _
    %p161 = scmp.le.s32.totalorder 1, %s10
    %p162 = scmp.lt.s32.totalorder %s10, 3
    %p163 = pnand %p161, %p162
    %p164 = pneg %p163
    // Predicated region
    $region33: #{_lambda_.4} parent=5 // pred_check
      _
    $region34: #{_lambda_.4} parent=5 // pred_check_branch
      %166 = sbr.rel (%p163) target = $region36
    $region35: #{_lambda_.4} parent=5 // pred_region
      %s167 = ssub.s32 %s10, 1
      %p168 = scmp.lt.s32.totalorder %s15, 1
      %s169 = scalar_select %p168, %s15, 1
      %s170 = smul.addr %s169, 4
      %s171 = smul.addr %s170, 4
      %s172 = scalar_lea.vmem %s0, %s171
      %p173 = pneg %p36
      %p174 = pneg %p33
      %p175 = pneg %p57
      %p176 = pneg %p54
      %p177 = pneg %p78
      %p178 = pneg %p75
      %p179 = pneg %p99
      %p180 = pneg %p96
      %p181 = pneg %p125
      %p182 = pneg %p122
      %p183 = scmp.lt.s32.totalorder %s15, 1
      %s184 = scalar_select %p183, %s15, 1
      %s185 = smul.addr %s184, 4
      %s186 = smul.addr %s185, 4
      %s187 = scalar_lea.vmem %s4, %s186
      %p188 = scmp.lt.s32.totalorder %s15, 1
      %s189 = scalar_select %p188, %s15, 1
      %s190 = smul.addr %s189, 4
      %s191 = smul.addr %s190, 4
      %s192 = scalar_lea.vmem %s0, %s191
      %p193 = scmp.lt.s32.totalorder %s15, 1
      %s194 = scalar_select %p193, %s15, 1
      %s195 = smul.addr %s194, 4
      %s196 = smul.addr %s195, 4
      %s197 = scalar_lea.vmem %s4, %s196
      %v199 = vld [vmem:[%s1] sm:$0xf]
      %v200 = vld [vmem:[%s1 + $0x4] sm:$0xf]
      %v201 = vld [vmem:[%s1 + $0x8] sm:$0xf]
      %v202 = vld [vmem:[%s1 + $0xc] sm:$0xf]
      %v203 = vld [vmem:[%s192] sm:$0xf]
      %v204 = vld [vmem:[%s192 + $0x4] sm:$0xf]
      %v205 = vld [vmem:[%s192 + $0x8] sm:$0xf]
      %v206 = vld [vmem:[%s192 + $0xc] sm:$0xf]
      %v207 = vld [vmem:[%s2] sm:$0xff]
      %v208 = vld [vmem:[%s2 + $0x8] sm:$0xff]
      %v209 = vld [vmem:[%s2 + $0x10] sm:$0xff]
      %v210 = vld [vmem:[%s2 + $0x18] sm:$0xff]
      %212 = vset.pattern.permute.xlu0 0
      %213 = vperm.xlu0 %212, %v207
      %v214 = vpop.permute.xlu0 %213
      %217 = vset.pattern.permute.xlu0 0
      %218 = vperm.xlu0 %217, %v208
      %v219 = vpop.permute.xlu0 %218
      %222 = vset.pattern.permute.xlu0 0
      %223 = vperm.xlu0 %222, %v209
      %v224 = vpop.permute.xlu0 %223
      %227 = vset.pattern.permute.xlu0 0
      %228 = vperm.xlu0 %227, %v210
      %v229 = vpop.permute.xlu0 %228
      %v235 = vunpack.c.l.b16 %v199
      %v236 = vunpack.c.l.b16 %v200
      %v237 = vunpack.c.l.b16 %v201
      %v238 = vunpack.c.l.b16 %v202
      %v239 = vpack.c.b16 %v236, %v235
      %v240 = vpack.c.b16 %v238, %v237
      %v245 = vunpack.c.l.b16 %v203
      %v246 = vunpack.c.l.b16 %v204
      %v247 = vunpack.c.l.b16 %v205
      %v248 = vunpack.c.l.b16 %v206
      %v249 = vpack.c.b16 %v246, %v245
      %v250 = vpack.c.b16 %v248, %v247
      %vm253 = vcmask 261120
      %v255 = vsel %vm253, %v239, 0
      %v258 = vsel %vm253, %v240, 0
      %260 = vmatpush.bf16.msra.mxu0 0
      %261 = vmatpush.bf16.msra.mxu0 0
      %262 = vmatpush.bf16.msra.mxu0 0
      %263 = vmatpush.bf16.msra.mxu0 0
      %264 = vmatpush.bf16.msra.mxu0 0
      %265 = vmatpush.bf16.msra.mxu0 0
      %266 = vmatpush.bf16.msra.mxu0 %v250
      %267 = vmatpush.bf16.msra.mxu0 %v249
      %268 = vmatmul.bf16.gmra.mxu0 %v255
      %v269 = vpop.f32.mrf.mxu0
      %v270 = vadd.f32 %v214, %v269
      %v271 = vpop.f32.mrf.mxu0
      %v272 = vadd.f32 %v219, %v271
      %273 = vmatmul.bf16.gmra.mxu0 %v258
      %v274 = vpop.f32.mrf.mxu0
      %v275 = vadd.f32 %v224, %v274
      %v276 = vpop.f32.mrf.mxu0
      %v277 = vadd.f32 %v229, %v276
      %278 = vdwg.mxu0
      %v279 = vld [vmem:[%s3] sm:$0x1]
      %v281 = vperm.slane %v279, 0
      %v283 = vmul.f32 %v270, %v281
      %v284 = vmul.f32 %v272, %v281
      %v285 = vmul.f32 %v275, %v281
      %v286 = vmul.f32 %v277, %v281
      %v287 = vpack.c.bf16 %v283, %v283
      %v288 = vpack.c.bf16 %v284, %v284
      %v289 = vpack.c.bf16 %v285, %v285
      %v290 = vpack.c.bf16 %v286, %v286
      %vm291 = vcmask 191488
      %292 = vst.msk [vmem:[%s197] sm:$0xf] %vm291, %v287
      %293 = vst.msk [vmem:[%s197 + $0x4] sm:$0xf] %vm291, %v288
      %294 = vst.msk [vmem:[%s197 + $0x8] sm:$0xf] %vm291, %v289
      %295 = vst.msk [vmem:[%s197 + $0xc] sm:$0xf] %vm291, %v290
      %p296 = scmp.lt.s32.totalorder %s15, 1
      %s297 = scalar_select %p296, %s15, 1
      %s298 = smul.addr %s297, 4
      %s299 = smul.addr %s298, 4
      %s300 = scalar_lea.vmem %s4, %s299
      // Predicated region
      $region37: #{_lambda_.4} parent=35 // pred_check
        %p301 = pneg %p122
      $region38: #{_lambda_.4} parent=35 // pred_check_branch
        %303 = sbr.rel (%p301) target = $region40
      $region39: #{_lambda_.4} parent=35 // pred_region
        _
      $region40: #{_lambda_.4} parent=35 // pred_fallthru
        _
    $region36: #{_lambda_.4} parent=5 // pred_fallthru
      _
    %p304 = scmp.le.s32.totalorder 2, %s10
    // Predicated region
    $region41: #{_lambda_.4} parent=5 // pred_check
      %p305 = pneg %p304
    $region42: #{_lambda_.4} parent=5 // pred_check_branch
      %307 = sbr.rel (%p305) target = $region44
    $region43: #{_lambda_.4} parent=5 // pred_region
      %s308 = ssub.s32 %s10, 2
      // Predicated region
      $region45: #{_lambda_.4} parent=43 // pred_check
        %p309 = pneg %p128
      $region46: #{_lambda_.4} parent=43 // pred_check_branch
        %311 = sbr.rel (%p309) target = $region48
      $region47: #{_lambda_.4} parent=43 // pred_region
        %p312 = scmp.lt.s32.totalorder %s16, 1
        %s313 = scalar_select %p312, %s16, 1
        %s314 = smul.addr %s313, 4
        %s315 = smul.addr %s314, 4
        %s316 = scalar_lea.vmem %s4, %s315
      $region48: #{_lambda_.4} parent=43 // pred_fallthru
        _
    $region44: #{_lambda_.4} parent=5 // pred_fallthru
      _
  $region6: #{_lambda_.4} parent=0 // loop_footer
    %s14 = sadd.s32 1, %s10
  $region7: #{_lambda_.4} parent=0 // loop_footer_branch
    %9 = sbr.rel target = $region3
  $region8: #{_lambda_.4} parent=0 // loop_exit
    _

// kernel: _lambda_.5
$region0: #{_lambda_.5}
  #allocation0 [shape = 'u32[]', space=smem, size = 0x4, offset = 0x4, fixed_abs, tag = 'smem constant byte address 0x4 - core index']
  #allocation1 [shape = 'u32[72,128]{1,0:T(1,128)}', space=vmem, size = 0x9000, scoped, tag = 'internal scratch']
  #allocation2 [shape = 'bf16[32,38]{1,0:T(8,128)(2,1)}', space=vmem, size = 0x2000, scoped, tag = 'scratch operand']
  #allocation3 [shape = 'bf16[32,38]{1,0:T(8,128)(2,1)}', space=vmem, size = 0x2000, scoped, tag = 'scratch operand']
  %s0 = inlined_call_operand.vmem [shape: bf16[2,32,24], index: 0, kind: input, shape index: {}]
  %s1 = inlined_call_operand.vmem [shape: bf16[2,9,32,32], index: 1, kind: input, shape index: {}]
  %s2 = inlined_call_operand.vmem [shape: f32[32,1], index: 2, kind: input, shape index: {}, may-alias: {2,4}]
  %s3 = inlined_call_operand.vmem [shape: bf16[2,9,32,32], index: 3, kind: input, shape index: {}]
  %s4 = inlined_call_operand.vmem [shape: f32[32,1], index: 4, kind: input, shape index: {}, may-alias: {2,4}]
  %s5 = inlined_call_operand.vmem [shape: bf16[2,4,32], index: 5, kind: input, shape index: {}]
  %s6 = inlined_call_operand.vmem [shape: f32[4,1], index: 6, kind: input, shape index: {}]
  %s7 = inlined_call_operand.vmem [shape: f32[1,24], index: 7, kind: input, shape index: {}]
  %s8 = inlined_call_operand.vmem [shape: bf16[2,32,24], index: 8, kind: output, shape index: {0}]
  %s9 = inlined_call_operand.vmem [shape: f32[2,4,24], index: 9, kind: output, shape index: {1}]
  %10 = xla_tuple %s8, %s9
  %s11 = sld [smem:[#allocation0]]
  $region73: #{_lambda_.5} parent=0
    _
  %s13 = ssub.s32 1, %s11
  %s14 = scalar_select 0, %s13, %s11
  loop: start=0, step=1, limit=4
  $region2: #{_lambda_.5} parent=0 // loop_pre_header
    _
  $region3: #{_lambda_.5} parent=0 // loop_header
    %s16 = sphi 0, %s20
    %p17 = scmp.ge.s32.totalorder %s16, 4
    %s26 = sphi 0, %s28
    %s29 = sphi 0, %s26
    %s30 = sphi 0, %s29
    %s46 = sphi 0, %s30
    %s52 = sphi 0, %s54
    %s55 = sphi 0, %s52
    %s56 = sphi 0, %s55
    %s72 = sphi 0, %s56
    %s76 = sphi 0, %s76
    %s78 = sphi 0, %s76
    %s79 = sphi 0, %s78
    %s93 = sphi 0, %s79
    %s99 = sphi 0, %s101
    %s102 = sphi 0, %s99
    %s103 = sphi 0, %s102
    %s119 = sphi 0, %s103
    %s123 = sphi 0, %s123
    %s125 = sphi 0, %s123
    %s126 = sphi 0, %s125
    %s140 = sphi 0, %s126
    %s146 = sphi 0, %s148
    %s149 = sphi 0, %s146
    %s150 = sphi 0, %s149
    %s166 = sphi 0, %s150
    %s170 = sphi 0, %s170
    %s172 = sphi 0, %s170
    %s173 = sphi 0, %s172
    %s187 = sphi 0, %s173
    %s191 = sphi 0, %s191
    %s193 = sphi 0, %s191
    %s194 = sphi 0, %s193
    %s208 = sphi 0, %s194
    %s214 = sphi 0, %s216
    %s217 = sphi 0, %s214
    %s218 = sphi 0, %s217
    %s234 = sphi 0, %s218
    %s240 = sphi 0, %s242
    %s243 = sphi 0, %s240
    %s244 = sphi 0, %s243
    %s260 = sphi 0, %s244
  $region4: #{_lambda_.5} parent=0 // loop_header_branch
    %19 = sbr.rel (%p17) target = $region8
  $region5: #{_lambda_.5} parent=0 // loop_body
    %s21 = ssub.s32 %s16, 1
    %s22 = ssub.s32 %s16, 2
    %s23 = sadd.s32 %s16, 1
    %s24 = ssub.s32 %s16, %s23
    %p25 = scmp.eq.s32.totalorder %s24, 0
    %s27 = sadd.s32 %s26, 1
    %s28 = scalar_select %p25, %s26, %s27
    %p31 = pneg %p25
    %p32 = scmp.eq.s32.totalorder %s16, 1
    %p33 = por %p31, %p32
    %p34 = scmp.ne.s32.totalorder %s26, %s29
    %p35 = scmp.eq.s32.totalorder %s16, 0
    %p36 = por %p34, %p35
    %p37 = scmp.ne.s32.totalorder %s26, %s29
    %p38 = scmp.eq.s32.totalorder %s21, 1
    %p39 = por %p37, %p38
    %p40 = scmp.ne.s32.totalorder %s29, %s30
    %p41 = scmp.eq.s32.totalorder %s21, 0
    %p42 = por %p40, %p41
    %p43 = scmp.ne.s32.totalorder %s29, %s30
    %p44 = scmp.eq.s32.totalorder %s22, 1
    %p45 = por %p43, %p44
    %p47 = scmp.ne.s32.totalorder %s30, %s46
    %p48 = scmp.eq.s32.totalorder %s22, 0
    %p49 = por %p47, %p48
    %s50 = ssub.s32 %s16, %s23
    %p51 = scmp.eq.s32.totalorder %s50, 0
    %s53 = sadd.s32 %s52, 1
    %s54 = scalar_select %p51, %s52, %s53
    %p57 = pneg %p51
    %p58 = scmp.eq.s32.totalorder %s16, 1
    %p59 = por %p57, %p58
    %p60 = scmp.ne.s32.totalorder %s52, %s55
    %p61 = scmp.eq.s32.totalorder %s16, 0
    %p62 = por %p60, %p61
    %p63 = scmp.ne.s32.totalorder %s52, %s55
    %p64 = scmp.eq.s32.totalorder %s21, 1
    %p65 = por %p63, %p64
    %p66 = scmp.ne.s32.totalorder %s55, %s56
    %p67 = scmp.eq.s32.totalorder %s21, 0
    %p68 = por %p66, %p67
    %p69 = scmp.ne.s32.totalorder %s55, %s56
    %p70 = scmp.eq.s32.totalorder %s22, 1
    %p71 = por %p69, %p70
    %p73 = scmp.ne.s32.totalorder %s56, %s72
    %p74 = scmp.eq.s32.totalorder %s22, 0
    %p75 = por %p73, %p74
    %s77 = sadd.s32 %s76, 1
    %p80 = scmp.eq.s32.totalorder %s16, 1
    %p81 = scmp.ne.s32.totalorder %s76, %s78
    %p82 = scmp.eq.s32.totalorder %s16, 0
    %p83 = por %p81, %p82
    %p84 = scmp.ne.s32.totalorder %s76, %s78
    %p85 = scmp.eq.s32.totalorder %s21, 1
    %p86 = por %p84, %p85
    %p87 = scmp.ne.s32.totalorder %s78, %s79
    %p88 = scmp.eq.s32.totalorder %s21, 0
    %p89 = por %p87, %p88
    %p90 = scmp.ne.s32.totalorder %s78, %s79
    %p91 = scmp.eq.s32.totalorder %s22, 1
    %p92 = por %p90, %p91
    %p94 = scmp.ne.s32.totalorder %s79, %s93
    %p95 = scmp.eq.s32.totalorder %s22, 0
    %p96 = por %p94, %p95
    %s97 = ssub.s32 %s16, %s23
    %p98 = scmp.eq.s32.totalorder %s97, 0
    %s100 = sadd.s32 %s99, 1
    %s101 = scalar_select %p98, %s99, %s100
    %p104 = pneg %p98
    %p105 = scmp.eq.s32.totalorder %s16, 1
    %p106 = por %p104, %p105
    %p107 = scmp.ne.s32.totalorder %s99, %s102
    %p108 = scmp.eq.s32.totalorder %s16, 0
    %p109 = por %p107, %p108
    %p110 = scmp.ne.s32.totalorder %s99, %s102
    %p111 = scmp.eq.s32.totalorder %s21, 1
    %p112 = por %p110, %p111
    %p113 = scmp.ne.s32.totalorder %s102, %s103
    %p114 = scmp.eq.s32.totalorder %s21, 0
    %p115 = por %p113, %p114
    %p116 = scmp.ne.s32.totalorder %s102, %s103
    %p117 = scmp.eq.s32.totalorder %s22, 1
    %p118 = por %p116, %p117
    %p120 = scmp.ne.s32.totalorder %s103, %s119
    %p121 = scmp.eq.s32.totalorder %s22, 0
    %p122 = por %p120, %p121
    %s124 = sadd.s32 %s123, 1
    %p127 = scmp.eq.s32.totalorder %s16, 1
    %p128 = scmp.ne.s32.totalorder %s123, %s125
    %p129 = scmp.eq.s32.totalorder %s16, 0
    %p130 = por %p128, %p129
    %p131 = scmp.ne.s32.totalorder %s123, %s125
    %p132 = scmp.eq.s32.totalorder %s21, 1
    %p133 = por %p131, %p132
    %p134 = scmp.ne.s32.totalorder %s125, %s126
    %p135 = scmp.eq.s32.totalorder %s21, 0
    %p136 = por %p134, %p135
    %p137 = scmp.ne.s32.totalorder %s125, %s126
    %p138 = scmp.eq.s32.totalorder %s22, 1
    %p139 = por %p137, %p138
    %p141 = scmp.ne.s32.totalorder %s126, %s140
    %p142 = scmp.eq.s32.totalorder %s22, 0
    %p143 = por %p141, %p142
    %s144 = ssub.s32 %s16, %s23
    %p145 = scmp.eq.s32.totalorder %s144, 0
    %s147 = sadd.s32 %s146, 1
    %s148 = scalar_select %p145, %s146, %s147
    %p151 = pneg %p145
    %p152 = scmp.eq.s32.totalorder %s16, 1
    %p153 = por %p151, %p152
    %p154 = scmp.ne.s32.totalorder %s146, %s149
    %p155 = scmp.eq.s32.totalorder %s16, 0
    %p156 = por %p154, %p155
    %p157 = scmp.ne.s32.totalorder %s146, %s149
    %p158 = scmp.eq.s32.totalorder %s21, 1
    %p159 = por %p157, %p158
    %p160 = scmp.ne.s32.totalorder %s149, %s150
    %p161 = scmp.eq.s32.totalorder %s21, 0
    %p162 = por %p160, %p161
    %p163 = scmp.ne.s32.totalorder %s149, %s150
    %p164 = scmp.eq.s32.totalorder %s22, 1
    %p165 = por %p163, %p164
    %p167 = scmp.ne.s32.totalorder %s150, %s166
    %p168 = scmp.eq.s32.totalorder %s22, 0
    %p169 = por %p167, %p168
    %s171 = sadd.s32 %s170, 1
    %p174 = scmp.eq.s32.totalorder %s16, 1
    %p175 = scmp.ne.s32.totalorder %s170, %s172
    %p176 = scmp.eq.s32.totalorder %s16, 0
    %p177 = por %p175, %p176
    %p178 = scmp.ne.s32.totalorder %s170, %s172
    %p179 = scmp.eq.s32.totalorder %s21, 1
    %p180 = por %p178, %p179
    %p181 = scmp.ne.s32.totalorder %s172, %s173
    %p182 = scmp.eq.s32.totalorder %s21, 0
    %p183 = por %p181, %p182
    %p184 = scmp.ne.s32.totalorder %s172, %s173
    %p185 = scmp.eq.s32.totalorder %s22, 1
    %p186 = por %p184, %p185
    %p188 = scmp.ne.s32.totalorder %s173, %s187
    %p189 = scmp.eq.s32.totalorder %s22, 0
    %p190 = por %p188, %p189
    %s192 = sadd.s32 %s191, 1
    %p195 = scmp.eq.s32.totalorder %s16, 1
    %p196 = scmp.ne.s32.totalorder %s191, %s193
    %p197 = scmp.eq.s32.totalorder %s16, 0
    %p198 = por %p196, %p197
    %p199 = scmp.ne.s32.totalorder %s191, %s193
    %p200 = scmp.eq.s32.totalorder %s21, 1
    %p201 = por %p199, %p200
    %p202 = scmp.ne.s32.totalorder %s193, %s194
    %p203 = scmp.eq.s32.totalorder %s21, 0
    %p204 = por %p202, %p203
    %p205 = scmp.ne.s32.totalorder %s193, %s194
    %p206 = scmp.eq.s32.totalorder %s22, 1
    %p207 = por %p205, %p206
    %p209 = scmp.ne.s32.totalorder %s194, %s208
    %p210 = scmp.eq.s32.totalorder %s22, 0
    %p211 = por %p209, %p210
    %s212 = ssub.s32 %s16, %s23
    %p213 = scmp.eq.s32.totalorder %s212, 0
    %s215 = sadd.s32 %s214, 1
    %s216 = scalar_select %p213, %s214, %s215
    %p219 = pneg %p213
    %p220 = scmp.eq.s32.totalorder %s16, 1
    %p221 = por %p219, %p220
    %p222 = scmp.ne.s32.totalorder %s214, %s217
    %p223 = scmp.eq.s32.totalorder %s16, 0
    %p224 = por %p222, %p223
    %p225 = scmp.ne.s32.totalorder %s214, %s217
    %p226 = scmp.eq.s32.totalorder %s21, 1
    %p227 = por %p225, %p226
    %p228 = scmp.ne.s32.totalorder %s217, %s218
    %p229 = scmp.eq.s32.totalorder %s21, 0
    %p230 = por %p228, %p229
    %p231 = scmp.ne.s32.totalorder %s217, %s218
    %p232 = scmp.eq.s32.totalorder %s22, 1
    %p233 = por %p231, %p232
    %p235 = scmp.ne.s32.totalorder %s218, %s234
    %p236 = scmp.eq.s32.totalorder %s22, 0
    %p237 = por %p235, %p236
    %s238 = ssub.s32 %s16, %s23
    %p239 = scmp.eq.s32.totalorder %s238, 0
    %s241 = sadd.s32 %s240, 1
    %s242 = scalar_select %p239, %s240, %s241
    %p245 = pneg %p239
    %p246 = scmp.eq.s32.totalorder %s16, 1
    %p247 = por %p245, %p246
    %p248 = scmp.ne.s32.totalorder %s240, %s243
    %p249 = scmp.eq.s32.totalorder %s16, 0
    %p250 = por %p248, %p249
    %p251 = scmp.ne.s32.totalorder %s240, %s243
    %p252 = scmp.eq.s32.totalorder %s21, 1
    %p253 = por %p251, %p252
    %p254 = scmp.ne.s32.totalorder %s243, %s244
    %p255 = scmp.eq.s32.totalorder %s21, 0
    %p256 = por %p254, %p255
    %p257 = scmp.ne.s32.totalorder %s243, %s244
    %p258 = scmp.eq.s32.totalorder %s22, 1
    %p259 = por %p257, %p258
    %p261 = scmp.ne.s32.totalorder %s244, %s260
    %p262 = scmp.eq.s32.totalorder %s22, 0
    %p263 = por %p261, %p262
    %p264 = scmp.le.s32.totalorder 1, %s16
    %p265 = scmp.lt.s32.totalorder %s16, 3
    %p266 = pnand %p264, %p265
    %p267 = pneg %p266
    // Predicated region
    $region9: #{_lambda_.5} parent=5 // pred_check
      _
    $region10: #{_lambda_.5} parent=5 // pred_check_branch
      %269 = sbr.rel (%p266) target = $region12
    $region11: #{_lambda_.5} parent=5 // pred_region
      %s270 = ssub.s32 %s16, 1
      // Predicated region
      $region13: #{_lambda_.5} parent=11 // pred_check
        %p271 = pneg %p89
      $region14: #{_lambda_.5} parent=11 // pred_check_branch
        %273 = sbr.rel (%p271) target = $region16
      $region15: #{_lambda_.5} parent=11 // pred_region
        _
      $region16: #{_lambda_.5} parent=11 // pred_fallthru
        _
      // Predicated region
      $region17: #{_lambda_.5} parent=11 // pred_check
        %p274 = pneg %p136
      $region18: #{_lambda_.5} parent=11 // pred_check_branch
        %276 = sbr.rel (%p274) target = $region20
      $region19: #{_lambda_.5} parent=11 // pred_region
        _
      $region20: #{_lambda_.5} parent=11 // pred_fallthru
        _
      // Predicated region
      $region21: #{_lambda_.5} parent=11 // pred_check
        %p277 = pneg %p183
      $region22: #{_lambda_.5} parent=11 // pred_check_branch
        %279 = sbr.rel (%p277) target = $region24
      $region23: #{_lambda_.5} parent=11 // pred_region
        _
      $region24: #{_lambda_.5} parent=11 // pred_fallthru
        _
      // Predicated region
      $region25: #{_lambda_.5} parent=11 // pred_check
        %p280 = pneg %p204
      $region26: #{_lambda_.5} parent=11 // pred_check_branch
        %282 = sbr.rel (%p280) target = $region28
      $region27: #{_lambda_.5} parent=11 // pred_region
        _
      $region28: #{_lambda_.5} parent=11 // pred_fallthru
        _
    $region12: #{_lambda_.5} parent=5 // pred_fallthru
      _
    %p283 = scmp.lt.s32.totalorder %s16, 2
    // Predicated region
    $region29: #{_lambda_.5} parent=5 // pred_check
      %p284 = pneg %p283
    $region30: #{_lambda_.5} parent=5 // pred_check_branch
      %286 = sbr.rel (%p284) target = $region32
    $region31: #{_lambda_.5} parent=5 // pred_region
      // Predicated region
      $region33: #{_lambda_.5} parent=31 // pred_check
        %p287 = pneg %p36
      $region34: #{_lambda_.5} parent=31 // pred_check_branch
        %289 = sbr.rel (%p287) target = $region36
      $region35: #{_lambda_.5} parent=31 // pred_region
        %p290 = scmp.lt.s32.totalorder %s16, 1
        %s291 = scalar_select %p290, %s16, 1
        %s292 = smul.addr %s291, 4
        %s293 = smul.addr %s292, 4
        %s294 = scalar_lea.vmem %s0, %s293
      $region36: #{_lambda_.5} parent=31 // pred_fallthru
        _
      // Predicated region
      $region37: #{_lambda_.5} parent=31 // pred_check
        %p295 = pneg %p62
      $region38: #{_lambda_.5} parent=31 // pred_check_branch
        %297 = sbr.rel (%p295) target = $region40
      $region39: #{_lambda_.5} parent=31 // pred_region
        %p298 = scmp.lt.s32.totalorder %s16, 1
        %s299 = scalar_select %p298, %s16, 1
        %s300 = smul.addr %s299, 36
        %s301 = smul.addr %s300, 4
        %s302 = scalar_lea.vmem %s1, %s301
      $region40: #{_lambda_.5} parent=31 // pred_fallthru
        _
      // Predicated region
      $region41: #{_lambda_.5} parent=31 // pred_check
        %p303 = pneg %p109
      $region42: #{_lambda_.5} parent=31 // pred_check_branch
        %305 = sbr.rel (%p303) target = $region44
      $region43: #{_lambda_.5} parent=31 // pred_region
        %p306 = scmp.lt.s32.totalorder %s16, 1
        %s307 = scalar_select %p306, %s16, 1
        %s308 = smul.addr %s307, 36
        %s309 = smul.addr %s308, 4
        %s310 = scalar_lea.vmem %s3, %s309
      $region44: #{_lambda_.5} parent=31 // pred_fallthru
        _
      // Predicated region
      $region45: #{_lambda_.5} parent=31 // pred_check
        %p311 = pneg %p156
      $region46: #{_lambda_.5} parent=31 // pred_check_branch
        %313 = sbr.rel (%p311) target = $region48
      $region47: #{_lambda_.5} parent=31 // pred_region
        %p314 = scmp.lt.s32.totalorder %s16, 1
        %s315 = scalar_select %p314, %s16, 1
        %s316 = smul.addr %s315, 2
        %s317 = scalar_lea.vmem %s5, %s316
      $region48: #{_lambda_.5} parent=31 // pred_fallthru
        _
    $region32: #{_lambda_.5} parent=5 // pred_fallthru
      _
    %p318 = scmp.le.s32.totalorder 1, %s16
    %p319 = scmp.lt.s32.totalorder %s16, 3
    %p320 = pnand %p318, %p319
    %p321 = pneg %p320
    // Predicated region
    $region49: #{_lambda_.5} parent=5 // pred_check
      _
    $region50: #{_lambda_.5} parent=5 // pred_check_branch
      %323 = sbr.rel (%p320) target = $region52
    $region51: #{_lambda_.5} parent=5 // pred_region
      %s324 = ssub.s32 %s16, 1
      %p325 = scmp.lt.s32.totalorder %s21, 1
      %s326 = scalar_select %p325, %s21, 1
      %s327 = smul.addr %s326, 4
      %s328 = smul.addr %s327, 4
      %s329 = scalar_lea.vmem %s0, %s328
      %p330 = pneg %p42
      %p331 = pneg %p39
      %p332 = scmp.lt.s32.totalorder %s21, 1
      %s333 = scalar_select %p332, %s21, 1
      %s334 = smul.addr %s333, 36
      %s335 = smul.addr %s334, 4
      %s336 = scalar_lea.vmem %s1, %s335
      %p337 = pneg %p68
      %p338 = pneg %p65
      %p339 = pneg %p89
      %p340 = pneg %p86
      %p341 = scmp.lt.s32.totalorder %s21, 1
      %s342 = scalar_select %p341, %s21, 1
      %s343 = smul.addr %s342, 36
      %s344 = smul.addr %s343, 4
      %s345 = scalar_lea.vmem %s3, %s344
      %p346 = pneg %p115
      %p347 = pneg %p112
      %p348 = pneg %p136
      %p349 = pneg %p133
      %p350 = scmp.lt.s32.totalorder %s21, 1
      %s351 = scalar_select %p350, %s21, 1
      %s352 = smul.addr %s351, 2
      %s353 = scalar_lea.vmem %s5, %s352
      %p354 = pneg %p162
      %p355 = pneg %p159
      %p356 = pneg %p183
      %p357 = pneg %p180
      %p358 = pneg %p204
      %p359 = pneg %p201
      %p360 = pneg %p230
      %p361 = pneg %p227
      %p362 = scmp.lt.s32.totalorder %s21, 1
      %s363 = scalar_select %p362, %s21, 1
      %s364 = smul.addr %s363, 4
      %s365 = smul.addr %s364, 4
      %s366 = scalar_lea.vmem %s8, %s365
      %p367 = pneg %p256
      %p368 = pneg %p253
      %p369 = scmp.lt.s32.totalorder %s21, 1
      %s370 = scalar_select %p369, %s21, 1
      %s371 = smul.addr %s370, 4
      %s372 = scalar_lea.vmem %s9, %s371
      %p373 = scmp.lt.s32.totalorder %s21, 1
      %s374 = scalar_select %p373, %s21, 1
      %s375 = smul.addr %s374, 4
      %s376 = smul.addr %s375, 4
      %s377 = scalar_lea.vmem %s0, %s376
      %p378 = scmp.lt.s32.totalorder %s21, 1
      %s379 = scalar_select %p378, %s21, 1
      %s380 = smul.addr %s379, 36
      %s381 = smul.addr %s380, 4
      %s382 = scalar_lea.vmem %s1, %s381
      %p383 = scmp.lt.s32.totalorder %s21, 1
      %s384 = scalar_select %p383, %s21, 1
      %s385 = smul.addr %s384, 36
      %s386 = smul.addr %s385, 4
      %s387 = scalar_lea.vmem %s3, %s386
      %p388 = scmp.lt.s32.totalorder %s21, 1
      %s389 = scalar_select %p388, %s21, 1
      %s390 = smul.addr %s389, 2
      %s391 = scalar_lea.vmem %s5, %s390
      %p392 = scmp.lt.s32.totalorder %s21, 1
      %s393 = scalar_select %p392, %s21, 1
      %s394 = smul.addr %s393, 4
      %s395 = smul.addr %s394, 4
      %s396 = scalar_lea.vmem %s8, %s395
      %p397 = scmp.lt.s32.totalorder %s21, 1
      %s398 = scalar_select %p397, %s21, 1
      %s399 = smul.addr %s398, 4
      %s400 = scalar_lea.vmem %s9, %s399
      %v402 = vld [vmem:[%s7] sm:$0x1]
      %v403 = vld [vmem:[%s377] sm:$0xf]
      %v404 = vld [vmem:[%s377 + $0x4] sm:$0xf]
      %v405 = vld [vmem:[%s377 + $0x8] sm:$0xf]
      %v406 = vld [vmem:[%s377 + $0xc] sm:$0xf]
      %vm407 = vcmask 52224
      %408 = vst.msk [vmem:[#allocation2] sm:$0xf] %vm407, 0
      %409 = vst.msk [vmem:[#allocation2 + $0x4] sm:$0xf] %vm407, 0
      %410 = vst.msk [vmem:[#allocation2 + $0x8] sm:$0xf] %vm407, 0
      %411 = vst.msk [vmem:[#allocation2 + $0xc] sm:$0xf] %vm407, 0
      %vm412 = vcmask 306424
      %413 = vst.msk [vmem:[#allocation2] sm:$0xf] %vm412, 0
      %414 = vst.msk [vmem:[#allocation2 + $0x4] sm:$0xf] %vm412, 0
      %415 = vst.msk [vmem:[#allocation2 + $0x8] sm:$0xf] %vm412, 0
      %416 = vst.msk [vmem:[#allocation2 + $0xc] sm:$0xf] %vm412, 0
      %421 = vrot.lane.b32.xlu0 %v403, 7
      %v422 = vpop.permute.xlu0 %421
      %423 = vrot.lane.b32.xlu0 %v404, 7
      %v424 = vpop.permute.xlu0 %423
      %425 = vrot.lane.b32.xlu0 %v405, 7
      %v426 = vpop.permute.xlu0 %425
      %427 = vrot.lane.b32.xlu0 %v406, 7
      %v428 = vpop.permute.xlu0 %427
      %vm433 = vcmask 248888
      %434 = vst.msk [vmem:[#allocation2] sm:$0xf] %vm433, %v422
      %435 = vst.msk [vmem:[#allocation2 + $0x4] sm:$0xf] %vm433, %v424
      %436 = vst.msk [vmem:[#allocation2 + $0x8] sm:$0xf] %vm433, %v426
      %437 = vst.msk [vmem:[#allocation2 + $0xc] sm:$0xf] %vm433, %v428
      %v438 = vld [vmem:[%s382] sm:$0xf]
      %v439 = vld [vmem:[%s382 + $0x4] sm:$0xf]
      %v440 = vld [vmem:[%s382 + $0x8] sm:$0xf]
      %v441 = vld [vmem:[%s382 + $0xc] sm:$0xf]
      %v442 = vld [vmem:[#allocation2] sm:$0xf]
      %v443 = vld [vmem:[#allocation2 + $0x4] sm:$0xf]
      %v444 = vld [vmem:[#allocation2 + $0x8] sm:$0xf]
      %v445 = vld [vmem:[#allocation2 + $0xc] sm:$0xf]
      %s446 = scalar_lea.vmem %s382, 16
      %v447 = vld [vmem:[%s446] sm:$0xf]
      %v448 = vld [vmem:[%s446 + $0x4] sm:$0xf]
      %v449 = vld [vmem:[%s446 + $0x8] sm:$0xf]
      %v450 = vld [vmem:[%s446 + $0xc] sm:$0xf]
      %v455 = vunpack.c.l.b16 %v447
      %v456 = vunpack.c.l.b16 %v448
      %v457 = vunpack.c.l.b16 %v449
      %v458 = vunpack.c.l.b16 %v450
      %v459 = vpack.c.b16 %v456, %v455
      %v460 = vpack.c.b16 %v458, %v457
      %v465 = vunpack.c.l.b16 %v442
      %v466 = vunpack.c.l.b16 %v443
      %v467 = vunpack.c.l.b16 %v444
      %v468 = vunpack.c.l.b16 %v445
      %v469 = vpack.c.b16 %v466, %v465
      %v470 = vpack.c.b16 %v468, %v467
      %471 = vrot.lane.b32.xlu0 %v469, 127
      %v472 = vpop.permute.xlu0 %471
      %473 = vrot.lane.b32.xlu0 %v470, 127
      %v474 = vpop.permute.xlu0 %473
      %vm477 = vcmask 261120
      %v479 = vsel %vm477, %v459, 0
      %v482 = vsel %vm477, %v460, 0
      %484 = vmatpush.bf16.msra.mxu0 0
      %485 = vmatpush.bf16.msra.mxu0 0
      %486 = vmatpush.bf16.msra.mxu0 0
      %487 = vmatpush.bf16.msra.mxu0 0
      %488 = vmatpush.bf16.msra.mxu0 0
      %489 = vmatpush.bf16.msra.mxu0 0
      %490 = vmatpush.bf16.msra.mxu0 %v474
      %491 = vmatpush.bf16.msra.mxu0 %v472
      %492 = vmatmul.bf16.gmra.mxu0 %v479
      %v493 = vpop.f32.mrf.mxu0
      %v494 = vadd.f32 0.0, %v493
      %v495 = vpop.f32.mrf.mxu0
      %v496 = vadd.f32 0.0, %v495
      %497 = vmatmul.bf16.gmra.mxu0 %v482
      %v498 = vpop.f32.mrf.mxu0
      %v499 = vadd.f32 0.0, %v498
      %v500 = vpop.f32.mrf.mxu0
      %v501 = vadd.f32 0.0, %v500
      %502 = vdwg.mxu0
      %v507 = vunpack.c.l.b16 %v438
      %v508 = vunpack.c.l.b16 %v439
      %v509 = vunpack.c.l.b16 %v440
      %v510 = vunpack.c.l.b16 %v441
      %v511 = vpack.c.b16 %v508, %v507
      %v512 = vpack.c.b16 %v510, %v509
      %v516 = vsel %vm477, %v511, 0
      %v519 = vsel %vm477, %v512, 0
      %521 = vmatpush.bf16.msra.mxu0 0
      %522 = vmatpush.bf16.msra.mxu0 0
      %523 = vmatpush.bf16.msra.mxu0 0
      %524 = vmatpush.bf16.msra.mxu0 0
      %525 = vmatpush.bf16.msra.mxu0 0
      %526 = vmatpush.bf16.msra.mxu0 0
      %527 = vmatpush.bf16.msra.mxu0 %v470
      %528 = vmatpush.bf16.msra.mxu0 %v469
      %529 = vmatmul.bf16.gmra.mxu0 %v516
      %v530 = vpop.f32.mrf.mxu0
      %v531 = vadd.f32 %v494, %v530
      %v532 = vpop.f32.mrf.mxu0
      %v533 = vadd.f32 %v496, %v532
      %534 = vmatmul.bf16.gmra.mxu0 %v519
      %v535 = vpop.f32.mrf.mxu0
      %v536 = vadd.f32 %v499, %v535
      %v537 = vpop.f32.mrf.mxu0
      %v538 = vadd.f32 %v501, %v537
      %539 = vdwg.mxu0
      %s540 = scalar_lea.vmem %s382, 32
      %v541 = vld [vmem:[%s540] sm:$0xf]
      %v542 = vld [vmem:[%s540 + $0x4] sm:$0xf]
      %v543 = vld [vmem:[%s540 + $0x8] sm:$0xf]
      %v544 = vld [vmem:[%s540 + $0xc] sm:$0xf]
      %v549 = vunpack.c.l.b16 %v541
      %v550 = vunpack.c.l.b16 %v542
      %v551 = vunpack.c.l.b16 %v543
      %v552 = vunpack.c.l.b16 %v544
      %v553 = vpack.c.b16 %v550, %v549
      %v554 = vpack.c.b16 %v552, %v551
      %555 = vrot.lane.b32.xlu0 %v469, 126
      %v556 = vpop.permute.xlu0 %555
      %557 = vrot.lane.b32.xlu0 %v470, 126
      %v558 = vpop.permute.xlu0 %557
      %v562 = vsel %vm477, %v553, 0
      %v565 = vsel %vm477, %v554, 0
      %567 = vmatpush.bf16.msra.mxu0 0
      %568 = vmatpush.bf16.msra.mxu0 0
      %569 = vmatpush.bf16.msra.mxu0 0
      %570 = vmatpush.bf16.msra.mxu0 0
      %571 = vmatpush.bf16.msra.mxu0 0
      %572 = vmatpush.bf16.msra.mxu0 0
      %573 = vmatpush.bf16.msra.mxu0 %v558
      %574 = vmatpush.bf16.msra.mxu0 %v556
      %575 = vmatmul.bf16.gmra.mxu0 %v562
      %v576 = vpop.f32.mrf.mxu0
      %v577 = vadd.f32 0.0, %v576
      %v578 = vpop.f32.mrf.mxu0
      %v579 = vadd.f32 0.0, %v578
      %580 = vmatmul.bf16.gmra.mxu0 %v565
      %v581 = vpop.f32.mrf.mxu0
      %v582 = vadd.f32 0.0, %v581
      %v583 = vpop.f32.mrf.mxu0
      %v584 = vadd.f32 0.0, %v583
      %585 = vdwg.mxu0
      %v586 = vadd.f32 %v531, %v577
      %v587 = vadd.f32 %v533, %v579
      %v588 = vadd.f32 %v536, %v582
      %v589 = vadd.f32 %v538, %v584
      %s590 = scalar_lea.vmem %s382, 48
      %v591 = vld [vmem:[%s590] sm:$0xf]
      %v592 = vld [vmem:[%s590 + $0x4] sm:$0xf]
      %v593 = vld [vmem:[%s590 + $0x8] sm:$0xf]
      %v594 = vld [vmem:[%s590 + $0xc] sm:$0xf]
      %v599 = vunpack.c.l.b16 %v591
      %v600 = vunpack.c.l.b16 %v592
      %v601 = vunpack.c.l.b16 %v593
      %v602 = vunpack.c.l.b16 %v594
      %v603 = vpack.c.b16 %v600, %v599
      %v604 = vpack.c.b16 %v602, %v601
      %605 = vrot.lane.b32.xlu0 %v469, 122
      %v606 = vpop.permute.xlu0 %605
      %607 = vrot.lane.b32.xlu0 %v470, 122
      %v608 = vpop.permute.xlu0 %607
      %v612 = vsel %vm477, %v603, 0
      %v615 = vsel %vm477, %v604, 0
      %617 = vmatpush.bf16.msra.mxu0 0
      %618 = vmatpush.bf16.msra.mxu0 0
      %619 = vmatpush.bf16.msra.mxu0 0
      %620 = vmatpush.bf16.msra.mxu0 0
      %621 = vmatpush.bf16.msra.mxu0 0
      %622 = vmatpush.bf16.msra.mxu0 0
      %623 = vmatpush.bf16.msra.mxu0 %v608
      %624 = vmatpush.bf16.msra.mxu0 %v606
      %625 = vmatmul.bf16.gmra.mxu0 %v612
      %v626 = vpop.f32.mrf.mxu0
      %v627 = vadd.f32 0.0, %v626
      %v628 = vpop.f32.mrf.mxu0
      %v629 = vadd.f32 0.0, %v628
      %630 = vmatmul.bf16.gmra.mxu0 %v615
      %v631 = vpop.f32.mrf.mxu0
      %v632 = vadd.f32 0.0, %v631
      %v633 = vpop.f32.mrf.mxu0
      %v634 = vadd.f32 0.0, %v633
      %635 = vdwg.mxu0
      %v636 = vadd.f32 %v586, %v627
      %v637 = vadd.f32 %v587, %v629
      %v638 = vadd.f32 %v588, %v632
      %v639 = vadd.f32 %v589, %v634
      %s640 = scalar_lea.vmem %s382, 64
      %v641 = vld [vmem:[%s640] sm:$0xf]
      %v642 = vld [vmem:[%s640 + $0x4] sm:$0xf]
      %v643 = vld [vmem:[%s640 + $0x8] sm:$0xf]
      %v644 = vld [vmem:[%s640 + $0xc] sm:$0xf]
      %v649 = vunpack.c.l.b16 %v641
      %v650 = vunpack.c.l.b16 %v642
      %v651 = vunpack.c.l.b16 %v643
      %v652 = vunpack.c.l.b16 %v644
      %v653 = vpack.c.b16 %v650, %v649
      %v654 = vpack.c.b16 %v652, %v651
      %655 = vrot.lane.b32.xlu0 %v469, 121
      %v656 = vpop.permute.xlu0 %655
      %657 = vrot.lane.b32.xlu0 %v470, 121
      %v658 = vpop.permute.xlu0 %657
      %v662 = vsel %vm477, %v653, 0
      %v665 = vsel %vm477, %v654, 0
      %667 = vmatpush.bf16.msra.mxu0 0
      %668 = vmatpush.bf16.msra.mxu0 0
      %669 = vmatpush.bf16.msra.mxu0 0
      %670 = vmatpush.bf16.msra.mxu0 0
      %671 = vmatpush.bf16.msra.mxu0 0
      %672 = vmatpush.bf16.msra.mxu0 0
      %673 = vmatpush.bf16.msra.mxu0 %v658
      %674 = vmatpush.bf16.msra.mxu0 %v656
      %675 = vmatmul.bf16.gmra.mxu0 %v662
      %v676 = vpop.f32.mrf.mxu0
      %v677 = vadd.f32 0.0, %v676
      %v678 = vpop.f32.mrf.mxu0
      %v679 = vadd.f32 0.0, %v678
      %680 = vmatmul.bf16.gmra.mxu0 %v665
      %v681 = vpop.f32.mrf.mxu0
      %v682 = vadd.f32 0.0, %v681
      %v683 = vpop.f32.mrf.mxu0
      %v684 = vadd.f32 0.0, %v683
      %685 = vdwg.mxu0
      %v686 = vadd.f32 %v636, %v677
      %v687 = vadd.f32 %v637, %v679
      %v688 = vadd.f32 %v638, %v682
      %v689 = vadd.f32 %v639, %v684
      %s690 = scalar_lea.vmem %s382, 80
      %v691 = vld [vmem:[%s690] sm:$0xf]
      %v692 = vld [vmem:[%s690 + $0x4] sm:$0xf]
      %v693 = vld [vmem:[%s690 + $0x8] sm:$0xf]
      %v694 = vld [vmem:[%s690 + $0xc] sm:$0xf]
      %v699 = vunpack.c.l.b16 %v691
      %v700 = vunpack.c.l.b16 %v692
      %v701 = vunpack.c.l.b16 %v693
      %v702 = vunpack.c.l.b16 %v694
      %v703 = vpack.c.b16 %v700, %v699
      %v704 = vpack.c.b16 %v702, %v701
      %705 = vrot.lane.b32.xlu0 %v469, 120
      %v706 = vpop.permute.xlu0 %705
      %707 = vrot.lane.b32.xlu0 %v470, 120
      %v708 = vpop.permute.xlu0 %707
      %v712 = vsel %vm477, %v703, 0
      %v715 = vsel %vm477, %v704, 0
      %717 = vmatpush.bf16.msra.mxu0 0
      %718 = vmatpush.bf16.msra.mxu0 0
      %719 = vmatpush.bf16.msra.mxu0 0
      %720 = vmatpush.bf16.msra.mxu0 0
      %721 = vmatpush.bf16.msra.mxu0 0
      %722 = vmatpush.bf16.msra.mxu0 0
      %723 = vmatpush.bf16.msra.mxu0 %v708
      %724 = vmatpush.bf16.msra.mxu0 %v706
      %725 = vmatmul.bf16.gmra.mxu0 %v712
      %v726 = vpop.f32.mrf.mxu0
      %v727 = vadd.f32 0.0, %v726
      %v728 = vpop.f32.mrf.mxu0
      %v729 = vadd.f32 0.0, %v728
      %730 = vmatmul.bf16.gmra.mxu0 %v715
      %v731 = vpop.f32.mrf.mxu0
      %v732 = vadd.f32 0.0, %v731
      %v733 = vpop.f32.mrf.mxu0
      %v734 = vadd.f32 0.0, %v733
      %735 = vdwg.mxu0
      %v736 = vadd.f32 %v686, %v727
      %v737 = vadd.f32 %v687, %v729
      %v738 = vadd.f32 %v688, %v732
      %v739 = vadd.f32 %v689, %v734
      %s740 = scalar_lea.vmem %s382, 96
      %v741 = vld [vmem:[%s740] sm:$0xf]
      %v742 = vld [vmem:[%s740 + $0x4] sm:$0xf]
      %v743 = vld [vmem:[%s740 + $0x8] sm:$0xf]
      %v744 = vld [vmem:[%s740 + $0xc] sm:$0xf]
      %v749 = vunpack.c.l.b16 %v741
      %v750 = vunpack.c.l.b16 %v742
      %v751 = vunpack.c.l.b16 %v743
      %v752 = vunpack.c.l.b16 %v744
      %v753 = vpack.c.b16 %v750, %v749
      %v754 = vpack.c.b16 %v752, %v751
      %755 = vrot.lane.b32.xlu0 %v469, 116
      %v756 = vpop.permute.xlu0 %755
      %757 = vrot.lane.b32.xlu0 %v470, 116
      %v758 = vpop.permute.xlu0 %757
      %v762 = vsel %vm477, %v753, 0
      %v765 = vsel %vm477, %v754, 0
      %767 = vmatpush.bf16.msra.mxu0 0
      %768 = vmatpush.bf16.msra.mxu0 0
      %769 = vmatpush.bf16.msra.mxu0 0
      %770 = vmatpush.bf16.msra.mxu0 0
      %771 = vmatpush.bf16.msra.mxu0 0
      %772 = vmatpush.bf16.msra.mxu0 0
      %773 = vmatpush.bf16.msra.mxu0 %v758
      %774 = vmatpush.bf16.msra.mxu0 %v756
      %775 = vmatmul.bf16.gmra.mxu0 %v762
      %v776 = vpop.f32.mrf.mxu0
      %v777 = vadd.f32 0.0, %v776
      %v778 = vpop.f32.mrf.mxu0
      %v779 = vadd.f32 0.0, %v778
      %780 = vmatmul.bf16.gmra.mxu0 %v765
      %v781 = vpop.f32.mrf.mxu0
      %v782 = vadd.f32 0.0, %v781
      %v783 = vpop.f32.mrf.mxu0
      %v784 = vadd.f32 0.0, %v783
      %785 = vdwg.mxu0
      %v786 = vadd.f32 %v736, %v777
      %v787 = vadd.f32 %v737, %v779
      %v788 = vadd.f32 %v738, %v782
      %v789 = vadd.f32 %v739, %v784
      %s790 = scalar_lea.vmem %s382, 112
      %v791 = vld [vmem:[%s790] sm:$0xf]
      %v792 = vld [vmem:[%s790 + $0x4] sm:$0xf]
      %v793 = vld [vmem:[%s790 + $0x8] sm:$0xf]
      %v794 = vld [vmem:[%s790 + $0xc] sm:$0xf]
      %v799 = vunpack.c.l.b16 %v791
      %v800 = vunpack.c.l.b16 %v792
      %v801 = vunpack.c.l.b16 %v793
      %v802 = vunpack.c.l.b16 %v794
      %v803 = vpack.c.b16 %v800, %v799
      %v804 = vpack.c.b16 %v802, %v801
      %805 = vrot.lane.b32.xlu0 %v469, 115
      %v806 = vpop.permute.xlu0 %805
      %807 = vrot.lane.b32.xlu0 %v470, 115
      %v808 = vpop.permute.xlu0 %807
      %v812 = vsel %vm477, %v803, 0
      %v815 = vsel %vm477, %v804, 0
      %817 = vmatpush.bf16.msra.mxu0 0
      %818 = vmatpush.bf16.msra.mxu0 0
      %819 = vmatpush.bf16.msra.mxu0 0
      %820 = vmatpush.bf16.msra.mxu0 0
      %821 = vmatpush.bf16.msra.mxu0 0
      %822 = vmatpush.bf16.msra.mxu0 0
      %823 = vmatpush.bf16.msra.mxu0 %v808
      %824 = vmatpush.bf16.msra.mxu0 %v806
      %825 = vmatmul.bf16.gmra.mxu0 %v812
      %v826 = vpop.f32.mrf.mxu0
      %v827 = vadd.f32 0.0, %v826
      %v828 = vpop.f32.mrf.mxu0
      %v829 = vadd.f32 0.0, %v828
      %830 = vmatmul.bf16.gmra.mxu0 %v815
      %v831 = vpop.f32.mrf.mxu0
      %v832 = vadd.f32 0.0, %v831
      %v833 = vpop.f32.mrf.mxu0
      %v834 = vadd.f32 0.0, %v833
      %835 = vdwg.mxu0
      %v836 = vadd.f32 %v786, %v827
      %v837 = vadd.f32 %v787, %v829
      %v838 = vadd.f32 %v788, %v832
      %v839 = vadd.f32 %v789, %v834
      %s840 = scalar_lea.vmem %s382, 128
      %v841 = vld [vmem:[%s840] sm:$0xf]
      %v842 = vld [vmem:[%s840 + $0x4] sm:$0xf]
      %v843 = vld [vmem:[%s840 + $0x8] sm:$0xf]
      %v844 = vld [vmem:[%s840 + $0xc] sm:$0xf]
      %v849 = vunpack.c.l.b16 %v841
      %v850 = vunpack.c.l.b16 %v842
      %v851 = vunpack.c.l.b16 %v843
      %v852 = vunpack.c.l.b16 %v844
      %v853 = vpack.c.b16 %v850, %v849
      %v854 = vpack.c.b16 %v852, %v851
      %855 = vrot.lane.b32.xlu0 %v469, 114
      %v856 = vpop.permute.xlu0 %855
      %857 = vrot.lane.b32.xlu0 %v470, 114
      %v858 = vpop.permute.xlu0 %857
      %v862 = vsel %vm477, %v853, 0
      %v865 = vsel %vm477, %v854, 0
      %867 = vmatpush.bf16.msra.mxu0 0
      %868 = vmatpush.bf16.msra.mxu0 0
      %869 = vmatpush.bf16.msra.mxu0 0
      %870 = vmatpush.bf16.msra.mxu0 0
      %871 = vmatpush.bf16.msra.mxu0 0
      %872 = vmatpush.bf16.msra.mxu0 0
      %873 = vmatpush.bf16.msra.mxu0 %v858
      %874 = vmatpush.bf16.msra.mxu0 %v856
      %875 = vmatmul.bf16.gmra.mxu0 %v862
      %v876 = vpop.f32.mrf.mxu0
      %v877 = vadd.f32 0.0, %v876
      %v878 = vpop.f32.mrf.mxu0
      %v879 = vadd.f32 0.0, %v878
      %880 = vmatmul.bf16.gmra.mxu0 %v865
      %v881 = vpop.f32.mrf.mxu0
      %v882 = vadd.f32 0.0, %v881
      %v883 = vpop.f32.mrf.mxu0
      %v884 = vadd.f32 0.0, %v883
      %885 = vdwg.mxu0
      %v886 = vadd.f32 %v836, %v877
      %v887 = vadd.f32 %v837, %v879
      %v888 = vadd.f32 %v838, %v882
      %v889 = vadd.f32 %v839, %v884
      %v890 = vld [vmem:[%s2] sm:$0xff]
      %v891 = vld [vmem:[%s2 + $0x8] sm:$0xff]
      %v892 = vld [vmem:[%s2 + $0x10] sm:$0xff]
      %v893 = vld [vmem:[%s2 + $0x18] sm:$0xff]
      %895 = vset.pattern.permute.xlu0 0
      %896 = vperm.xlu0 %895, %v890
      %v897 = vpop.permute.xlu0 %896
      %900 = vset.pattern.permute.xlu0 0
      %901 = vperm.xlu0 %900, %v891
      %v902 = vpop.permute.xlu0 %901
      %905 = vset.pattern.permute.xlu0 0
      %906 = vperm.xlu0 %905, %v892
      %v907 = vpop.permute.xlu0 %906
      %910 = vset.pattern.permute.xlu0 0
      %911 = vperm.xlu0 %910, %v893
      %v912 = vpop.permute.xlu0 %911
      %v914 = vadd.f32 %v886, %v897
      %v915 = vadd.f32 %v887, %v902
      %v916 = vadd.f32 %v888, %v907
      %v917 = vadd.f32 %v889, %v912
      %v918 = vmul.f32 %v914, 0.2
      %v919 = vmul.f32 %v915, 0.2
      %v920 = vmul.f32 %v916, 0.2
      %v921 = vmul.f32 %v917, 0.2
      %v922 = vmax.f32 %v914, %v918
      %v923 = vmax.f32 %v915, %v919
      %v924 = vmax.f32 %v916, %v920
      %v925 = vmax.f32 %v917, %v921
      %v927 = vperm.slane %v402, 0
      %v929 = vmul.f32 %v922, %v927
      %v930 = vmul.f32 %v923, %v927
      %v931 = vmul.f32 %v924, %v927
      %v932 = vmul.f32 %v925, %v927
      %v933 = vpack.c.bf16 %v929, %v929
      %v934 = vpack.c.bf16 %v930, %v930
      %v935 = vpack.c.bf16 %v931, %v931
      %v936 = vpack.c.bf16 %v932, %v932
      %937 = vst.msk [vmem:[#allocation3] sm:$0xf] %vm407, 0
      %938 = vst.msk [vmem:[#allocation3 + $0x4] sm:$0xf] %vm407, 0
      %939 = vst.msk [vmem:[#allocation3 + $0x8] sm:$0xf] %vm407, 0
      %940 = vst.msk [vmem:[#allocation3 + $0xc] sm:$0xf] %vm407, 0
      %941 = vst.msk [vmem:[#allocation3] sm:$0xf] %vm412, 0
      %942 = vst.msk [vmem:[#allocation3 + $0x4] sm:$0xf] %vm412, 0
      %943 = vst.msk [vmem:[#allocation3 + $0x8] sm:$0xf] %vm412, 0
      %944 = vst.msk [vmem:[#allocation3 + $0xc] sm:$0xf] %vm412, 0
      %949 = vrot.lane.b32.xlu0 %v933, 7
      %v950 = vpop.permute.xlu0 %949
      %951 = vrot.lane.b32.xlu0 %v934, 7
      %v952 = vpop.permute.xlu0 %951
      %953 = vrot.lane.b32.xlu0 %v935, 7
      %v954 = vpop.permute.xlu0 %953
      %955 = vrot.lane.b32.xlu0 %v936, 7
      %v956 = vpop.permute.xlu0 %955
      %961 = vst.msk [vmem:[#allocation3] sm:$0xf] %vm433, %v950
      %962 = vst.msk [vmem:[#allocation3 + $0x4] sm:$0xf] %vm433, %v952
      %963 = vst.msk [vmem:[#allocation3 + $0x8] sm:$0xf] %vm433, %v954
      %964 = vst.msk [vmem:[#allocation3 + $0xc] sm:$0xf] %vm433, %v956
      %v965 = vld [vmem:[%s387] sm:$0xf]
      %v966 = vld [vmem:[%s387 + $0x4] sm:$0xf]
      %v967 = vld [vmem:[%s387 + $0x8] sm:$0xf]
      %v968 = vld [vmem:[%s387 + $0xc] sm:$0xf]
      %v969 = vld [vmem:[#allocation3] sm:$0xf]
      %v970 = vld [vmem:[#allocation3 + $0x4] sm:$0xf]
      %v971 = vld [vmem:[#allocation3 + $0x8] sm:$0xf]
      %v972 = vld [vmem:[#allocation3 + $0xc] sm:$0xf]
      %s973 = scalar_lea.vmem %s387, 16
      %v974 = vld [vmem:[%s973] sm:$0xf]
      %v975 = vld [vmem:[%s973 + $0x4] sm:$0xf]
      %v976 = vld [vmem:[%s973 + $0x8] sm:$0xf]
      %v977 = vld [vmem:[%s973 + $0xc] sm:$0xf]
      %v982 = vunpack.c.l.b16 %v974
      %v983 = vunpack.c.l.b16 %v975
      %v984 = vunpack.c.l.b16 %v976
      %v985 = vunpack.c.l.b16 %v977
      %v986 = vpack.c.b16 %v983, %v982
      %v987 = vpack.c.b16 %v985, %v984
      %v992 = vunpack.c.l.b16 %v969
      %v993 = vunpack.c.l.b16 %v970
      %v994 = vunpack.c.l.b16 %v971
      %v995 = vunpack.c.l.b16 %v972
      %v996 = vpack.c.b16 %v993, %v992
      %v997 = vpack.c.b16 %v995, %v994
      %998 = vrot.lane.b32.xlu0 %v996, 127
      %v999 = vpop.permute.xlu0 %998
      %1000 = vrot.lane.b32.xlu0 %v997, 127
      %v1001 = vpop.permute.xlu0 %1000
      %v1005 = vsel %vm477, %v986, 0
      %v1008 = vsel %vm477, %v987, 0
      %1010 = vmatpush.bf16.msra.mxu0 0
      %1011 = vmatpush.bf16.msra.mxu0 0
      %1012 = vmatpush.bf16.msra.mxu0 0
      %1013 = vmatpush.bf16.msra.mxu0 0
      %1014 = vmatpush.bf16.msra.mxu0 0
      %1015 = vmatpush.bf16.msra.mxu0 0
      %1016 = vmatpush.bf16.msra.mxu0 %v1001
      %1017 = vmatpush.bf16.msra.mxu0 %v999
      %1018 = vmatmul.bf16.gmra.mxu0 %v1005
      %v1019 = vpop.f32.mrf.mxu0
      %v1020 = vadd.f32 0.0, %v1019
      %v1021 = vpop.f32.mrf.mxu0
      %v1022 = vadd.f32 0.0, %v1021
      %1023 = vmatmul.bf16.gmra.mxu0 %v1008
      %v1024 = vpop.f32.mrf.mxu0
      %v1025 = vadd.f32 0.0, %v1024
      %v1026 = vpop.f32.mrf.mxu0
      %v1027 = vadd.f32 0.0, %v1026
      %1028 = vdwg.mxu0
      %v1033 = vunpack.c.l.b16 %v965
      %v1034 = vunpack.c.l.b16 %v966
      %v1035 = vunpack.c.l.b16 %v967
      %v1036 = vunpack.c.l.b16 %v968
      %v1037 = vpack.c.b16 %v1034, %v1033
      %v1038 = vpack.c.b16 %v1036, %v1035
      %v1042 = vsel %vm477, %v1037, 0
      %v1045 = vsel %vm477, %v1038, 0
      %1047 = vmatpush.bf16.msra.mxu0 0
      %1048 = vmatpush.bf16.msra.mxu0 0
      %1049 = vmatpush.bf16.msra.mxu0 0
      %1050 = vmatpush.bf16.msra.mxu0 0
      %1051 = vmatpush.bf16.msra.mxu0 0
      %1052 = vmatpush.bf16.msra.mxu0 0
      %1053 = vmatpush.bf16.msra.mxu0 %v997
      %1054 = vmatpush.bf16.msra.mxu0 %v996
      %1055 = vmatmul.bf16.gmra.mxu0 %v1042
      %v1056 = vpop.f32.mrf.mxu0
      %v1057 = vadd.f32 %v1020, %v1056
      %v1058 = vpop.f32.mrf.mxu0
      %v1059 = vadd.f32 %v1022, %v1058
      %1060 = vmatmul.bf16.gmra.mxu0 %v1045
      %v1061 = vpop.f32.mrf.mxu0
      %v1062 = vadd.f32 %v1025, %v1061
      %v1063 = vpop.f32.mrf.mxu0
      %v1064 = vadd.f32 %v1027, %v1063
      %1065 = vdwg.mxu0
      %s1066 = scalar_lea.vmem %s387, 32
      %v1067 = vld [vmem:[%s1066] sm:$0xf]
      %v1068 = vld [vmem:[%s1066 + $0x4] sm:$0xf]
      %v1069 = vld [vmem:[%s1066 + $0x8] sm:$0xf]
      %v1070 = vld [vmem:[%s1066 + $0xc] sm:$0xf]
      %v1075 = vunpack.c.l.b16 %v1067
      %v1076 = vunpack.c.l.b16 %v1068
      %v1077 = vunpack.c.l.b16 %v1069
      %v1078 = vunpack.c.l.b16 %v1070
      %v1079 = vpack.c.b16 %v1076, %v1075
      %v1080 = vpack.c.b16 %v1078, %v1077
      %1081 = vrot.lane.b32.xlu0 %v996, 126
      %v1082 = vpop.permute.xlu0 %1081
      %1083 = vrot.lane.b32.xlu0 %v997, 126
      %v1084 = vpop.permute.xlu0 %1083
      %v1088 = vsel %vm477, %v1079, 0
      %v1091 = vsel %vm477, %v1080, 0
      %1093 = vmatpush.bf16.msra.mxu0 0
      %1094 = vmatpush.bf16.msra.mxu0 0
      %1095 = vmatpush.bf16.msra.mxu0 0
      %1096 = vmatpush.bf16.msra.mxu0 0
      %1097 = vmatpush.bf16.msra.mxu0 0
      %1098 = vmatpush.bf16.msra.mxu0 0
      %1099 = vmatpush.bf16.msra.mxu0 %v1084
      %1100 = vmatpush.bf16.msra.mxu0 %v1082
      %1101 = vmatmul.bf16.gmra.mxu0 %v1088
      %v1102 = vpop.f32.mrf.mxu0
      %v1103 = vadd.f32 0.0, %v1102
      %v1104 = vpop.f32.mrf.mxu0
      %v1105 = vadd.f32 0.0, %v1104
      %1106 = vmatmul.bf16.gmra.mxu0 %v1091
      %v1107 = vpop.f32.mrf.mxu0
      %v1108 = vadd.f32 0.0, %v1107
      %v1109 = vpop.f32.mrf.mxu0
      %v1110 = vadd.f32 0.0, %v1109
      %1111 = vdwg.mxu0
      %v1112 = vadd.f32 %v1057, %v1103
      %v1113 = vadd.f32 %v1059, %v1105
      %v1114 = vadd.f32 %v1062, %v1108
      %v1115 = vadd.f32 %v1064, %v1110
      %s1116 = scalar_lea.vmem %s387, 48
      %v1117 = vld [vmem:[%s1116] sm:$0xf]
      %v1118 = vld [vmem:[%s1116 + $0x4] sm:$0xf]
      %v1119 = vld [vmem:[%s1116 + $0x8] sm:$0xf]
      %v1120 = vld [vmem:[%s1116 + $0xc] sm:$0xf]
      %v1125 = vunpack.c.l.b16 %v1117
      %v1126 = vunpack.c.l.b16 %v1118
      %v1127 = vunpack.c.l.b16 %v1119
      %v1128 = vunpack.c.l.b16 %v1120
      %v1129 = vpack.c.b16 %v1126, %v1125
      %v1130 = vpack.c.b16 %v1128, %v1127
      %1131 = vrot.lane.b32.xlu0 %v996, 122
      %v1132 = vpop.permute.xlu0 %1131
      %1133 = vrot.lane.b32.xlu0 %v997, 122
      %v1134 = vpop.permute.xlu0 %1133
      %v1138 = vsel %vm477, %v1129, 0
      %v1141 = vsel %vm477, %v1130, 0
      %1143 = vmatpush.bf16.msra.mxu0 0
      %1144 = vmatpush.bf16.msra.mxu0 0
      %1145 = vmatpush.bf16.msra.mxu0 0
      %1146 = vmatpush.bf16.msra.mxu0 0
      %1147 = vmatpush.bf16.msra.mxu0 0
      %1148 = vmatpush.bf16.msra.mxu0 0
      %1149 = vmatpush.bf16.msra.mxu0 %v1134
      %1150 = vmatpush.bf16.msra.mxu0 %v1132
      %1151 = vmatmul.bf16.gmra.mxu0 %v1138
      %v1152 = vpop.f32.mrf.mxu0
      %v1153 = vadd.f32 0.0, %v1152
      %v1154 = vpop.f32.mrf.mxu0
      %v1155 = vadd.f32 0.0, %v1154
      %1156 = vmatmul.bf16.gmra.mxu0 %v1141
      %v1157 = vpop.f32.mrf.mxu0
      %v1158 = vadd.f32 0.0, %v1157
      %v1159 = vpop.f32.mrf.mxu0
      %v1160 = vadd.f32 0.0, %v1159
      %1161 = vdwg.mxu0
      %v1162 = vadd.f32 %v1112, %v1153
      %v1163 = vadd.f32 %v1113, %v1155
      %v1164 = vadd.f32 %v1114, %v1158
      %v1165 = vadd.f32 %v1115, %v1160
      %s1166 = scalar_lea.vmem %s387, 64
      %v1167 = vld [vmem:[%s1166] sm:$0xf]
      %v1168 = vld [vmem:[%s1166 + $0x4] sm:$0xf]
      %v1169 = vld [vmem:[%s1166 + $0x8] sm:$0xf]
      %v1170 = vld [vmem:[%s1166 + $0xc] sm:$0xf]
      %v1175 = vunpack.c.l.b16 %v1167
      %v1176 = vunpack.c.l.b16 %v1168
      %v1177 = vunpack.c.l.b16 %v1169
      %v1178 = vunpack.c.l.b16 %v1170
      %v1179 = vpack.c.b16 %v1176, %v1175
      %v1180 = vpack.c.b16 %v1178, %v1177
      %1181 = vrot.lane.b32.xlu0 %v996, 121
      %v1182 = vpop.permute.xlu0 %1181
      %1183 = vrot.lane.b32.xlu0 %v997, 121
      %v1184 = vpop.permute.xlu0 %1183
      %v1188 = vsel %vm477, %v1179, 0
      %v1191 = vsel %vm477, %v1180, 0
      %1193 = vmatpush.bf16.msra.mxu0 0
      %1194 = vmatpush.bf16.msra.mxu0 0
      %1195 = vmatpush.bf16.msra.mxu0 0
      %1196 = vmatpush.bf16.msra.mxu0 0
      %1197 = vmatpush.bf16.msra.mxu0 0
      %1198 = vmatpush.bf16.msra.mxu0 0
      %1199 = vmatpush.bf16.msra.mxu0 %v1184
      %1200 = vmatpush.bf16.msra.mxu0 %v1182
      %1201 = vmatmul.bf16.gmra.mxu0 %v1188
      %v1202 = vpop.f32.mrf.mxu0
      %v1203 = vadd.f32 0.0, %v1202
      %v1204 = vpop.f32.mrf.mxu0
      %v1205 = vadd.f32 0.0, %v1204
      %1206 = vmatmul.bf16.gmra.mxu0 %v1191
      %v1207 = vpop.f32.mrf.mxu0
      %v1208 = vadd.f32 0.0, %v1207
      %v1209 = vpop.f32.mrf.mxu0
      %v1210 = vadd.f32 0.0, %v1209
      %1211 = vdwg.mxu0
      %v1212 = vadd.f32 %v1162, %v1203
      %v1213 = vadd.f32 %v1163, %v1205
      %v1214 = vadd.f32 %v1164, %v1208
      %v1215 = vadd.f32 %v1165, %v1210
      %s1216 = scalar_lea.vmem %s387, 80
      %v1217 = vld [vmem:[%s1216] sm:$0xf]
      %v1218 = vld [vmem:[%s1216 + $0x4] sm:$0xf]
      %v1219 = vld [vmem:[%s1216 + $0x8] sm:$0xf]
      %v1220 = vld [vmem:[%s1216 + $0xc] sm:$0xf]
      %v1225 = vunpack.c.l.b16 %v1217
      %v1226 = vunpack.c.l.b16 %v1218
      %v1227 = vunpack.c.l.b16 %v1219
      %v1228 = vunpack.c.l.b16 %v1220
      %v1229 = vpack.c.b16 %v1226, %v1225
      %v1230 = vpack.c.b16 %v1228, %v1227
      %1231 = vrot.lane.b32.xlu0 %v996, 120
      %v1232 = vpop.permute.xlu0 %1231
      %1233 = vrot.lane.b32.xlu0 %v997, 120
      %v1234 = vpop.permute.xlu0 %1233
      %v1238 = vsel %vm477, %v1229, 0
      %v1241 = vsel %vm477, %v1230, 0
      %1243 = vmatpush.bf16.msra.mxu0 0
      %1244 = vmatpush.bf16.msra.mxu0 0
      %1245 = vmatpush.bf16.msra.mxu0 0
      %1246 = vmatpush.bf16.msra.mxu0 0
      %1247 = vmatpush.bf16.msra.mxu0 0
      %1248 = vmatpush.bf16.msra.mxu0 0
      %1249 = vmatpush.bf16.msra.mxu0 %v1234
      %1250 = vmatpush.bf16.msra.mxu0 %v1232
      %1251 = vmatmul.bf16.gmra.mxu0 %v1238
      %v1252 = vpop.f32.mrf.mxu0
      %v1253 = vadd.f32 0.0, %v1252
      %v1254 = vpop.f32.mrf.mxu0
      %v1255 = vadd.f32 0.0, %v1254
      %1256 = vmatmul.bf16.gmra.mxu0 %v1241
      %v1257 = vpop.f32.mrf.mxu0
      %v1258 = vadd.f32 0.0, %v1257
      %v1259 = vpop.f32.mrf.mxu0
      %v1260 = vadd.f32 0.0, %v1259
      %1261 = vdwg.mxu0
      %v1262 = vadd.f32 %v1212, %v1253
      %v1263 = vadd.f32 %v1213, %v1255
      %v1264 = vadd.f32 %v1214, %v1258
      %v1265 = vadd.f32 %v1215, %v1260
      %s1266 = scalar_lea.vmem %s387, 96
      %v1267 = vld [vmem:[%s1266] sm:$0xf]
      %v1268 = vld [vmem:[%s1266 + $0x4] sm:$0xf]
      %v1269 = vld [vmem:[%s1266 + $0x8] sm:$0xf]
      %v1270 = vld [vmem:[%s1266 + $0xc] sm:$0xf]
      %v1275 = vunpack.c.l.b16 %v1267
      %v1276 = vunpack.c.l.b16 %v1268
      %v1277 = vunpack.c.l.b16 %v1269
      %v1278 = vunpack.c.l.b16 %v1270
      %v1279 = vpack.c.b16 %v1276, %v1275
      %v1280 = vpack.c.b16 %v1278, %v1277
      %1281 = vrot.lane.b32.xlu0 %v996, 116
      %v1282 = vpop.permute.xlu0 %1281
      %1283 = vrot.lane.b32.xlu0 %v997, 116
      %v1284 = vpop.permute.xlu0 %1283
      %v1288 = vsel %vm477, %v1279, 0
      %v1291 = vsel %vm477, %v1280, 0
      %1293 = vmatpush.bf16.msra.mxu0 0
      %1294 = vmatpush.bf16.msra.mxu0 0
      %1295 = vmatpush.bf16.msra.mxu0 0
      %1296 = vmatpush.bf16.msra.mxu0 0
      %1297 = vmatpush.bf16.msra.mxu0 0
      %1298 = vmatpush.bf16.msra.mxu0 0
      %1299 = vmatpush.bf16.msra.mxu0 %v1284
      %1300 = vmatpush.bf16.msra.mxu0 %v1282
      %1301 = vmatmul.bf16.gmra.mxu0 %v1288
      %v1302 = vpop.f32.mrf.mxu0
      %v1303 = vadd.f32 0.0, %v1302
      %v1304 = vpop.f32.mrf.mxu0
      %v1305 = vadd.f32 0.0, %v1304
      %1306 = vmatmul.bf16.gmra.mxu0 %v1291
      %v1307 = vpop.f32.mrf.mxu0
      %v1308 = vadd.f32 0.0, %v1307
      %v1309 = vpop.f32.mrf.mxu0
      %v1310 = vadd.f32 0.0, %v1309
      %1311 = vdwg.mxu0
      %v1312 = vadd.f32 %v1262, %v1303
      %v1313 = vadd.f32 %v1263, %v1305
      %v1314 = vadd.f32 %v1264, %v1308
      %v1315 = vadd.f32 %v1265, %v1310
      %s1316 = scalar_lea.vmem %s387, 112
      %v1317 = vld [vmem:[%s1316] sm:$0xf]
      %v1318 = vld [vmem:[%s1316 + $0x4] sm:$0xf]
      %v1319 = vld [vmem:[%s1316 + $0x8] sm:$0xf]
      %v1320 = vld [vmem:[%s1316 + $0xc] sm:$0xf]
      %v1325 = vunpack.c.l.b16 %v1317
      %v1326 = vunpack.c.l.b16 %v1318
      %v1327 = vunpack.c.l.b16 %v1319
      %v1328 = vunpack.c.l.b16 %v1320
      %v1329 = vpack.c.b16 %v1326, %v1325
      %v1330 = vpack.c.b16 %v1328, %v1327
      %1331 = vrot.lane.b32.xlu0 %v996, 115
      %v1332 = vpop.permute.xlu0 %1331
      %1333 = vrot.lane.b32.xlu0 %v997, 115
      %v1334 = vpop.permute.xlu0 %1333
      %v1338 = vsel %vm477, %v1329, 0
      %v1341 = vsel %vm477, %v1330, 0
      %1343 = vmatpush.bf16.msra.mxu0 0
      %1344 = vmatpush.bf16.msra.mxu0 0
      %1345 = vmatpush.bf16.msra.mxu0 0
      %1346 = vmatpush.bf16.msra.mxu0 0
      %1347 = vmatpush.bf16.msra.mxu0 0
      %1348 = vmatpush.bf16.msra.mxu0 0
      %1349 = vmatpush.bf16.msra.mxu0 %v1334
      %1350 = vmatpush.bf16.msra.mxu0 %v1332
      %1351 = vmatmul.bf16.gmra.mxu0 %v1338
      %v1352 = vpop.f32.mrf.mxu0
      %v1353 = vadd.f32 0.0, %v1352
      %v1354 = vpop.f32.mrf.mxu0
      %v1355 = vadd.f32 0.0, %v1354
      %1356 = vmatmul.bf16.gmra.mxu0 %v1341
      %v1357 = vpop.f32.mrf.mxu0
      %v1358 = vadd.f32 0.0, %v1357
      %v1359 = vpop.f32.mrf.mxu0
      %v1360 = vadd.f32 0.0, %v1359
      %1361 = vdwg.mxu0
      %v1362 = vadd.f32 %v1312, %v1353
      %v1363 = vadd.f32 %v1313, %v1355
      %v1364 = vadd.f32 %v1314, %v1358
      %v1365 = vadd.f32 %v1315, %v1360
      %s1366 = scalar_lea.vmem %s387, 128
      %v1367 = vld [vmem:[%s1366] sm:$0xf]
      %v1368 = vld [vmem:[%s1366 + $0x4] sm:$0xf]
      %v1369 = vld [vmem:[%s1366 + $0x8] sm:$0xf]
      %v1370 = vld [vmem:[%s1366 + $0xc] sm:$0xf]
      %v1375 = vunpack.c.l.b16 %v1367
      %v1376 = vunpack.c.l.b16 %v1368
      %v1377 = vunpack.c.l.b16 %v1369
      %v1378 = vunpack.c.l.b16 %v1370
      %v1379 = vpack.c.b16 %v1376, %v1375
      %v1380 = vpack.c.b16 %v1378, %v1377
      %1381 = vrot.lane.b32.xlu0 %v996, 114
      %v1382 = vpop.permute.xlu0 %1381
      %1383 = vrot.lane.b32.xlu0 %v997, 114
      %v1384 = vpop.permute.xlu0 %1383
      %v1388 = vsel %vm477, %v1379, 0
      %v1391 = vsel %vm477, %v1380, 0
      %1393 = vmatpush.bf16.msra.mxu0 0
      %1394 = vmatpush.bf16.msra.mxu0 0
      %1395 = vmatpush.bf16.msra.mxu0 0
      %1396 = vmatpush.bf16.msra.mxu0 0
      %1397 = vmatpush.bf16.msra.mxu0 0
      %1398 = vmatpush.bf16.msra.mxu0 0
      %1399 = vmatpush.bf16.msra.mxu0 %v1384
      %1400 = vmatpush.bf16.msra.mxu0 %v1382
      %1401 = vmatmul.bf16.gmra.mxu0 %v1388
      %v1402 = vpop.f32.mrf.mxu0
      %v1403 = vadd.f32 0.0, %v1402
      %v1404 = vpop.f32.mrf.mxu0
      %v1405 = vadd.f32 0.0, %v1404
      %1406 = vmatmul.bf16.gmra.mxu0 %v1391
      %v1407 = vpop.f32.mrf.mxu0
      %v1408 = vadd.f32 0.0, %v1407
      %v1409 = vpop.f32.mrf.mxu0
      %v1410 = vadd.f32 0.0, %v1409
      %1411 = vdwg.mxu0
      %v1412 = vadd.f32 %v1362, %v1403
      %v1413 = vadd.f32 %v1363, %v1405
      %v1414 = vadd.f32 %v1364, %v1408
      %v1415 = vadd.f32 %v1365, %v1410
      %v1416 = vld [vmem:[%s4] sm:$0xff]
      %v1417 = vld [vmem:[%s4 + $0x8] sm:$0xff]
      %v1418 = vld [vmem:[%s4 + $0x10] sm:$0xff]
      %v1419 = vld [vmem:[%s4 + $0x18] sm:$0xff]
      %1421 = vset.pattern.permute.xlu0 0
      %1422 = vperm.xlu0 %1421, %v1416
      %v1423 = vpop.permute.xlu0 %1422
      %1426 = vset.pattern.permute.xlu0 0
      %1427 = vperm.xlu0 %1426, %v1417
      %v1428 = vpop.permute.xlu0 %1427
      %1431 = vset.pattern.permute.xlu0 0
      %1432 = vperm.xlu0 %1431, %v1418
      %v1433 = vpop.permute.xlu0 %1432
      %1436 = vset.pattern.permute.xlu0 0
      %1437 = vperm.xlu0 %1436, %v1419
      %v1438 = vpop.permute.xlu0 %1437
      %v1440 = vadd.f32 %v1412, %v1423
      %v1441 = vadd.f32 %v1413, %v1428
      %v1442 = vadd.f32 %v1414, %v1433
      %v1443 = vadd.f32 %v1415, %v1438
      %v1444 = vmul.f32 %v1440, 0.2
      %v1445 = vmul.f32 %v1441, 0.2
      %v1446 = vmul.f32 %v1442, 0.2
      %v1447 = vmul.f32 %v1443, 0.2
      %v1448 = vmax.f32 %v1440, %v1444
      %v1449 = vmax.f32 %v1441, %v1445
      %v1450 = vmax.f32 %v1442, %v1446
      %v1451 = vmax.f32 %v1443, %v1447
      %v1452 = vmul.f32 %v1448, %v927
      %v1453 = vmul.f32 %v1449, %v927
      %v1454 = vmul.f32 %v1450, %v927
      %v1455 = vmul.f32 %v1451, %v927
      %v1456 = vpack.c.bf16 %v1452, %v1452
      %v1457 = vpack.c.bf16 %v1453, %v1453
      %v1458 = vpack.c.bf16 %v1454, %v1454
      %v1459 = vpack.c.bf16 %v1455, %v1455
      %vm1460 = vcmask 191488
      %1461 = vst.msk [vmem:[%s396] sm:$0xf] %vm1460, %v1456
      %1462 = vst.msk [vmem:[%s396 + $0x4] sm:$0xf] %vm1460, %v1457
      %1463 = vst.msk [vmem:[%s396 + $0x8] sm:$0xf] %vm1460, %v1458
      %1464 = vst.msk [vmem:[%s396 + $0xc] sm:$0xf] %vm1460, %v1459
      %v1465 = vld [vmem:[%s391] sm:$0x3]
      %v1466 = vld [vmem:[%s6] sm:$0xf]
      %1468 = vset.pattern.permute.xlu0 0
      %1469 = vperm.xlu0 %1468, %v1466
      %v1470 = vpop.permute.xlu0 %1469
      %v1476 = vunpack.c.l.b16 %v1456
      %v1477 = vunpack.c.l.b16 %v1457
      %v1478 = vunpack.c.l.b16 %v1458
      %v1479 = vunpack.c.l.b16 %v1459
      %v1480 = vpack.c.b16 %v1477, %v1476
      %v1481 = vpack.c.b16 %v1479, %v1478
      %v1485 = vsel %vm477, %v1465, 0
      %1487 = vmatpush.bf16.msra.mxu0 0
      %1488 = vmatpush.bf16.msra.mxu0 0
      %1489 = vmatpush.bf16.msra.mxu0 0
      %1490 = vmatpush.bf16.msra.mxu0 0
      %1491 = vmatpush.bf16.msra.mxu0 0
      %1492 = vmatpush.bf16.msra.mxu0 0
      %1493 = vmatpush.bf16.msra.mxu0 %v1481
      %1494 = vmatpush.bf16.msra.mxu0 %v1480
      %1495 = vmatmul.bf16.gmra.mxu0 %v1485
      %v1496 = vpop.f32.mrf.mxu0
      %v1497 = vadd.f32 %v1470, %v1496
      %v1498 = vpop.f32.mrf.mxu0
      %1499 = vdwg.mxu0
      %v1500 = vmul.f32 %v1497, %v927
      %vm1501 = vcmask 190464
      %1502 = vst.msk [vmem:[%s400] sm:$0x7] %vm1501, %v1500
      %v1503 = vxor.u32 %v1497, 2147483648
      %v1504 = vmul.f32 %v1503, 1.442695
      %v1505 = vpow.pop %v1504
      %v1506 = vadd.f32 %v1505, 1.0
      %v1507 = vrcp.pop %v1506
      %v1508 = vmul.f32 %v1506, %v1507
      %v1509 = vsub.f32 1.0, %v1508
      %v1510 = vmul.f32 %v1507, %v1509
      %v1511 = vadd.f32 %v1507, %v1510
      %vm1512 = vweird.f32 %v1506
      %vm1513 = vweird.f32 %v1507
      %vm1514 = vmor %vm1512, %vm1513
      %v1515 = vsel %vm1514, %v1507, %v1511
      %v1516 = vand.u32 2147483647, %v1506
      %vm1517 = vcmp.eq.f32.partialorder %v1516, 8.507059e+37
      %v1518 = vand.u32 %v1506, 2147483648
      %v1519 = vor.u32 1.1754944e-38, %v1518
      %v1520 = vsel %vm1517, %v1519, %v1515
      %v1521 = vmul.f32 1.0, %v1520
      %v1522 = vmul.f32 %v1521, %v927
      %vm1523 = vcmask 191491
      %1524 = vst.msk [vmem:[%s400] sm:$0x8] %vm1523, %v1522
      %p1525 = scmp.lt.s32.totalorder %s21, 1
      %s1526 = scalar_select %p1525, %s21, 1
      %s1527 = smul.addr %s1526, 4
      %s1528 = smul.addr %s1527, 4
      %s1529 = scalar_lea.vmem %s8, %s1528
      %p1530 = scmp.lt.s32.totalorder %s21, 1
      %s1531 = scalar_select %p1530, %s21, 1
      %s1532 = smul.addr %s1531, 4
      %s1533 = scalar_lea.vmem %s9, %s1532
      // Predicated region
      $region53: #{_lambda_.5} parent=51 // pred_check
        %p1534 = pneg %p227
      $region54: #{_lambda_.5} parent=51 // pred_check_branch
        %1536 = sbr.rel (%p1534) target = $region56
      $region55: #{_lambda_.5} parent=51 // pred_region
        _
      $region56: #{_lambda_.5} parent=51 // pred_fallthru
        _
      // Predicated region
      $region57: #{_lambda_.5} parent=51 // pred_check
        %p1537 = pneg %p253
      $region58: #{_lambda_.5} parent=51 // pred_check_branch
        %1539 = sbr.rel (%p1537) target = $region60
      $region59: #{_lambda_.5} parent=51 // pred_region
        _
      $region60: #{_lambda_.5} parent=51 // pred_fallthru
        _
    $region52: #{_lambda_.5} parent=5 // pred_fallthru
      _
    %p1540 = scmp.le.s32.totalorder 2, %s16
    // Predicated region
    $region61: #{_lambda_.5} parent=5 // pred_check
      %p1541 = pneg %p1540
    $region62: #{_lambda_.5} parent=5 // pred_check_branch
      %1543 = sbr.rel (%p1541) target = $region64
    $region63: #{_lambda_.5} parent=5 // pred_region
      %s1544 = ssub.s32 %s16, 2
      // Predicated region
      $region65: #{_lambda_.5} parent=63 // pred_check
        %p1545 = pneg %p233
      $region66: #{_lambda_.5} parent=63 // pred_check_branch
        %1547 = sbr.rel (%p1545) target = $region68
      $region67: #{_lambda_.5} parent=63 // pred_region
        %p1548 = scmp.lt.s32.totalorder %s22, 1
        %s1549 = scalar_select %p1548, %s22, 1
        %s1550 = smul.addr %s1549, 4
        %s1551 = smul.addr %s1550, 4
        %s1552 = scalar_lea.vmem %s8, %s1551
      $region68: #{_lambda_.5} parent=63 // pred_fallthru
        _
      // Predicated region
      $region69: #{_lambda_.5} parent=63 // pred_check
        %p1553 = pneg %p259
      $region70: #{_lambda_.5} parent=63 // pred_check_branch
        %1555 = sbr.rel (%p1553) target = $region72
      $region71: #{_lambda_.5} parent=63 // pred_region
        %p1556 = scmp.lt.s32.totalorder %s22, 1
        %s1557 = scalar_select %p1556, %s22, 1
        %s1558 = smul.addr %s1557, 4
        %s1559 = scalar_lea.vmem %s9, %s1558
      $region72: #{_lambda_.5} parent=63 // pred_fallthru
        _
    $region64: #{_lambda_.5} parent=5 // pred_fallthru
      _
  $region6: #{_lambda_.5} parent=0 // loop_footer
    %s20 = sadd.s32 1, %s16
  $region7: #{_lambda_.5} parent=0 // loop_footer_branch
    %15 = sbr.rel target = $region3
  $region8: #{_lambda_.5} parent=0 // loop_exit
    _

// kernel: _lambda_.6
$region0: #{_lambda_.6}
  #allocation0 [shape = 'u32[]', space=smem, size = 0x4, offset = 0x4, fixed_abs, tag = 'smem constant byte address 0x4 - core index']
  #allocation1 [shape = 'u32[72,128]{1,0:T(1,128)}', space=vmem, size = 0x9000, scoped, tag = 'internal scratch']
  #allocation2 [shape = 'bf16[32,102]{1,0:T(8,128)(2,1)}', space=vmem, size = 0x2000, scoped, tag = 'scratch operand']
  #allocation3 [shape = 'bf16[16,102]{1,0:T(8,128)(2,1)}', space=vmem, size = 0x1000, scoped, tag = 'scratch operand']
  #allocation4 [shape = 'f32[4,80]{1,0:T(4,128)}', space=vmem, size = 0x800, scoped, tag = 'scratch operand']
  %s0 = inlined_call_operand.vmem [shape: bf16[2,32,24], index: 0, kind: input, shape index: {}]
  %s1 = inlined_call_operand.vmem [shape: bf16[2,9,16,32], index: 1, kind: input, shape index: {}]
  %s2 = inlined_call_operand.vmem [shape: f32[16,1], index: 2, kind: input, shape index: {}, may-alias: {2,4}]
  %s3 = inlined_call_operand.vmem [shape: bf16[2,9,16,16], index: 3, kind: input, shape index: {}]
  %s4 = inlined_call_operand.vmem [shape: f32[16,1], index: 4, kind: input, shape index: {}, may-alias: {2,4}]
  %s5 = inlined_call_operand.vmem [shape: bf16[2,4,16], index: 5, kind: input, shape index: {}]
  %s6 = inlined_call_operand.vmem [shape: f32[4,1], index: 6, kind: input, shape index: {}]
  %s7 = inlined_call_operand.vmem [shape: f32[1,80], index: 7, kind: input, shape index: {}]
  %s8 = inlined_call_operand.vmem [shape: f32[6,10], index: 8, kind: input, shape index: {}]
  %s9 = inlined_call_operand.vmem [shape: f32[2,4,24], index: 9, kind: input, shape index: {}]
  %s10 = inlined_call_operand.vmem [shape: bf16[2,16,80], index: 10, kind: output, shape index: {0}]
  %s11 = inlined_call_operand.vmem [shape: f32[2,4,80], index: 11, kind: output, shape index: {1}]
  %12 = xla_tuple %s10, %s11
  %s13 = sld [smem:[#allocation0]]
  $region81: #{_lambda_.6} parent=0
    _
  %s15 = ssub.s32 1, %s13
  %s16 = scalar_select 0, %s15, %s13
  loop: start=0, step=1, limit=4
  $region2: #{_lambda_.6} parent=0 // loop_pre_header
    _
  $region3: #{_lambda_.6} parent=0 // loop_header
    %s18 = sphi 0, %s22
    %p19 = scmp.ge.s32.totalorder %s18, 4
    %s28 = sphi 0, %s30
    %s31 = sphi 0, %s28
    %s32 = sphi 0, %s31
    %s48 = sphi 0, %s32
    %s54 = sphi 0, %s56
    %s57 = sphi 0, %s54
    %s58 = sphi 0, %s57
    %s74 = sphi 0, %s58
    %s78 = sphi 0, %s78
    %s80 = sphi 0, %s78
    %s81 = sphi 0, %s80
    %s95 = sphi 0, %s81
    %s101 = sphi 0, %s103
    %s104 = sphi 0, %s101
    %s105 = sphi 0, %s104
    %s121 = sphi 0, %s105
    %s125 = sphi 0, %s125
    %s127 = sphi 0, %s125
    %s128 = sphi 0, %s127
    %s142 = sphi 0, %s128
    %s148 = sphi 0, %s150
    %s151 = sphi 0, %s148
    %s152 = sphi 0, %s151
    %s168 = sphi 0, %s152
    %s172 = sphi 0, %s172
    %s174 = sphi 0, %s172
    %s175 = sphi 0, %s174
    %s189 = sphi 0, %s175
    %s193 = sphi 0, %s193
    %s195 = sphi 0, %s193
    %s196 = sphi 0, %s195
    %s210 = sphi 0, %s196
    %s214 = sphi 0, %s214
    %s216 = sphi 0, %s214
    %s217 = sphi 0, %s216
    %s231 = sphi 0, %s217
    %s237 = sphi 0, %s239
    %s240 = sphi 0, %s237
    %s241 = sphi 0, %s240
    %s257 = sphi 0, %s241
    %s263 = sphi 0, %s265
    %s266 = sphi 0, %s263
    %s267 = sphi 0, %s266
    %s283 = sphi 0, %s267
    %s289 = sphi 0, %s291
    %s292 = sphi 0, %s289
    %s293 = sphi 0, %s292
    %s309 = sphi 0, %s293
  $region4: #{_lambda_.6} parent=0 // loop_header_branch
    %21 = sbr.rel (%p19) target = $region8
  $region5: #{_lambda_.6} parent=0 // loop_body
    %s23 = ssub.s32 %s18, 1
    %s24 = ssub.s32 %s18, 2
    %s25 = sadd.s32 %s18, 1
    %s26 = ssub.s32 %s18, %s25
    %p27 = scmp.eq.s32.totalorder %s26, 0
    %s29 = sadd.s32 %s28, 1
    %s30 = scalar_select %p27, %s28, %s29
    %p33 = pneg %p27
    %p34 = scmp.eq.s32.totalorder %s18, 1
    %p35 = por %p33, %p34
    %p36 = scmp.ne.s32.totalorder %s28, %s31
    %p37 = scmp.eq.s32.totalorder %s18, 0
    %p38 = por %p36, %p37
    %p39 = scmp.ne.s32.totalorder %s28, %s31
    %p40 = scmp.eq.s32.totalorder %s23, 1
    %p41 = por %p39, %p40
    %p42 = scmp.ne.s32.totalorder %s31, %s32
    %p43 = scmp.eq.s32.totalorder %s23, 0
    %p44 = por %p42, %p43
    %p45 = scmp.ne.s32.totalorder %s31, %s32
    %p46 = scmp.eq.s32.totalorder %s24, 1
    %p47 = por %p45, %p46
    %p49 = scmp.ne.s32.totalorder %s32, %s48
    %p50 = scmp.eq.s32.totalorder %s24, 0
    %p51 = por %p49, %p50
    %s52 = ssub.s32 %s18, %s25
    %p53 = scmp.eq.s32.totalorder %s52, 0
    %s55 = sadd.s32 %s54, 1
    %s56 = scalar_select %p53, %s54, %s55
    %p59 = pneg %p53
    %p60 = scmp.eq.s32.totalorder %s18, 1
    %p61 = por %p59, %p60
    %p62 = scmp.ne.s32.totalorder %s54, %s57
    %p63 = scmp.eq.s32.totalorder %s18, 0
    %p64 = por %p62, %p63
    %p65 = scmp.ne.s32.totalorder %s54, %s57
    %p66 = scmp.eq.s32.totalorder %s23, 1
    %p67 = por %p65, %p66
    %p68 = scmp.ne.s32.totalorder %s57, %s58
    %p69 = scmp.eq.s32.totalorder %s23, 0
    %p70 = por %p68, %p69
    %p71 = scmp.ne.s32.totalorder %s57, %s58
    %p72 = scmp.eq.s32.totalorder %s24, 1
    %p73 = por %p71, %p72
    %p75 = scmp.ne.s32.totalorder %s58, %s74
    %p76 = scmp.eq.s32.totalorder %s24, 0
    %p77 = por %p75, %p76
    %s79 = sadd.s32 %s78, 1
    %p82 = scmp.eq.s32.totalorder %s18, 1
    %p83 = scmp.ne.s32.totalorder %s78, %s80
    %p84 = scmp.eq.s32.totalorder %s18, 0
    %p85 = por %p83, %p84
    %p86 = scmp.ne.s32.totalorder %s78, %s80
    %p87 = scmp.eq.s32.totalorder %s23, 1
    %p88 = por %p86, %p87
    %p89 = scmp.ne.s32.totalorder %s80, %s81
    %p90 = scmp.eq.s32.totalorder %s23, 0
    %p91 = por %p89, %p90
    %p92 = scmp.ne.s32.totalorder %s80, %s81
    %p93 = scmp.eq.s32.totalorder %s24, 1
    %p94 = por %p92, %p93
    %p96 = scmp.ne.s32.totalorder %s81, %s95
    %p97 = scmp.eq.s32.totalorder %s24, 0
    %p98 = por %p96, %p97
    %s99 = ssub.s32 %s18, %s25
    %p100 = scmp.eq.s32.totalorder %s99, 0
    %s102 = sadd.s32 %s101, 1
    %s103 = scalar_select %p100, %s101, %s102
    %p106 = pneg %p100
    %p107 = scmp.eq.s32.totalorder %s18, 1
    %p108 = por %p106, %p107
    %p109 = scmp.ne.s32.totalorder %s101, %s104
    %p110 = scmp.eq.s32.totalorder %s18, 0
    %p111 = por %p109, %p110
    %p112 = scmp.ne.s32.totalorder %s101, %s104
    %p113 = scmp.eq.s32.totalorder %s23, 1
    %p114 = por %p112, %p113
    %p115 = scmp.ne.s32.totalorder %s104, %s105
    %p116 = scmp.eq.s32.totalorder %s23, 0
    %p117 = por %p115, %p116
    %p118 = scmp.ne.s32.totalorder %s104, %s105
    %p119 = scmp.eq.s32.totalorder %s24, 1
    %p120 = por %p118, %p119
    %p122 = scmp.ne.s32.totalorder %s105, %s121
    %p123 = scmp.eq.s32.totalorder %s24, 0
    %p124 = por %p122, %p123
    %s126 = sadd.s32 %s125, 1
    %p129 = scmp.eq.s32.totalorder %s18, 1
    %p130 = scmp.ne.s32.totalorder %s125, %s127
    %p131 = scmp.eq.s32.totalorder %s18, 0
    %p132 = por %p130, %p131
    %p133 = scmp.ne.s32.totalorder %s125, %s127
    %p134 = scmp.eq.s32.totalorder %s23, 1
    %p135 = por %p133, %p134
    %p136 = scmp.ne.s32.totalorder %s127, %s128
    %p137 = scmp.eq.s32.totalorder %s23, 0
    %p138 = por %p136, %p137
    %p139 = scmp.ne.s32.totalorder %s127, %s128
    %p140 = scmp.eq.s32.totalorder %s24, 1
    %p141 = por %p139, %p140
    %p143 = scmp.ne.s32.totalorder %s128, %s142
    %p144 = scmp.eq.s32.totalorder %s24, 0
    %p145 = por %p143, %p144
    %s146 = ssub.s32 %s18, %s25
    %p147 = scmp.eq.s32.totalorder %s146, 0
    %s149 = sadd.s32 %s148, 1
    %s150 = scalar_select %p147, %s148, %s149
    %p153 = pneg %p147
    %p154 = scmp.eq.s32.totalorder %s18, 1
    %p155 = por %p153, %p154
    %p156 = scmp.ne.s32.totalorder %s148, %s151
    %p157 = scmp.eq.s32.totalorder %s18, 0
    %p158 = por %p156, %p157
    %p159 = scmp.ne.s32.totalorder %s148, %s151
    %p160 = scmp.eq.s32.totalorder %s23, 1
    %p161 = por %p159, %p160
    %p162 = scmp.ne.s32.totalorder %s151, %s152
    %p163 = scmp.eq.s32.totalorder %s23, 0
    %p164 = por %p162, %p163
    %p165 = scmp.ne.s32.totalorder %s151, %s152
    %p166 = scmp.eq.s32.totalorder %s24, 1
    %p167 = por %p165, %p166
    %p169 = scmp.ne.s32.totalorder %s152, %s168
    %p170 = scmp.eq.s32.totalorder %s24, 0
    %p171 = por %p169, %p170
    %s173 = sadd.s32 %s172, 1
    %p176 = scmp.eq.s32.totalorder %s18, 1
    %p177 = scmp.ne.s32.totalorder %s172, %s174
    %p178 = scmp.eq.s32.totalorder %s18, 0
    %p179 = por %p177, %p178
    %p180 = scmp.ne.s32.totalorder %s172, %s174
    %p181 = scmp.eq.s32.totalorder %s23, 1
    %p182 = por %p180, %p181
    %p183 = scmp.ne.s32.totalorder %s174, %s175
    %p184 = scmp.eq.s32.totalorder %s23, 0
    %p185 = por %p183, %p184
    %p186 = scmp.ne.s32.totalorder %s174, %s175
    %p187 = scmp.eq.s32.totalorder %s24, 1
    %p188 = por %p186, %p187
    %p190 = scmp.ne.s32.totalorder %s175, %s189
    %p191 = scmp.eq.s32.totalorder %s24, 0
    %p192 = por %p190, %p191
    %s194 = sadd.s32 %s193, 1
    %p197 = scmp.eq.s32.totalorder %s18, 1
    %p198 = scmp.ne.s32.totalorder %s193, %s195
    %p199 = scmp.eq.s32.totalorder %s18, 0
    %p200 = por %p198, %p199
    %p201 = scmp.ne.s32.totalorder %s193, %s195
    %p202 = scmp.eq.s32.totalorder %s23, 1
    %p203 = por %p201, %p202
    %p204 = scmp.ne.s32.totalorder %s195, %s196
    %p205 = scmp.eq.s32.totalorder %s23, 0
    %p206 = por %p204, %p205
    %p207 = scmp.ne.s32.totalorder %s195, %s196
    %p208 = scmp.eq.s32.totalorder %s24, 1
    %p209 = por %p207, %p208
    %p211 = scmp.ne.s32.totalorder %s196, %s210
    %p212 = scmp.eq.s32.totalorder %s24, 0
    %p213 = por %p211, %p212
    %s215 = sadd.s32 %s214, 1
    %p218 = scmp.eq.s32.totalorder %s18, 1
    %p219 = scmp.ne.s32.totalorder %s214, %s216
    %p220 = scmp.eq.s32.totalorder %s18, 0
    %p221 = por %p219, %p220
    %p222 = scmp.ne.s32.totalorder %s214, %s216
    %p223 = scmp.eq.s32.totalorder %s23, 1
    %p224 = por %p222, %p223
    %p225 = scmp.ne.s32.totalorder %s216, %s217
    %p226 = scmp.eq.s32.totalorder %s23, 0
    %p227 = por %p225, %p226
    %p228 = scmp.ne.s32.totalorder %s216, %s217
    %p229 = scmp.eq.s32.totalorder %s24, 1
    %p230 = por %p228, %p229
    %p232 = scmp.ne.s32.totalorder %s217, %s231
    %p233 = scmp.eq.s32.totalorder %s24, 0
    %p234 = por %p232, %p233
    %s235 = ssub.s32 %s18, %s25
    %p236 = scmp.eq.s32.totalorder %s235, 0
    %s238 = sadd.s32 %s237, 1
    %s239 = scalar_select %p236, %s237, %s238
    %p242 = pneg %p236
    %p243 = scmp.eq.s32.totalorder %s18, 1
    %p244 = por %p242, %p243
    %p245 = scmp.ne.s32.totalorder %s237, %s240
    %p246 = scmp.eq.s32.totalorder %s18, 0
    %p247 = por %p245, %p246
    %p248 = scmp.ne.s32.totalorder %s237, %s240
    %p249 = scmp.eq.s32.totalorder %s23, 1
    %p250 = por %p248, %p249
    %p251 = scmp.ne.s32.totalorder %s240, %s241
    %p252 = scmp.eq.s32.totalorder %s23, 0
    %p253 = por %p251, %p252
    %p254 = scmp.ne.s32.totalorder %s240, %s241
    %p255 = scmp.eq.s32.totalorder %s24, 1
    %p256 = por %p254, %p255
    %p258 = scmp.ne.s32.totalorder %s241, %s257
    %p259 = scmp.eq.s32.totalorder %s24, 0
    %p260 = por %p258, %p259
    %s261 = ssub.s32 %s18, %s25
    %p262 = scmp.eq.s32.totalorder %s261, 0
    %s264 = sadd.s32 %s263, 1
    %s265 = scalar_select %p262, %s263, %s264
    %p268 = pneg %p262
    %p269 = scmp.eq.s32.totalorder %s18, 1
    %p270 = por %p268, %p269
    %p271 = scmp.ne.s32.totalorder %s263, %s266
    %p272 = scmp.eq.s32.totalorder %s18, 0
    %p273 = por %p271, %p272
    %p274 = scmp.ne.s32.totalorder %s263, %s266
    %p275 = scmp.eq.s32.totalorder %s23, 1
    %p276 = por %p274, %p275
    %p277 = scmp.ne.s32.totalorder %s266, %s267
    %p278 = scmp.eq.s32.totalorder %s23, 0
    %p279 = por %p277, %p278
    %p280 = scmp.ne.s32.totalorder %s266, %s267
    %p281 = scmp.eq.s32.totalorder %s24, 1
    %p282 = por %p280, %p281
    %p284 = scmp.ne.s32.totalorder %s267, %s283
    %p285 = scmp.eq.s32.totalorder %s24, 0
    %p286 = por %p284, %p285
    %s287 = ssub.s32 %s18, %s25
    %p288 = scmp.eq.s32.totalorder %s287, 0
    %s290 = sadd.s32 %s289, 1
    %s291 = scalar_select %p288, %s289, %s290
    %p294 = pneg %p288
    %p295 = scmp.eq.s32.totalorder %s18, 1
    %p296 = por %p294, %p295
    %p297 = scmp.ne.s32.totalorder %s289, %s292
    %p298 = scmp.eq.s32.totalorder %s18, 0
    %p299 = por %p297, %p298
    %p300 = scmp.ne.s32.totalorder %s289, %s292
    %p301 = scmp.eq.s32.totalorder %s23, 1
    %p302 = por %p300, %p301
    %p303 = scmp.ne.s32.totalorder %s292, %s293
    %p304 = scmp.eq.s32.totalorder %s23, 0
    %p305 = por %p303, %p304
    %p306 = scmp.ne.s32.totalorder %s292, %s293
    %p307 = scmp.eq.s32.totalorder %s24, 1
    %p308 = por %p306, %p307
    %p310 = scmp.ne.s32.totalorder %s293, %s309
    %p311 = scmp.eq.s32.totalorder %s24, 0
    %p312 = por %p310, %p311
    %p313 = scmp.le.s32.totalorder 1, %s18
    %p314 = scmp.lt.s32.totalorder %s18, 3
    %p315 = pnand %p313, %p314
    %p316 = pneg %p315
    // Predicated region
    $region9: #{_lambda_.6} parent=5 // pred_check
      _
    $region10: #{_lambda_.6} parent=5 // pred_check_branch
      %318 = sbr.rel (%p315) target = $region12
    $region11: #{_lambda_.6} parent=5 // pred_region
      %s319 = ssub.s32 %s18, 1
      // Predicated region
      $region13: #{_lambda_.6} parent=11 // pred_check
        %p320 = pneg %p91
      $region14: #{_lambda_.6} parent=11 // pred_check_branch
        %322 = sbr.rel (%p320) target = $region16
      $region15: #{_lambda_.6} parent=11 // pred_region
        _
      $region16: #{_lambda_.6} parent=11 // pred_fallthru
        _
      // Predicated region
      $region17: #{_lambda_.6} parent=11 // pred_check
        %p323 = pneg %p138
      $region18: #{_lambda_.6} parent=11 // pred_check_branch
        %325 = sbr.rel (%p323) target = $region20
      $region19: #{_lambda_.6} parent=11 // pred_region
        _
      $region20: #{_lambda_.6} parent=11 // pred_fallthru
        _
      // Predicated region
      $region21: #{_lambda_.6} parent=11 // pred_check
        %p326 = pneg %p185
      $region22: #{_lambda_.6} parent=11 // pred_check_branch
        %328 = sbr.rel (%p326) target = $region24
      $region23: #{_lambda_.6} parent=11 // pred_region
        _
      $region24: #{_lambda_.6} parent=11 // pred_fallthru
        _
      // Predicated region
      $region25: #{_lambda_.6} parent=11 // pred_check
        %p329 = pneg %p206
      $region26: #{_lambda_.6} parent=11 // pred_check_branch
        %331 = sbr.rel (%p329) target = $region28
      $region27: #{_lambda_.6} parent=11 // pred_region
        _
      $region28: #{_lambda_.6} parent=11 // pred_fallthru
        _
      // Predicated region
      $region29: #{_lambda_.6} parent=11 // pred_check
        %p332 = pneg %p227
      $region30: #{_lambda_.6} parent=11 // pred_check_branch
        %334 = sbr.rel (%p332) target = $region32
      $region31: #{_lambda_.6} parent=11 // pred_region
        _
      $region32: #{_lambda_.6} parent=11 // pred_fallthru
        _
    $region12: #{_lambda_.6} parent=5 // pred_fallthru
      _
    %p335 = scmp.lt.s32.totalorder %s18, 2
    // Predicated region
    $region33: #{_lambda_.6} parent=5 // pred_check
      %p336 = pneg %p335
    $region34: #{_lambda_.6} parent=5 // pred_check_branch
      %338 = sbr.rel (%p336) target = $region36
    $region35: #{_lambda_.6} parent=5 // pred_region
      // Predicated region
      $region37: #{_lambda_.6} parent=35 // pred_check
        %p339 = pneg %p38
      $region38: #{_lambda_.6} parent=35 // pred_check_branch
        %341 = sbr.rel (%p339) target = $region40
      $region39: #{_lambda_.6} parent=35 // pred_region
        %p342 = scmp.lt.s32.totalorder %s18, 1
        %s343 = scalar_select %p342, %s18, 1
        %s344 = smul.addr %s343, 4
        %s345 = smul.addr %s344, 4
        %s346 = scalar_lea.vmem %s0, %s345
      $region40: #{_lambda_.6} parent=35 // pred_fallthru
        _
      // Predicated region
      $region41: #{_lambda_.6} parent=35 // pred_check
        %p347 = pneg %p64
      $region42: #{_lambda_.6} parent=35 // pred_check_branch
        %349 = sbr.rel (%p347) target = $region44
      $region43: #{_lambda_.6} parent=35 // pred_region
        %p350 = scmp.lt.s32.totalorder %s18, 1
        %s351 = scalar_select %p350, %s18, 1
        %s352 = smul.addr %s351, 18
        %s353 = smul.addr %s352, 4
        %s354 = scalar_lea.vmem %s1, %s353
      $region44: #{_lambda_.6} parent=35 // pred_fallthru
        _
      // Predicated region
      $region45: #{_lambda_.6} parent=35 // pred_check
        %p355 = pneg %p111
      $region46: #{_lambda_.6} parent=35 // pred_check_branch
        %357 = sbr.rel (%p355) target = $region48
      $region47: #{_lambda_.6} parent=35 // pred_region
        %p358 = scmp.lt.s32.totalorder %s18, 1
        %s359 = scalar_select %p358, %s18, 1
        %s360 = smul.addr %s359, 18
        %s361 = smul.addr %s360, 4
        %s362 = scalar_lea.vmem %s3, %s361
      $region48: #{_lambda_.6} parent=35 // pred_fallthru
        _
      // Predicated region
      $region49: #{_lambda_.6} parent=35 // pred_check
        %p363 = pneg %p158
      $region50: #{_lambda_.6} parent=35 // pred_check_branch
        %365 = sbr.rel (%p363) target = $region52
      $region51: #{_lambda_.6} parent=35 // pred_region
        %p366 = scmp.lt.s32.totalorder %s18, 1
        %s367 = scalar_select %p366, %s18, 1
        %s368 = smul.addr %s367, 2
        %s369 = scalar_lea.vmem %s5, %s368
      $region52: #{_lambda_.6} parent=35 // pred_fallthru
        _
      // Predicated region
      $region53: #{_lambda_.6} parent=35 // pred_check
        %p370 = pneg %p247
      $region54: #{_lambda_.6} parent=35 // pred_check_branch
        %372 = sbr.rel (%p370) target = $region56
      $region55: #{_lambda_.6} parent=35 // pred_region
        %p373 = scmp.lt.s32.totalorder %s18, 1
        %s374 = scalar_select %p373, %s18, 1
        %s375 = smul.addr %s374, 4
        %s376 = scalar_lea.vmem %s9, %s375
      $region56: #{_lambda_.6} parent=35 // pred_fallthru
        _
    $region36: #{_lambda_.6} parent=5 // pred_fallthru
      _
    %p377 = scmp.le.s32.totalorder 1, %s18
    %p378 = scmp.lt.s32.totalorder %s18, 3
    %p379 = pnand %p377, %p378
    %p380 = pneg %p379
    // Predicated region
    $region57: #{_lambda_.6} parent=5 // pred_check
      _
    $region58: #{_lambda_.6} parent=5 // pred_check_branch
      %382 = sbr.rel (%p379) target = $region60
    $region59: #{_lambda_.6} parent=5 // pred_region
      %s383 = ssub.s32 %s18, 1
      %p384 = scmp.lt.s32.totalorder %s23, 1
      %s385 = scalar_select %p384, %s23, 1
      %s386 = smul.addr %s385, 4
      %s387 = smul.addr %s386, 4
      %s388 = scalar_lea.vmem %s0, %s387
      %p389 = pneg %p44
      %p390 = pneg %p41
      %p391 = scmp.lt.s32.totalorder %s23, 1
      %s392 = scalar_select %p391, %s23, 1
      %s393 = smul.addr %s392, 18
      %s394 = smul.addr %s393, 4
      %s395 = scalar_lea.vmem %s1, %s394
      %p396 = pneg %p70
      %p397 = pneg %p67
      %p398 = pneg %p91
      %p399 = pneg %p88
      %p400 = scmp.lt.s32.totalorder %s23, 1
      %s401 = scalar_select %p400, %s23, 1
      %s402 = smul.addr %s401, 18
      %s403 = smul.addr %s402, 4
      %s404 = scalar_lea.vmem %s3, %s403
      %p405 = pneg %p117
      %p406 = pneg %p114
      %p407 = pneg %p138
      %p408 = pneg %p135
      %p409 = scmp.lt.s32.totalorder %s23, 1
      %s410 = scalar_select %p409, %s23, 1
      %s411 = smul.addr %s410, 2
      %s412 = scalar_lea.vmem %s5, %s411
      %p413 = pneg %p164
      %p414 = pneg %p161
      %p415 = pneg %p185
      %p416 = pneg %p182
      %p417 = pneg %p206
      %p418 = pneg %p203
      %p419 = pneg %p227
      %p420 = pneg %p224
      %p421 = scmp.lt.s32.totalorder %s23, 1
      %s422 = scalar_select %p421, %s23, 1
      %s423 = smul.addr %s422, 4
      %s424 = scalar_lea.vmem %s9, %s423
      %p425 = pneg %p253
      %p426 = pneg %p250
      %p427 = pneg %p279
      %p428 = pneg %p276
      %p429 = scmp.lt.s32.totalorder %s23, 1
      %s430 = scalar_select %p429, %s23, 1
      %s431 = smul.addr %s430, 2
      %s432 = smul.addr %s431, 4
      %s433 = scalar_lea.vmem %s10, %s432
      %p434 = pneg %p305
      %p435 = pneg %p302
      %p436 = scmp.lt.s32.totalorder %s23, 1
      %s437 = scalar_select %p436, %s23, 1
      %s438 = smul.addr %s437, 4
      %s439 = scalar_lea.vmem %s11, %s438
      %p440 = scmp.lt.s32.totalorder %s23, 1
      %s441 = scalar_select %p440, %s23, 1
      %s442 = smul.addr %s441, 4
      %s443 = smul.addr %s442, 4
      %s444 = scalar_lea.vmem %s0, %s443
      %p445 = scmp.lt.s32.totalorder %s23, 1
      %s446 = scalar_select %p445, %s23, 1
      %s447 = smul.addr %s446, 18
      %s448 = smul.addr %s447, 4
      %s449 = scalar_lea.vmem %s1, %s448
      %p450 = scmp.lt.s32.totalorder %s23, 1
      %s451 = scalar_select %p450, %s23, 1
      %s452 = smul.addr %s451, 18
      %s453 = smul.addr %s452, 4
      %s454 = scalar_lea.vmem %s3, %s453
      %p455 = scmp.lt.s32.totalorder %s23, 1
      %s456 = scalar_select %p455, %s23, 1
      %s457 = smul.addr %s456, 2
      %s458 = scalar_lea.vmem %s5, %s457
      %p459 = scmp.lt.s32.totalorder %s23, 1
      %s460 = scalar_select %p459, %s23, 1
      %s461 = smul.addr %s460, 4
      %s462 = scalar_lea.vmem %s9, %s461
      %p463 = scmp.lt.s32.totalorder %s23, 1
      %s464 = scalar_select %p463, %s23, 1
      %s465 = smul.addr %s464, 2
      %s466 = smul.addr %s465, 4
      %s467 = scalar_lea.vmem %s10, %s466
      %p468 = scmp.lt.s32.totalorder %s23, 1
      %s469 = scalar_select %p468, %s23, 1
      %s470 = smul.addr %s469, 4
      %s471 = scalar_lea.vmem %s11, %s470
      %v473 = vld [vmem:[%s7] sm:$0x1]
      %vm474 = vcmask 84992
      %475 = vst.msk [vmem:[#allocation2] sm:$0xf] %vm474, 0
      %476 = vst.msk [vmem:[#allocation2 + $0x4] sm:$0xf] %vm474, 0
      %477 = vst.msk [vmem:[#allocation2 + $0x8] sm:$0xf] %vm474, 0
      %478 = vst.msk [vmem:[#allocation2 + $0xc] sm:$0xf] %vm474, 0
      %vm479 = vcmask 831192
      %480 = vst.msk [vmem:[#allocation2] sm:$0xf] %vm479, 0
      %481 = vst.msk [vmem:[#allocation2 + $0x4] sm:$0xf] %vm479, 0
      %482 = vst.msk [vmem:[#allocation2 + $0x8] sm:$0xf] %vm479, 0
      %483 = vst.msk [vmem:[#allocation2 + $0xc] sm:$0xf] %vm479, 0
      %v484 = vld [vmem:[%s444] sm:$0xf]
      %v485 = vld [vmem:[%s444 + $0x4] sm:$0xf]
      %v486 = vld [vmem:[%s444 + $0x8] sm:$0xf]
      %v487 = vld [vmem:[%s444 + $0xc] sm:$0xf]
      %v488 = vld [vmem:[%s8] sm:$0x3f]
      %v489 = vpack.c.bf16 %v488, %v488
      %v490 = vunpack.c.l.bf16 %v484
      %v491 = vunpack.c.l.bf16 %v485
      %v492 = vunpack.c.l.bf16 %v486
      %v493 = vunpack.c.l.bf16 %v487
      %v494 = vmul.f32 %v490, 0.75
      %v495 = vmul.f32 %v491, 0.75
      %v496 = vmul.f32 %v492, 0.75
      %v497 = vmul.f32 %v493, 0.75
      %v498 = vmul.f32 %v490, 0.25
      %v499 = vmul.f32 %v491, 0.25
      %v500 = vmul.f32 %v492, 0.25
      %v501 = vmul.f32 %v493, 0.25
      %v502 = vadd.f32 %v494, %v498
      %v503 = vadd.f32 %v495, %v499
      %v504 = vadd.f32 %v496, %v500
      %v505 = vadd.f32 %v497, %v501
      %v506 = vpack.c.bf16 %v503, %v502
      %v507 = vpack.c.bf16 %v505, %v504
      %vm508 = vcmask 48128
      %v510 = vsel %vm508, %v506, 0
      %v513 = vsel %vm508, %v507, 0
      %vm515 = vcmask 1042432
      %v517 = vsel %vm515, %v489, 0
      %519 = vmatpush.bf16.msra.mxu0 0
      %520 = vmatpush.bf16.msra.mxu0 0
      %521 = vmatpush.bf16.msra.mxu0 0
      %522 = vmatpush.bf16.msra.mxu0 0
      %523 = vmatpush.bf16.msra.mxu0 0
      %524 = vmatpush.bf16.msra.mxu0 0
      %525 = vmatpush.bf16.msra.mxu0 0
      %526 = vmatpush.bf16.msra.mxu0 %v517
      %527 = vmatmul.bf16.gmra.mxu0 %v510
      %v528 = vpop.f32.mrf.mxu0
      %v529 = vadd.f32 0.0, %v528
      %v530 = vpop.f32.mrf.mxu0
      %v531 = vadd.f32 0.0, %v530
      %532 = vmatmul.bf16.gmra.mxu0 %v513
      %v533 = vpop.f32.mrf.mxu0
      %v534 = vadd.f32 0.0, %v533
      %v535 = vpop.f32.mrf.mxu0
      %v536 = vadd.f32 0.0, %v535
      %537 = vdwg.mxu0
      %v538 = vpack.c.bf16 %v529, %v529
      %v539 = vpack.c.bf16 %v531, %v531
      %v540 = vpack.c.bf16 %v534, %v534
      %v541 = vpack.c.bf16 %v536, %v536
      %546 = vrot.lane.b32.xlu0 %v538, 11
      %v547 = vpop.permute.xlu0 %546
      %548 = vrot.lane.b32.xlu0 %v539, 11
      %v549 = vpop.permute.xlu0 %548
      %550 = vrot.lane.b32.xlu0 %v540, 11
      %v551 = vpop.permute.xlu0 %550
      %552 = vrot.lane.b32.xlu0 %v541, 11
      %v553 = vpop.permute.xlu0 %552
      %vm558 = vcmask 167000
      %559 = vst.msk [vmem:[#allocation2] sm:$0xf] %vm558, %v547
      %560 = vst.msk [vmem:[#allocation2 + $0x4] sm:$0xf] %vm558, %v549
      %561 = vst.msk [vmem:[#allocation2 + $0x8] sm:$0xf] %vm558, %v551
      %562 = vst.msk [vmem:[#allocation2 + $0xc] sm:$0xf] %vm558, %v553
      %567 = vrot.lane.b32.xlu0 %v498, 122
      %v568 = vpop.permute.xlu0 %567
      %569 = vrot.lane.b32.xlu0 %v499, 122
      %v570 = vpop.permute.xlu0 %569
      %571 = vrot.lane.b32.xlu0 %v500, 122
      %v572 = vpop.permute.xlu0 %571
      %573 = vrot.lane.b32.xlu0 %v501, 122
      %v574 = vpop.permute.xlu0 %573
      %v579 = vadd.f32 %v494, %v568
      %v580 = vadd.f32 %v495, %v570
      %v581 = vadd.f32 %v496, %v572
      %v582 = vadd.f32 %v497, %v574
      %v583 = vpack.c.bf16 %v580, %v579
      %v584 = vpack.c.bf16 %v582, %v581
      %v586 = vsel %vm508, %v583, 0
      %v589 = vsel %vm508, %v584, 0
      %591 = vmatpush.bf16.msra.mxu0 0
      %592 = vmatpush.bf16.msra.mxu0 0
      %593 = vmatpush.bf16.msra.mxu0 0
      %594 = vmatpush.bf16.msra.mxu0 0
      %595 = vmatpush.bf16.msra.mxu0 0
      %596 = vmatpush.bf16.msra.mxu0 0
      %597 = vmatpush.bf16.msra.mxu0 0
      %598 = vmatpush.bf16.msra.mxu0 %v517
      %599 = vmatmul.bf16.gmra.mxu0 %v586
      %v600 = vpop.f32.mrf.mxu0
      %v601 = vadd.f32 0.0, %v600
      %v602 = vpop.f32.mrf.mxu0
      %v603 = vadd.f32 0.0, %v602
      %604 = vmatmul.bf16.gmra.mxu0 %v589
      %v605 = vpop.f32.mrf.mxu0
      %v606 = vadd.f32 0.0, %v605
      %v607 = vpop.f32.mrf.mxu0
      %v608 = vadd.f32 0.0, %v607
      %609 = vdwg.mxu0
      %v610 = vpack.c.bf16 %v601, %v601
      %v611 = vpack.c.bf16 %v603, %v603
      %v612 = vpack.c.bf16 %v606, %v606
      %v613 = vpack.c.bf16 %v608, %v608
      %618 = vrot.lane.b32.xlu0 %v610, 21
      %v619 = vpop.permute.xlu0 %618
      %620 = vrot.lane.b32.xlu0 %v611, 21
      %v621 = vpop.permute.xlu0 %620
      %622 = vrot.lane.b32.xlu0 %v612, 21
      %v623 = vpop.permute.xlu0 %622
      %624 = vrot.lane.b32.xlu0 %v613, 21
      %v625 = vpop.permute.xlu0 %624
      %vm630 = vcmask 249000
      %631 = vst.msk [vmem:[#allocation2] sm:$0xf] %vm630, %v619
      %632 = vst.msk [vmem:[#allocation2 + $0x4] sm:$0xf] %vm630, %v621
      %633 = vst.msk [vmem:[#allocation2 + $0x8] sm:$0xf] %vm630, %v623
      %634 = vst.msk [vmem:[#allocation2 + $0xc] sm:$0xf] %vm630, %v625
      %635 = vrot.lane.b32.xlu0 %v498, 6
      %v636 = vpop.permute.xlu0 %635
      %637 = vrot.lane.b32.xlu0 %v499, 6
      %v638 = vpop.permute.xlu0 %637
      %639 = vrot.lane.b32.xlu0 %v500, 6
      %v640 = vpop.permute.xlu0 %639
      %641 = vrot.lane.b32.xlu0 %v501, 6
      %v642 = vpop.permute.xlu0 %641
      %v647 = vadd.f32 %v494, %v636
      %v648 = vadd.f32 %v495, %v638
      %v649 = vadd.f32 %v496, %v640
      %v650 = vadd.f32 %v497, %v642
      %v651 = vpack.c.bf16 %v648, %v647
      %v652 = vpack.c.bf16 %v650, %v649
      %655 = vrot.lane.b32.xlu0 %v651, 122
      %v656 = vpop.permute.xlu0 %655
      %657 = vrot.lane.b32.xlu0 %v652, 122
      %v658 = vpop.permute.xlu0 %657
      %v660 = vsel %vm508, %v656, 0
      %v663 = vsel %vm508, %v658, 0
      %665 = vmatpush.bf16.msra.mxu0 0
      %666 = vmatpush.bf16.msra.mxu0 0
      %667 = vmatpush.bf16.msra.mxu0 0
      %668 = vmatpush.bf16.msra.mxu0 0
      %669 = vmatpush.bf16.msra.mxu0 0
      %670 = vmatpush.bf16.msra.mxu0 0
      %671 = vmatpush.bf16.msra.mxu0 0
      %672 = vmatpush.bf16.msra.mxu0 %v517
      %673 = vmatmul.bf16.gmra.mxu0 %v660
      %v674 = vpop.f32.mrf.mxu0
      %v675 = vadd.f32 0.0, %v674
      %v676 = vpop.f32.mrf.mxu0
      %v677 = vadd.f32 0.0, %v676
      %678 = vmatmul.bf16.gmra.mxu0 %v663
      %v679 = vpop.f32.mrf.mxu0
      %v680 = vadd.f32 0.0, %v679
      %v681 = vpop.f32.mrf.mxu0
      %v682 = vadd.f32 0.0, %v681
      %683 = vdwg.mxu0
      %v684 = vpack.c.bf16 %v675, %v675
      %v685 = vpack.c.bf16 %v677, %v677
      %v686 = vpack.c.bf16 %v680, %v680
      %v687 = vpack.c.bf16 %v682, %v682
      %692 = vrot.lane.b32.xlu0 %v684, 31
      %v693 = vpop.permute.xlu0 %692
      %694 = vrot.lane.b32.xlu0 %v685, 31
      %v695 = vpop.permute.xlu0 %694
      %696 = vrot.lane.b32.xlu0 %v686, 31
      %v697 = vpop.permute.xlu0 %696
      %698 = vrot.lane.b32.xlu0 %v687, 31
      %v699 = vpop.permute.xlu0 %698
      %vm704 = vcmask 331000
      %705 = vst.msk [vmem:[#allocation2] sm:$0xf] %vm704, %v693
      %706 = vst.msk [vmem:[#allocation2 + $0x4] sm:$0xf] %vm704, %v695
      %707 = vst.msk [vmem:[#allocation2 + $0x8] sm:$0xf] %vm704, %v697
      %708 = vst.msk [vmem:[#allocation2 + $0xc] sm:$0xf] %vm704, %v699
      %711 = vrot.lane.b32.xlu0 %v583, 122
      %v712 = vpop.permute.xlu0 %711
      %713 = vrot.lane.b32.xlu0 %v584, 122
      %v714 = vpop.permute.xlu0 %713
      %v716 = vsel %vm508, %v712, 0
      %v719 = vsel %vm508, %v714, 0
      %721 = vmatpush.bf16.msra.mxu0 0
      %722 = vmatpush.bf16.msra.mxu0 0
      %723 = vmatpush.bf16.msra.mxu0 0
      %724 = vmatpush.bf16.msra.mxu0 0
      %725 = vmatpush.bf16.msra.mxu0 0
      %726 = vmatpush.bf16.msra.mxu0 0
      %727 = vmatpush.bf16.msra.mxu0 0
      %728 = vmatpush.bf16.msra.mxu0 %v517
      %729 = vmatmul.bf16.gmra.mxu0 %v716
      %v730 = vpop.f32.mrf.mxu0
      %v731 = vadd.f32 0.0, %v730
      %v732 = vpop.f32.mrf.mxu0
      %v733 = vadd.f32 0.0, %v732
      %734 = vmatmul.bf16.gmra.mxu0 %v719
      %v735 = vpop.f32.mrf.mxu0
      %v736 = vadd.f32 0.0, %v735
      %v737 = vpop.f32.mrf.mxu0
      %v738 = vadd.f32 0.0, %v737
      %739 = vdwg.mxu0
      %v740 = vpack.c.bf16 %v731, %v731
      %v741 = vpack.c.bf16 %v733, %v733
      %v742 = vpack.c.bf16 %v736, %v736
      %v743 = vpack.c.bf16 %v738, %v738
      %748 = vrot.lane.b32.xlu0 %v740, 41
      %v749 = vpop.permute.xlu0 %748
      %750 = vrot.lane.b32.xlu0 %v741, 41
      %v751 = vpop.permute.xlu0 %750
      %752 = vrot.lane.b32.xlu0 %v742, 41
      %v753 = vpop.permute.xlu0 %752
      %754 = vrot.lane.b32.xlu0 %v743, 41
      %v755 = vpop.permute.xlu0 %754
      %vm760 = vcmask 413000
      %761 = vst.msk [vmem:[#allocation2] sm:$0xf] %vm760, %v749
      %762 = vst.msk [vmem:[#allocation2 + $0x4] sm:$0xf] %vm760, %v751
      %763 = vst.msk [vmem:[#allocation2 + $0x8] sm:$0xf] %vm760, %v753
      %764 = vst.msk [vmem:[#allocation2 + $0xc] sm:$0xf] %vm760, %v755
      %765 = vrot.lane.b32.xlu0 %v651, 116
      %v766 = vpop.permute.xlu0 %765
      %767 = vrot.lane.b32.xlu0 %v652, 116
      %v768 = vpop.permute.xlu0 %767
      %v770 = vsel %vm508, %v766, 0
      %v773 = vsel %vm508, %v768, 0
      %775 = vmatpush.bf16.msra.mxu0 0
      %776 = vmatpush.bf16.msra.mxu0 0
      %777 = vmatpush.bf16.msra.mxu0 0
      %778 = vmatpush.bf16.msra.mxu0 0
      %779 = vmatpush.bf16.msra.mxu0 0
      %780 = vmatpush.bf16.msra.mxu0 0
      %781 = vmatpush.bf16.msra.mxu0 0
      %782 = vmatpush.bf16.msra.mxu0 %v517
      %783 = vmatmul.bf16.gmra.mxu0 %v770
      %v784 = vpop.f32.mrf.mxu0
      %v785 = vadd.f32 0.0, %v784
      %v786 = vpop.f32.mrf.mxu0
      %v787 = vadd.f32 0.0, %v786
      %788 = vmatmul.bf16.gmra.mxu0 %v773
      %v789 = vpop.f32.mrf.mxu0
      %v790 = vadd.f32 0.0, %v789
      %v791 = vpop.f32.mrf.mxu0
      %v792 = vadd.f32 0.0, %v791
      %793 = vdwg.mxu0
      %v794 = vpack.c.bf16 %v785, %v785
      %v795 = vpack.c.bf16 %v787, %v787
      %v796 = vpack.c.bf16 %v790, %v790
      %v797 = vpack.c.bf16 %v792, %v792
      %802 = vrot.lane.b32.xlu0 %v794, 51
      %v803 = vpop.permute.xlu0 %802
      %804 = vrot.lane.b32.xlu0 %v795, 51
      %v805 = vpop.permute.xlu0 %804
      %806 = vrot.lane.b32.xlu0 %v796, 51
      %v807 = vpop.permute.xlu0 %806
      %808 = vrot.lane.b32.xlu0 %v797, 51
      %v809 = vpop.permute.xlu0 %808
      %vm814 = vcmask 495000
      %815 = vst.msk [vmem:[#allocation2] sm:$0xf] %vm814, %v803
      %816 = vst.msk [vmem:[#allocation2 + $0x4] sm:$0xf] %vm814, %v805
      %817 = vst.msk [vmem:[#allocation2 + $0x8] sm:$0xf] %vm814, %v807
      %818 = vst.msk [vmem:[#allocation2 + $0xc] sm:$0xf] %vm814, %v809
      %819 = vrot.lane.b32.xlu0 %v583, 116
      %v820 = vpop.permute.xlu0 %819
      %821 = vrot.lane.b32.xlu0 %v584, 116
      %v822 = vpop.permute.xlu0 %821
      %v824 = vsel %vm508, %v820, 0
      %v827 = vsel %vm508, %v822, 0
      %829 = vmatpush.bf16.msra.mxu0 0
      %830 = vmatpush.bf16.msra.mxu0 0
      %831 = vmatpush.bf16.msra.mxu0 0
      %832 = vmatpush.bf16.msra.mxu0 0
      %833 = vmatpush.bf16.msra.mxu0 0
      %834 = vmatpush.bf16.msra.mxu0 0
      %835 = vmatpush.bf16.msra.mxu0 0
      %836 = vmatpush.bf16.msra.mxu0 %v517
      %837 = vmatmul.bf16.gmra.mxu0 %v824
      %v838 = vpop.f32.mrf.mxu0
      %v839 = vadd.f32 0.0, %v838
      %v840 = vpop.f32.mrf.mxu0
      %v841 = vadd.f32 0.0, %v840
      %842 = vmatmul.bf16.gmra.mxu0 %v827
      %v843 = vpop.f32.mrf.mxu0
      %v844 = vadd.f32 0.0, %v843
      %v845 = vpop.f32.mrf.mxu0
      %v846 = vadd.f32 0.0, %v845
      %847 = vdwg.mxu0
      %v848 = vpack.c.bf16 %v839, %v839
      %v849 = vpack.c.bf16 %v841, %v841
      %v850 = vpack.c.bf16 %v844, %v844
      %v851 = vpack.c.bf16 %v846, %v846
      %856 = vrot.lane.b32.xlu0 %v848, 61
      %v857 = vpop.permute.xlu0 %856
      %858 = vrot.lane.b32.xlu0 %v849, 61
      %v859 = vpop.permute.xlu0 %858
      %860 = vrot.lane.b32.xlu0 %v850, 61
      %v861 = vpop.permute.xlu0 %860
      %862 = vrot.lane.b32.xlu0 %v851, 61
      %v863 = vpop.permute.xlu0 %862
      %vm868 = vcmask 577000
      %869 = vst.msk [vmem:[#allocation2] sm:$0xf] %vm868, %v857
      %870 = vst.msk [vmem:[#allocation2 + $0x4] sm:$0xf] %vm868, %v859
      %871 = vst.msk [vmem:[#allocation2 + $0x8] sm:$0xf] %vm868, %v861
      %872 = vst.msk [vmem:[#allocation2 + $0xc] sm:$0xf] %vm868, %v863
      %873 = vrot.lane.b32.xlu0 %v651, 110
      %v874 = vpop.permute.xlu0 %873
      %875 = vrot.lane.b32.xlu0 %v652, 110
      %v876 = vpop.permute.xlu0 %875
      %v878 = vsel %vm508, %v874, 0
      %v881 = vsel %vm508, %v876, 0
      %883 = vmatpush.bf16.msra.mxu0 0
      %884 = vmatpush.bf16.msra.mxu0 0
      %885 = vmatpush.bf16.msra.mxu0 0
      %886 = vmatpush.bf16.msra.mxu0 0
      %887 = vmatpush.bf16.msra.mxu0 0
      %888 = vmatpush.bf16.msra.mxu0 0
      %889 = vmatpush.bf16.msra.mxu0 0
      %890 = vmatpush.bf16.msra.mxu0 %v517
      %891 = vmatmul.bf16.gmra.mxu0 %v878
      %v892 = vpop.f32.mrf.mxu0
      %v893 = vadd.f32 0.0, %v892
      %v894 = vpop.f32.mrf.mxu0
      %v895 = vadd.f32 0.0, %v894
      %896 = vmatmul.bf16.gmra.mxu0 %v881
      %v897 = vpop.f32.mrf.mxu0
      %v898 = vadd.f32 0.0, %v897
      %v899 = vpop.f32.mrf.mxu0
      %v900 = vadd.f32 0.0, %v899
      %901 = vdwg.mxu0
      %v902 = vpack.c.bf16 %v893, %v893
      %v903 = vpack.c.bf16 %v895, %v895
      %v904 = vpack.c.bf16 %v898, %v898
      %v905 = vpack.c.bf16 %v900, %v900
      %910 = vrot.lane.b32.xlu0 %v902, 71
      %v911 = vpop.permute.xlu0 %910
      %912 = vrot.lane.b32.xlu0 %v903, 71
      %v913 = vpop.permute.xlu0 %912
      %914 = vrot.lane.b32.xlu0 %v904, 71
      %v915 = vpop.permute.xlu0 %914
      %916 = vrot.lane.b32.xlu0 %v905, 71
      %v917 = vpop.permute.xlu0 %916
      %vm922 = vcmask 659000
      %923 = vst.msk [vmem:[#allocation2] sm:$0xf] %vm922, %v911
      %924 = vst.msk [vmem:[#allocation2 + $0x4] sm:$0xf] %vm922, %v913
      %925 = vst.msk [vmem:[#allocation2 + $0x8] sm:$0xf] %vm922, %v915
      %926 = vst.msk [vmem:[#allocation2 + $0xc] sm:$0xf] %vm922, %v917
      %929 = vrot.lane.b32.xlu0 %v506, 110
      %v930 = vpop.permute.xlu0 %929
      %931 = vrot.lane.b32.xlu0 %v507, 110
      %v932 = vpop.permute.xlu0 %931
      %v934 = vsel %vm508, %v930, 0
      %v937 = vsel %vm508, %v932, 0
      %939 = vmatpush.bf16.msra.mxu0 0
      %940 = vmatpush.bf16.msra.mxu0 0
      %941 = vmatpush.bf16.msra.mxu0 0
      %942 = vmatpush.bf16.msra.mxu0 0
      %943 = vmatpush.bf16.msra.mxu0 0
      %944 = vmatpush.bf16.msra.mxu0 0
      %945 = vmatpush.bf16.msra.mxu0 0
      %946 = vmatpush.bf16.msra.mxu0 %v517
      %947 = vmatmul.bf16.gmra.mxu0 %v934
      %v948 = vpop.f32.mrf.mxu0
      %v949 = vadd.f32 0.0, %v948
      %v950 = vpop.f32.mrf.mxu0
      %v951 = vadd.f32 0.0, %v950
      %952 = vmatmul.bf16.gmra.mxu0 %v937
      %v953 = vpop.f32.mrf.mxu0
      %v954 = vadd.f32 0.0, %v953
      %v955 = vpop.f32.mrf.mxu0
      %v956 = vadd.f32 0.0, %v955
      %957 = vdwg.mxu0
      %v958 = vpack.c.bf16 %v949, %v949
      %v959 = vpack.c.bf16 %v951, %v951
      %v960 = vpack.c.bf16 %v954, %v954
      %v961 = vpack.c.bf16 %v956, %v956
      %966 = vrot.lane.b32.xlu0 %v958, 81
      %v967 = vpop.permute.xlu0 %966
      %968 = vrot.lane.b32.xlu0 %v959, 81
      %v969 = vpop.permute.xlu0 %968
      %970 = vrot.lane.b32.xlu0 %v960, 81
      %v971 = vpop.permute.xlu0 %970
      %972 = vrot.lane.b32.xlu0 %v961, 81
      %v973 = vpop.permute.xlu0 %972
      %vm978 = vcmask 741000
      %979 = vst.msk [vmem:[#allocation2] sm:$0xf] %vm978, %v967
      %980 = vst.msk [vmem:[#allocation2 + $0x4] sm:$0xf] %vm978, %v969
      %981 = vst.msk [vmem:[#allocation2 + $0x8] sm:$0xf] %vm978, %v971
      %982 = vst.msk [vmem:[#allocation2 + $0xc] sm:$0xf] %vm978, %v973
      %v983 = vld [vmem:[%s449] sm:$0xf]
      %v984 = vld [vmem:[%s449 + $0x4] sm:$0xf]
      %v985 = vld [vmem:[#allocation2] sm:$0xf]
      %v986 = vld [vmem:[#allocation2 + $0x4] sm:$0xf]
      %v987 = vld [vmem:[#allocation2 + $0x8] sm:$0xf]
      %v988 = vld [vmem:[#allocation2 + $0xc] sm:$0xf]
      %s989 = scalar_lea.vmem %s449, 8
      %v990 = vld [vmem:[%s989] sm:$0xf]
      %v991 = vld [vmem:[%s989 + $0x4] sm:$0xf]
      %v994 = vunpack.c.l.b16 %v990
      %v995 = vunpack.c.l.b16 %v991
      %v996 = vpack.c.b16 %v995, %v994
      %v1001 = vunpack.c.l.b16 %v985
      %v1002 = vunpack.c.l.b16 %v986
      %v1003 = vunpack.c.l.b16 %v987
      %v1004 = vunpack.c.l.b16 %v988
      %v1005 = vpack.c.b16 %v1002, %v1001
      %v1006 = vpack.c.b16 %v1004, %v1003
      %1007 = vrot.lane.b32.xlu0 %v1005, 127
      %v1008 = vpop.permute.xlu0 %1007
      %1009 = vrot.lane.b32.xlu0 %v1006, 127
      %v1010 = vpop.permute.xlu0 %1009
      %vm1013 = vcmask 261120
      %v1015 = vsel %vm1013, %v996, 0
      %1017 = vmatpush.bf16.msra.mxu0 0
      %1018 = vmatpush.bf16.msra.mxu0 0
      %1019 = vmatpush.bf16.msra.mxu0 0
      %1020 = vmatpush.bf16.msra.mxu0 0
      %1021 = vmatpush.bf16.msra.mxu0 0
      %1022 = vmatpush.bf16.msra.mxu0 0
      %1023 = vmatpush.bf16.msra.mxu0 %v1010
      %1024 = vmatpush.bf16.msra.mxu0 %v1008
      %1025 = vmatmul.bf16.gmra.mxu0 %v1015
      %v1026 = vpop.f32.mrf.mxu0
      %v1027 = vadd.f32 0.0, %v1026
      %v1028 = vpop.f32.mrf.mxu0
      %v1029 = vadd.f32 0.0, %v1028
      %1030 = vdwg.mxu0
      %v1033 = vunpack.c.l.b16 %v983
      %v1034 = vunpack.c.l.b16 %v984
      %v1035 = vpack.c.b16 %v1034, %v1033
      %v1039 = vsel %vm1013, %v1035, 0
      %1041 = vmatpush.bf16.msra.mxu0 0
      %1042 = vmatpush.bf16.msra.mxu0 0
      %1043 = vmatpush.bf16.msra.mxu0 0
      %1044 = vmatpush.bf16.msra.mxu0 0
      %1045 = vmatpush.bf16.msra.mxu0 0
      %1046 = vmatpush.bf16.msra.mxu0 0
      %1047 = vmatpush.bf16.msra.mxu0 %v1006
      %1048 = vmatpush.bf16.msra.mxu0 %v1005
      %1049 = vmatmul.bf16.gmra.mxu0 %v1039
      %v1050 = vpop.f32.mrf.mxu0
      %v1051 = vadd.f32 %v1027, %v1050
      %v1052 = vpop.f32.mrf.mxu0
      %v1053 = vadd.f32 %v1029, %v1052
      %1054 = vdwg.mxu0
      %s1055 = scalar_lea.vmem %s449, 16
      %v1056 = vld [vmem:[%s1055] sm:$0xf]
      %v1057 = vld [vmem:[%s1055 + $0x4] sm:$0xf]
      %v1060 = vunpack.c.l.b16 %v1056
      %v1061 = vunpack.c.l.b16 %v1057
      %v1062 = vpack.c.b16 %v1061, %v1060
      %1063 = vrot.lane.b32.xlu0 %v1005, 126
      %v1064 = vpop.permute.xlu0 %1063
      %1065 = vrot.lane.b32.xlu0 %v1006, 126
      %v1066 = vpop.permute.xlu0 %1065
      %v1070 = vsel %vm1013, %v1062, 0
      %1072 = vmatpush.bf16.msra.mxu0 0
      %1073 = vmatpush.bf16.msra.mxu0 0
      %1074 = vmatpush.bf16.msra.mxu0 0
      %1075 = vmatpush.bf16.msra.mxu0 0
      %1076 = vmatpush.bf16.msra.mxu0 0
      %1077 = vmatpush.bf16.msra.mxu0 0
      %1078 = vmatpush.bf16.msra.mxu0 %v1066
      %1079 = vmatpush.bf16.msra.mxu0 %v1064
      %1080 = vmatmul.bf16.gmra.mxu0 %v1070
      %v1081 = vpop.f32.mrf.mxu0
      %v1082 = vadd.f32 0.0, %v1081
      %v1083 = vpop.f32.mrf.mxu0
      %v1084 = vadd.f32 0.0, %v1083
      %1085 = vdwg.mxu0
      %v1086 = vadd.f32 %v1051, %v1082
      %v1087 = vadd.f32 %v1053, %v1084
      %s1088 = scalar_lea.vmem %s449, 24
      %v1089 = vld [vmem:[%s1088] sm:$0xf]
      %v1090 = vld [vmem:[%s1088 + $0x4] sm:$0xf]
      %v1093 = vunpack.c.l.b16 %v1089
      %v1094 = vunpack.c.l.b16 %v1090
      %v1095 = vpack.c.b16 %v1094, %v1093
      %1096 = vrot.lane.b32.xlu0 %v1005, 118
      %v1097 = vpop.permute.xlu0 %1096
      %1098 = vrot.lane.b32.xlu0 %v1006, 118
      %v1099 = vpop.permute.xlu0 %1098
      %v1103 = vsel %vm1013, %v1095, 0
      %1105 = vmatpush.bf16.msra.mxu0 0
      %1106 = vmatpush.bf16.msra.mxu0 0
      %1107 = vmatpush.bf16.msra.mxu0 0
      %1108 = vmatpush.bf16.msra.mxu0 0
      %1109 = vmatpush.bf16.msra.mxu0 0
      %1110 = vmatpush.bf16.msra.mxu0 0
      %1111 = vmatpush.bf16.msra.mxu0 %v1099
      %1112 = vmatpush.bf16.msra.mxu0 %v1097
      %1113 = vmatmul.bf16.gmra.mxu0 %v1103
      %v1114 = vpop.f32.mrf.mxu0
      %v1115 = vadd.f32 0.0, %v1114
      %v1116 = vpop.f32.mrf.mxu0
      %v1117 = vadd.f32 0.0, %v1116
      %1118 = vdwg.mxu0
      %v1119 = vadd.f32 %v1086, %v1115
      %v1120 = vadd.f32 %v1087, %v1117
      %s1121 = scalar_lea.vmem %s449, 32
      %v1122 = vld [vmem:[%s1121] sm:$0xf]
      %v1123 = vld [vmem:[%s1121 + $0x4] sm:$0xf]
      %v1126 = vunpack.c.l.b16 %v1122
      %v1127 = vunpack.c.l.b16 %v1123
      %v1128 = vpack.c.b16 %v1127, %v1126
      %1129 = vrot.lane.b32.xlu0 %v1005, 117
      %v1130 = vpop.permute.xlu0 %1129
      %1131 = vrot.lane.b32.xlu0 %v1006, 117
      %v1132 = vpop.permute.xlu0 %1131
      %v1136 = vsel %vm1013, %v1128, 0
      %1138 = vmatpush.bf16.msra.mxu0 0
      %1139 = vmatpush.bf16.msra.mxu0 0
      %1140 = vmatpush.bf16.msra.mxu0 0
      %1141 = vmatpush.bf16.msra.mxu0 0
      %1142 = vmatpush.bf16.msra.mxu0 0
      %1143 = vmatpush.bf16.msra.mxu0 0
      %1144 = vmatpush.bf16.msra.mxu0 %v1132
      %1145 = vmatpush.bf16.msra.mxu0 %v1130
      %1146 = vmatmul.bf16.gmra.mxu0 %v1136
      %v1147 = vpop.f32.mrf.mxu0
      %v1148 = vadd.f32 0.0, %v1147
      %v1149 = vpop.f32.mrf.mxu0
      %v1150 = vadd.f32 0.0, %v1149
      %1151 = vdwg.mxu0
      %v1152 = vadd.f32 %v1119, %v1148
      %v1153 = vadd.f32 %v1120, %v1150
      %s1154 = scalar_lea.vmem %s449, 40
      %v1155 = vld [vmem:[%s1154] sm:$0xf]
      %v1156 = vld [vmem:[%s1154 + $0x4] sm:$0xf]
      %v1159 = vunpack.c.l.b16 %v1155
      %v1160 = vunpack.c.l.b16 %v1156
      %v1161 = vpack.c.b16 %v1160, %v1159
      %1162 = vrot.lane.b32.xlu0 %v1005, 116
      %v1163 = vpop.permute.xlu0 %1162
      %1164 = vrot.lane.b32.xlu0 %v1006, 116
      %v1165 = vpop.permute.xlu0 %1164
      %v1169 = vsel %vm1013, %v1161, 0
      %1171 = vmatpush.bf16.msra.mxu0 0
      %1172 = vmatpush.bf16.msra.mxu0 0
      %1173 = vmatpush.bf16.msra.mxu0 0
      %1174 = vmatpush.bf16.msra.mxu0 0
      %1175 = vmatpush.bf16.msra.mxu0 0
      %1176 = vmatpush.bf16.msra.mxu0 0
      %1177 = vmatpush.bf16.msra.mxu0 %v1165
      %1178 = vmatpush.bf16.msra.mxu0 %v1163
      %1179 = vmatmul.bf16.gmra.mxu0 %v1169
      %v1180 = vpop.f32.mrf.mxu0
      %v1181 = vadd.f32 0.0, %v1180
      %v1182 = vpop.f32.mrf.mxu0
      %v1183 = vadd.f32 0.0, %v1182
      %1184 = vdwg.mxu0
      %v1185 = vadd.f32 %v1152, %v1181
      %v1186 = vadd.f32 %v1153, %v1183
      %s1187 = scalar_lea.vmem %s449, 48
      %v1188 = vld [vmem:[%s1187] sm:$0xf]
      %v1189 = vld [vmem:[%s1187 + $0x4] sm:$0xf]
      %v1192 = vunpack.c.l.b16 %v1188
      %v1193 = vunpack.c.l.b16 %v1189
      %v1194 = vpack.c.b16 %v1193, %v1192
      %1195 = vrot.lane.b32.xlu0 %v1005, 108
      %v1196 = vpop.permute.xlu0 %1195
      %1197 = vrot.lane.b32.xlu0 %v1006, 108
      %v1198 = vpop.permute.xlu0 %1197
      %v1202 = vsel %vm1013, %v1194, 0
      %1204 = vmatpush.bf16.msra.mxu0 0
      %1205 = vmatpush.bf16.msra.mxu0 0
      %1206 = vmatpush.bf16.msra.mxu0 0
      %1207 = vmatpush.bf16.msra.mxu0 0
      %1208 = vmatpush.bf16.msra.mxu0 0
      %1209 = vmatpush.bf16.msra.mxu0 0
      %1210 = vmatpush.bf16.msra.mxu0 %v1198
      %1211 = vmatpush.bf16.msra.mxu0 %v1196
      %1212 = vmatmul.bf16.gmra.mxu0 %v1202
      %v1213 = vpop.f32.mrf.mxu0
      %v1214 = vadd.f32 0.0, %v1213
      %v1215 = vpop.f32.mrf.mxu0
      %v1216 = vadd.f32 0.0, %v1215
      %1217 = vdwg.mxu0
      %v1218 = vadd.f32 %v1185, %v1214
      %v1219 = vadd.f32 %v1186, %v1216
      %s1220 = scalar_lea.vmem %s449, 56
      %v1221 = vld [vmem:[%s1220] sm:$0xf]
      %v1222 = vld [vmem:[%s1220 + $0x4] sm:$0xf]
      %v1225 = vunpack.c.l.b16 %v1221
      %v1226 = vunpack.c.l.b16 %v1222
      %v1227 = vpack.c.b16 %v1226, %v1225
      %1228 = vrot.lane.b32.xlu0 %v1005, 107
      %v1229 = vpop.permute.xlu0 %1228
      %1230 = vrot.lane.b32.xlu0 %v1006, 107
      %v1231 = vpop.permute.xlu0 %1230
      %v1235 = vsel %vm1013, %v1227, 0
      %1237 = vmatpush.bf16.msra.mxu0 0
      %1238 = vmatpush.bf16.msra.mxu0 0
      %1239 = vmatpush.bf16.msra.mxu0 0
      %1240 = vmatpush.bf16.msra.mxu0 0
      %1241 = vmatpush.bf16.msra.mxu0 0
      %1242 = vmatpush.bf16.msra.mxu0 0
      %1243 = vmatpush.bf16.msra.mxu0 %v1231
      %1244 = vmatpush.bf16.msra.mxu0 %v1229
      %1245 = vmatmul.bf16.gmra.mxu0 %v1235
      %v1246 = vpop.f32.mrf.mxu0
      %v1247 = vadd.f32 0.0, %v1246
      %v1248 = vpop.f32.mrf.mxu0
      %v1249 = vadd.f32 0.0, %v1248
      %1250 = vdwg.mxu0
      %v1251 = vadd.f32 %v1218, %v1247
      %v1252 = vadd.f32 %v1219, %v1249
      %s1253 = scalar_lea.vmem %s449, 64
      %v1254 = vld [vmem:[%s1253] sm:$0xf]
      %v1255 = vld [vmem:[%s1253 + $0x4] sm:$0xf]
      %v1258 = vunpack.c.l.b16 %v1254
      %v1259 = vunpack.c.l.b16 %v1255
      %v1260 = vpack.c.b16 %v1259, %v1258
      %1261 = vrot.lane.b32.xlu0 %v1005, 106
      %v1262 = vpop.permute.xlu0 %1261
      %1263 = vrot.lane.b32.xlu0 %v1006, 106
      %v1264 = vpop.permute.xlu0 %1263
      %v1268 = vsel %vm1013, %v1260, 0
      %1270 = vmatpush.bf16.msra.mxu0 0
      %1271 = vmatpush.bf16.msra.mxu0 0
      %1272 = vmatpush.bf16.msra.mxu0 0
      %1273 = vmatpush.bf16.msra.mxu0 0
      %1274 = vmatpush.bf16.msra.mxu0 0
      %1275 = vmatpush.bf16.msra.mxu0 0
      %1276 = vmatpush.bf16.msra.mxu0 %v1264
      %1277 = vmatpush.bf16.msra.mxu0 %v1262
      %1278 = vmatmul.bf16.gmra.mxu0 %v1268
      %v1279 = vpop.f32.mrf.mxu0
      %v1280 = vadd.f32 0.0, %v1279
      %v1281 = vpop.f32.mrf.mxu0
      %v1282 = vadd.f32 0.0, %v1281
      %1283 = vdwg.mxu0
      %v1284 = vadd.f32 %v1251, %v1280
      %v1285 = vadd.f32 %v1252, %v1282
      %v1286 = vld [vmem:[%s2] sm:$0xff]
      %v1287 = vld [vmem:[%s2 + $0x8] sm:$0xff]
      %1289 = vset.pattern.permute.xlu0 0
      %1290 = vperm.xlu0 %1289, %v1286
      %v1291 = vpop.permute.xlu0 %1290
      %1294 = vset.pattern.permute.xlu0 0
      %1295 = vperm.xlu0 %1294, %v1287
      %v1296 = vpop.permute.xlu0 %1295
      %v1298 = vadd.f32 %v1284, %v1291
      %v1299 = vadd.f32 %v1285, %v1296
      %v1300 = vmul.f32 %v1298, 0.2
      %v1301 = vmul.f32 %v1299, 0.2
      %v1302 = vmax.f32 %v1298, %v1300
      %v1303 = vmax.f32 %v1299, %v1301
      %v1305 = vperm.slane %v473, 0
      %v1307 = vmul.f32 %v1302, %v1305
      %v1308 = vmul.f32 %v1303, %v1305
      %v1309 = vpack.c.bf16 %v1307, %v1307
      %v1310 = vpack.c.bf16 %v1308, %v1308
      %1311 = vst.msk [vmem:[#allocation3] sm:$0xf] %vm474, 0
      %1312 = vst.msk [vmem:[#allocation3 + $0x4] sm:$0xf] %vm474, 0
      %1313 = vst.msk [vmem:[#allocation3] sm:$0xf] %vm479, 0
      %1314 = vst.msk [vmem:[#allocation3 + $0x4] sm:$0xf] %vm479, 0
      %1317 = vrot.lane.b32.xlu0 %v1309, 11
      %v1318 = vpop.permute.xlu0 %1317
      %1319 = vrot.lane.b32.xlu0 %v1310, 11
      %v1320 = vpop.permute.xlu0 %1319
      %vm1323 = vcmask 740440
      %1324 = vst.msk [vmem:[#allocation3] sm:$0xf] %vm1323, %v1318
      %1325 = vst.msk [vmem:[#allocation3 + $0x4] sm:$0xf] %vm1323, %v1320
      %v1326 = vld [vmem:[%s454] sm:$0xf]
      %v1327 = vld [vmem:[%s454 + $0x4] sm:$0xf]
      %v1328 = vld [vmem:[#allocation3] sm:$0xf]
      %v1329 = vld [vmem:[#allocation3 + $0x4] sm:$0xf]
      %s1330 = scalar_lea.vmem %s454, 8
      %v1331 = vld [vmem:[%s1330] sm:$0xf]
      %v1332 = vld [vmem:[%s1330 + $0x4] sm:$0xf]
      %v1335 = vunpack.c.l.b16 %v1331
      %v1336 = vunpack.c.l.b16 %v1332
      %v1337 = vpack.c.b16 %v1336, %v1335
      %v1340 = vunpack.c.l.b16 %v1328
      %v1341 = vunpack.c.l.b16 %v1329
      %v1342 = vpack.c.b16 %v1341, %v1340
      %1343 = vrot.lane.b32.xlu0 %v1342, 127
      %v1344 = vpop.permute.xlu0 %1343
      %vm1346 = vcmask 130048
      %v1348 = vsel %vm1346, %v1337, 0
      %1350 = vmatpush.bf16.msra.mxu0 0
      %1351 = vmatpush.bf16.msra.mxu0 0
      %1352 = vmatpush.bf16.msra.mxu0 0
      %1353 = vmatpush.bf16.msra.mxu0 0
      %1354 = vmatpush.bf16.msra.mxu0 0
      %1355 = vmatpush.bf16.msra.mxu0 0
      %1356 = vmatpush.bf16.msra.mxu0 0
      %1357 = vmatpush.bf16.msra.mxu0 %v1344
      %1358 = vmatmul.bf16.gmra.mxu0 %v1348
      %v1359 = vpop.f32.mrf.mxu0
      %v1360 = vadd.f32 0.0, %v1359
      %v1361 = vpop.f32.mrf.mxu0
      %v1362 = vadd.f32 0.0, %v1361
      %1363 = vdwg.mxu0
      %v1366 = vunpack.c.l.b16 %v1326
      %v1367 = vunpack.c.l.b16 %v1327
      %v1368 = vpack.c.b16 %v1367, %v1366
      %v1371 = vsel %vm1346, %v1368, 0
      %1373 = vmatpush.bf16.msra.mxu0 0
      %1374 = vmatpush.bf16.msra.mxu0 0
      %1375 = vmatpush.bf16.msra.mxu0 0
      %1376 = vmatpush.bf16.msra.mxu0 0
      %1377 = vmatpush.bf16.msra.mxu0 0
      %1378 = vmatpush.bf16.msra.mxu0 0
      %1379 = vmatpush.bf16.msra.mxu0 0
      %1380 = vmatpush.bf16.msra.mxu0 %v1342
      %1381 = vmatmul.bf16.gmra.mxu0 %v1371
      %v1382 = vpop.f32.mrf.mxu0
      %v1383 = vadd.f32 %v1360, %v1382
      %v1384 = vpop.f32.mrf.mxu0
      %v1385 = vadd.f32 %v1362, %v1384
      %1386 = vdwg.mxu0
      %s1387 = scalar_lea.vmem %s454, 16
      %v1388 = vld [vmem:[%s1387] sm:$0xf]
      %v1389 = vld [vmem:[%s1387 + $0x4] sm:$0xf]
      %v1392 = vunpack.c.l.b16 %v1388
      %v1393 = vunpack.c.l.b16 %v1389
      %v1394 = vpack.c.b16 %v1393, %v1392
      %1395 = vrot.lane.b32.xlu0 %v1342, 126
      %v1396 = vpop.permute.xlu0 %1395
      %v1399 = vsel %vm1346, %v1394, 0
      %1401 = vmatpush.bf16.msra.mxu0 0
      %1402 = vmatpush.bf16.msra.mxu0 0
      %1403 = vmatpush.bf16.msra.mxu0 0
      %1404 = vmatpush.bf16.msra.mxu0 0
      %1405 = vmatpush.bf16.msra.mxu0 0
      %1406 = vmatpush.bf16.msra.mxu0 0
      %1407 = vmatpush.bf16.msra.mxu0 0
      %1408 = vmatpush.bf16.msra.mxu0 %v1396
      %1409 = vmatmul.bf16.gmra.mxu0 %v1399
      %v1410 = vpop.f32.mrf.mxu0
      %v1411 = vadd.f32 0.0, %v1410
      %v1412 = vpop.f32.mrf.mxu0
      %v1413 = vadd.f32 0.0, %v1412
      %1414 = vdwg.mxu0
      %v1415 = vadd.f32 %v1383, %v1411
      %v1416 = vadd.f32 %v1385, %v1413
      %s1417 = scalar_lea.vmem %s454, 24
      %v1418 = vld [vmem:[%s1417] sm:$0xf]
      %v1419 = vld [vmem:[%s1417 + $0x4] sm:$0xf]
      %v1422 = vunpack.c.l.b16 %v1418
      %v1423 = vunpack.c.l.b16 %v1419
      %v1424 = vpack.c.b16 %v1423, %v1422
      %1425 = vrot.lane.b32.xlu0 %v1342, 118
      %v1426 = vpop.permute.xlu0 %1425
      %v1429 = vsel %vm1346, %v1424, 0
      %1431 = vmatpush.bf16.msra.mxu0 0
      %1432 = vmatpush.bf16.msra.mxu0 0
      %1433 = vmatpush.bf16.msra.mxu0 0
      %1434 = vmatpush.bf16.msra.mxu0 0
      %1435 = vmatpush.bf16.msra.mxu0 0
      %1436 = vmatpush.bf16.msra.mxu0 0
      %1437 = vmatpush.bf16.msra.mxu0 0
      %1438 = vmatpush.bf16.msra.mxu0 %v1426
      %1439 = vmatmul.bf16.gmra.mxu0 %v1429
      %v1440 = vpop.f32.mrf.mxu0
      %v1441 = vadd.f32 0.0, %v1440
      %v1442 = vpop.f32.mrf.mxu0
      %v1443 = vadd.f32 0.0, %v1442
      %1444 = vdwg.mxu0
      %v1445 = vadd.f32 %v1415, %v1441
      %v1446 = vadd.f32 %v1416, %v1443
      %s1447 = scalar_lea.vmem %s454, 32
      %v1448 = vld [vmem:[%s1447] sm:$0xf]
      %v1449 = vld [vmem:[%s1447 + $0x4] sm:$0xf]
      %v1452 = vunpack.c.l.b16 %v1448
      %v1453 = vunpack.c.l.b16 %v1449
      %v1454 = vpack.c.b16 %v1453, %v1452
      %1455 = vrot.lane.b32.xlu0 %v1342, 117
      %v1456 = vpop.permute.xlu0 %1455
      %v1459 = vsel %vm1346, %v1454, 0
      %1461 = vmatpush.bf16.msra.mxu0 0
      %1462 = vmatpush.bf16.msra.mxu0 0
      %1463 = vmatpush.bf16.msra.mxu0 0
      %1464 = vmatpush.bf16.msra.mxu0 0
      %1465 = vmatpush.bf16.msra.mxu0 0
      %1466 = vmatpush.bf16.msra.mxu0 0
      %1467 = vmatpush.bf16.msra.mxu0 0
      %1468 = vmatpush.bf16.msra.mxu0 %v1456
      %1469 = vmatmul.bf16.gmra.mxu0 %v1459
      %v1470 = vpop.f32.mrf.mxu0
      %v1471 = vadd.f32 0.0, %v1470
      %v1472 = vpop.f32.mrf.mxu0
      %v1473 = vadd.f32 0.0, %v1472
      %1474 = vdwg.mxu0
      %v1475 = vadd.f32 %v1445, %v1471
      %v1476 = vadd.f32 %v1446, %v1473
      %s1477 = scalar_lea.vmem %s454, 40
      %v1478 = vld [vmem:[%s1477] sm:$0xf]
      %v1479 = vld [vmem:[%s1477 + $0x4] sm:$0xf]
      %v1482 = vunpack.c.l.b16 %v1478
      %v1483 = vunpack.c.l.b16 %v1479
      %v1484 = vpack.c.b16 %v1483, %v1482
      %1485 = vrot.lane.b32.xlu0 %v1342, 116
      %v1486 = vpop.permute.xlu0 %1485
      %v1489 = vsel %vm1346, %v1484, 0
      %1491 = vmatpush.bf16.msra.mxu0 0
      %1492 = vmatpush.bf16.msra.mxu0 0
      %1493 = vmatpush.bf16.msra.mxu0 0
      %1494 = vmatpush.bf16.msra.mxu0 0
      %1495 = vmatpush.bf16.msra.mxu0 0
      %1496 = vmatpush.bf16.msra.mxu0 0
      %1497 = vmatpush.bf16.msra.mxu0 0
      %1498 = vmatpush.bf16.msra.mxu0 %v1486
      %1499 = vmatmul.bf16.gmra.mxu0 %v1489
      %v1500 = vpop.f32.mrf.mxu0
      %v1501 = vadd.f32 0.0, %v1500
      %v1502 = vpop.f32.mrf.mxu0
      %v1503 = vadd.f32 0.0, %v1502
      %1504 = vdwg.mxu0
      %v1505 = vadd.f32 %v1475, %v1501
      %v1506 = vadd.f32 %v1476, %v1503
      %s1507 = scalar_lea.vmem %s454, 48
      %v1508 = vld [vmem:[%s1507] sm:$0xf]
      %v1509 = vld [vmem:[%s1507 + $0x4] sm:$0xf]
      %v1512 = vunpack.c.l.b16 %v1508
      %v1513 = vunpack.c.l.b16 %v1509
      %v1514 = vpack.c.b16 %v1513, %v1512
      %1515 = vrot.lane.b32.xlu0 %v1342, 108
      %v1516 = vpop.permute.xlu0 %1515
      %v1519 = vsel %vm1346, %v1514, 0
      %1521 = vmatpush.bf16.msra.mxu0 0
      %1522 = vmatpush.bf16.msra.mxu0 0
      %1523 = vmatpush.bf16.msra.mxu0 0
      %1524 = vmatpush.bf16.msra.mxu0 0
      %1525 = vmatpush.bf16.msra.mxu0 0
      %1526 = vmatpush.bf16.msra.mxu0 0
      %1527 = vmatpush.bf16.msra.mxu0 0
      %1528 = vmatpush.bf16.msra.mxu0 %v1516
      %1529 = vmatmul.bf16.gmra.mxu0 %v1519
      %v1530 = vpop.f32.mrf.mxu0
      %v1531 = vadd.f32 0.0, %v1530
      %v1532 = vpop.f32.mrf.mxu0
      %v1533 = vadd.f32 0.0, %v1532
      %1534 = vdwg.mxu0
      %v1535 = vadd.f32 %v1505, %v1531
      %v1536 = vadd.f32 %v1506, %v1533
      %s1537 = scalar_lea.vmem %s454, 56
      %v1538 = vld [vmem:[%s1537] sm:$0xf]
      %v1539 = vld [vmem:[%s1537 + $0x4] sm:$0xf]
      %v1542 = vunpack.c.l.b16 %v1538
      %v1543 = vunpack.c.l.b16 %v1539
      %v1544 = vpack.c.b16 %v1543, %v1542
      %1545 = vrot.lane.b32.xlu0 %v1342, 107
      %v1546 = vpop.permute.xlu0 %1545
      %v1549 = vsel %vm1346, %v1544, 0
      %1551 = vmatpush.bf16.msra.mxu0 0
      %1552 = vmatpush.bf16.msra.mxu0 0
      %1553 = vmatpush.bf16.msra.mxu0 0
      %1554 = vmatpush.bf16.msra.mxu0 0
      %1555 = vmatpush.bf16.msra.mxu0 0
      %1556 = vmatpush.bf16.msra.mxu0 0
      %1557 = vmatpush.bf16.msra.mxu0 0
      %1558 = vmatpush.bf16.msra.mxu0 %v1546
      %1559 = vmatmul.bf16.gmra.mxu0 %v1549
      %v1560 = vpop.f32.mrf.mxu0
      %v1561 = vadd.f32 0.0, %v1560
      %v1562 = vpop.f32.mrf.mxu0
      %v1563 = vadd.f32 0.0, %v1562
      %1564 = vdwg.mxu0
      %v1565 = vadd.f32 %v1535, %v1561
      %v1566 = vadd.f32 %v1536, %v1563
      %s1567 = scalar_lea.vmem %s454, 64
      %v1568 = vld [vmem:[%s1567] sm:$0xf]
      %v1569 = vld [vmem:[%s1567 + $0x4] sm:$0xf]
      %v1572 = vunpack.c.l.b16 %v1568
      %v1573 = vunpack.c.l.b16 %v1569
      %v1574 = vpack.c.b16 %v1573, %v1572
      %1575 = vrot.lane.b32.xlu0 %v1342, 106
      %v1576 = vpop.permute.xlu0 %1575
      %v1579 = vsel %vm1346, %v1574, 0
      %1581 = vmatpush.bf16.msra.mxu0 0
      %1582 = vmatpush.bf16.msra.mxu0 0
      %1583 = vmatpush.bf16.msra.mxu0 0
      %1584 = vmatpush.bf16.msra.mxu0 0
      %1585 = vmatpush.bf16.msra.mxu0 0
      %1586 = vmatpush.bf16.msra.mxu0 0
      %1587 = vmatpush.bf16.msra.mxu0 0
      %1588 = vmatpush.bf16.msra.mxu0 %v1576
      %1589 = vmatmul.bf16.gmra.mxu0 %v1579
      %v1590 = vpop.f32.mrf.mxu0
      %v1591 = vadd.f32 0.0, %v1590
      %v1592 = vpop.f32.mrf.mxu0
      %v1593 = vadd.f32 0.0, %v1592
      %1594 = vdwg.mxu0
      %v1595 = vadd.f32 %v1565, %v1591
      %v1596 = vadd.f32 %v1566, %v1593
      %v1597 = vld [vmem:[%s4] sm:$0xff]
      %v1598 = vld [vmem:[%s4 + $0x8] sm:$0xff]
      %1600 = vset.pattern.permute.xlu0 0
      %1601 = vperm.xlu0 %1600, %v1597
      %v1602 = vpop.permute.xlu0 %1601
      %1605 = vset.pattern.permute.xlu0 0
      %1606 = vperm.xlu0 %1605, %v1598
      %v1607 = vpop.permute.xlu0 %1606
      %v1609 = vadd.f32 %v1595, %v1602
      %v1610 = vadd.f32 %v1596, %v1607
      %v1611 = vmul.f32 %v1609, 0.2
      %v1612 = vmul.f32 %v1610, 0.2
      %v1613 = vmax.f32 %v1609, %v1611
      %v1614 = vmax.f32 %v1610, %v1612
      %v1615 = vmul.f32 %v1613, %v1305
      %v1616 = vmul.f32 %v1614, %v1305
      %v1617 = vpack.c.bf16 %v1615, %v1615
      %v1618 = vpack.c.bf16 %v1616, %v1616
      %vm1619 = vcmask 650240
      %1620 = vst.msk [vmem:[%s467] sm:$0xf] %vm1619, %v1617
      %1621 = vst.msk [vmem:[%s467 + $0x4] sm:$0xf] %vm1619, %v1618
      %v1622 = vld [vmem:[%s458] sm:$0x3]
      %v1623 = vld [vmem:[%s6] sm:$0xf]
      %1625 = vset.pattern.permute.xlu0 0
      %1626 = vperm.xlu0 %1625, %v1623
      %v1627 = vpop.permute.xlu0 %1626
      %v1631 = vunpack.c.l.b16 %v1617
      %v1632 = vunpack.c.l.b16 %v1618
      %v1633 = vpack.c.b16 %v1632, %v1631
      %v1636 = vsel %vm1346, %v1622, 0
      %1638 = vmatpush.bf16.msra.mxu0 0
      %1639 = vmatpush.bf16.msra.mxu0 0
      %1640 = vmatpush.bf16.msra.mxu0 0
      %1641 = vmatpush.bf16.msra.mxu0 0
      %1642 = vmatpush.bf16.msra.mxu0 0
      %1643 = vmatpush.bf16.msra.mxu0 0
      %1644 = vmatpush.bf16.msra.mxu0 0
      %1645 = vmatpush.bf16.msra.mxu0 %v1633
      %1646 = vmatmul.bf16.gmra.mxu0 %v1636
      %v1647 = vpop.f32.mrf.mxu0
      %v1648 = vadd.f32 %v1627, %v1647
      %v1649 = vpop.f32.mrf.mxu0
      %1650 = vdwg.mxu0
      %v1651 = vld [vmem:[%s462] sm:$0xf]
      %v1652 = vld [vmem:[%s8] sm:$0x3f]
      %v1653 = vmul.f32 %v1651, 0.75
      %v1654 = vmul.f32 %v1651, 0.25
      %v1655 = vadd.f32 %v1653, %v1654
      %v1657 = vsel %vm508, %v1655, 0
      %vm1659 = vcmask 1045504
      %v1661 = vsel %vm1659, %v1652, 0
      %1663 = vmatpush.msra.mxu0 0.0
      %1664 = vmatpush.msra.mxu0 0.0
      %1665 = vmatpush.msra.mxu0 0.0
      %1666 = vmatpush.msra.mxu0 0.0
      %1667 = vmatpush.msra.mxu0 0.0
      %1668 = vmatpush.msra.mxu0 0.0
      %1669 = vmatpush.msra.mxu0 0.0
      %1670 = vmatpush.msra.mxu0 0.0
      %1671 = vmatpush.msra.mxu0 0.0
      %1672 = vmatpush.msra.mxu0 0.0
      %1673 = vmatpush.msra.mxu0 0.0
      %1674 = vmatpush.msra.mxu0 0.0
      %1675 = vmatpush.msra.mxu0 0.0
      %1676 = vmatpush.msra.mxu0 0.0
      %1677 = vmatpush.msra.mxu0 0.0
      %1678 = vmatpush.msra.mxu0 %v1661
      %1679 = vmatmul.f32.gmra.mxu0 %v1657
      %v1680 = vpop.f32.mrf.mxu0
      %v1681 = vadd.f32 0.0, %v1680
      %1682 = vdwg.mxu0
      %vm1683 = vcmask 76800
      %1684 = vst.msk [vmem:[#allocation4] sm:$0xf] %vm1683, %v1681
      %1686 = vrot.lane.b32.xlu0 %v1654, 122
      %v1687 = vpop.permute.xlu0 %1686
      %v1689 = vadd.f32 %v1653, %v1687
      %v1691 = vsel %vm508, %v1689, 0
      %1693 = vmatpush.msra.mxu0 0.0
      %1694 = vmatpush.msra.mxu0 0.0
      %1695 = vmatpush.msra.mxu0 0.0
      %1696 = vmatpush.msra.mxu0 0.0
      %1697 = vmatpush.msra.mxu0 0.0
      %1698 = vmatpush.msra.mxu0 0.0
      %1699 = vmatpush.msra.mxu0 0.0
      %1700 = vmatpush.msra.mxu0 0.0
      %1701 = vmatpush.msra.mxu0 0.0
      %1702 = vmatpush.msra.mxu0 0.0
      %1703 = vmatpush.msra.mxu0 0.0
      %1704 = vmatpush.msra.mxu0 0.0
      %1705 = vmatpush.msra.mxu0 0.0
      %1706 = vmatpush.msra.mxu0 0.0
      %1707 = vmatpush.msra.mxu0 0.0
      %1708 = vmatpush.msra.mxu0 %v1661
      %1709 = vmatmul.f32.gmra.mxu0 %v1691
      %v1710 = vpop.f32.mrf.mxu0
      %v1711 = vadd.f32 0.0, %v1710
      %1712 = vdwg.mxu0
      %1714 = vrot.lane.b32.xlu0 %v1711, 10
      %v1715 = vpop.permute.xlu0 %1714
      %vm1717 = vcmask 158800
      %1718 = vst.msk [vmem:[#allocation4] sm:$0xf] %vm1717, %v1715
      %1719 = vrot.lane.b32.xlu0 %v1654, 6
      %v1720 = vpop.permute.xlu0 %1719
      %v1722 = vadd.f32 %v1653, %v1720
      %1724 = vrot.lane.b32.xlu0 %v1722, 122
      %v1725 = vpop.permute.xlu0 %1724
      %v1726 = vsel %vm508, %v1725, 0
      %1728 = vmatpush.msra.mxu0 0.0
      %1729 = vmatpush.msra.mxu0 0.0
      %1730 = vmatpush.msra.mxu0 0.0
      %1731 = vmatpush.msra.mxu0 0.0
      %1732 = vmatpush.msra.mxu0 0.0
      %1733 = vmatpush.msra.mxu0 0.0
      %1734 = vmatpush.msra.mxu0 0.0
      %1735 = vmatpush.msra.mxu0 0.0
      %1736 = vmatpush.msra.mxu0 0.0
      %1737 = vmatpush.msra.mxu0 0.0
      %1738 = vmatpush.msra.mxu0 0.0
      %1739 = vmatpush.msra.mxu0 0.0
      %1740 = vmatpush.msra.mxu0 0.0
      %1741 = vmatpush.msra.mxu0 0.0
      %1742 = vmatpush.msra.mxu0 0.0
      %1743 = vmatpush.msra.mxu0 %v1661
      %1744 = vmatmul.f32.gmra.mxu0 %v1726
      %v1745 = vpop.f32.mrf.mxu0
      %v1746 = vadd.f32 0.0, %v1745
      %1747 = vdwg.mxu0
      %1749 = vrot.lane.b32.xlu0 %v1746, 20
      %v1750 = vpop.permute.xlu0 %1749
      %vm1752 = vcmask 240800
      %1753 = vst.msk [vmem:[#allocation4] sm:$0xf] %vm1752, %v1750
      %1754 = vrot.lane.b32.xlu0 %v1689, 122
      %v1755 = vpop.permute.xlu0 %1754
      %v1756 = vsel %vm508, %v1755, 0
      %1758 = vmatpush.msra.mxu0 0.0
      %1759 = vmatpush.msra.mxu0 0.0
      %1760 = vmatpush.msra.mxu0 0.0
      %1761 = vmatpush.msra.mxu0 0.0
      %1762 = vmatpush.msra.mxu0 0.0
      %1763 = vmatpush.msra.mxu0 0.0
      %1764 = vmatpush.msra.mxu0 0.0
      %1765 = vmatpush.msra.mxu0 0.0
      %1766 = vmatpush.msra.mxu0 0.0
      %1767 = vmatpush.msra.mxu0 0.0
      %1768 = vmatpush.msra.mxu0 0.0
      %1769 = vmatpush.msra.mxu0 0.0
      %1770 = vmatpush.msra.mxu0 0.0
      %1771 = vmatpush.msra.mxu0 0.0
      %1772 = vmatpush.msra.mxu0 0.0
      %1773 = vmatpush.msra.mxu0 %v1661
      %1774 = vmatmul.f32.gmra.mxu0 %v1756
      %v1775 = vpop.f32.mrf.mxu0
      %v1776 = vadd.f32 0.0, %v1775
      %1777 = vdwg.mxu0
      %1779 = vrot.lane.b32.xlu0 %v1776, 30
      %v1780 = vpop.permute.xlu0 %1779
      %vm1782 = vcmask 322800
      %1783 = vst.msk [vmem:[#allocation4] sm:$0xf] %vm1782, %v1780
      %1784 = vrot.lane.b32.xlu0 %v1722, 116
      %v1785 = vpop.permute.xlu0 %1784
      %v1786 = vsel %vm508, %v1785, 0
      %1788 = vmatpush.msra.mxu0 0.0
      %1789 = vmatpush.msra.mxu0 0.0
      %1790 = vmatpush.msra.mxu0 0.0
      %1791 = vmatpush.msra.mxu0 0.0
      %1792 = vmatpush.msra.mxu0 0.0
      %1793 = vmatpush.msra.mxu0 0.0
      %1794 = vmatpush.msra.mxu0 0.0
      %1795 = vmatpush.msra.mxu0 0.0
      %1796 = vmatpush.msra.mxu0 0.0
      %1797 = vmatpush.msra.mxu0 0.0
      %1798 = vmatpush.msra.mxu0 0.0
      %1799 = vmatpush.msra.mxu0 0.0
      %1800 = vmatpush.msra.mxu0 0.0
      %1801 = vmatpush.msra.mxu0 0.0
      %1802 = vmatpush.msra.mxu0 0.0
      %1803 = vmatpush.msra.mxu0 %v1661
      %1804 = vmatmul.f32.gmra.mxu0 %v1786
      %v1805 = vpop.f32.mrf.mxu0
      %v1806 = vadd.f32 0.0, %v1805
      %1807 = vdwg.mxu0
      %1809 = vrot.lane.b32.xlu0 %v1806, 40
      %v1810 = vpop.permute.xlu0 %1809
      %vm1812 = vcmask 404800
      %1813 = vst.msk [vmem:[#allocation4] sm:$0xf] %vm1812, %v1810
      %1814 = vrot.lane.b32.xlu0 %v1689, 116
      %v1815 = vpop.permute.xlu0 %1814
      %v1816 = vsel %vm508, %v1815, 0
      %1818 = vmatpush.msra.mxu0 0.0
      %1819 = vmatpush.msra.mxu0 0.0
      %1820 = vmatpush.msra.mxu0 0.0
      %1821 = vmatpush.msra.mxu0 0.0
      %1822 = vmatpush.msra.mxu0 0.0
      %1823 = vmatpush.msra.mxu0 0.0
      %1824 = vmatpush.msra.mxu0 0.0
      %1825 = vmatpush.msra.mxu0 0.0
      %1826 = vmatpush.msra.mxu0 0.0
      %1827 = vmatpush.msra.mxu0 0.0
      %1828 = vmatpush.msra.mxu0 0.0
      %1829 = vmatpush.msra.mxu0 0.0
      %1830 = vmatpush.msra.mxu0 0.0
      %1831 = vmatpush.msra.mxu0 0.0
      %1832 = vmatpush.msra.mxu0 0.0
      %1833 = vmatpush.msra.mxu0 %v1661
      %1834 = vmatmul.f32.gmra.mxu0 %v1816
      %v1835 = vpop.f32.mrf.mxu0
      %v1836 = vadd.f32 0.0, %v1835
      %1837 = vdwg.mxu0
      %1839 = vrot.lane.b32.xlu0 %v1836, 50
      %v1840 = vpop.permute.xlu0 %1839
      %vm1842 = vcmask 486800
      %1843 = vst.msk [vmem:[#allocation4] sm:$0xf] %vm1842, %v1840
      %1844 = vrot.lane.b32.xlu0 %v1722, 110
      %v1845 = vpop.permute.xlu0 %1844
      %v1846 = vsel %vm508, %v1845, 0
      %1848 = vmatpush.msra.mxu0 0.0
      %1849 = vmatpush.msra.mxu0 0.0
      %1850 = vmatpush.msra.mxu0 0.0
      %1851 = vmatpush.msra.mxu0 0.0
      %1852 = vmatpush.msra.mxu0 0.0
      %1853 = vmatpush.msra.mxu0 0.0
      %1854 = vmatpush.msra.mxu0 0.0
      %1855 = vmatpush.msra.mxu0 0.0
      %1856 = vmatpush.msra.mxu0 0.0
      %1857 = vmatpush.msra.mxu0 0.0
      %1858 = vmatpush.msra.mxu0 0.0
      %1859 = vmatpush.msra.mxu0 0.0
      %1860 = vmatpush.msra.mxu0 0.0
      %1861 = vmatpush.msra.mxu0 0.0
      %1862 = vmatpush.msra.mxu0 0.0
      %1863 = vmatpush.msra.mxu0 %v1661
      %1864 = vmatmul.f32.gmra.mxu0 %v1846
      %v1865 = vpop.f32.mrf.mxu0
      %v1866 = vadd.f32 0.0, %v1865
      %1867 = vdwg.mxu0
      %1869 = vrot.lane.b32.xlu0 %v1866, 60
      %v1870 = vpop.permute.xlu0 %1869
      %vm1872 = vcmask 568800
      %1873 = vst.msk [vmem:[#allocation4] sm:$0xf] %vm1872, %v1870
      %1874 = vrot.lane.b32.xlu0 %v1655, 110
      %v1875 = vpop.permute.xlu0 %1874
      %v1876 = vsel %vm508, %v1875, 0
      %1878 = vmatpush.msra.mxu0 0.0
      %1879 = vmatpush.msra.mxu0 0.0
      %1880 = vmatpush.msra.mxu0 0.0
      %1881 = vmatpush.msra.mxu0 0.0
      %1882 = vmatpush.msra.mxu0 0.0
      %1883 = vmatpush.msra.mxu0 0.0
      %1884 = vmatpush.msra.mxu0 0.0
      %1885 = vmatpush.msra.mxu0 0.0
      %1886 = vmatpush.msra.mxu0 0.0
      %1887 = vmatpush.msra.mxu0 0.0
      %1888 = vmatpush.msra.mxu0 0.0
      %1889 = vmatpush.msra.mxu0 0.0
      %1890 = vmatpush.msra.mxu0 0.0
      %1891 = vmatpush.msra.mxu0 0.0
      %1892 = vmatpush.msra.mxu0 0.0
      %1893 = vmatpush.msra.mxu0 %v1661
      %1894 = vmatmul.f32.gmra.mxu0 %v1876
      %v1895 = vpop.f32.mrf.mxu0
      %v1896 = vadd.f32 0.0, %v1895
      %1897 = vdwg.mxu0
      %1899 = vrot.lane.b32.xlu0 %v1896, 70
      %v1900 = vpop.permute.xlu0 %1899
      %vm1902 = vcmask 650800
      %1903 = vst.msk [vmem:[#allocation4] sm:$0xf] %vm1902, %v1900
      %v1904 = vld [vmem:[#allocation4] sm:$0xf]
      %v1905 = vadd.f32 %v1648, %v1904
      %v1906 = vmul.f32 %v1905, %v1305
      %vm1907 = vcmask 649216
      %1908 = vst.msk [vmem:[%s471] sm:$0x7] %vm1907, %v1906
      %v1909 = vxor.u32 %v1905, 2147483648
      %v1910 = vmul.f32 %v1909, 1.442695
      %v1911 = vpow.pop %v1910
      %v1912 = vadd.f32 %v1911, 1.0
      %v1913 = vrcp.pop %v1912
      %v1914 = vmul.f32 %v1912, %v1913
      %v1915 = vsub.f32 1.0, %v1914
      %v1916 = vmul.f32 %v1913, %v1915
      %v1917 = vadd.f32 %v1913, %v1916
      %vm1918 = vweird.f32 %v1912
      %vm1919 = vweird.f32 %v1913
      %vm1920 = vmor %vm1918, %vm1919
      %v1921 = vsel %vm1920, %v1913, %v1917
      %v1922 = vand.u32 2147483647, %v1912
      %vm1923 = vcmp.eq.f32.partialorder %v1922, 8.507059e+37
      %v1924 = vand.u32 %v1912, 2147483648
      %v1925 = vor.u32 1.1754944e-38, %v1924
      %v1926 = vsel %vm1923, %v1925, %v1921
      %v1927 = vmul.f32 1.0, %v1926
      %v1928 = vmul.f32 %v1927, %v1305
      %vm1929 = vcmask 650243
      %1930 = vst.msk [vmem:[%s471] sm:$0x8] %vm1929, %v1928
      %p1931 = scmp.lt.s32.totalorder %s23, 1
      %s1932 = scalar_select %p1931, %s23, 1
      %s1933 = smul.addr %s1932, 2
      %s1934 = smul.addr %s1933, 4
      %s1935 = scalar_lea.vmem %s10, %s1934
      %p1936 = scmp.lt.s32.totalorder %s23, 1
      %s1937 = scalar_select %p1936, %s23, 1
      %s1938 = smul.addr %s1937, 4
      %s1939 = scalar_lea.vmem %s11, %s1938
      // Predicated region
      $region61: #{_lambda_.6} parent=59 // pred_check
        %p1940 = pneg %p276
      $region62: #{_lambda_.6} parent=59 // pred_check_branch
        %1942 = sbr.rel (%p1940) target = $region64
      $region63: #{_lambda_.6} parent=59 // pred_region
        _
      $region64: #{_lambda_.6} parent=59 // pred_fallthru
        _
      // Predicated region
      $region65: #{_lambda_.6} parent=59 // pred_check
        %p1943 = pneg %p302
      $region66: #{_lambda_.6} parent=59 // pred_check_branch
        %1945 = sbr.rel (%p1943) target = $region68
      $region67: #{_lambda_.6} parent=59 // pred_region
        _
      $region68: #{_lambda_.6} parent=59 // pred_fallthru
        _
    $region60: #{_lambda_.6} parent=5 // pred_fallthru
      _
    %p1946 = scmp.le.s32.totalorder 2, %s18
    // Predicated region
    $region69: #{_lambda_.6} parent=5 // pred_check
      %p1947 = pneg %p1946
    $region70: #{_lambda_.6} parent=5 // pred_check_branch
      %1949 = sbr.rel (%p1947) target = $region72
    $region71: #{_lambda_.6} parent=5 // pred_region
      %s1950 = ssub.s32 %s18, 2
      // Predicated region
      $region73: #{_lambda_.6} parent=71 // pred_check
        %p1951 = pneg %p282
      $region74: #{_lambda_.6} parent=71 // pred_check_branch
        %1953 = sbr.rel (%p1951) target = $region76
      $region75: #{_lambda_.6} parent=71 // pred_region
        %p1954 = scmp.lt.s32.totalorder %s24, 1
        %s1955 = scalar_select %p1954, %s24, 1
        %s1956 = smul.addr %s1955, 2
        %s1957 = smul.addr %s1956, 4
        %s1958 = scalar_lea.vmem %s10, %s1957
      $region76: #{_lambda_.6} parent=71 // pred_fallthru
        _
      // Predicated region
      $region77: #{_lambda_.6} parent=71 // pred_check
        %p1959 = pneg %p308
      $region78: #{_lambda_.6} parent=71 // pred_check_branch
        %1961 = sbr.rel (%p1959) target = $region80
      $region79: #{_lambda_.6} parent=71 // pred_region
        %p1962 = scmp.lt.s32.totalorder %s24, 1
        %s1963 = scalar_select %p1962, %s24, 1
        %s1964 = smul.addr %s1963, 4
        %s1965 = scalar_lea.vmem %s11, %s1964
      $region80: #{_lambda_.6} parent=71 // pred_fallthru
        _
    $region72: #{_lambda_.6} parent=5 // pred_fallthru
      _
  $region6: #{_lambda_.6} parent=0 // loop_footer
    %s22 = sadd.s32 1, %s18
  $region7: #{_lambda_.6} parent=0 // loop_footer_branch
    %17 = sbr.rel target = $region3
  $region8: #{_lambda_.6} parent=0 // loop_exit
    _

// kernel: _lambda_.7
$region0: #{_lambda_.7}
  #allocation0 [shape = 'u32[]', space=smem, size = 0x4, offset = 0x4, fixed_abs, tag = 'smem constant byte address 0x4 - core index']
  #allocation1 [shape = 'u32[72,128]{1,0:T(1,128)}', space=vmem, size = 0x9000, scoped, tag = 'internal scratch']
  #allocation2 [shape = 'bf16[16,326]{1,0:T(8,128)(2,1)}', space=vmem, size = 0x3000, scoped, tag = 'scratch operand']
  #allocation3 [shape = 'bf16[8,326]{1,0:T(8,128)(2,1)}', space=vmem, size = 0x1800, scoped, tag = 'scratch operand']
  #allocation4 [shape = 'f32[4,288]{1,0:T(4,128)}', space=vmem, size = 0x1800, scoped, tag = 'scratch operand']
  %s0 = inlined_call_operand.vmem [shape: bf16[2,16,80], index: 0, kind: input, shape index: {}]
  %s1 = inlined_call_operand.vmem [shape: bf16[2,9,8,16], index: 1, kind: input, shape index: {}]
  %s2 = inlined_call_operand.vmem [shape: f32[8,1], index: 2, kind: input, shape index: {}, may-alias: {2,4}]
  %s3 = inlined_call_operand.vmem [shape: bf16[2,9,8,8], index: 3, kind: input, shape index: {}]
  %s4 = inlined_call_operand.vmem [shape: f32[8,1], index: 4, kind: input, shape index: {}, may-alias: {2,4}]
  %s5 = inlined_call_operand.vmem [shape: bf16[2,4,8], index: 5, kind: input, shape index: {}]
  %s6 = inlined_call_operand.vmem [shape: f32[4,1], index: 6, kind: input, shape index: {}]
  %s7 = inlined_call_operand.vmem [shape: f32[1,288], index: 7, kind: input, shape index: {}]
  %s8 = inlined_call_operand.vmem [shape: f32[10,18], index: 8, kind: input, shape index: {}]
  %s9 = inlined_call_operand.vmem [shape: f32[2,4,80], index: 9, kind: input, shape index: {}]
  %s10 = inlined_call_operand.hbm [shape: bf16[2,8,288], index: 10, kind: output, shape index: {0}]
  %s11 = inlined_call_operand.vmem [shape: f32[2,4,288], index: 11, kind: output, shape index: {1}]
  %12 = xla_tuple %s10, %s11
  %s13 = sld [smem:[#allocation0]]
  $region81: #{_lambda_.7} parent=0
    _
  %s15 = ssub.s32 1, %s13
  %s16 = scalar_select 0, %s15, %s13
  $region1: #{_lambda_.7} parent=0
    #allocation5 [shape = 'u8[12288]{0}', space=vmem, size = 0x3000, scoped, tag = 'output window, operand 0']
    #allocation6 [shape = 's32[2]{0}', space=sflag, size = 0x8, scoped, tag = 'scoped memory for _lambda_.7']
    %17 = vsyncpa [#allocation6], 0
    %s18 = scalar_lea.sflag [#allocation6], 1
    %19 = vsyncpa %s18, 0
    loop: start=0, step=1, limit=4
    $region2: #{_lambda_.7} parent=1 // loop_pre_header
      _
    $region3: #{_lambda_.7} parent=1 // loop_header
      %s21 = sphi 0, %s25
      %p22 = scmp.ge.s32.totalorder %s21, 4
      %s31 = sphi 0, %s33
      %s34 = sphi 0, %s31
      %s35 = sphi 0, %s34
      %s51 = sphi 0, %s35
      %s57 = sphi 0, %s59
      %s60 = sphi 0, %s57
      %s61 = sphi 0, %s60
      %s77 = sphi 0, %s61
      %s81 = sphi 0, %s81
      %s83 = sphi 0, %s81
      %s84 = sphi 0, %s83
      %s98 = sphi 0, %s84
      %s104 = sphi 0, %s106
      %s107 = sphi 0, %s104
      %s108 = sphi 0, %s107
      %s124 = sphi 0, %s108
      %s128 = sphi 0, %s128
      %s130 = sphi 0, %s128
      %s131 = sphi 0, %s130
      %s145 = sphi 0, %s131
      %s151 = sphi 0, %s153
      %s154 = sphi 0, %s151
      %s155 = sphi 0, %s154
      %s171 = sphi 0, %s155
      %s175 = sphi 0, %s175
      %s177 = sphi 0, %s175
      %s178 = sphi 0, %s177
      %s192 = sphi 0, %s178
      %s196 = sphi 0, %s196
      %s198 = sphi 0, %s196
      %s199 = sphi 0, %s198
      %s213 = sphi 0, %s199
      %s217 = sphi 0, %s217
      %s219 = sphi 0, %s217
      %s220 = sphi 0, %s219
      %s234 = sphi 0, %s220
      %s240 = sphi 0, %s242
      %s243 = sphi 0, %s240
      %s244 = sphi 0, %s243
      %s260 = sphi 0, %s244
      %s266 = sphi 0, %s268
      %s269 = sphi 0, %s266
      %s270 = sphi 0, %s269
      %s286 = sphi 0, %s270
      %s292 = sphi 0, %s294
      %s295 = sphi 0, %s292
      %s296 = sphi 0, %s295
      %s312 = sphi 0, %s296
    $region4: #{_lambda_.7} parent=1 // loop_header_branch
      %24 = sbr.rel (%p22) target = $region8
    $region5: #{_lambda_.7} parent=1 // loop_body
      %s26 = ssub.s32 %s21, 1
      %s27 = ssub.s32 %s21, 2
      %s28 = sadd.s32 %s21, 1
      %s29 = ssub.s32 %s21, %s28
      %p30 = scmp.eq.s32.totalorder %s29, 0
      %s32 = sadd.s32 %s31, 1
      %s33 = scalar_select %p30, %s31, %s32
      %p36 = pneg %p30
      %p37 = scmp.eq.s32.totalorder %s21, 1
      %p38 = por %p36, %p37
      %p39 = scmp.ne.s32.totalorder %s31, %s34
      %p40 = scmp.eq.s32.totalorder %s21, 0
      %p41 = por %p39, %p40
      %p42 = scmp.ne.s32.totalorder %s31, %s34
      %p43 = scmp.eq.s32.totalorder %s26, 1
      %p44 = por %p42, %p43
      %p45 = scmp.ne.s32.totalorder %s34, %s35
      %p46 = scmp.eq.s32.totalorder %s26, 0
      %p47 = por %p45, %p46
      %p48 = scmp.ne.s32.totalorder %s34, %s35
      %p49 = scmp.eq.s32.totalorder %s27, 1
      %p50 = por %p48, %p49
      %p52 = scmp.ne.s32.totalorder %s35, %s51
      %p53 = scmp.eq.s32.totalorder %s27, 0
      %p54 = por %p52, %p53
      %s55 = ssub.s32 %s21, %s28
      %p56 = scmp.eq.s32.totalorder %s55, 0
      %s58 = sadd.s32 %s57, 1
      %s59 = scalar_select %p56, %s57, %s58
      %p62 = pneg %p56
      %p63 = scmp.eq.s32.totalorder %s21, 1
      %p64 = por %p62, %p63
      %p65 = scmp.ne.s32.totalorder %s57, %s60
      %p66 = scmp.eq.s32.totalorder %s21, 0
      %p67 = por %p65, %p66
      %p68 = scmp.ne.s32.totalorder %s57, %s60
      %p69 = scmp.eq.s32.totalorder %s26, 1
      %p70 = por %p68, %p69
      %p71 = scmp.ne.s32.totalorder %s60, %s61
      %p72 = scmp.eq.s32.totalorder %s26, 0
      %p73 = por %p71, %p72
      %p74 = scmp.ne.s32.totalorder %s60, %s61
      %p75 = scmp.eq.s32.totalorder %s27, 1
      %p76 = por %p74, %p75
      %p78 = scmp.ne.s32.totalorder %s61, %s77
      %p79 = scmp.eq.s32.totalorder %s27, 0
      %p80 = por %p78, %p79
      %s82 = sadd.s32 %s81, 1
      %p85 = scmp.eq.s32.totalorder %s21, 1
      %p86 = scmp.ne.s32.totalorder %s81, %s83
      %p87 = scmp.eq.s32.totalorder %s21, 0
      %p88 = por %p86, %p87
      %p89 = scmp.ne.s32.totalorder %s81, %s83
      %p90 = scmp.eq.s32.totalorder %s26, 1
      %p91 = por %p89, %p90
      %p92 = scmp.ne.s32.totalorder %s83, %s84
      %p93 = scmp.eq.s32.totalorder %s26, 0
      %p94 = por %p92, %p93
      %p95 = scmp.ne.s32.totalorder %s83, %s84
      %p96 = scmp.eq.s32.totalorder %s27, 1
      %p97 = por %p95, %p96
      %p99 = scmp.ne.s32.totalorder %s84, %s98
      %p100 = scmp.eq.s32.totalorder %s27, 0
      %p101 = por %p99, %p100
      %s102 = ssub.s32 %s21, %s28
      %p103 = scmp.eq.s32.totalorder %s102, 0
      %s105 = sadd.s32 %s104, 1
      %s106 = scalar_select %p103, %s104, %s105
      %p109 = pneg %p103
      %p110 = scmp.eq.s32.totalorder %s21, 1
      %p111 = por %p109, %p110
      %p112 = scmp.ne.s32.totalorder %s104, %s107
      %p113 = scmp.eq.s32.totalorder %s21, 0
      %p114 = por %p112, %p113
      %p115 = scmp.ne.s32.totalorder %s104, %s107
      %p116 = scmp.eq.s32.totalorder %s26, 1
      %p117 = por %p115, %p116
      %p118 = scmp.ne.s32.totalorder %s107, %s108
      %p119 = scmp.eq.s32.totalorder %s26, 0
      %p120 = por %p118, %p119
      %p121 = scmp.ne.s32.totalorder %s107, %s108
      %p122 = scmp.eq.s32.totalorder %s27, 1
      %p123 = por %p121, %p122
      %p125 = scmp.ne.s32.totalorder %s108, %s124
      %p126 = scmp.eq.s32.totalorder %s27, 0
      %p127 = por %p125, %p126
      %s129 = sadd.s32 %s128, 1
      %p132 = scmp.eq.s32.totalorder %s21, 1
      %p133 = scmp.ne.s32.totalorder %s128, %s130
      %p134 = scmp.eq.s32.totalorder %s21, 0
      %p135 = por %p133, %p134
      %p136 = scmp.ne.s32.totalorder %s128, %s130
      %p137 = scmp.eq.s32.totalorder %s26, 1
      %p138 = por %p136, %p137
      %p139 = scmp.ne.s32.totalorder %s130, %s131
      %p140 = scmp.eq.s32.totalorder %s26, 0
      %p141 = por %p139, %p140
      %p142 = scmp.ne.s32.totalorder %s130, %s131
      %p143 = scmp.eq.s32.totalorder %s27, 1
      %p144 = por %p142, %p143
      %p146 = scmp.ne.s32.totalorder %s131, %s145
      %p147 = scmp.eq.s32.totalorder %s27, 0
      %p148 = por %p146, %p147
      %s149 = ssub.s32 %s21, %s28
      %p150 = scmp.eq.s32.totalorder %s149, 0
      %s152 = sadd.s32 %s151, 1
      %s153 = scalar_select %p150, %s151, %s152
      %p156 = pneg %p150
      %p157 = scmp.eq.s32.totalorder %s21, 1
      %p158 = por %p156, %p157
      %p159 = scmp.ne.s32.totalorder %s151, %s154
      %p160 = scmp.eq.s32.totalorder %s21, 0
      %p161 = por %p159, %p160
      %p162 = scmp.ne.s32.totalorder %s151, %s154
      %p163 = scmp.eq.s32.totalorder %s26, 1
      %p164 = por %p162, %p163
      %p165 = scmp.ne.s32.totalorder %s154, %s155
      %p166 = scmp.eq.s32.totalorder %s26, 0
      %p167 = por %p165, %p166
      %p168 = scmp.ne.s32.totalorder %s154, %s155
      %p169 = scmp.eq.s32.totalorder %s27, 1
      %p170 = por %p168, %p169
      %p172 = scmp.ne.s32.totalorder %s155, %s171
      %p173 = scmp.eq.s32.totalorder %s27, 0
      %p174 = por %p172, %p173
      %s176 = sadd.s32 %s175, 1
      %p179 = scmp.eq.s32.totalorder %s21, 1
      %p180 = scmp.ne.s32.totalorder %s175, %s177
      %p181 = scmp.eq.s32.totalorder %s21, 0
      %p182 = por %p180, %p181
      %p183 = scmp.ne.s32.totalorder %s175, %s177
      %p184 = scmp.eq.s32.totalorder %s26, 1
      %p185 = por %p183, %p184
      %p186 = scmp.ne.s32.totalorder %s177, %s178
      %p187 = scmp.eq.s32.totalorder %s26, 0
      %p188 = por %p186, %p187
      %p189 = scmp.ne.s32.totalorder %s177, %s178
      %p190 = scmp.eq.s32.totalorder %s27, 1
      %p191 = por %p189, %p190
      %p193 = scmp.ne.s32.totalorder %s178, %s192
      %p194 = scmp.eq.s32.totalorder %s27, 0
      %p195 = por %p193, %p194
      %s197 = sadd.s32 %s196, 1
      %p200 = scmp.eq.s32.totalorder %s21, 1
      %p201 = scmp.ne.s32.totalorder %s196, %s198
      %p202 = scmp.eq.s32.totalorder %s21, 0
      %p203 = por %p201, %p202
      %p204 = scmp.ne.s32.totalorder %s196, %s198
      %p205 = scmp.eq.s32.totalorder %s26, 1
      %p206 = por %p204, %p205
      %p207 = scmp.ne.s32.totalorder %s198, %s199
      %p208 = scmp.eq.s32.totalorder %s26, 0
      %p209 = por %p207, %p208
      %p210 = scmp.ne.s32.totalorder %s198, %s199
      %p211 = scmp.eq.s32.totalorder %s27, 1
      %p212 = por %p210, %p211
      %p214 = scmp.ne.s32.totalorder %s199, %s213
      %p215 = scmp.eq.s32.totalorder %s27, 0
      %p216 = por %p214, %p215
      %s218 = sadd.s32 %s217, 1
      %p221 = scmp.eq.s32.totalorder %s21, 1
      %p222 = scmp.ne.s32.totalorder %s217, %s219
      %p223 = scmp.eq.s32.totalorder %s21, 0
      %p224 = por %p222, %p223
      %p225 = scmp.ne.s32.totalorder %s217, %s219
      %p226 = scmp.eq.s32.totalorder %s26, 1
      %p227 = por %p225, %p226
      %p228 = scmp.ne.s32.totalorder %s219, %s220
      %p229 = scmp.eq.s32.totalorder %s26, 0
      %p230 = por %p228, %p229
      %p231 = scmp.ne.s32.totalorder %s219, %s220
      %p232 = scmp.eq.s32.totalorder %s27, 1
      %p233 = por %p231, %p232
      %p235 = scmp.ne.s32.totalorder %s220, %s234
      %p236 = scmp.eq.s32.totalorder %s27, 0
      %p237 = por %p235, %p236
      %s238 = ssub.s32 %s21, %s28
      %p239 = scmp.eq.s32.totalorder %s238, 0
      %s241 = sadd.s32 %s240, 1
      %s242 = scalar_select %p239, %s240, %s241
      %p245 = pneg %p239
      %p246 = scmp.eq.s32.totalorder %s21, 1
      %p247 = por %p245, %p246
      %p248 = scmp.ne.s32.totalorder %s240, %s243
      %p249 = scmp.eq.s32.totalorder %s21, 0
      %p250 = por %p248, %p249
      %p251 = scmp.ne.s32.totalorder %s240, %s243
      %p252 = scmp.eq.s32.totalorder %s26, 1
      %p253 = por %p251, %p252
      %p254 = scmp.ne.s32.totalorder %s243, %s244
      %p255 = scmp.eq.s32.totalorder %s26, 0
      %p256 = por %p254, %p255
      %p257 = scmp.ne.s32.totalorder %s243, %s244
      %p258 = scmp.eq.s32.totalorder %s27, 1
      %p259 = por %p257, %p258
      %p261 = scmp.ne.s32.totalorder %s244, %s260
      %p262 = scmp.eq.s32.totalorder %s27, 0
      %p263 = por %p261, %p262
      %s264 = ssub.s32 %s21, %s28
      %p265 = scmp.eq.s32.totalorder %s264, 0
      %s267 = sadd.s32 %s266, 1
      %s268 = scalar_select %p265, %s266, %s267
      %p271 = pneg %p265
      %p272 = scmp.eq.s32.totalorder %s21, 1
      %p273 = por %p271, %p272
      %p274 = scmp.ne.s32.totalorder %s266, %s269
      %p275 = scmp.eq.s32.totalorder %s21, 0
      %p276 = por %p274, %p275
      %p277 = scmp.ne.s32.totalorder %s266, %s269
      %p278 = scmp.eq.s32.totalorder %s26, 1
      %p279 = por %p277, %p278
      %p280 = scmp.ne.s32.totalorder %s269, %s270
      %p281 = scmp.eq.s32.totalorder %s26, 0
      %p282 = por %p280, %p281
      %p283 = scmp.ne.s32.totalorder %s269, %s270
      %p284 = scmp.eq.s32.totalorder %s27, 1
      %p285 = por %p283, %p284
      %p287 = scmp.ne.s32.totalorder %s270, %s286
      %p288 = scmp.eq.s32.totalorder %s27, 0
      %p289 = por %p287, %p288
      %s290 = ssub.s32 %s21, %s28
      %p291 = scmp.eq.s32.totalorder %s290, 0
      %s293 = sadd.s32 %s292, 1
      %s294 = scalar_select %p291, %s292, %s293
      %p297 = pneg %p291
      %p298 = scmp.eq.s32.totalorder %s21, 1
      %p299 = por %p297, %p298
      %p300 = scmp.ne.s32.totalorder %s292, %s295
      %p301 = scmp.eq.s32.totalorder %s21, 0
      %p302 = por %p300, %p301
      %p303 = scmp.ne.s32.totalorder %s292, %s295
      %p304 = scmp.eq.s32.totalorder %s26, 1
      %p305 = por %p303, %p304
      %p306 = scmp.ne.s32.totalorder %s295, %s296
      %p307 = scmp.eq.s32.totalorder %s26, 0
      %p308 = por %p306, %p307
      %p309 = scmp.ne.s32.totalorder %s295, %s296
      %p310 = scmp.eq.s32.totalorder %s27, 1
      %p311 = por %p309, %p310
      %p313 = scmp.ne.s32.totalorder %s296, %s312
      %p314 = scmp.eq.s32.totalorder %s27, 0
      %p315 = por %p313, %p314
      %p316 = scmp.le.s32.totalorder 1, %s21
      %p317 = scmp.lt.s32.totalorder %s21, 3
      %p318 = pnand %p316, %p317
      %p319 = pneg %p318
      // Predicated region
      $region9: #{_lambda_.7} parent=5 // pred_check
        _
      $region10: #{_lambda_.7} parent=5 // pred_check_branch
        %321 = sbr.rel (%p318) target = $region12
      $region11: #{_lambda_.7} parent=5 // pred_region
        %s322 = ssub.s32 %s21, 1
        // Predicated region
        $region13: #{_lambda_.7} parent=11 // pred_check
          %p323 = pneg %p94
        $region14: #{_lambda_.7} parent=11 // pred_check_branch
          %325 = sbr.rel (%p323) target = $region16
        $region15: #{_lambda_.7} parent=11 // pred_region
          _
        $region16: #{_lambda_.7} parent=11 // pred_fallthru
          _
        // Predicated region
        $region17: #{_lambda_.7} parent=11 // pred_check
          %p326 = pneg %p141
        $region18: #{_lambda_.7} parent=11 // pred_check_branch
          %328 = sbr.rel (%p326) target = $region20
        $region19: #{_lambda_.7} parent=11 // pred_region
          _
        $region20: #{_lambda_.7} parent=11 // pred_fallthru
          _
        // Predicated region
        $region21: #{_lambda_.7} parent=11 // pred_check
          %p329 = pneg %p188
        $region22: #{_lambda_.7} parent=11 // pred_check_branch
          %331 = sbr.rel (%p329) target = $region24
        $region23: #{_lambda_.7} parent=11 // pred_region
          _
        $region24: #{_lambda_.7} parent=11 // pred_fallthru
          _
        // Predicated region
        $region25: #{_lambda_.7} parent=11 // pred_check
          %p332 = pneg %p209
        $region26: #{_lambda_.7} parent=11 // pred_check_branch
          %334 = sbr.rel (%p332) target = $region28
        $region27: #{_lambda_.7} parent=11 // pred_region
          _
        $region28: #{_lambda_.7} parent=11 // pred_fallthru
          _
        // Predicated region
        $region29: #{_lambda_.7} parent=11 // pred_check
          %p335 = pneg %p230
        $region30: #{_lambda_.7} parent=11 // pred_check_branch
          %337 = sbr.rel (%p335) target = $region32
        $region31: #{_lambda_.7} parent=11 // pred_region
          _
        $region32: #{_lambda_.7} parent=11 // pred_fallthru
          _
      $region12: #{_lambda_.7} parent=5 // pred_fallthru
        _
      %p338 = scmp.lt.s32.totalorder %s21, 2
      // Predicated region
      $region33: #{_lambda_.7} parent=5 // pred_check
        %p339 = pneg %p338
      $region34: #{_lambda_.7} parent=5 // pred_check_branch
        %341 = sbr.rel (%p339) target = $region36
      $region35: #{_lambda_.7} parent=5 // pred_region
        // Predicated region
        $region37: #{_lambda_.7} parent=35 // pred_check
          %p342 = pneg %p41
        $region38: #{_lambda_.7} parent=35 // pred_check_branch
          %344 = sbr.rel (%p342) target = $region40
        $region39: #{_lambda_.7} parent=35 // pred_region
          %p345 = scmp.lt.s32.totalorder %s21, 1
          %s346 = scalar_select %p345, %s21, 1
          %s347 = smul.addr %s346, 2
          %s348 = smul.addr %s347, 4
          %s349 = scalar_lea.vmem %s0, %s348
        $region40: #{_lambda_.7} parent=35 // pred_fallthru
          _
        // Predicated region
        $region41: #{_lambda_.7} parent=35 // pred_check
          %p350 = pneg %p67
        $region42: #{_lambda_.7} parent=35 // pred_check_branch
          %352 = sbr.rel (%p350) target = $region44
        $region43: #{_lambda_.7} parent=35 // pred_region
          %p353 = scmp.lt.s32.totalorder %s21, 1
          %s354 = scalar_select %p353, %s21, 1
          %s355 = smul.addr %s354, 9
          %s356 = smul.addr %s355, 4
          %s357 = scalar_lea.vmem %s1, %s356
        $region44: #{_lambda_.7} parent=35 // pred_fallthru
          _
        // Predicated region
        $region45: #{_lambda_.7} parent=35 // pred_check
          %p358 = pneg %p114
        $region46: #{_lambda_.7} parent=35 // pred_check_branch
          %360 = sbr.rel (%p358) target = $region48
        $region47: #{_lambda_.7} parent=35 // pred_region
          %p361 = scmp.lt.s32.totalorder %s21, 1
          %s362 = scalar_select %p361, %s21, 1
          %s363 = smul.addr %s362, 9
          %s364 = smul.addr %s363, 4
          %s365 = scalar_lea.vmem %s3, %s364
        $region48: #{_lambda_.7} parent=35 // pred_fallthru
          _
        // Predicated region
        $region49: #{_lambda_.7} parent=35 // pred_check
          %p366 = pneg %p161
        $region50: #{_lambda_.7} parent=35 // pred_check_branch
          %368 = sbr.rel (%p366) target = $region52
        $region51: #{_lambda_.7} parent=35 // pred_region
          %p369 = scmp.lt.s32.totalorder %s21, 1
          %s370 = scalar_select %p369, %s21, 1
          %s371 = smul.addr %s370, 2
          %s372 = scalar_lea.vmem %s5, %s371
        $region52: #{_lambda_.7} parent=35 // pred_fallthru
          _
        // Predicated region
        $region53: #{_lambda_.7} parent=35 // pred_check
          %p373 = pneg %p250
        $region54: #{_lambda_.7} parent=35 // pred_check_branch
          %375 = sbr.rel (%p373) target = $region56
        $region55: #{_lambda_.7} parent=35 // pred_region
          %p376 = scmp.lt.s32.totalorder %s21, 1
          %s377 = scalar_select %p376, %s21, 1
          %s378 = smul.addr %s377, 4
          %s379 = scalar_lea.vmem %s9, %s378
        $region56: #{_lambda_.7} parent=35 // pred_fallthru
          _
      $region36: #{_lambda_.7} parent=5 // pred_fallthru
        _
      %p380 = scmp.le.s32.totalorder 1, %s21
      %p381 = scmp.lt.s32.totalorder %s21, 3
      %p382 = pnand %p380, %p381
      %p383 = pneg %p382
      // Predicated region
      $region57: #{_lambda_.7} parent=5 // pred_check
        _
      $region58: #{_lambda_.7} parent=5 // pred_check_branch
        %385 = sbr.rel (%p382) target = $region60
      $region59: #{_lambda_.7} parent=5 // pred_region
        %s386 = ssub.s32 %s21, 1
        %p387 = scmp.lt.s32.totalorder %s26, 1
        %s388 = scalar_select %p387, %s26, 1
        %s389 = smul.addr %s388, 2
        %s390 = smul.addr %s389, 4
        %s391 = scalar_lea.vmem %s0, %s390
        %p392 = pneg %p47
        %p393 = pneg %p44
        %p394 = scmp.lt.s32.totalorder %s26, 1
        %s395 = scalar_select %p394, %s26, 1
        %s396 = smul.addr %s395, 9
        %s397 = smul.addr %s396, 4
        %s398 = scalar_lea.vmem %s1, %s397
        %p399 = pneg %p73
        %p400 = pneg %p70
        %p401 = pneg %p94
        %p402 = pneg %p91
        %p403 = scmp.lt.s32.totalorder %s26, 1
        %s404 = scalar_select %p403, %s26, 1
        %s405 = smul.addr %s404, 9
        %s406 = smul.addr %s405, 4
        %s407 = scalar_lea.vmem %s3, %s406
        %p408 = pneg %p120
        %p409 = pneg %p117
        %p410 = pneg %p141
        %p411 = pneg %p138
        %p412 = scmp.lt.s32.totalorder %s26, 1
        %s413 = scalar_select %p412, %s26, 1
        %s414 = smul.addr %s413, 2
        %s415 = scalar_lea.vmem %s5, %s414
        %p416 = pneg %p167
        %p417 = pneg %p164
        %p418 = pneg %p188
        %p419 = pneg %p185
        %p420 = pneg %p209
        %p421 = pneg %p206
        %p422 = pneg %p230
        %p423 = pneg %p227
        %p424 = scmp.lt.s32.totalorder %s26, 1
        %s425 = scalar_select %p424, %s26, 1
        %s426 = smul.addr %s425, 4
        %s427 = scalar_lea.vmem %s9, %s426
        %p428 = pneg %p256
        %p429 = pneg %p253
        %p430 = pneg %p282
        %p431 = pneg %p279
        %s432 = sand.u32 %s269, 1
        %s433 = scalar_lea.sflag [#allocation6], %s432
        %s434 = sand.u32 %s269, 1
        %s435 = smul.addr %s434, 12
        %s436 = scalar_lea.vmem [#allocation5], %s435
        %p437 = pneg %p308
        %p438 = pneg %p305
        %p439 = scmp.lt.s32.totalorder %s26, 1
        %s440 = scalar_select %p439, %s26, 1
        %s441 = smul.addr %s440, 3
        %s442 = smul.addr %s441, 4
        %s443 = scalar_lea.vmem %s11, %s442
        %p444 = scmp.lt.s32.totalorder %s26, 1
        %s445 = scalar_select %p444, %s26, 1
        %s446 = smul.addr %s445, 2
        %s447 = smul.addr %s446, 4
        %s448 = scalar_lea.vmem %s0, %s447
        %p449 = scmp.lt.s32.totalorder %s26, 1
        %s450 = scalar_select %p449, %s26, 1
        %s451 = smul.addr %s450, 9
        %s452 = smul.addr %s451, 4
        %s453 = scalar_lea.vmem %s1, %s452
        %p454 = scmp.lt.s32.totalorder %s26, 1
        %s455 = scalar_select %p454, %s26, 1
        %s456 = smul.addr %s455, 9
        %s457 = smul.addr %s456, 4
        %s458 = scalar_lea.vmem %s3, %s457
        %p459 = scmp.lt.s32.totalorder %s26, 1
        %s460 = scalar_select %p459, %s26, 1
        %s461 = smul.addr %s460, 2
        %s462 = scalar_lea.vmem %s5, %s461
        %p463 = scmp.lt.s32.totalorder %s26, 1
        %s464 = scalar_select %p463, %s26, 1
        %s465 = smul.addr %s464, 4
        %s466 = scalar_lea.vmem %s9, %s465
        %p467 = scmp.lt.s32.totalorder %s26, 1
        %s468 = scalar_select %p467, %s26, 1
        %s469 = smul.addr %s468, 3
        %s470 = smul.addr %s469, 4
        %s471 = scalar_lea.vmem %s11, %s470
        %v473 = vld [vmem:[%s7] sm:$0x7]
        %vm474 = vcmask 150528
        %475 = vst.msk [vmem:[#allocation2] sm:$0xf] %vm474, 0
        %476 = vst.msk [vmem:[#allocation2 + $0xc] sm:$0xf] %vm474, 0
        %vm477 = vcmask 568728
        %478 = vst.msk [vmem:[#allocation2 + $0x8] sm:$0xf] %vm477, 0
        %479 = vst.msk [vmem:[#allocation2 + $0x14] sm:$0xf] %vm477, 0
        %v480 = vld [vmem:[%s448] sm:$0xf]
        %v481 = vld [vmem:[%s448 + $0x4] sm:$0xf]
        %v482 = vld [vmem:[%s8] sm:$0xff]
        %v483 = vld [vmem:[%s8 + $0x8] sm:$0x3]
        %v484 = vpack.c.bf16 %v483, %v482
        %v485 = vunpack.c.l.bf16 %v480
        %v486 = vunpack.c.l.bf16 %v481
        %v487 = vmul.f32 %v485, 0.75
        %v488 = vmul.f32 %v486, 0.75
        %v489 = vmul.f32 %v485, 0.25
        %v490 = vmul.f32 %v486, 0.25
        %v491 = vadd.f32 %v487, %v489
        %v492 = vadd.f32 %v488, %v490
        %v493 = vpack.c.bf16 %v492, %v491
        %vm494 = vcmask 80896
        %v496 = vsel %vm494, %v493, 0
        %vm498 = vcmask 1044480
        %v500 = vsel %vm498, %v484, 0
        %502 = vmatpush.bf16.msra.mxu0 0
        %503 = vmatpush.bf16.msra.mxu0 0
        %504 = vmatpush.bf16.msra.mxu0 0
        %505 = vmatpush.bf16.msra.mxu0 0
        %506 = vmatpush.bf16.msra.mxu0 0
        %507 = vmatpush.bf16.msra.mxu0 0
        %508 = vmatpush.bf16.msra.mxu0 0
        %509 = vmatpush.bf16.msra.mxu0 %v500
        %510 = vmatmul.bf16.gmra.mxu0 %v496
        %v511 = vpop.f32.mrf.mxu0
        %v512 = vadd.f32 0.0, %v511
        %v513 = vpop.f32.mrf.mxu0
        %v514 = vadd.f32 0.0, %v513
        %515 = vdwg.mxu0
        %v516 = vpack.c.bf16 %v512, %v512
        %v517 = vpack.c.bf16 %v514, %v514
        %520 = vrot.lane.b32.xlu0 %v516, 19
        %v521 = vpop.permute.xlu0 %520
        %522 = vrot.lane.b32.xlu0 %v517, 19
        %v523 = vpop.permute.xlu0 %522
        %vm526 = vcmask 298136
        %527 = vst.msk [vmem:[#allocation2] sm:$0xf] %vm526, %v521
        %528 = vst.msk [vmem:[#allocation2 + $0xc] sm:$0xf] %vm526, %v523
        %531 = vrot.lane.b32.xlu0 %v489, 118
        %v532 = vpop.permute.xlu0 %531
        %533 = vrot.lane.b32.xlu0 %v490, 118
        %v534 = vpop.permute.xlu0 %533
        %v537 = vadd.f32 %v487, %v532
        %v538 = vadd.f32 %v488, %v534
        %v539 = vpack.c.bf16 %v538, %v537
        %v541 = vsel %vm494, %v539, 0
        %543 = vmatpush.bf16.msra.mxu0 0
        %544 = vmatpush.bf16.msra.mxu0 0
        %545 = vmatpush.bf16.msra.mxu0 0
        %546 = vmatpush.bf16.msra.mxu0 0
        %547 = vmatpush.bf16.msra.mxu0 0
        %548 = vmatpush.bf16.msra.mxu0 0
        %549 = vmatpush.bf16.msra.mxu0 0
        %550 = vmatpush.bf16.msra.mxu0 %v500
        %551 = vmatmul.bf16.gmra.mxu0 %v541
        %v552 = vpop.f32.mrf.mxu0
        %v553 = vadd.f32 0.0, %v552
        %v554 = vpop.f32.mrf.mxu0
        %v555 = vadd.f32 0.0, %v554
        %556 = vdwg.mxu0
        %v557 = vpack.c.bf16 %v553, %v553
        %v558 = vpack.c.bf16 %v555, %v555
        %561 = vrot.lane.b32.xlu0 %v557, 37
        %v562 = vpop.permute.xlu0 %561
        %563 = vrot.lane.b32.xlu0 %v558, 37
        %v564 = vpop.permute.xlu0 %563
        %vm567 = vcmask 445736
        %568 = vst.msk [vmem:[#allocation2] sm:$0xf] %vm567, %v562
        %569 = vst.msk [vmem:[#allocation2 + $0xc] sm:$0xf] %vm567, %v564
        %570 = vrot.lane.b32.xlu0 %v489, 10
        %v571 = vpop.permute.xlu0 %570
        %572 = vrot.lane.b32.xlu0 %v490, 10
        %v573 = vpop.permute.xlu0 %572
        %v576 = vadd.f32 %v487, %v571
        %v577 = vadd.f32 %v488, %v573
        %v578 = vpack.c.bf16 %v577, %v576
        %580 = vrot.lane.b32.xlu0 %v578, 118
        %v581 = vpop.permute.xlu0 %580
        %v583 = vsel %vm494, %v581, 0
        %585 = vmatpush.bf16.msra.mxu0 0
        %586 = vmatpush.bf16.msra.mxu0 0
        %587 = vmatpush.bf16.msra.mxu0 0
        %588 = vmatpush.bf16.msra.mxu0 0
        %589 = vmatpush.bf16.msra.mxu0 0
        %590 = vmatpush.bf16.msra.mxu0 0
        %591 = vmatpush.bf16.msra.mxu0 0
        %592 = vmatpush.bf16.msra.mxu0 %v500
        %593 = vmatmul.bf16.gmra.mxu0 %v583
        %v594 = vpop.f32.mrf.mxu0
        %v595 = vadd.f32 0.0, %v594
        %v596 = vpop.f32.mrf.mxu0
        %v597 = vadd.f32 0.0, %v596
        %598 = vdwg.mxu0
        %v599 = vpack.c.bf16 %v595, %v595
        %v600 = vpack.c.bf16 %v597, %v597
        %603 = vrot.lane.b32.xlu0 %v599, 55
        %v604 = vpop.permute.xlu0 %603
        %605 = vrot.lane.b32.xlu0 %v600, 55
        %v606 = vpop.permute.xlu0 %605
        %vm609 = vcmask 593336
        %610 = vst.msk [vmem:[#allocation2] sm:$0xf] %vm609, %v604
        %611 = vst.msk [vmem:[#allocation2 + $0xc] sm:$0xf] %vm609, %v606
        %613 = vrot.lane.b32.xlu0 %v539, 118
        %v614 = vpop.permute.xlu0 %613
        %v616 = vsel %vm494, %v614, 0
        %618 = vmatpush.bf16.msra.mxu0 0
        %619 = vmatpush.bf16.msra.mxu0 0
        %620 = vmatpush.bf16.msra.mxu0 0
        %621 = vmatpush.bf16.msra.mxu0 0
        %622 = vmatpush.bf16.msra.mxu0 0
        %623 = vmatpush.bf16.msra.mxu0 0
        %624 = vmatpush.bf16.msra.mxu0 0
        %625 = vmatpush.bf16.msra.mxu0 %v500
        %626 = vmatmul.bf16.gmra.mxu0 %v616
        %v627 = vpop.f32.mrf.mxu0
        %v628 = vadd.f32 0.0, %v627
        %v629 = vpop.f32.mrf.mxu0
        %v630 = vadd.f32 0.0, %v629
        %631 = vdwg.mxu0
        %v632 = vpack.c.bf16 %v628, %v628
        %v633 = vpack.c.bf16 %v630, %v630
        %636 = vrot.lane.b32.xlu0 %v632, 73
        %v637 = vpop.permute.xlu0 %636
        %638 = vrot.lane.b32.xlu0 %v633, 73
        %v639 = vpop.permute.xlu0 %638
        %vm642 = vcmask 740936
        %643 = vst.msk [vmem:[#allocation2] sm:$0xf] %vm642, %v637
        %644 = vst.msk [vmem:[#allocation2 + $0xc] sm:$0xf] %vm642, %v639
        %645 = vrot.lane.b32.xlu0 %v578, 108
        %v646 = vpop.permute.xlu0 %645
        %v648 = vsel %vm494, %v646, 0
        %650 = vmatpush.bf16.msra.mxu0 0
        %651 = vmatpush.bf16.msra.mxu0 0
        %652 = vmatpush.bf16.msra.mxu0 0
        %653 = vmatpush.bf16.msra.mxu0 0
        %654 = vmatpush.bf16.msra.mxu0 0
        %655 = vmatpush.bf16.msra.mxu0 0
        %656 = vmatpush.bf16.msra.mxu0 0
        %657 = vmatpush.bf16.msra.mxu0 %v500
        %658 = vmatmul.bf16.gmra.mxu0 %v648
        %v659 = vpop.f32.mrf.mxu0
        %v660 = vadd.f32 0.0, %v659
        %v661 = vpop.f32.mrf.mxu0
        %v662 = vadd.f32 0.0, %v661
        %663 = vdwg.mxu0
        %v664 = vpack.c.bf16 %v660, %v660
        %v665 = vpack.c.bf16 %v662, %v662
        %668 = vrot.lane.b32.xlu0 %v664, 91
        %v669 = vpop.permute.xlu0 %668
        %670 = vrot.lane.b32.xlu0 %v665, 91
        %v671 = vpop.permute.xlu0 %670
        %vm674 = vcmask 888536
        %675 = vst.msk [vmem:[#allocation2] sm:$0xf] %vm674, %v669
        %676 = vst.msk [vmem:[#allocation2 + $0xc] sm:$0xf] %vm674, %v671
        %677 = vrot.lane.b32.xlu0 %v539, 108
        %v678 = vpop.permute.xlu0 %677
        %v680 = vsel %vm494, %v678, 0
        %682 = vmatpush.bf16.msra.mxu0 0
        %683 = vmatpush.bf16.msra.mxu0 0
        %684 = vmatpush.bf16.msra.mxu0 0
        %685 = vmatpush.bf16.msra.mxu0 0
        %686 = vmatpush.bf16.msra.mxu0 0
        %687 = vmatpush.bf16.msra.mxu0 0
        %688 = vmatpush.bf16.msra.mxu0 0
        %689 = vmatpush.bf16.msra.mxu0 %v500
        %690 = vmatmul.bf16.gmra.mxu0 %v680
        %v691 = vpop.f32.mrf.mxu0
        %v692 = vadd.f32 0.0, %v691
        %v693 = vpop.f32.mrf.mxu0
        %v694 = vadd.f32 0.0, %v693
        %695 = vdwg.mxu0
        %v696 = vpack.c.bf16 %v692, %v692
        %v697 = vpack.c.bf16 %v694, %v694
        %700 = vrot.lane.b32.xlu0 %v696, 109
        %v701 = vpop.permute.xlu0 %700
        %702 = vrot.lane.b32.xlu0 %v697, 109
        %v703 = vpop.permute.xlu0 %702
        %vm706 = vcmask 1036136
        %707 = vst.msk [vmem:[#allocation2] sm:$0xf] %vm706, %v701
        %708 = vst.msk [vmem:[#allocation2 + $0xc] sm:$0xf] %vm706, %v703
        %709 = vrot.lane.b32.xlu0 %v578, 98
        %v710 = vpop.permute.xlu0 %709
        %v712 = vsel %vm494, %v710, 0
        %714 = vmatpush.bf16.msra.mxu0 0
        %715 = vmatpush.bf16.msra.mxu0 0
        %716 = vmatpush.bf16.msra.mxu0 0
        %717 = vmatpush.bf16.msra.mxu0 0
        %718 = vmatpush.bf16.msra.mxu0 0
        %719 = vmatpush.bf16.msra.mxu0 0
        %720 = vmatpush.bf16.msra.mxu0 0
        %721 = vmatpush.bf16.msra.mxu0 %v500
        %722 = vmatmul.bf16.gmra.mxu0 %v712
        %v723 = vpop.f32.mrf.mxu0
        %v724 = vadd.f32 0.0, %v723
        %v725 = vpop.f32.mrf.mxu0
        %v726 = vadd.f32 0.0, %v725
        %727 = vdwg.mxu0
        %v728 = vpack.c.bf16 %v724, %v724
        %v729 = vpack.c.bf16 %v726, %v726
        %732 = vrot.lane.b32.xlu0 %v728, 127
        %v733 = vpop.permute.xlu0 %732
        %734 = vrot.lane.b32.xlu0 %v729, 127
        %v735 = vpop.permute.xlu0 %734
        %v736 = vrot.slane %v733, 4
        %v737 = vrot.slane %v735, 4
        %vm738 = vcmask 1039360
        %v739 = vsel %vm738, %v736, %v733
        %v740 = vsel %vm738, %v737, %v735
        %vm743 = vcmask 1044472
        %vm744 = vcmask 138244
        %vm745 = vmor %vm744, %vm743
        %746 = vst.msk [vmem:[#allocation2] sm:$0xff] %vm745, %v739
        %747 = vst.msk [vmem:[#allocation2 + $0xc] sm:$0xff] %vm745, %v740
        %748 = vrot.lane.b32.xlu0 %v539, 98
        %v749 = vpop.permute.xlu0 %748
        %v751 = vsel %vm494, %v749, 0
        %753 = vmatpush.bf16.msra.mxu0 0
        %754 = vmatpush.bf16.msra.mxu0 0
        %755 = vmatpush.bf16.msra.mxu0 0
        %756 = vmatpush.bf16.msra.mxu0 0
        %757 = vmatpush.bf16.msra.mxu0 0
        %758 = vmatpush.bf16.msra.mxu0 0
        %759 = vmatpush.bf16.msra.mxu0 0
        %760 = vmatpush.bf16.msra.mxu0 %v500
        %761 = vmatmul.bf16.gmra.mxu0 %v751
        %v762 = vpop.f32.mrf.mxu0
        %v763 = vadd.f32 0.0, %v762
        %v764 = vpop.f32.mrf.mxu0
        %v765 = vadd.f32 0.0, %v764
        %766 = vdwg.mxu0
        %v767 = vpack.c.bf16 %v763, %v763
        %v768 = vpack.c.bf16 %v765, %v765
        %771 = vrot.lane.b32.xlu0 %v767, 17
        %v772 = vpop.permute.xlu0 %771
        %773 = vrot.lane.b32.xlu0 %v768, 17
        %v774 = vpop.permute.xlu0 %773
        %vm777 = vcmask 281736
        %778 = vst.msk [vmem:[#allocation2 + $0x4] sm:$0xf] %vm777, %v772
        %779 = vst.msk [vmem:[#allocation2 + $0x10] sm:$0xf] %vm777, %v774
        %780 = vrot.lane.b32.xlu0 %v578, 88
        %v781 = vpop.permute.xlu0 %780
        %v783 = vsel %vm494, %v781, 0
        %785 = vmatpush.bf16.msra.mxu0 0
        %786 = vmatpush.bf16.msra.mxu0 0
        %787 = vmatpush.bf16.msra.mxu0 0
        %788 = vmatpush.bf16.msra.mxu0 0
        %789 = vmatpush.bf16.msra.mxu0 0
        %790 = vmatpush.bf16.msra.mxu0 0
        %791 = vmatpush.bf16.msra.mxu0 0
        %792 = vmatpush.bf16.msra.mxu0 %v500
        %793 = vmatmul.bf16.gmra.mxu0 %v783
        %v794 = vpop.f32.mrf.mxu0
        %v795 = vadd.f32 0.0, %v794
        %v796 = vpop.f32.mrf.mxu0
        %v797 = vadd.f32 0.0, %v796
        %798 = vdwg.mxu0
        %v799 = vpack.c.bf16 %v795, %v795
        %v800 = vpack.c.bf16 %v797, %v797
        %803 = vrot.lane.b32.xlu0 %v799, 35
        %v804 = vpop.permute.xlu0 %803
        %805 = vrot.lane.b32.xlu0 %v800, 35
        %v806 = vpop.permute.xlu0 %805
        %vm809 = vcmask 429336
        %810 = vst.msk [vmem:[#allocation2 + $0x4] sm:$0xf] %vm809, %v804
        %811 = vst.msk [vmem:[#allocation2 + $0x10] sm:$0xf] %vm809, %v806
        %812 = vrot.lane.b32.xlu0 %v539, 88
        %v813 = vpop.permute.xlu0 %812
        %v815 = vsel %vm494, %v813, 0
        %817 = vmatpush.bf16.msra.mxu0 0
        %818 = vmatpush.bf16.msra.mxu0 0
        %819 = vmatpush.bf16.msra.mxu0 0
        %820 = vmatpush.bf16.msra.mxu0 0
        %821 = vmatpush.bf16.msra.mxu0 0
        %822 = vmatpush.bf16.msra.mxu0 0
        %823 = vmatpush.bf16.msra.mxu0 0
        %824 = vmatpush.bf16.msra.mxu0 %v500
        %825 = vmatmul.bf16.gmra.mxu0 %v815
        %v826 = vpop.f32.mrf.mxu0
        %v827 = vadd.f32 0.0, %v826
        %v828 = vpop.f32.mrf.mxu0
        %v829 = vadd.f32 0.0, %v828
        %830 = vdwg.mxu0
        %v831 = vpack.c.bf16 %v827, %v827
        %v832 = vpack.c.bf16 %v829, %v829
        %835 = vrot.lane.b32.xlu0 %v831, 53
        %v836 = vpop.permute.xlu0 %835
        %837 = vrot.lane.b32.xlu0 %v832, 53
        %v838 = vpop.permute.xlu0 %837
        %vm841 = vcmask 576936
        %842 = vst.msk [vmem:[#allocation2 + $0x4] sm:$0xf] %vm841, %v836
        %843 = vst.msk [vmem:[#allocation2 + $0x10] sm:$0xf] %vm841, %v838
        %844 = vrot.lane.b32.xlu0 %v578, 78
        %v845 = vpop.permute.xlu0 %844
        %v847 = vsel %vm494, %v845, 0
        %849 = vmatpush.bf16.msra.mxu0 0
        %850 = vmatpush.bf16.msra.mxu0 0
        %851 = vmatpush.bf16.msra.mxu0 0
        %852 = vmatpush.bf16.msra.mxu0 0
        %853 = vmatpush.bf16.msra.mxu0 0
        %854 = vmatpush.bf16.msra.mxu0 0
        %855 = vmatpush.bf16.msra.mxu0 0
        %856 = vmatpush.bf16.msra.mxu0 %v500
        %857 = vmatmul.bf16.gmra.mxu0 %v847
        %v858 = vpop.f32.mrf.mxu0
        %v859 = vadd.f32 0.0, %v858
        %v860 = vpop.f32.mrf.mxu0
        %v861 = vadd.f32 0.0, %v860
        %862 = vdwg.mxu0
        %v863 = vpack.c.bf16 %v859, %v859
        %v864 = vpack.c.bf16 %v861, %v861
        %867 = vrot.lane.b32.xlu0 %v863, 71
        %v868 = vpop.permute.xlu0 %867
        %869 = vrot.lane.b32.xlu0 %v864, 71
        %v870 = vpop.permute.xlu0 %869
        %vm873 = vcmask 724536
        %874 = vst.msk [vmem:[#allocation2 + $0x4] sm:$0xf] %vm873, %v868
        %875 = vst.msk [vmem:[#allocation2 + $0x10] sm:$0xf] %vm873, %v870
        %876 = vrot.lane.b32.xlu0 %v539, 78
        %v877 = vpop.permute.xlu0 %876
        %v879 = vsel %vm494, %v877, 0
        %881 = vmatpush.bf16.msra.mxu0 0
        %882 = vmatpush.bf16.msra.mxu0 0
        %883 = vmatpush.bf16.msra.mxu0 0
        %884 = vmatpush.bf16.msra.mxu0 0
        %885 = vmatpush.bf16.msra.mxu0 0
        %886 = vmatpush.bf16.msra.mxu0 0
        %887 = vmatpush.bf16.msra.mxu0 0
        %888 = vmatpush.bf16.msra.mxu0 %v500
        %889 = vmatmul.bf16.gmra.mxu0 %v879
        %v890 = vpop.f32.mrf.mxu0
        %v891 = vadd.f32 0.0, %v890
        %v892 = vpop.f32.mrf.mxu0
        %v893 = vadd.f32 0.0, %v892
        %894 = vdwg.mxu0
        %v895 = vpack.c.bf16 %v891, %v891
        %v896 = vpack.c.bf16 %v893, %v893
        %899 = vrot.lane.b32.xlu0 %v895, 89
        %v900 = vpop.permute.xlu0 %899
        %901 = vrot.lane.b32.xlu0 %v896, 89
        %v902 = vpop.permute.xlu0 %901
        %vm905 = vcmask 872136
        %906 = vst.msk [vmem:[#allocation2 + $0x4] sm:$0xf] %vm905, %v900
        %907 = vst.msk [vmem:[#allocation2 + $0x10] sm:$0xf] %vm905, %v902
        %908 = vrot.lane.b32.xlu0 %v578, 68
        %v909 = vpop.permute.xlu0 %908
        %v911 = vsel %vm494, %v909, 0
        %913 = vmatpush.bf16.msra.mxu0 0
        %914 = vmatpush.bf16.msra.mxu0 0
        %915 = vmatpush.bf16.msra.mxu0 0
        %916 = vmatpush.bf16.msra.mxu0 0
        %917 = vmatpush.bf16.msra.mxu0 0
        %918 = vmatpush.bf16.msra.mxu0 0
        %919 = vmatpush.bf16.msra.mxu0 0
        %920 = vmatpush.bf16.msra.mxu0 %v500
        %921 = vmatmul.bf16.gmra.mxu0 %v911
        %v922 = vpop.f32.mrf.mxu0
        %v923 = vadd.f32 0.0, %v922
        %v924 = vpop.f32.mrf.mxu0
        %v925 = vadd.f32 0.0, %v924
        %926 = vdwg.mxu0
        %v927 = vpack.c.bf16 %v923, %v923
        %v928 = vpack.c.bf16 %v925, %v925
        %931 = vrot.lane.b32.xlu0 %v927, 107
        %v932 = vpop.permute.xlu0 %931
        %933 = vrot.lane.b32.xlu0 %v928, 107
        %v934 = vpop.permute.xlu0 %933
        %vm937 = vcmask 1019736
        %938 = vst.msk [vmem:[#allocation2 + $0x4] sm:$0xf] %vm937, %v932
        %939 = vst.msk [vmem:[#allocation2 + $0x10] sm:$0xf] %vm937, %v934
        %940 = vrot.lane.b32.xlu0 %v539, 68
        %v941 = vpop.permute.xlu0 %940
        %v943 = vsel %vm494, %v941, 0
        %945 = vmatpush.bf16.msra.mxu0 0
        %946 = vmatpush.bf16.msra.mxu0 0
        %947 = vmatpush.bf16.msra.mxu0 0
        %948 = vmatpush.bf16.msra.mxu0 0
        %949 = vmatpush.bf16.msra.mxu0 0
        %950 = vmatpush.bf16.msra.mxu0 0
        %951 = vmatpush.bf16.msra.mxu0 0
        %952 = vmatpush.bf16.msra.mxu0 %v500
        %953 = vmatmul.bf16.gmra.mxu0 %v943
        %v954 = vpop.f32.mrf.mxu0
        %v955 = vadd.f32 0.0, %v954
        %v956 = vpop.f32.mrf.mxu0
        %v957 = vadd.f32 0.0, %v956
        %958 = vdwg.mxu0
        %v959 = vpack.c.bf16 %v955, %v955
        %v960 = vpack.c.bf16 %v957, %v957
        %963 = vrot.lane.b32.xlu0 %v959, 125
        %v964 = vpop.permute.xlu0 %963
        %965 = vrot.lane.b32.xlu0 %v960, 125
        %v966 = vpop.permute.xlu0 %965
        %v967 = vrot.slane %v964, 4
        %v968 = vrot.slane %v966, 4
        %vm969 = vcmask 1022976
        %v970 = vsel %vm969, %v967, %v964
        %v971 = vsel %vm969, %v968, %v966
        %vm974 = vcmask 1044456
        %vm975 = vcmask 121860
        %vm976 = vmor %vm975, %vm974
        %977 = vst.msk [vmem:[#allocation2 + $0x4] sm:$0xff] %vm976, %v970
        %978 = vst.msk [vmem:[#allocation2 + $0x10] sm:$0xff] %vm976, %v971
        %979 = vrot.lane.b32.xlu0 %v578, 58
        %v980 = vpop.permute.xlu0 %979
        %v982 = vsel %vm494, %v980, 0
        %984 = vmatpush.bf16.msra.mxu0 0
        %985 = vmatpush.bf16.msra.mxu0 0
        %986 = vmatpush.bf16.msra.mxu0 0
        %987 = vmatpush.bf16.msra.mxu0 0
        %988 = vmatpush.bf16.msra.mxu0 0
        %989 = vmatpush.bf16.msra.mxu0 0
        %990 = vmatpush.bf16.msra.mxu0 0
        %991 = vmatpush.bf16.msra.mxu0 %v500
        %992 = vmatmul.bf16.gmra.mxu0 %v982
        %v993 = vpop.f32.mrf.mxu0
        %v994 = vadd.f32 0.0, %v993
        %v995 = vpop.f32.mrf.mxu0
        %v996 = vadd.f32 0.0, %v995
        %997 = vdwg.mxu0
        %v998 = vpack.c.bf16 %v994, %v994
        %v999 = vpack.c.bf16 %v996, %v996
        %1002 = vrot.lane.b32.xlu0 %v998, 15
        %v1003 = vpop.permute.xlu0 %1002
        %1004 = vrot.lane.b32.xlu0 %v999, 15
        %v1005 = vpop.permute.xlu0 %1004
        %vm1008 = vcmask 265336
        %1009 = vst.msk [vmem:[#allocation2 + $0x8] sm:$0xf] %vm1008, %v1003
        %1010 = vst.msk [vmem:[#allocation2 + $0x14] sm:$0xf] %vm1008, %v1005
        %1012 = vrot.lane.b32.xlu0 %v493, 58
        %v1013 = vpop.permute.xlu0 %1012
        %v1015 = vsel %vm494, %v1013, 0
        %1017 = vmatpush.bf16.msra.mxu0 0
        %1018 = vmatpush.bf16.msra.mxu0 0
        %1019 = vmatpush.bf16.msra.mxu0 0
        %1020 = vmatpush.bf16.msra.mxu0 0
        %1021 = vmatpush.bf16.msra.mxu0 0
        %1022 = vmatpush.bf16.msra.mxu0 0
        %1023 = vmatpush.bf16.msra.mxu0 0
        %1024 = vmatpush.bf16.msra.mxu0 %v500
        %1025 = vmatmul.bf16.gmra.mxu0 %v1015
        %v1026 = vpop.f32.mrf.mxu0
        %v1027 = vadd.f32 0.0, %v1026
        %v1028 = vpop.f32.mrf.mxu0
        %v1029 = vadd.f32 0.0, %v1028
        %1030 = vdwg.mxu0
        %v1031 = vpack.c.bf16 %v1027, %v1027
        %v1032 = vpack.c.bf16 %v1029, %v1029
        %1035 = vrot.lane.b32.xlu0 %v1031, 33
        %v1036 = vpop.permute.xlu0 %1035
        %1037 = vrot.lane.b32.xlu0 %v1032, 33
        %v1038 = vpop.permute.xlu0 %1037
        %vm1041 = vcmask 412936
        %1042 = vst.msk [vmem:[#allocation2 + $0x8] sm:$0xf] %vm1041, %v1036
        %1043 = vst.msk [vmem:[#allocation2 + $0x14] sm:$0xf] %vm1041, %v1038
        %v1044 = vld [vmem:[%s453] sm:$0xf]
        %v1045 = vld [vmem:[#allocation2] sm:$0xff]
        %v1046 = vld [vmem:[#allocation2 + $0x8] sm:$0xf]
        %v1047 = vld [vmem:[#allocation2 + $0xc] sm:$0xff]
        %v1048 = vld [vmem:[#allocation2 + $0x14] sm:$0xf]
        %s1049 = scalar_lea.vmem %s453, 4
        %v1050 = vld [vmem:[%s1049] sm:$0xf]
        %v1055 = vunpack.c.l.b16 %v1045
        %v1056 = vunpack.c.h.b16 %v1045
        %v1057 = vunpack.c.l.b16 %v1046
        %v1058 = vunpack.c.l.b16 %v1047
        %v1059 = vunpack.c.h.b16 %v1047
        %v1060 = vunpack.c.l.b16 %v1048
        %v1061 = vpack.c.b16 %v1058, %v1055
        %v1062 = vpack.c.b16 %v1059, %v1056
        %v1063 = vpack.c.b16 %v1060, %v1057
        %1064 = vrot.lane.b32.xlu0 %v1061, 127
        %v1065 = vpop.permute.xlu0 %1064
        %1066 = vrot.lane.b32.xlu0 %v1062, 127
        %v1067 = vpop.permute.xlu0 %1066
        %1068 = vrot.lane.b32.xlu0 %v1063, 127
        %v1069 = vpop.permute.xlu0 %1068
        %v1070 = vsel %vm738, %v1065, %v1067
        %v1071 = vsel %vm738, %v1067, %v1069
        %vm1075 = vcmask 130048
        %v1077 = vsel %vm1075, %v1050, 0
        %1079 = vmatpush.bf16.msra.mxu0 0
        %1080 = vmatpush.bf16.msra.mxu0 0
        %1081 = vmatpush.bf16.msra.mxu0 0
        %1082 = vmatpush.bf16.msra.mxu0 0
        %1083 = vmatpush.bf16.msra.mxu0 0
        %1084 = vmatpush.bf16.msra.mxu0 0
        %1085 = vmatpush.bf16.msra.mxu0 0
        %1086 = vmatpush.bf16.msra.mxu0 %v1070
        %1087 = vmatmul.bf16.gmra.mxu0 %v1077
        %v1088 = vpop.f32.mrf.mxu0
        %v1089 = vadd.f32 0.0, %v1088
        %v1090 = vpop.f32.mrf.mxu0
        %1091 = vdwg.mxu0
        %1092 = vmatpush.bf16.msra.mxu0 0
        %1093 = vmatpush.bf16.msra.mxu0 0
        %1094 = vmatpush.bf16.msra.mxu0 0
        %1095 = vmatpush.bf16.msra.mxu0 0
        %1096 = vmatpush.bf16.msra.mxu0 0
        %1097 = vmatpush.bf16.msra.mxu0 0
        %1098 = vmatpush.bf16.msra.mxu0 0
        %1099 = vmatpush.bf16.msra.mxu0 %v1071
        %1100 = vmatmul.bf16.gmra.mxu0 %v1077
        %v1101 = vpop.f32.mrf.mxu0
        %v1102 = vadd.f32 0.0, %v1101
        %v1103 = vpop.f32.mrf.mxu0
        %1104 = vdwg.mxu0
        %1105 = vmatpush.bf16.msra.mxu0 0
        %1106 = vmatpush.bf16.msra.mxu0 0
        %1107 = vmatpush.bf16.msra.mxu0 0
        %1108 = vmatpush.bf16.msra.mxu0 0
        %1109 = vmatpush.bf16.msra.mxu0 0
        %1110 = vmatpush.bf16.msra.mxu0 0
        %1111 = vmatpush.bf16.msra.mxu0 0
        %1112 = vmatpush.bf16.msra.mxu0 %v1069
        %1113 = vmatmul.bf16.gmra.mxu0 %v1077
        %v1114 = vpop.f32.mrf.mxu0
        %v1115 = vadd.f32 0.0, %v1114
        %v1116 = vpop.f32.mrf.mxu0
        %1117 = vdwg.mxu0
        %v1122 = vsel %vm1075, %v1044, 0
        %1124 = vmatpush.bf16.msra.mxu0 0
        %1125 = vmatpush.bf16.msra.mxu0 0
        %1126 = vmatpush.bf16.msra.mxu0 0
        %1127 = vmatpush.bf16.msra.mxu0 0
        %1128 = vmatpush.bf16.msra.mxu0 0
        %1129 = vmatpush.bf16.msra.mxu0 0
        %1130 = vmatpush.bf16.msra.mxu0 0
        %1131 = vmatpush.bf16.msra.mxu0 %v1061
        %1132 = vmatmul.bf16.gmra.mxu0 %v1122
        %v1133 = vpop.f32.mrf.mxu0
        %v1134 = vadd.f32 %v1089, %v1133
        %v1135 = vpop.f32.mrf.mxu0
        %1136 = vdwg.mxu0
        %1137 = vmatpush.bf16.msra.mxu0 0
        %1138 = vmatpush.bf16.msra.mxu0 0
        %1139 = vmatpush.bf16.msra.mxu0 0
        %1140 = vmatpush.bf16.msra.mxu0 0
        %1141 = vmatpush.bf16.msra.mxu0 0
        %1142 = vmatpush.bf16.msra.mxu0 0
        %1143 = vmatpush.bf16.msra.mxu0 0
        %1144 = vmatpush.bf16.msra.mxu0 %v1062
        %1145 = vmatmul.bf16.gmra.mxu0 %v1122
        %v1146 = vpop.f32.mrf.mxu0
        %v1147 = vadd.f32 %v1102, %v1146
        %v1148 = vpop.f32.mrf.mxu0
        %1149 = vdwg.mxu0
        %1150 = vmatpush.bf16.msra.mxu0 0
        %1151 = vmatpush.bf16.msra.mxu0 0
        %1152 = vmatpush.bf16.msra.mxu0 0
        %1153 = vmatpush.bf16.msra.mxu0 0
        %1154 = vmatpush.bf16.msra.mxu0 0
        %1155 = vmatpush.bf16.msra.mxu0 0
        %1156 = vmatpush.bf16.msra.mxu0 0
        %1157 = vmatpush.bf16.msra.mxu0 %v1063
        %1158 = vmatmul.bf16.gmra.mxu0 %v1122
        %v1159 = vpop.f32.mrf.mxu0
        %v1160 = vadd.f32 %v1115, %v1159
        %v1161 = vpop.f32.mrf.mxu0
        %1162 = vdwg.mxu0
        %s1163 = scalar_lea.vmem %s453, 8
        %v1164 = vld [vmem:[%s1163] sm:$0xf]
        %1165 = vrot.lane.b32.xlu0 %v1061, 126
        %v1166 = vpop.permute.xlu0 %1165
        %1167 = vrot.lane.b32.xlu0 %v1062, 126
        %v1168 = vpop.permute.xlu0 %1167
        %1169 = vrot.lane.b32.xlu0 %v1063, 126
        %v1170 = vpop.permute.xlu0 %1169
        %vm1171 = vcmask 1031168
        %v1172 = vsel %vm1171, %v1166, %v1168
        %v1173 = vsel %vm1171, %v1168, %v1170
        %v1178 = vsel %vm1075, %v1164, 0
        %1180 = vmatpush.bf16.msra.mxu0 0
        %1181 = vmatpush.bf16.msra.mxu0 0
        %1182 = vmatpush.bf16.msra.mxu0 0
        %1183 = vmatpush.bf16.msra.mxu0 0
        %1184 = vmatpush.bf16.msra.mxu0 0
        %1185 = vmatpush.bf16.msra.mxu0 0
        %1186 = vmatpush.bf16.msra.mxu0 0
        %1187 = vmatpush.bf16.msra.mxu0 %v1172
        %1188 = vmatmul.bf16.gmra.mxu0 %v1178
        %v1189 = vpop.f32.mrf.mxu0
        %v1190 = vadd.f32 0.0, %v1189
        %v1191 = vpop.f32.mrf.mxu0
        %1192 = vdwg.mxu0
        %1193 = vmatpush.bf16.msra.mxu0 0
        %1194 = vmatpush.bf16.msra.mxu0 0
        %1195 = vmatpush.bf16.msra.mxu0 0
        %1196 = vmatpush.bf16.msra.mxu0 0
        %1197 = vmatpush.bf16.msra.mxu0 0
        %1198 = vmatpush.bf16.msra.mxu0 0
        %1199 = vmatpush.bf16.msra.mxu0 0
        %1200 = vmatpush.bf16.msra.mxu0 %v1173
        %1201 = vmatmul.bf16.gmra.mxu0 %v1178
        %v1202 = vpop.f32.mrf.mxu0
        %v1203 = vadd.f32 0.0, %v1202
        %v1204 = vpop.f32.mrf.mxu0
        %1205 = vdwg.mxu0
        %1206 = vmatpush.bf16.msra.mxu0 0
        %1207 = vmatpush.bf16.msra.mxu0 0
        %1208 = vmatpush.bf16.msra.mxu0 0
        %1209 = vmatpush.bf16.msra.mxu0 0
        %1210 = vmatpush.bf16.msra.mxu0 0
        %1211 = vmatpush.bf16.msra.mxu0 0
        %1212 = vmatpush.bf16.msra.mxu0 0
        %1213 = vmatpush.bf16.msra.mxu0 %v1170
        %1214 = vmatmul.bf16.gmra.mxu0 %v1178
        %v1215 = vpop.f32.mrf.mxu0
        %v1216 = vadd.f32 0.0, %v1215
        %v1217 = vpop.f32.mrf.mxu0
        %1218 = vdwg.mxu0
        %v1219 = vadd.f32 %v1134, %v1190
        %v1220 = vadd.f32 %v1147, %v1203
        %v1221 = vadd.f32 %v1160, %v1216
        %s1222 = scalar_lea.vmem %s453, 12
        %v1223 = vld [vmem:[%s1222] sm:$0xf]
        %1224 = vrot.lane.b32.xlu0 %v1061, 110
        %v1225 = vpop.permute.xlu0 %1224
        %1226 = vrot.lane.b32.xlu0 %v1062, 110
        %v1227 = vpop.permute.xlu0 %1226
        %1228 = vrot.lane.b32.xlu0 %v1063, 110
        %v1229 = vpop.permute.xlu0 %1228
        %vm1230 = vcmask 900096
        %v1231 = vsel %vm1230, %v1225, %v1227
        %v1232 = vsel %vm1230, %v1227, %v1229
        %v1237 = vsel %vm1075, %v1223, 0
        %1239 = vmatpush.bf16.msra.mxu0 0
        %1240 = vmatpush.bf16.msra.mxu0 0
        %1241 = vmatpush.bf16.msra.mxu0 0
        %1242 = vmatpush.bf16.msra.mxu0 0
        %1243 = vmatpush.bf16.msra.mxu0 0
        %1244 = vmatpush.bf16.msra.mxu0 0
        %1245 = vmatpush.bf16.msra.mxu0 0
        %1246 = vmatpush.bf16.msra.mxu0 %v1231
        %1247 = vmatmul.bf16.gmra.mxu0 %v1237
        %v1248 = vpop.f32.mrf.mxu0
        %v1249 = vadd.f32 0.0, %v1248
        %v1250 = vpop.f32.mrf.mxu0
        %1251 = vdwg.mxu0
        %1252 = vmatpush.bf16.msra.mxu0 0
        %1253 = vmatpush.bf16.msra.mxu0 0
        %1254 = vmatpush.bf16.msra.mxu0 0
        %1255 = vmatpush.bf16.msra.mxu0 0
        %1256 = vmatpush.bf16.msra.mxu0 0
        %1257 = vmatpush.bf16.msra.mxu0 0
        %1258 = vmatpush.bf16.msra.mxu0 0
        %1259 = vmatpush.bf16.msra.mxu0 %v1232
        %1260 = vmatmul.bf16.gmra.mxu0 %v1237
        %v1261 = vpop.f32.mrf.mxu0
        %v1262 = vadd.f32 0.0, %v1261
        %v1263 = vpop.f32.mrf.mxu0
        %1264 = vdwg.mxu0
        %1265 = vmatpush.bf16.msra.mxu0 0
        %1266 = vmatpush.bf16.msra.mxu0 0
        %1267 = vmatpush.bf16.msra.mxu0 0
        %1268 = vmatpush.bf16.msra.mxu0 0
        %1269 = vmatpush.bf16.msra.mxu0 0
        %1270 = vmatpush.bf16.msra.mxu0 0
        %1271 = vmatpush.bf16.msra.mxu0 0
        %1272 = vmatpush.bf16.msra.mxu0 %v1229
        %1273 = vmatmul.bf16.gmra.mxu0 %v1237
        %v1274 = vpop.f32.mrf.mxu0
        %v1275 = vadd.f32 0.0, %v1274
        %v1276 = vpop.f32.mrf.mxu0
        %1277 = vdwg.mxu0
        %v1278 = vadd.f32 %v1219, %v1249
        %v1279 = vadd.f32 %v1220, %v1262
        %v1280 = vadd.f32 %v1221, %v1275
        %s1281 = scalar_lea.vmem %s453, 16
        %v1282 = vld [vmem:[%s1281] sm:$0xf]
        %1283 = vrot.lane.b32.xlu0 %v1061, 109
        %v1284 = vpop.permute.xlu0 %1283
        %1285 = vrot.lane.b32.xlu0 %v1062, 109
        %v1286 = vpop.permute.xlu0 %1285
        %1287 = vrot.lane.b32.xlu0 %v1063, 109
        %v1288 = vpop.permute.xlu0 %1287
        %vm1289 = vcmask 891904
        %v1290 = vsel %vm1289, %v1284, %v1286
        %v1291 = vsel %vm1289, %v1286, %v1288
        %v1296 = vsel %vm1075, %v1282, 0
        %1298 = vmatpush.bf16.msra.mxu0 0
        %1299 = vmatpush.bf16.msra.mxu0 0
        %1300 = vmatpush.bf16.msra.mxu0 0
        %1301 = vmatpush.bf16.msra.mxu0 0
        %1302 = vmatpush.bf16.msra.mxu0 0
        %1303 = vmatpush.bf16.msra.mxu0 0
        %1304 = vmatpush.bf16.msra.mxu0 0
        %1305 = vmatpush.bf16.msra.mxu0 %v1290
        %1306 = vmatmul.bf16.gmra.mxu0 %v1296
        %v1307 = vpop.f32.mrf.mxu0
        %v1308 = vadd.f32 0.0, %v1307
        %v1309 = vpop.f32.mrf.mxu0
        %1310 = vdwg.mxu0
        %1311 = vmatpush.bf16.msra.mxu0 0
        %1312 = vmatpush.bf16.msra.mxu0 0
        %1313 = vmatpush.bf16.msra.mxu0 0
        %1314 = vmatpush.bf16.msra.mxu0 0
        %1315 = vmatpush.bf16.msra.mxu0 0
        %1316 = vmatpush.bf16.msra.mxu0 0
        %1317 = vmatpush.bf16.msra.mxu0 0
        %1318 = vmatpush.bf16.msra.mxu0 %v1291
        %1319 = vmatmul.bf16.gmra.mxu0 %v1296
        %v1320 = vpop.f32.mrf.mxu0
        %v1321 = vadd.f32 0.0, %v1320
        %v1322 = vpop.f32.mrf.mxu0
        %1323 = vdwg.mxu0
        %1324 = vmatpush.bf16.msra.mxu0 0
        %1325 = vmatpush.bf16.msra.mxu0 0
        %1326 = vmatpush.bf16.msra.mxu0 0
        %1327 = vmatpush.bf16.msra.mxu0 0
        %1328 = vmatpush.bf16.msra.mxu0 0
        %1329 = vmatpush.bf16.msra.mxu0 0
        %1330 = vmatpush.bf16.msra.mxu0 0
        %1331 = vmatpush.bf16.msra.mxu0 %v1288
        %1332 = vmatmul.bf16.gmra.mxu0 %v1296
        %v1333 = vpop.f32.mrf.mxu0
        %v1334 = vadd.f32 0.0, %v1333
        %v1335 = vpop.f32.mrf.mxu0
        %1336 = vdwg.mxu0
        %v1337 = vadd.f32 %v1278, %v1308
        %v1338 = vadd.f32 %v1279, %v1321
        %v1339 = vadd.f32 %v1280, %v1334
        %s1340 = scalar_lea.vmem %s453, 20
        %v1341 = vld [vmem:[%s1340] sm:$0xf]
        %1342 = vrot.lane.b32.xlu0 %v1061, 108
        %v1343 = vpop.permute.xlu0 %1342
        %1344 = vrot.lane.b32.xlu0 %v1062, 108
        %v1345 = vpop.permute.xlu0 %1344
        %1346 = vrot.lane.b32.xlu0 %v1063, 108
        %v1347 = vpop.permute.xlu0 %1346
        %vm1348 = vcmask 883712
        %v1349 = vsel %vm1348, %v1343, %v1345
        %v1350 = vsel %vm1348, %v1345, %v1347
        %v1355 = vsel %vm1075, %v1341, 0
        %1357 = vmatpush.bf16.msra.mxu0 0
        %1358 = vmatpush.bf16.msra.mxu0 0
        %1359 = vmatpush.bf16.msra.mxu0 0
        %1360 = vmatpush.bf16.msra.mxu0 0
        %1361 = vmatpush.bf16.msra.mxu0 0
        %1362 = vmatpush.bf16.msra.mxu0 0
        %1363 = vmatpush.bf16.msra.mxu0 0
        %1364 = vmatpush.bf16.msra.mxu0 %v1349
        %1365 = vmatmul.bf16.gmra.mxu0 %v1355
        %v1366 = vpop.f32.mrf.mxu0
        %v1367 = vadd.f32 0.0, %v1366
        %v1368 = vpop.f32.mrf.mxu0
        %1369 = vdwg.mxu0
        %1370 = vmatpush.bf16.msra.mxu0 0
        %1371 = vmatpush.bf16.msra.mxu0 0
        %1372 = vmatpush.bf16.msra.mxu0 0
        %1373 = vmatpush.bf16.msra.mxu0 0
        %1374 = vmatpush.bf16.msra.mxu0 0
        %1375 = vmatpush.bf16.msra.mxu0 0
        %1376 = vmatpush.bf16.msra.mxu0 0
        %1377 = vmatpush.bf16.msra.mxu0 %v1350
        %1378 = vmatmul.bf16.gmra.mxu0 %v1355
        %v1379 = vpop.f32.mrf.mxu0
        %v1380 = vadd.f32 0.0, %v1379
        %v1381 = vpop.f32.mrf.mxu0
        %1382 = vdwg.mxu0
        %1383 = vmatpush.bf16.msra.mxu0 0
        %1384 = vmatpush.bf16.msra.mxu0 0
        %1385 = vmatpush.bf16.msra.mxu0 0
        %1386 = vmatpush.bf16.msra.mxu0 0
        %1387 = vmatpush.bf16.msra.mxu0 0
        %1388 = vmatpush.bf16.msra.mxu0 0
        %1389 = vmatpush.bf16.msra.mxu0 0
        %1390 = vmatpush.bf16.msra.mxu0 %v1347
        %1391 = vmatmul.bf16.gmra.mxu0 %v1355
        %v1392 = vpop.f32.mrf.mxu0
        %v1393 = vadd.f32 0.0, %v1392
        %v1394 = vpop.f32.mrf.mxu0
        %1395 = vdwg.mxu0
        %v1396 = vadd.f32 %v1337, %v1367
        %v1397 = vadd.f32 %v1338, %v1380
        %v1398 = vadd.f32 %v1339, %v1393
        %s1399 = scalar_lea.vmem %s453, 24
        %v1400 = vld [vmem:[%s1399] sm:$0xf]
        %1401 = vrot.lane.b32.xlu0 %v1061, 92
        %v1402 = vpop.permute.xlu0 %1401
        %1403 = vrot.lane.b32.xlu0 %v1062, 92
        %v1404 = vpop.permute.xlu0 %1403
        %1405 = vrot.lane.b32.xlu0 %v1063, 92
        %v1406 = vpop.permute.xlu0 %1405
        %vm1407 = vcmask 752640
        %v1408 = vsel %vm1407, %v1402, %v1404
        %v1409 = vsel %vm1407, %v1404, %v1406
        %v1414 = vsel %vm1075, %v1400, 0
        %1416 = vmatpush.bf16.msra.mxu0 0
        %1417 = vmatpush.bf16.msra.mxu0 0
        %1418 = vmatpush.bf16.msra.mxu0 0
        %1419 = vmatpush.bf16.msra.mxu0 0
        %1420 = vmatpush.bf16.msra.mxu0 0
        %1421 = vmatpush.bf16.msra.mxu0 0
        %1422 = vmatpush.bf16.msra.mxu0 0
        %1423 = vmatpush.bf16.msra.mxu0 %v1408
        %1424 = vmatmul.bf16.gmra.mxu0 %v1414
        %v1425 = vpop.f32.mrf.mxu0
        %v1426 = vadd.f32 0.0, %v1425
        %v1427 = vpop.f32.mrf.mxu0
        %1428 = vdwg.mxu0
        %1429 = vmatpush.bf16.msra.mxu0 0
        %1430 = vmatpush.bf16.msra.mxu0 0
        %1431 = vmatpush.bf16.msra.mxu0 0
        %1432 = vmatpush.bf16.msra.mxu0 0
        %1433 = vmatpush.bf16.msra.mxu0 0
        %1434 = vmatpush.bf16.msra.mxu0 0
        %1435 = vmatpush.bf16.msra.mxu0 0
        %1436 = vmatpush.bf16.msra.mxu0 %v1409
        %1437 = vmatmul.bf16.gmra.mxu0 %v1414
        %v1438 = vpop.f32.mrf.mxu0
        %v1439 = vadd.f32 0.0, %v1438
        %v1440 = vpop.f32.mrf.mxu0
        %1441 = vdwg.mxu0
        %1442 = vmatpush.bf16.msra.mxu0 0
        %1443 = vmatpush.bf16.msra.mxu0 0
        %1444 = vmatpush.bf16.msra.mxu0 0
        %1445 = vmatpush.bf16.msra.mxu0 0
        %1446 = vmatpush.bf16.msra.mxu0 0
        %1447 = vmatpush.bf16.msra.mxu0 0
        %1448 = vmatpush.bf16.msra.mxu0 0
        %1449 = vmatpush.bf16.msra.mxu0 %v1406
        %1450 = vmatmul.bf16.gmra.mxu0 %v1414
        %v1451 = vpop.f32.mrf.mxu0
        %v1452 = vadd.f32 0.0, %v1451
        %v1453 = vpop.f32.mrf.mxu0
        %1454 = vdwg.mxu0
        %v1455 = vadd.f32 %v1396, %v1426
        %v1456 = vadd.f32 %v1397, %v1439
        %v1457 = vadd.f32 %v1398, %v1452
        %s1458 = scalar_lea.vmem %s453, 28
        %v1459 = vld [vmem:[%s1458] sm:$0xf]
        %1460 = vrot.lane.b32.xlu0 %v1061, 91
        %v1461 = vpop.permute.xlu0 %1460
        %1462 = vrot.lane.b32.xlu0 %v1062, 91
        %v1463 = vpop.permute.xlu0 %1462
        %1464 = vrot.lane.b32.xlu0 %v1063, 91
        %v1465 = vpop.permute.xlu0 %1464
        %vm1466 = vcmask 744448
        %v1467 = vsel %vm1466, %v1461, %v1463
        %v1468 = vsel %vm1466, %v1463, %v1465
        %v1473 = vsel %vm1075, %v1459, 0
        %1475 = vmatpush.bf16.msra.mxu0 0
        %1476 = vmatpush.bf16.msra.mxu0 0
        %1477 = vmatpush.bf16.msra.mxu0 0
        %1478 = vmatpush.bf16.msra.mxu0 0
        %1479 = vmatpush.bf16.msra.mxu0 0
        %1480 = vmatpush.bf16.msra.mxu0 0
        %1481 = vmatpush.bf16.msra.mxu0 0
        %1482 = vmatpush.bf16.msra.mxu0 %v1467
        %1483 = vmatmul.bf16.gmra.mxu0 %v1473
        %v1484 = vpop.f32.mrf.mxu0
        %v1485 = vadd.f32 0.0, %v1484
        %v1486 = vpop.f32.mrf.mxu0
        %1487 = vdwg.mxu0
        %1488 = vmatpush.bf16.msra.mxu0 0
        %1489 = vmatpush.bf16.msra.mxu0 0
        %1490 = vmatpush.bf16.msra.mxu0 0
        %1491 = vmatpush.bf16.msra.mxu0 0
        %1492 = vmatpush.bf16.msra.mxu0 0
        %1493 = vmatpush.bf16.msra.mxu0 0
        %1494 = vmatpush.bf16.msra.mxu0 0
        %1495 = vmatpush.bf16.msra.mxu0 %v1468
        %1496 = vmatmul.bf16.gmra.mxu0 %v1473
        %v1497 = vpop.f32.mrf.mxu0
        %v1498 = vadd.f32 0.0, %v1497
        %v1499 = vpop.f32.mrf.mxu0
        %1500 = vdwg.mxu0
        %1501 = vmatpush.bf16.msra.mxu0 0
        %1502 = vmatpush.bf16.msra.mxu0 0
        %1503 = vmatpush.bf16.msra.mxu0 0
        %1504 = vmatpush.bf16.msra.mxu0 0
        %1505 = vmatpush.bf16.msra.mxu0 0
        %1506 = vmatpush.bf16.msra.mxu0 0
        %1507 = vmatpush.bf16.msra.mxu0 0
        %1508 = vmatpush.bf16.msra.mxu0 %v1465
        %1509 = vmatmul.bf16.gmra.mxu0 %v1473
        %v1510 = vpop.f32.mrf.mxu0
        %v1511 = vadd.f32 0.0, %v1510
        %v1512 = vpop.f32.mrf.mxu0
        %1513 = vdwg.mxu0
        %v1514 = vadd.f32 %v1455, %v1485
        %v1515 = vadd.f32 %v1456, %v1498
        %v1516 = vadd.f32 %v1457, %v1511
        %s1517 = scalar_lea.vmem %s453, 32
        %v1518 = vld [vmem:[%s1517] sm:$0xf]
        %1519 = vrot.lane.b32.xlu0 %v1061, 90
        %v1520 = vpop.permute.xlu0 %1519
        %1521 = vrot.lane.b32.xlu0 %v1062, 90
        %v1522 = vpop.permute.xlu0 %1521
        %1523 = vrot.lane.b32.xlu0 %v1063, 90
        %v1524 = vpop.permute.xlu0 %1523
        %vm1525 = vcmask 736256
        %v1526 = vsel %vm1525, %v1520, %v1522
        %v1527 = vsel %vm1525, %v1522, %v1524
        %v1532 = vsel %vm1075, %v1518, 0
        %1534 = vmatpush.bf16.msra.mxu0 0
        %1535 = vmatpush.bf16.msra.mxu0 0
        %1536 = vmatpush.bf16.msra.mxu0 0
        %1537 = vmatpush.bf16.msra.mxu0 0
        %1538 = vmatpush.bf16.msra.mxu0 0
        %1539 = vmatpush.bf16.msra.mxu0 0
        %1540 = vmatpush.bf16.msra.mxu0 0
        %1541 = vmatpush.bf16.msra.mxu0 %v1526
        %1542 = vmatmul.bf16.gmra.mxu0 %v1532
        %v1543 = vpop.f32.mrf.mxu0
        %v1544 = vadd.f32 0.0, %v1543
        %v1545 = vpop.f32.mrf.mxu0
        %1546 = vdwg.mxu0
        %1547 = vmatpush.bf16.msra.mxu0 0
        %1548 = vmatpush.bf16.msra.mxu0 0
        %1549 = vmatpush.bf16.msra.mxu0 0
        %1550 = vmatpush.bf16.msra.mxu0 0
        %1551 = vmatpush.bf16.msra.mxu0 0
        %1552 = vmatpush.bf16.msra.mxu0 0
        %1553 = vmatpush.bf16.msra.mxu0 0
        %1554 = vmatpush.bf16.msra.mxu0 %v1527
        %1555 = vmatmul.bf16.gmra.mxu0 %v1532
        %v1556 = vpop.f32.mrf.mxu0
        %v1557 = vadd.f32 0.0, %v1556
        %v1558 = vpop.f32.mrf.mxu0
        %1559 = vdwg.mxu0
        %1560 = vmatpush.bf16.msra.mxu0 0
        %1561 = vmatpush.bf16.msra.mxu0 0
        %1562 = vmatpush.bf16.msra.mxu0 0
        %1563 = vmatpush.bf16.msra.mxu0 0
        %1564 = vmatpush.bf16.msra.mxu0 0
        %1565 = vmatpush.bf16.msra.mxu0 0
        %1566 = vmatpush.bf16.msra.mxu0 0
        %1567 = vmatpush.bf16.msra.mxu0 %v1524
        %1568 = vmatmul.bf16.gmra.mxu0 %v1532
        %v1569 = vpop.f32.mrf.mxu0
        %v1570 = vadd.f32 0.0, %v1569
        %v1571 = vpop.f32.mrf.mxu0
        %1572 = vdwg.mxu0
        %v1573 = vadd.f32 %v1514, %v1544
        %v1574 = vadd.f32 %v1515, %v1557
        %v1575 = vadd.f32 %v1516, %v1570
        %v1576 = vld [vmem:[%s2] sm:$0xff]
        %1578 = vset.pattern.permute.xlu0 0
        %1579 = vperm.xlu0 %1578, %v1576
        %v1580 = vpop.permute.xlu0 %1579
        %v1582 = vadd.f32 %v1573, %v1580
        %v1583 = vadd.f32 %v1574, %v1580
        %v1584 = vadd.f32 %v1575, %v1580
        %v1585 = vmul.f32 %v1582, 0.2
        %v1586 = vmul.f32 %v1583, 0.2
        %v1587 = vmul.f32 %v1584, 0.2
        %v1588 = vmax.f32 %v1582, %v1585
        %v1589 = vmax.f32 %v1583, %v1586
        %v1590 = vmax.f32 %v1584, %v1587
        %v1592 = vperm.slane %v473, 0
        %v1593 = vperm.slane %v473, 1
        %v1594 = vperm.slane %v473, 2
        %v1598 = vmul.f32 %v1588, %v1592
        %v1599 = vmul.f32 %v1589, %v1593
        %v1600 = vmul.f32 %v1590, %v1594
        %v1601 = vpack.c.bf16 %v1599, %v1598
        %v1602 = vpack.c.bf16 %v1600, %v1600
        %1603 = vst.msk [vmem:[#allocation3] sm:$0xf] %vm474, 0
        %1604 = vst.msk [vmem:[#allocation3 + $0x8] sm:$0xf] %vm477, 0
        %1607 = vrot.lane.b32.xlu0 %v1601, 19
        %v1608 = vpop.permute.xlu0 %1607
        %1609 = vrot.lane.b32.xlu0 %v1602, 19
        %v1610 = vpop.permute.xlu0 %1609
        %v1611 = vrot.slane %v1608, 4
        %vm1612 = vcmask 154624
        %v1613 = vsel %vm1612, %v1611, %v1608
        %v1614 = vsel %vm1612, %v1611, %v1610
        %vm1617 = vcmask 1043608
        %vm1618 = vcmask 1047556
        %vm1619 = vmor %vm1618, %vm1617
        %1620 = vst.msk [vmem:[#allocation3] sm:$0xff] %vm1619, %v1613
        %vm1621 = vcmask 412672
        %1622 = vst.msk [vmem:[#allocation3 + $0x8] sm:$0xf] %vm1621, %v1614
        %v1623 = vld [vmem:[%s458] sm:$0xf]
        %v1624 = vld [vmem:[#allocation3] sm:$0xff]
        %v1625 = vld [vmem:[#allocation3 + $0x8] sm:$0xf]
        %s1626 = scalar_lea.vmem %s458, 4
        %v1627 = vld [vmem:[%s1626] sm:$0xf]
        %v1630 = vunpack.c.l.b16 %v1624
        %v1631 = vunpack.c.h.b16 %v1624
        %v1632 = vunpack.c.l.b16 %v1625
        %v1633 = vpack.c.b16 %v1630, %v1630
        %v1634 = vpack.c.b16 %v1631, %v1631
        %v1635 = vpack.c.b16 %v1632, %v1632
        %1636 = vrot.lane.b32.xlu0 %v1633, 127
        %v1637 = vpop.permute.xlu0 %1636
        %1638 = vrot.lane.b32.xlu0 %v1634, 127
        %v1639 = vpop.permute.xlu0 %1638
        %1640 = vrot.lane.b32.xlu0 %v1635, 127
        %v1641 = vpop.permute.xlu0 %1640
        %v1642 = vsel %vm738, %v1637, %v1639
        %v1643 = vsel %vm738, %v1639, %v1641
        %vm1644 = vcmask 64512
        %v1646 = vsel %vm1644, %v1627, 0
        %vm1648 = vcmask 1043456
        %v1650 = vsel %vm1648, %v1642, 0
        %v1653 = vsel %vm1648, %v1643, 0
        %v1656 = vsel %vm1648, %v1641, 0
        %1658 = vmatpush.bf16.msra.mxu0 0
        %1659 = vmatpush.bf16.msra.mxu0 0
        %1660 = vmatpush.bf16.msra.mxu0 0
        %1661 = vmatpush.bf16.msra.mxu0 0
        %1662 = vmatpush.bf16.msra.mxu0 0
        %1663 = vmatpush.bf16.msra.mxu0 0
        %1664 = vmatpush.bf16.msra.mxu0 0
        %1665 = vmatpush.bf16.msra.mxu0 %v1650
        %1666 = vmatmul.bf16.gmra.mxu0 %v1646
        %v1667 = vpop.f32.mrf.mxu0
        %v1668 = vadd.f32 0.0, %v1667
        %v1669 = vpop.f32.mrf.mxu0
        %1670 = vdwg.mxu0
        %1671 = vmatpush.bf16.msra.mxu0 0
        %1672 = vmatpush.bf16.msra.mxu0 0
        %1673 = vmatpush.bf16.msra.mxu0 0
        %1674 = vmatpush.bf16.msra.mxu0 0
        %1675 = vmatpush.bf16.msra.mxu0 0
        %1676 = vmatpush.bf16.msra.mxu0 0
        %1677 = vmatpush.bf16.msra.mxu0 0
        %1678 = vmatpush.bf16.msra.mxu0 %v1653
        %1679 = vmatmul.bf16.gmra.mxu0 %v1646
        %v1680 = vpop.f32.mrf.mxu0
        %v1681 = vadd.f32 0.0, %v1680
        %v1682 = vpop.f32.mrf.mxu0
        %1683 = vdwg.mxu0
        %1684 = vmatpush.bf16.msra.mxu0 0
        %1685 = vmatpush.bf16.msra.mxu0 0
        %1686 = vmatpush.bf16.msra.mxu0 0
        %1687 = vmatpush.bf16.msra.mxu0 0
        %1688 = vmatpush.bf16.msra.mxu0 0
        %1689 = vmatpush.bf16.msra.mxu0 0
        %1690 = vmatpush.bf16.msra.mxu0 0
        %1691 = vmatpush.bf16.msra.mxu0 %v1656
        %1692 = vmatmul.bf16.gmra.mxu0 %v1646
        %v1693 = vpop.f32.mrf.mxu0
        %v1694 = vadd.f32 0.0, %v1693
        %v1695 = vpop.f32.mrf.mxu0
        %1696 = vdwg.mxu0
        %v1698 = vsel %vm1644, %v1623, 0
        %v1701 = vsel %vm1648, %v1633, 0
        %v1704 = vsel %vm1648, %v1634, 0
        %v1707 = vsel %vm1648, %v1635, 0
        %1709 = vmatpush.bf16.msra.mxu0 0
        %1710 = vmatpush.bf16.msra.mxu0 0
        %1711 = vmatpush.bf16.msra.mxu0 0
        %1712 = vmatpush.bf16.msra.mxu0 0
        %1713 = vmatpush.bf16.msra.mxu0 0
        %1714 = vmatpush.bf16.msra.mxu0 0
        %1715 = vmatpush.bf16.msra.mxu0 0
        %1716 = vmatpush.bf16.msra.mxu0 %v1701
        %1717 = vmatmul.bf16.gmra.mxu0 %v1698
        %v1718 = vpop.f32.mrf.mxu0
        %v1719 = vadd.f32 %v1668, %v1718
        %v1720 = vpop.f32.mrf.mxu0
        %1721 = vdwg.mxu0
        %1722 = vmatpush.bf16.msra.mxu0 0
        %1723 = vmatpush.bf16.msra.mxu0 0
        %1724 = vmatpush.bf16.msra.mxu0 0
        %1725 = vmatpush.bf16.msra.mxu0 0
        %1726 = vmatpush.bf16.msra.mxu0 0
        %1727 = vmatpush.bf16.msra.mxu0 0
        %1728 = vmatpush.bf16.msra.mxu0 0
        %1729 = vmatpush.bf16.msra.mxu0 %v1704
        %1730 = vmatmul.bf16.gmra.mxu0 %v1698
        %v1731 = vpop.f32.mrf.mxu0
        %v1732 = vadd.f32 %v1681, %v1731
        %v1733 = vpop.f32.mrf.mxu0
        %1734 = vdwg.mxu0
        %1735 = vmatpush.bf16.msra.mxu0 0
        %1736 = vmatpush.bf16.msra.mxu0 0
        %1737 = vmatpush.bf16.msra.mxu0 0
        %1738 = vmatpush.bf16.msra.mxu0 0
        %1739 = vmatpush.bf16.msra.mxu0 0
        %1740 = vmatpush.bf16.msra.mxu0 0
        %1741 = vmatpush.bf16.msra.mxu0 0
        %1742 = vmatpush.bf16.msra.mxu0 %v1707
        %1743 = vmatmul.bf16.gmra.mxu0 %v1698
        %v1744 = vpop.f32.mrf.mxu0
        %v1745 = vadd.f32 %v1694, %v1744
        %v1746 = vpop.f32.mrf.mxu0
        %1747 = vdwg.mxu0
        %s1748 = scalar_lea.vmem %s458, 8
        %v1749 = vld [vmem:[%s1748] sm:$0xf]
        %1750 = vrot.lane.b32.xlu0 %v1633, 126
        %v1751 = vpop.permute.xlu0 %1750
        %1752 = vrot.lane.b32.xlu0 %v1634, 126
        %v1753 = vpop.permute.xlu0 %1752
        %1754 = vrot.lane.b32.xlu0 %v1635, 126
        %v1755 = vpop.permute.xlu0 %1754
        %v1756 = vsel %vm1171, %v1751, %v1753
        %v1757 = vsel %vm1171, %v1753, %v1755
        %v1759 = vsel %vm1644, %v1749, 0
        %v1762 = vsel %vm1648, %v1756, 0
        %v1765 = vsel %vm1648, %v1757, 0
        %v1768 = vsel %vm1648, %v1755, 0
        %1770 = vmatpush.bf16.msra.mxu0 0
        %1771 = vmatpush.bf16.msra.mxu0 0
        %1772 = vmatpush.bf16.msra.mxu0 0
        %1773 = vmatpush.bf16.msra.mxu0 0
        %1774 = vmatpush.bf16.msra.mxu0 0
        %1775 = vmatpush.bf16.msra.mxu0 0
        %1776 = vmatpush.bf16.msra.mxu0 0
        %1777 = vmatpush.bf16.msra.mxu0 %v1762
        %1778 = vmatmul.bf16.gmra.mxu0 %v1759
        %v1779 = vpop.f32.mrf.mxu0
        %v1780 = vadd.f32 0.0, %v1779
        %v1781 = vpop.f32.mrf.mxu0
        %1782 = vdwg.mxu0
        %1783 = vmatpush.bf16.msra.mxu0 0
        %1784 = vmatpush.bf16.msra.mxu0 0
        %1785 = vmatpush.bf16.msra.mxu0 0
        %1786 = vmatpush.bf16.msra.mxu0 0
        %1787 = vmatpush.bf16.msra.mxu0 0
        %1788 = vmatpush.bf16.msra.mxu0 0
        %1789 = vmatpush.bf16.msra.mxu0 0
        %1790 = vmatpush.bf16.msra.mxu0 %v1765
        %1791 = vmatmul.bf16.gmra.mxu0 %v1759
        %v1792 = vpop.f32.mrf.mxu0
        %v1793 = vadd.f32 0.0, %v1792
        %v1794 = vpop.f32.mrf.mxu0
        %1795 = vdwg.mxu0
        %1796 = vmatpush.bf16.msra.mxu0 0
        %1797 = vmatpush.bf16.msra.mxu0 0
        %1798 = vmatpush.bf16.msra.mxu0 0
        %1799 = vmatpush.bf16.msra.mxu0 0
        %1800 = vmatpush.bf16.msra.mxu0 0
        %1801 = vmatpush.bf16.msra.mxu0 0
        %1802 = vmatpush.bf16.msra.mxu0 0
        %1803 = vmatpush.bf16.msra.mxu0 %v1768
        %1804 = vmatmul.bf16.gmra.mxu0 %v1759
        %v1805 = vpop.f32.mrf.mxu0
        %v1806 = vadd.f32 0.0, %v1805
        %v1807 = vpop.f32.mrf.mxu0
        %1808 = vdwg.mxu0
        %v1809 = vadd.f32 %v1719, %v1780
        %v1810 = vadd.f32 %v1732, %v1793
        %v1811 = vadd.f32 %v1745, %v1806
        %s1812 = scalar_lea.vmem %s458, 12
        %v1813 = vld [vmem:[%s1812] sm:$0xf]
        %1814 = vrot.lane.b32.xlu0 %v1633, 110
        %v1815 = vpop.permute.xlu0 %1814
        %1816 = vrot.lane.b32.xlu0 %v1634, 110
        %v1817 = vpop.permute.xlu0 %1816
        %1818 = vrot.lane.b32.xlu0 %v1635, 110
        %v1819 = vpop.permute.xlu0 %1818
        %v1820 = vsel %vm1230, %v1815, %v1817
        %v1821 = vsel %vm1230, %v1817, %v1819
        %v1823 = vsel %vm1644, %v1813, 0
        %v1826 = vsel %vm1648, %v1820, 0
        %v1829 = vsel %vm1648, %v1821, 0
        %v1832 = vsel %vm1648, %v1819, 0
        %1834 = vmatpush.bf16.msra.mxu0 0
        %1835 = vmatpush.bf16.msra.mxu0 0
        %1836 = vmatpush.bf16.msra.mxu0 0
        %1837 = vmatpush.bf16.msra.mxu0 0
        %1838 = vmatpush.bf16.msra.mxu0 0
        %1839 = vmatpush.bf16.msra.mxu0 0
        %1840 = vmatpush.bf16.msra.mxu0 0
        %1841 = vmatpush.bf16.msra.mxu0 %v1826
        %1842 = vmatmul.bf16.gmra.mxu0 %v1823
        %v1843 = vpop.f32.mrf.mxu0
        %v1844 = vadd.f32 0.0, %v1843
        %v1845 = vpop.f32.mrf.mxu0
        %1846 = vdwg.mxu0
        %1847 = vmatpush.bf16.msra.mxu0 0
        %1848 = vmatpush.bf16.msra.mxu0 0
        %1849 = vmatpush.bf16.msra.mxu0 0
        %1850 = vmatpush.bf16.msra.mxu0 0
        %1851 = vmatpush.bf16.msra.mxu0 0
        %1852 = vmatpush.bf16.msra.mxu0 0
        %1853 = vmatpush.bf16.msra.mxu0 0
        %1854 = vmatpush.bf16.msra.mxu0 %v1829
        %1855 = vmatmul.bf16.gmra.mxu0 %v1823
        %v1856 = vpop.f32.mrf.mxu0
        %v1857 = vadd.f32 0.0, %v1856
        %v1858 = vpop.f32.mrf.mxu0
        %1859 = vdwg.mxu0
        %1860 = vmatpush.bf16.msra.mxu0 0
        %1861 = vmatpush.bf16.msra.mxu0 0
        %1862 = vmatpush.bf16.msra.mxu0 0
        %1863 = vmatpush.bf16.msra.mxu0 0
        %1864 = vmatpush.bf16.msra.mxu0 0
        %1865 = vmatpush.bf16.msra.mxu0 0
        %1866 = vmatpush.bf16.msra.mxu0 0
        %1867 = vmatpush.bf16.msra.mxu0 %v1832
        %1868 = vmatmul.bf16.gmra.mxu0 %v1823
        %v1869 = vpop.f32.mrf.mxu0
        %v1870 = vadd.f32 0.0, %v1869
        %v1871 = vpop.f32.mrf.mxu0
        %1872 = vdwg.mxu0
        %v1873 = vadd.f32 %v1809, %v1844
        %v1874 = vadd.f32 %v1810, %v1857
        %v1875 = vadd.f32 %v1811, %v1870
        %s1876 = scalar_lea.vmem %s458, 16
        %v1877 = vld [vmem:[%s1876] sm:$0xf]
        %1878 = vrot.lane.b32.xlu0 %v1633, 109
        %v1879 = vpop.permute.xlu0 %1878
        %1880 = vrot.lane.b32.xlu0 %v1634, 109
        %v1881 = vpop.permute.xlu0 %1880
        %1882 = vrot.lane.b32.xlu0 %v1635, 109
        %v1883 = vpop.permute.xlu0 %1882
        %v1884 = vsel %vm1289, %v1879, %v1881
        %v1885 = vsel %vm1289, %v1881, %v1883
        %v1887 = vsel %vm1644, %v1877, 0
        %v1890 = vsel %vm1648, %v1884, 0
        %v1893 = vsel %vm1648, %v1885, 0
        %v1896 = vsel %vm1648, %v1883, 0
        %1898 = vmatpush.bf16.msra.mxu0 0
        %1899 = vmatpush.bf16.msra.mxu0 0
        %1900 = vmatpush.bf16.msra.mxu0 0
        %1901 = vmatpush.bf16.msra.mxu0 0
        %1902 = vmatpush.bf16.msra.mxu0 0
        %1903 = vmatpush.bf16.msra.mxu0 0
        %1904 = vmatpush.bf16.msra.mxu0 0
        %1905 = vmatpush.bf16.msra.mxu0 %v1890
        %1906 = vmatmul.bf16.gmra.mxu0 %v1887
        %v1907 = vpop.f32.mrf.mxu0
        %v1908 = vadd.f32 0.0, %v1907
        %v1909 = vpop.f32.mrf.mxu0
        %1910 = vdwg.mxu0
        %1911 = vmatpush.bf16.msra.mxu0 0
        %1912 = vmatpush.bf16.msra.mxu0 0
        %1913 = vmatpush.bf16.msra.mxu0 0
        %1914 = vmatpush.bf16.msra.mxu0 0
        %1915 = vmatpush.bf16.msra.mxu0 0
        %1916 = vmatpush.bf16.msra.mxu0 0
        %1917 = vmatpush.bf16.msra.mxu0 0
        %1918 = vmatpush.bf16.msra.mxu0 %v1893
        %1919 = vmatmul.bf16.gmra.mxu0 %v1887
        %v1920 = vpop.f32.mrf.mxu0
        %v1921 = vadd.f32 0.0, %v1920
        %v1922 = vpop.f32.mrf.mxu0
        %1923 = vdwg.mxu0
        %1924 = vmatpush.bf16.msra.mxu0 0
        %1925 = vmatpush.bf16.msra.mxu0 0
        %1926 = vmatpush.bf16.msra.mxu0 0
        %1927 = vmatpush.bf16.msra.mxu0 0
        %1928 = vmatpush.bf16.msra.mxu0 0
        %1929 = vmatpush.bf16.msra.mxu0 0
        %1930 = vmatpush.bf16.msra.mxu0 0
        %1931 = vmatpush.bf16.msra.mxu0 %v1896
        %1932 = vmatmul.bf16.gmra.mxu0 %v1887
        %v1933 = vpop.f32.mrf.mxu0
        %v1934 = vadd.f32 0.0, %v1933
        %v1935 = vpop.f32.mrf.mxu0
        %1936 = vdwg.mxu0
        %v1937 = vadd.f32 %v1873, %v1908
        %v1938 = vadd.f32 %v1874, %v1921
        %v1939 = vadd.f32 %v1875, %v1934
        %s1940 = scalar_lea.vmem %s458, 20
        %v1941 = vld [vmem:[%s1940] sm:$0xf]
        %1942 = vrot.lane.b32.xlu0 %v1633, 108
        %v1943 = vpop.permute.xlu0 %1942
        %1944 = vrot.lane.b32.xlu0 %v1634, 108
        %v1945 = vpop.permute.xlu0 %1944
        %1946 = vrot.lane.b32.xlu0 %v1635, 108
        %v1947 = vpop.permute.xlu0 %1946
        %v1948 = vsel %vm1348, %v1943, %v1945
        %v1949 = vsel %vm1348, %v1945, %v1947
        %v1951 = vsel %vm1644, %v1941, 0
        %v1954 = vsel %vm1648, %v1948, 0
        %v1957 = vsel %vm1648, %v1949, 0
        %v1960 = vsel %vm1648, %v1947, 0
        %1962 = vmatpush.bf16.msra.mxu0 0
        %1963 = vmatpush.bf16.msra.mxu0 0
        %1964 = vmatpush.bf16.msra.mxu0 0
        %1965 = vmatpush.bf16.msra.mxu0 0
        %1966 = vmatpush.bf16.msra.mxu0 0
        %1967 = vmatpush.bf16.msra.mxu0 0
        %1968 = vmatpush.bf16.msra.mxu0 0
        %1969 = vmatpush.bf16.msra.mxu0 %v1954
        %1970 = vmatmul.bf16.gmra.mxu0 %v1951
        %v1971 = vpop.f32.mrf.mxu0
        %v1972 = vadd.f32 0.0, %v1971
        %v1973 = vpop.f32.mrf.mxu0
        %1974 = vdwg.mxu0
        %1975 = vmatpush.bf16.msra.mxu0 0
        %1976 = vmatpush.bf16.msra.mxu0 0
        %1977 = vmatpush.bf16.msra.mxu0 0
        %1978 = vmatpush.bf16.msra.mxu0 0
        %1979 = vmatpush.bf16.msra.mxu0 0
        %1980 = vmatpush.bf16.msra.mxu0 0
        %1981 = vmatpush.bf16.msra.mxu0 0
        %1982 = vmatpush.bf16.msra.mxu0 %v1957
        %1983 = vmatmul.bf16.gmra.mxu0 %v1951
        %v1984 = vpop.f32.mrf.mxu0
        %v1985 = vadd.f32 0.0, %v1984
        %v1986 = vpop.f32.mrf.mxu0
        %1987 = vdwg.mxu0
        %1988 = vmatpush.bf16.msra.mxu0 0
        %1989 = vmatpush.bf16.msra.mxu0 0
        %1990 = vmatpush.bf16.msra.mxu0 0
        %1991 = vmatpush.bf16.msra.mxu0 0
        %1992 = vmatpush.bf16.msra.mxu0 0
        %1993 = vmatpush.bf16.msra.mxu0 0
        %1994 = vmatpush.bf16.msra.mxu0 0
        %1995 = vmatpush.bf16.msra.mxu0 %v1960
        %1996 = vmatmul.bf16.gmra.mxu0 %v1951
        %v1997 = vpop.f32.mrf.mxu0
        %v1998 = vadd.f32 0.0, %v1997
        %v1999 = vpop.f32.mrf.mxu0
        %2000 = vdwg.mxu0
        %v2001 = vadd.f32 %v1937, %v1972
        %v2002 = vadd.f32 %v1938, %v1985
        %v2003 = vadd.f32 %v1939, %v1998
        %s2004 = scalar_lea.vmem %s458, 24
        %v2005 = vld [vmem:[%s2004] sm:$0xf]
        %2006 = vrot.lane.b32.xlu0 %v1633, 92
        %v2007 = vpop.permute.xlu0 %2006
        %2008 = vrot.lane.b32.xlu0 %v1634, 92
        %v2009 = vpop.permute.xlu0 %2008
        %2010 = vrot.lane.b32.xlu0 %v1635, 92
        %v2011 = vpop.permute.xlu0 %2010
        %v2012 = vsel %vm1407, %v2007, %v2009
        %v2013 = vsel %vm1407, %v2009, %v2011
        %v2015 = vsel %vm1644, %v2005, 0
        %v2018 = vsel %vm1648, %v2012, 0
        %v2021 = vsel %vm1648, %v2013, 0
        %v2024 = vsel %vm1648, %v2011, 0
        %2026 = vmatpush.bf16.msra.mxu0 0
        %2027 = vmatpush.bf16.msra.mxu0 0
        %2028 = vmatpush.bf16.msra.mxu0 0
        %2029 = vmatpush.bf16.msra.mxu0 0
        %2030 = vmatpush.bf16.msra.mxu0 0
        %2031 = vmatpush.bf16.msra.mxu0 0
        %2032 = vmatpush.bf16.msra.mxu0 0
        %2033 = vmatpush.bf16.msra.mxu0 %v2018
        %2034 = vmatmul.bf16.gmra.mxu0 %v2015
        %v2035 = vpop.f32.mrf.mxu0
        %v2036 = vadd.f32 0.0, %v2035
        %v2037 = vpop.f32.mrf.mxu0
        %2038 = vdwg.mxu0
        %2039 = vmatpush.bf16.msra.mxu0 0
        %2040 = vmatpush.bf16.msra.mxu0 0
        %2041 = vmatpush.bf16.msra.mxu0 0
        %2042 = vmatpush.bf16.msra.mxu0 0
        %2043 = vmatpush.bf16.msra.mxu0 0
        %2044 = vmatpush.bf16.msra.mxu0 0
        %2045 = vmatpush.bf16.msra.mxu0 0
        %2046 = vmatpush.bf16.msra.mxu0 %v2021
        %2047 = vmatmul.bf16.gmra.mxu0 %v2015
        %v2048 = vpop.f32.mrf.mxu0
        %v2049 = vadd.f32 0.0, %v2048
        %v2050 = vpop.f32.mrf.mxu0
        %2051 = vdwg.mxu0
        %2052 = vmatpush.bf16.msra.mxu0 0
        %2053 = vmatpush.bf16.msra.mxu0 0
        %2054 = vmatpush.bf16.msra.mxu0 0
        %2055 = vmatpush.bf16.msra.mxu0 0
        %2056 = vmatpush.bf16.msra.mxu0 0
        %2057 = vmatpush.bf16.msra.mxu0 0
        %2058 = vmatpush.bf16.msra.mxu0 0
        %2059 = vmatpush.bf16.msra.mxu0 %v2024
        %2060 = vmatmul.bf16.gmra.mxu0 %v2015
        %v2061 = vpop.f32.mrf.mxu0
        %v2062 = vadd.f32 0.0, %v2061
        %v2063 = vpop.f32.mrf.mxu0
        %2064 = vdwg.mxu0
        %v2065 = vadd.f32 %v2001, %v2036
        %v2066 = vadd.f32 %v2002, %v2049
        %v2067 = vadd.f32 %v2003, %v2062
        %s2068 = scalar_lea.vmem %s458, 28
        %v2069 = vld [vmem:[%s2068] sm:$0xf]
        %2070 = vrot.lane.b32.xlu0 %v1633, 91
        %v2071 = vpop.permute.xlu0 %2070
        %2072 = vrot.lane.b32.xlu0 %v1634, 91
        %v2073 = vpop.permute.xlu0 %2072
        %2074 = vrot.lane.b32.xlu0 %v1635, 91
        %v2075 = vpop.permute.xlu0 %2074
        %v2076 = vsel %vm1466, %v2071, %v2073
        %v2077 = vsel %vm1466, %v2073, %v2075
        %v2079 = vsel %vm1644, %v2069, 0
        %v2082 = vsel %vm1648, %v2076, 0
        %v2085 = vsel %vm1648, %v2077, 0
        %v2088 = vsel %vm1648, %v2075, 0
        %2090 = vmatpush.bf16.msra.mxu0 0
        %2091 = vmatpush.bf16.msra.mxu0 0
        %2092 = vmatpush.bf16.msra.mxu0 0
        %2093 = vmatpush.bf16.msra.mxu0 0
        %2094 = vmatpush.bf16.msra.mxu0 0
        %2095 = vmatpush.bf16.msra.mxu0 0
        %2096 = vmatpush.bf16.msra.mxu0 0
        %2097 = vmatpush.bf16.msra.mxu0 %v2082
        %2098 = vmatmul.bf16.gmra.mxu0 %v2079
        %v2099 = vpop.f32.mrf.mxu0
        %v2100 = vadd.f32 0.0, %v2099
        %v2101 = vpop.f32.mrf.mxu0
        %2102 = vdwg.mxu0
        %2103 = vmatpush.bf16.msra.mxu0 0
        %2104 = vmatpush.bf16.msra.mxu0 0
        %2105 = vmatpush.bf16.msra.mxu0 0
        %2106 = vmatpush.bf16.msra.mxu0 0
        %2107 = vmatpush.bf16.msra.mxu0 0
        %2108 = vmatpush.bf16.msra.mxu0 0
        %2109 = vmatpush.bf16.msra.mxu0 0
        %2110 = vmatpush.bf16.msra.mxu0 %v2085
        %2111 = vmatmul.bf16.gmra.mxu0 %v2079
        %v2112 = vpop.f32.mrf.mxu0
        %v2113 = vadd.f32 0.0, %v2112
        %v2114 = vpop.f32.mrf.mxu0
        %2115 = vdwg.mxu0
        %2116 = vmatpush.bf16.msra.mxu0 0
        %2117 = vmatpush.bf16.msra.mxu0 0
        %2118 = vmatpush.bf16.msra.mxu0 0
        %2119 = vmatpush.bf16.msra.mxu0 0
        %2120 = vmatpush.bf16.msra.mxu0 0
        %2121 = vmatpush.bf16.msra.mxu0 0
        %2122 = vmatpush.bf16.msra.mxu0 0
        %2123 = vmatpush.bf16.msra.mxu0 %v2088
        %2124 = vmatmul.bf16.gmra.mxu0 %v2079
        %v2125 = vpop.f32.mrf.mxu0
        %v2126 = vadd.f32 0.0, %v2125
        %v2127 = vpop.f32.mrf.mxu0
        %2128 = vdwg.mxu0
        %v2129 = vadd.f32 %v2065, %v2100
        %v2130 = vadd.f32 %v2066, %v2113
        %v2131 = vadd.f32 %v2067, %v2126
        %s2132 = scalar_lea.vmem %s458, 32
        %v2133 = vld [vmem:[%s2132] sm:$0xf]
        %2134 = vrot.lane.b32.xlu0 %v1633, 90
        %v2135 = vpop.permute.xlu0 %2134
        %2136 = vrot.lane.b32.xlu0 %v1634, 90
        %v2137 = vpop.permute.xlu0 %2136
        %2138 = vrot.lane.b32.xlu0 %v1635, 90
        %v2139 = vpop.permute.xlu0 %2138
        %v2140 = vsel %vm1525, %v2135, %v2137
        %v2141 = vsel %vm1525, %v2137, %v2139
        %v2143 = vsel %vm1644, %v2133, 0
        %v2146 = vsel %vm1648, %v2140, 0
        %v2149 = vsel %vm1648, %v2141, 0
        %v2152 = vsel %vm1648, %v2139, 0
        %2154 = vmatpush.bf16.msra.mxu0 0
        %2155 = vmatpush.bf16.msra.mxu0 0
        %2156 = vmatpush.bf16.msra.mxu0 0
        %2157 = vmatpush.bf16.msra.mxu0 0
        %2158 = vmatpush.bf16.msra.mxu0 0
        %2159 = vmatpush.bf16.msra.mxu0 0
        %2160 = vmatpush.bf16.msra.mxu0 0
        %2161 = vmatpush.bf16.msra.mxu0 %v2146
        %2162 = vmatmul.bf16.gmra.mxu0 %v2143
        %v2163 = vpop.f32.mrf.mxu0
        %v2164 = vadd.f32 0.0, %v2163
        %v2165 = vpop.f32.mrf.mxu0
        %2166 = vdwg.mxu0
        %2167 = vmatpush.bf16.msra.mxu0 0
        %2168 = vmatpush.bf16.msra.mxu0 0
        %2169 = vmatpush.bf16.msra.mxu0 0
        %2170 = vmatpush.bf16.msra.mxu0 0
        %2171 = vmatpush.bf16.msra.mxu0 0
        %2172 = vmatpush.bf16.msra.mxu0 0
        %2173 = vmatpush.bf16.msra.mxu0 0
        %2174 = vmatpush.bf16.msra.mxu0 %v2149
        %2175 = vmatmul.bf16.gmra.mxu0 %v2143
        %v2176 = vpop.f32.mrf.mxu0
        %v2177 = vadd.f32 0.0, %v2176
        %v2178 = vpop.f32.mrf.mxu0
        %2179 = vdwg.mxu0
        %2180 = vmatpush.bf16.msra.mxu0 0
        %2181 = vmatpush.bf16.msra.mxu0 0
        %2182 = vmatpush.bf16.msra.mxu0 0
        %2183 = vmatpush.bf16.msra.mxu0 0
        %2184 = vmatpush.bf16.msra.mxu0 0
        %2185 = vmatpush.bf16.msra.mxu0 0
        %2186 = vmatpush.bf16.msra.mxu0 0
        %2187 = vmatpush.bf16.msra.mxu0 %v2152
        %2188 = vmatmul.bf16.gmra.mxu0 %v2143
        %v2189 = vpop.f32.mrf.mxu0
        %v2190 = vadd.f32 0.0, %v2189
        %v2191 = vpop.f32.mrf.mxu0
        %2192 = vdwg.mxu0
        %v2193 = vadd.f32 %v2129, %v2164
        %v2194 = vadd.f32 %v2130, %v2177
        %v2195 = vadd.f32 %v2131, %v2190
        %v2196 = vld [vmem:[%s4] sm:$0xff]
        %2198 = vset.pattern.permute.xlu0 0
        %2199 = vperm.xlu0 %2198, %v2196
        %v2200 = vpop.permute.xlu0 %2199
        %v2202 = vadd.f32 %v2193, %v2200
        %v2203 = vadd.f32 %v2194, %v2200
        %v2204 = vadd.f32 %v2195, %v2200
        %v2205 = vmul.f32 %v2202, 0.2
        %v2206 = vmul.f32 %v2203, 0.2
        %v2207 = vmul.f32 %v2204, 0.2
        %v2208 = vmax.f32 %v2202, %v2205
        %v2209 = vmax.f32 %v2203, %v2206
        %v2210 = vmax.f32 %v2204, %v2207
        %v2211 = vmul.f32 %v2208, %v1592
        %v2212 = vmul.f32 %v2209, %v1593
        %v2213 = vmul.f32 %v2210, %v1594
        %v2214 = vpack.c.bf16 %v2212, %v2211
        %v2215 = vpack.c.bf16 %v2213, %v2213
        %2216 = vst [vmem:[%s436] sm:$0xff] %v2214
        %vm2217 = vcmask 257024
        %2218 = vst.msk [vmem:[%s436 + $0x8] sm:$0xf] %vm2217, %v2215
        %v2219 = vld [vmem:[%s462] sm:$0x3]
        %v2220 = vld [vmem:[%s6] sm:$0xf]
        %2222 = vset.pattern.permute.xlu0 0
        %2223 = vperm.xlu0 %2222, %v2220
        %v2224 = vpop.permute.xlu0 %2223
        %v2228 = vunpack.c.l.b16 %v2214
        %v2229 = vunpack.c.h.b16 %v2214
        %v2230 = vunpack.c.l.b16 %v2215
        %v2231 = vpack.c.b16 %v2228, %v2228
        %v2232 = vpack.c.b16 %v2229, %v2229
        %v2233 = vpack.c.b16 %v2230, %v2230
        %v2235 = vsel %vm1644, %v2219, 0
        %v2238 = vsel %vm1648, %v2231, 0
        %v2241 = vsel %vm1648, %v2232, 0
        %v2244 = vsel %vm1648, %v2233, 0
        %2246 = vmatpush.bf16.msra.mxu0 0
        %2247 = vmatpush.bf16.msra.mxu0 0
        %2248 = vmatpush.bf16.msra.mxu0 0
        %2249 = vmatpush.bf16.msra.mxu0 0
        %2250 = vmatpush.bf16.msra.mxu0 0
        %2251 = vmatpush.bf16.msra.mxu0 0
        %2252 = vmatpush.bf16.msra.mxu0 0
        %2253 = vmatpush.bf16.msra.mxu0 %v2238
        %2254 = vmatmul.bf16.gmra.mxu0 %v2235
        %v2255 = vpop.f32.mrf.mxu0
        %v2256 = vadd.f32 %v2224, %v2255
        %v2257 = vpop.f32.mrf.mxu0
        %2258 = vdwg.mxu0
        %2259 = vmatpush.bf16.msra.mxu0 0
        %2260 = vmatpush.bf16.msra.mxu0 0
        %2261 = vmatpush.bf16.msra.mxu0 0
        %2262 = vmatpush.bf16.msra.mxu0 0
        %2263 = vmatpush.bf16.msra.mxu0 0
        %2264 = vmatpush.bf16.msra.mxu0 0
        %2265 = vmatpush.bf16.msra.mxu0 0
        %2266 = vmatpush.bf16.msra.mxu0 %v2241
        %2267 = vmatmul.bf16.gmra.mxu0 %v2235
        %v2268 = vpop.f32.mrf.mxu0
        %v2269 = vadd.f32 %v2224, %v2268
        %v2270 = vpop.f32.mrf.mxu0
        %2271 = vdwg.mxu0
        %2272 = vmatpush.bf16.msra.mxu0 0
        %2273 = vmatpush.bf16.msra.mxu0 0
        %2274 = vmatpush.bf16.msra.mxu0 0
        %2275 = vmatpush.bf16.msra.mxu0 0
        %2276 = vmatpush.bf16.msra.mxu0 0
        %2277 = vmatpush.bf16.msra.mxu0 0
        %2278 = vmatpush.bf16.msra.mxu0 0
        %2279 = vmatpush.bf16.msra.mxu0 %v2244
        %2280 = vmatmul.bf16.gmra.mxu0 %v2235
        %v2281 = vpop.f32.mrf.mxu0
        %v2282 = vadd.f32 %v2224, %v2281
        %v2283 = vpop.f32.mrf.mxu0
        %2284 = vdwg.mxu0
        %v2285 = vld [vmem:[%s466] sm:$0xf]
        %v2286 = vld [vmem:[%s8] sm:$0xff]
        %v2287 = vld [vmem:[%s8 + $0x8] sm:$0x3]
        %v2288 = vmul.f32 %v2285, 0.75
        %v2289 = vmul.f32 %v2285, 0.25
        %v2290 = vadd.f32 %v2288, %v2289
        %v2292 = vsel %vm494, %v2290, 0
        %vm2294 = vcmask 1041408
        %v2296 = vsel %vm2294, %v2287, 0
        %2298 = vmatpush.msra.mxu0 0.0
        %2299 = vmatpush.msra.mxu0 0.0
        %2300 = vmatpush.msra.mxu0 0.0
        %2301 = vmatpush.msra.mxu0 0.0
        %2302 = vmatpush.msra.mxu0 0.0
        %2303 = vmatpush.msra.mxu0 0.0
        %2304 = vmatpush.msra.mxu0 0.0
        %2305 = vmatpush.msra.mxu0 0.0
        %2306 = vmatpush.msra.mxu0 0.0
        %2307 = vmatpush.msra.mxu0 0.0
        %2308 = vmatpush.msra.mxu0 0.0
        %2309 = vmatpush.msra.mxu0 0.0
        %2310 = vmatpush.msra.mxu0 0.0
        %2311 = vmatpush.msra.mxu0 0.0
        %2312 = vmatpush.msra.mxu0 %v2296
        %2313 = vmatpush.msra.mxu0 %v2286
        %2314 = vmatmul.f32.gmra.mxu0 %v2292
        %v2315 = vpop.f32.mrf.mxu0
        %v2316 = vadd.f32 0.0, %v2315
        %2317 = vdwg.mxu0
        %vm2318 = vcmask 142336
        %2319 = vst.msk [vmem:[#allocation4] sm:$0xf] %vm2318, %v2316
        %2321 = vrot.lane.b32.xlu0 %v2289, 118
        %v2322 = vpop.permute.xlu0 %2321
        %v2324 = vadd.f32 %v2288, %v2322
        %v2326 = vsel %vm494, %v2324, 0
        %2328 = vmatpush.msra.mxu0 0.0
        %2329 = vmatpush.msra.mxu0 0.0
        %2330 = vmatpush.msra.mxu0 0.0
        %2331 = vmatpush.msra.mxu0 0.0
        %2332 = vmatpush.msra.mxu0 0.0
        %2333 = vmatpush.msra.mxu0 0.0
        %2334 = vmatpush.msra.mxu0 0.0
        %2335 = vmatpush.msra.mxu0 0.0
        %2336 = vmatpush.msra.mxu0 0.0
        %2337 = vmatpush.msra.mxu0 0.0
        %2338 = vmatpush.msra.mxu0 0.0
        %2339 = vmatpush.msra.mxu0 0.0
        %2340 = vmatpush.msra.mxu0 0.0
        %2341 = vmatpush.msra.mxu0 0.0
        %2342 = vmatpush.msra.mxu0 %v2296
        %2343 = vmatpush.msra.mxu0 %v2286
        %2344 = vmatmul.f32.gmra.mxu0 %v2326
        %v2345 = vpop.f32.mrf.mxu0
        %v2346 = vadd.f32 0.0, %v2345
        %2347 = vdwg.mxu0
        %2349 = vrot.lane.b32.xlu0 %v2346, 18
        %v2350 = vpop.permute.xlu0 %2349
        %vm2352 = vcmask 289936
        %2353 = vst.msk [vmem:[#allocation4] sm:$0xf] %vm2352, %v2350
        %2354 = vrot.lane.b32.xlu0 %v2289, 10
        %v2355 = vpop.permute.xlu0 %2354
        %v2357 = vadd.f32 %v2288, %v2355
        %2359 = vrot.lane.b32.xlu0 %v2357, 118
        %v2360 = vpop.permute.xlu0 %2359
        %v2361 = vsel %vm494, %v2360, 0
        %2363 = vmatpush.msra.mxu0 0.0
        %2364 = vmatpush.msra.mxu0 0.0
        %2365 = vmatpush.msra.mxu0 0.0
        %2366 = vmatpush.msra.mxu0 0.0
        %2367 = vmatpush.msra.mxu0 0.0
        %2368 = vmatpush.msra.mxu0 0.0
        %2369 = vmatpush.msra.mxu0 0.0
        %2370 = vmatpush.msra.mxu0 0.0
        %2371 = vmatpush.msra.mxu0 0.0
        %2372 = vmatpush.msra.mxu0 0.0
        %2373 = vmatpush.msra.mxu0 0.0
        %2374 = vmatpush.msra.mxu0 0.0
        %2375 = vmatpush.msra.mxu0 0.0
        %2376 = vmatpush.msra.mxu0 0.0
        %2377 = vmatpush.msra.mxu0 %v2296
        %2378 = vmatpush.msra.mxu0 %v2286
        %2379 = vmatmul.f32.gmra.mxu0 %v2361
        %v2380 = vpop.f32.mrf.mxu0
        %v2381 = vadd.f32 0.0, %v2380
        %2382 = vdwg.mxu0
        %2384 = vrot.lane.b32.xlu0 %v2381, 36
        %v2385 = vpop.permute.xlu0 %2384
        %vm2387 = vcmask 437536
        %2388 = vst.msk [vmem:[#allocation4] sm:$0xf] %vm2387, %v2385
        %2389 = vrot.lane.b32.xlu0 %v2324, 118
        %v2390 = vpop.permute.xlu0 %2389
        %v2391 = vsel %vm494, %v2390, 0
        %2393 = vmatpush.msra.mxu0 0.0
        %2394 = vmatpush.msra.mxu0 0.0
        %2395 = vmatpush.msra.mxu0 0.0
        %2396 = vmatpush.msra.mxu0 0.0
        %2397 = vmatpush.msra.mxu0 0.0
        %2398 = vmatpush.msra.mxu0 0.0
        %2399 = vmatpush.msra.mxu0 0.0
        %2400 = vmatpush.msra.mxu0 0.0
        %2401 = vmatpush.msra.mxu0 0.0
        %2402 = vmatpush.msra.mxu0 0.0
        %2403 = vmatpush.msra.mxu0 0.0
        %2404 = vmatpush.msra.mxu0 0.0
        %2405 = vmatpush.msra.mxu0 0.0
        %2406 = vmatpush.msra.mxu0 0.0
        %2407 = vmatpush.msra.mxu0 %v2296
        %2408 = vmatpush.msra.mxu0 %v2286
        %2409 = vmatmul.f32.gmra.mxu0 %v2391
        %v2410 = vpop.f32.mrf.mxu0
        %v2411 = vadd.f32 0.0, %v2410
        %2412 = vdwg.mxu0
        %2414 = vrot.lane.b32.xlu0 %v2411, 54
        %v2415 = vpop.permute.xlu0 %2414
        %vm2417 = vcmask 585136
        %2418 = vst.msk [vmem:[#allocation4] sm:$0xf] %vm2417, %v2415
        %2419 = vrot.lane.b32.xlu0 %v2357, 108
        %v2420 = vpop.permute.xlu0 %2419
        %v2421 = vsel %vm494, %v2420, 0
        %2423 = vmatpush.msra.mxu0 0.0
        %2424 = vmatpush.msra.mxu0 0.0
        %2425 = vmatpush.msra.mxu0 0.0
        %2426 = vmatpush.msra.mxu0 0.0
        %2427 = vmatpush.msra.mxu0 0.0
        %2428 = vmatpush.msra.mxu0 0.0
        %2429 = vmatpush.msra.mxu0 0.0
        %2430 = vmatpush.msra.mxu0 0.0
        %2431 = vmatpush.msra.mxu0 0.0
        %2432 = vmatpush.msra.mxu0 0.0
        %2433 = vmatpush.msra.mxu0 0.0
        %2434 = vmatpush.msra.mxu0 0.0
        %2435 = vmatpush.msra.mxu0 0.0
        %2436 = vmatpush.msra.mxu0 0.0
        %2437 = vmatpush.msra.mxu0 %v2296
        %2438 = vmatpush.msra.mxu0 %v2286
        %2439 = vmatmul.f32.gmra.mxu0 %v2421
        %v2440 = vpop.f32.mrf.mxu0
        %v2441 = vadd.f32 0.0, %v2440
        %2442 = vdwg.mxu0
        %2444 = vrot.lane.b32.xlu0 %v2441, 72
        %v2445 = vpop.permute.xlu0 %2444
        %vm2447 = vcmask 732736
        %2448 = vst.msk [vmem:[#allocation4] sm:$0xf] %vm2447, %v2445
        %2449 = vrot.lane.b32.xlu0 %v2324, 108
        %v2450 = vpop.permute.xlu0 %2449
        %v2451 = vsel %vm494, %v2450, 0
        %2453 = vmatpush.msra.mxu0 0.0
        %2454 = vmatpush.msra.mxu0 0.0
        %2455 = vmatpush.msra.mxu0 0.0
        %2456 = vmatpush.msra.mxu0 0.0
        %2457 = vmatpush.msra.mxu0 0.0
        %2458 = vmatpush.msra.mxu0 0.0
        %2459 = vmatpush.msra.mxu0 0.0
        %2460 = vmatpush.msra.mxu0 0.0
        %2461 = vmatpush.msra.mxu0 0.0
        %2462 = vmatpush.msra.mxu0 0.0
        %2463 = vmatpush.msra.mxu0 0.0
        %2464 = vmatpush.msra.mxu0 0.0
        %2465 = vmatpush.msra.mxu0 0.0
        %2466 = vmatpush.msra.mxu0 0.0
        %2467 = vmatpush.msra.mxu0 %v2296
        %2468 = vmatpush.msra.mxu0 %v2286
        %2469 = vmatmul.f32.gmra.mxu0 %v2451
        %v2470 = vpop.f32.mrf.mxu0
        %v2471 = vadd.f32 0.0, %v2470
        %2472 = vdwg.mxu0
        %2474 = vrot.lane.b32.xlu0 %v2471, 90
        %v2475 = vpop.permute.xlu0 %2474
        %vm2477 = vcmask 880336
        %2478 = vst.msk [vmem:[#allocation4] sm:$0xf] %vm2477, %v2475
        %2479 = vrot.lane.b32.xlu0 %v2357, 98
        %v2480 = vpop.permute.xlu0 %2479
        %v2481 = vsel %vm494, %v2480, 0
        %2483 = vmatpush.msra.mxu0 0.0
        %2484 = vmatpush.msra.mxu0 0.0
        %2485 = vmatpush.msra.mxu0 0.0
        %2486 = vmatpush.msra.mxu0 0.0
        %2487 = vmatpush.msra.mxu0 0.0
        %2488 = vmatpush.msra.mxu0 0.0
        %2489 = vmatpush.msra.mxu0 0.0
        %2490 = vmatpush.msra.mxu0 0.0
        %2491 = vmatpush.msra.mxu0 0.0
        %2492 = vmatpush.msra.mxu0 0.0
        %2493 = vmatpush.msra.mxu0 0.0
        %2494 = vmatpush.msra.mxu0 0.0
        %2495 = vmatpush.msra.mxu0 0.0
        %2496 = vmatpush.msra.mxu0 0.0
        %2497 = vmatpush.msra.mxu0 %v2296
        %2498 = vmatpush.msra.mxu0 %v2286
        %2499 = vmatmul.f32.gmra.mxu0 %v2481
        %v2500 = vpop.f32.mrf.mxu0
        %v2501 = vadd.f32 0.0, %v2500
        %2502 = vdwg.mxu0
        %2504 = vrot.lane.b32.xlu0 %v2501, 108
        %v2505 = vpop.permute.xlu0 %2504
        %vm2507 = vcmask 1027936
        %2508 = vst.msk [vmem:[#allocation4] sm:$0xf] %vm2507, %v2505
        %2509 = vrot.lane.b32.xlu0 %v2324, 98
        %v2510 = vpop.permute.xlu0 %2509
        %v2511 = vsel %vm494, %v2510, 0
        %2513 = vmatpush.msra.mxu0 0.0
        %2514 = vmatpush.msra.mxu0 0.0
        %2515 = vmatpush.msra.mxu0 0.0
        %2516 = vmatpush.msra.mxu0 0.0
        %2517 = vmatpush.msra.mxu0 0.0
        %2518 = vmatpush.msra.mxu0 0.0
        %2519 = vmatpush.msra.mxu0 0.0
        %2520 = vmatpush.msra.mxu0 0.0
        %2521 = vmatpush.msra.mxu0 0.0
        %2522 = vmatpush.msra.mxu0 0.0
        %2523 = vmatpush.msra.mxu0 0.0
        %2524 = vmatpush.msra.mxu0 0.0
        %2525 = vmatpush.msra.mxu0 0.0
        %2526 = vmatpush.msra.mxu0 0.0
        %2527 = vmatpush.msra.mxu0 %v2296
        %2528 = vmatpush.msra.mxu0 %v2286
        %2529 = vmatmul.f32.gmra.mxu0 %v2511
        %v2530 = vpop.f32.mrf.mxu0
        %v2531 = vadd.f32 0.0, %v2530
        %2532 = vdwg.mxu0
        %2534 = vrot.lane.b32.xlu0 %v2531, 126
        %v2535 = vpop.permute.xlu0 %2534
        %v2536 = vrot.slane %v2535, 4
        %vm2537 = vcmask 1031168
        %v2538 = vsel %vm2537, %v2536, %v2535
        %vm2540 = vcmask 1044464
        %vm2541 = vcmask 130052
        %vm2542 = vmor %vm2541, %vm2540
        %2543 = vst.msk [vmem:[#allocation4] sm:$0xff] %vm2542, %v2538
        %2544 = vrot.lane.b32.xlu0 %v2357, 88
        %v2545 = vpop.permute.xlu0 %2544
        %v2546 = vsel %vm494, %v2545, 0
        %2548 = vmatpush.msra.mxu0 0.0
        %2549 = vmatpush.msra.mxu0 0.0
        %2550 = vmatpush.msra.mxu0 0.0
        %2551 = vmatpush.msra.mxu0 0.0
        %2552 = vmatpush.msra.mxu0 0.0
        %2553 = vmatpush.msra.mxu0 0.0
        %2554 = vmatpush.msra.mxu0 0.0
        %2555 = vmatpush.msra.mxu0 0.0
        %2556 = vmatpush.msra.mxu0 0.0
        %2557 = vmatpush.msra.mxu0 0.0
        %2558 = vmatpush.msra.mxu0 0.0
        %2559 = vmatpush.msra.mxu0 0.0
        %2560 = vmatpush.msra.mxu0 0.0
        %2561 = vmatpush.msra.mxu0 0.0
        %2562 = vmatpush.msra.mxu0 %v2296
        %2563 = vmatpush.msra.mxu0 %v2286
        %2564 = vmatmul.f32.gmra.mxu0 %v2546
        %v2565 = vpop.f32.mrf.mxu0
        %v2566 = vadd.f32 0.0, %v2565
        %2567 = vdwg.mxu0
        %2569 = vrot.lane.b32.xlu0 %v2566, 16
        %v2570 = vpop.permute.xlu0 %2569
        %vm2572 = vcmask 273536
        %2573 = vst.msk [vmem:[#allocation4 + $0x4] sm:$0xf] %vm2572, %v2570
        %2574 = vrot.lane.b32.xlu0 %v2324, 88
        %v2575 = vpop.permute.xlu0 %2574
        %v2576 = vsel %vm494, %v2575, 0
        %2578 = vmatpush.msra.mxu0 0.0
        %2579 = vmatpush.msra.mxu0 0.0
        %2580 = vmatpush.msra.mxu0 0.0
        %2581 = vmatpush.msra.mxu0 0.0
        %2582 = vmatpush.msra.mxu0 0.0
        %2583 = vmatpush.msra.mxu0 0.0
        %2584 = vmatpush.msra.mxu0 0.0
        %2585 = vmatpush.msra.mxu0 0.0
        %2586 = vmatpush.msra.mxu0 0.0
        %2587 = vmatpush.msra.mxu0 0.0
        %2588 = vmatpush.msra.mxu0 0.0
        %2589 = vmatpush.msra.mxu0 0.0
        %2590 = vmatpush.msra.mxu0 0.0
        %2591 = vmatpush.msra.mxu0 0.0
        %2592 = vmatpush.msra.mxu0 %v2296
        %2593 = vmatpush.msra.mxu0 %v2286
        %2594 = vmatmul.f32.gmra.mxu0 %v2576
        %v2595 = vpop.f32.mrf.mxu0
        %v2596 = vadd.f32 0.0, %v2595
        %2597 = vdwg.mxu0
        %2599 = vrot.lane.b32.xlu0 %v2596, 34
        %v2600 = vpop.permute.xlu0 %2599
        %vm2602 = vcmask 421136
        %2603 = vst.msk [vmem:[#allocation4 + $0x4] sm:$0xf] %vm2602, %v2600
        %2604 = vrot.lane.b32.xlu0 %v2357, 78
        %v2605 = vpop.permute.xlu0 %2604
        %v2606 = vsel %vm494, %v2605, 0
        %2608 = vmatpush.msra.mxu0 0.0
        %2609 = vmatpush.msra.mxu0 0.0
        %2610 = vmatpush.msra.mxu0 0.0
        %2611 = vmatpush.msra.mxu0 0.0
        %2612 = vmatpush.msra.mxu0 0.0
        %2613 = vmatpush.msra.mxu0 0.0
        %2614 = vmatpush.msra.mxu0 0.0
        %2615 = vmatpush.msra.mxu0 0.0
        %2616 = vmatpush.msra.mxu0 0.0
        %2617 = vmatpush.msra.mxu0 0.0
        %2618 = vmatpush.msra.mxu0 0.0
        %2619 = vmatpush.msra.mxu0 0.0
        %2620 = vmatpush.msra.mxu0 0.0
        %2621 = vmatpush.msra.mxu0 0.0
        %2622 = vmatpush.msra.mxu0 %v2296
        %2623 = vmatpush.msra.mxu0 %v2286
        %2624 = vmatmul.f32.gmra.mxu0 %v2606
        %v2625 = vpop.f32.mrf.mxu0
        %v2626 = vadd.f32 0.0, %v2625
        %2627 = vdwg.mxu0
        %2629 = vrot.lane.b32.xlu0 %v2626, 52
        %v2630 = vpop.permute.xlu0 %2629
        %vm2632 = vcmask 568736
        %2633 = vst.msk [vmem:[#allocation4 + $0x4] sm:$0xf] %vm2632, %v2630
        %2634 = vrot.lane.b32.xlu0 %v2324, 78
        %v2635 = vpop.permute.xlu0 %2634
        %v2636 = vsel %vm494, %v2635, 0
        %2638 = vmatpush.msra.mxu0 0.0
        %2639 = vmatpush.msra.mxu0 0.0
        %2640 = vmatpush.msra.mxu0 0.0
        %2641 = vmatpush.msra.mxu0 0.0
        %2642 = vmatpush.msra.mxu0 0.0
        %2643 = vmatpush.msra.mxu0 0.0
        %2644 = vmatpush.msra.mxu0 0.0
        %2645 = vmatpush.msra.mxu0 0.0
        %2646 = vmatpush.msra.mxu0 0.0
        %2647 = vmatpush.msra.mxu0 0.0
        %2648 = vmatpush.msra.mxu0 0.0
        %2649 = vmatpush.msra.mxu0 0.0
        %2650 = vmatpush.msra.mxu0 0.0
        %2651 = vmatpush.msra.mxu0 0.0
        %2652 = vmatpush.msra.mxu0 %v2296
        %2653 = vmatpush.msra.mxu0 %v2286
        %2654 = vmatmul.f32.gmra.mxu0 %v2636
        %v2655 = vpop.f32.mrf.mxu0
        %v2656 = vadd.f32 0.0, %v2655
        %2657 = vdwg.mxu0
        %2659 = vrot.lane.b32.xlu0 %v2656, 70
        %v2660 = vpop.permute.xlu0 %2659
        %vm2662 = vcmask 716336
        %2663 = vst.msk [vmem:[#allocation4 + $0x4] sm:$0xf] %vm2662, %v2660
        %2664 = vrot.lane.b32.xlu0 %v2357, 68
        %v2665 = vpop.permute.xlu0 %2664
        %v2666 = vsel %vm494, %v2665, 0
        %2668 = vmatpush.msra.mxu0 0.0
        %2669 = vmatpush.msra.mxu0 0.0
        %2670 = vmatpush.msra.mxu0 0.0
        %2671 = vmatpush.msra.mxu0 0.0
        %2672 = vmatpush.msra.mxu0 0.0
        %2673 = vmatpush.msra.mxu0 0.0
        %2674 = vmatpush.msra.mxu0 0.0
        %2675 = vmatpush.msra.mxu0 0.0
        %2676 = vmatpush.msra.mxu0 0.0
        %2677 = vmatpush.msra.mxu0 0.0
        %2678 = vmatpush.msra.mxu0 0.0
        %2679 = vmatpush.msra.mxu0 0.0
        %2680 = vmatpush.msra.mxu0 0.0
        %2681 = vmatpush.msra.mxu0 0.0
        %2682 = vmatpush.msra.mxu0 %v2296
        %2683 = vmatpush.msra.mxu0 %v2286
        %2684 = vmatmul.f32.gmra.mxu0 %v2666
        %v2685 = vpop.f32.mrf.mxu0
        %v2686 = vadd.f32 0.0, %v2685
        %2687 = vdwg.mxu0
        %2689 = vrot.lane.b32.xlu0 %v2686, 88
        %v2690 = vpop.permute.xlu0 %2689
        %vm2692 = vcmask 863936
        %2693 = vst.msk [vmem:[#allocation4 + $0x4] sm:$0xf] %vm2692, %v2690
        %2694 = vrot.lane.b32.xlu0 %v2324, 68
        %v2695 = vpop.permute.xlu0 %2694
        %v2696 = vsel %vm494, %v2695, 0
        %2698 = vmatpush.msra.mxu0 0.0
        %2699 = vmatpush.msra.mxu0 0.0
        %2700 = vmatpush.msra.mxu0 0.0
        %2701 = vmatpush.msra.mxu0 0.0
        %2702 = vmatpush.msra.mxu0 0.0
        %2703 = vmatpush.msra.mxu0 0.0
        %2704 = vmatpush.msra.mxu0 0.0
        %2705 = vmatpush.msra.mxu0 0.0
        %2706 = vmatpush.msra.mxu0 0.0
        %2707 = vmatpush.msra.mxu0 0.0
        %2708 = vmatpush.msra.mxu0 0.0
        %2709 = vmatpush.msra.mxu0 0.0
        %2710 = vmatpush.msra.mxu0 0.0
        %2711 = vmatpush.msra.mxu0 0.0
        %2712 = vmatpush.msra.mxu0 %v2296
        %2713 = vmatpush.msra.mxu0 %v2286
        %2714 = vmatmul.f32.gmra.mxu0 %v2696
        %v2715 = vpop.f32.mrf.mxu0
        %v2716 = vadd.f32 0.0, %v2715
        %2717 = vdwg.mxu0
        %2719 = vrot.lane.b32.xlu0 %v2716, 106
        %v2720 = vpop.permute.xlu0 %2719
        %vm2722 = vcmask 1011536
        %2723 = vst.msk [vmem:[#allocation4 + $0x4] sm:$0xf] %vm2722, %v2720
        %2724 = vrot.lane.b32.xlu0 %v2357, 58
        %v2725 = vpop.permute.xlu0 %2724
        %v2726 = vsel %vm494, %v2725, 0
        %2728 = vmatpush.msra.mxu0 0.0
        %2729 = vmatpush.msra.mxu0 0.0
        %2730 = vmatpush.msra.mxu0 0.0
        %2731 = vmatpush.msra.mxu0 0.0
        %2732 = vmatpush.msra.mxu0 0.0
        %2733 = vmatpush.msra.mxu0 0.0
        %2734 = vmatpush.msra.mxu0 0.0
        %2735 = vmatpush.msra.mxu0 0.0
        %2736 = vmatpush.msra.mxu0 0.0
        %2737 = vmatpush.msra.mxu0 0.0
        %2738 = vmatpush.msra.mxu0 0.0
        %2739 = vmatpush.msra.mxu0 0.0
        %2740 = vmatpush.msra.mxu0 0.0
        %2741 = vmatpush.msra.mxu0 0.0
        %2742 = vmatpush.msra.mxu0 %v2296
        %2743 = vmatpush.msra.mxu0 %v2286
        %2744 = vmatmul.f32.gmra.mxu0 %v2726
        %v2745 = vpop.f32.mrf.mxu0
        %v2746 = vadd.f32 0.0, %v2745
        %2747 = vdwg.mxu0
        %2749 = vrot.lane.b32.xlu0 %v2746, 124
        %v2750 = vpop.permute.xlu0 %2749
        %v2751 = vrot.slane %v2750, 4
        %vm2752 = vcmask 1014784
        %v2753 = vsel %vm2752, %v2751, %v2750
        %vm2755 = vcmask 1044448
        %vm2756 = vcmask 113668
        %vm2757 = vmor %vm2756, %vm2755
        %2758 = vst.msk [vmem:[#allocation4 + $0x4] sm:$0xff] %vm2757, %v2753
        %2759 = vrot.lane.b32.xlu0 %v2290, 58
        %v2760 = vpop.permute.xlu0 %2759
        %v2761 = vsel %vm494, %v2760, 0
        %2763 = vmatpush.msra.mxu0 0.0
        %2764 = vmatpush.msra.mxu0 0.0
        %2765 = vmatpush.msra.mxu0 0.0
        %2766 = vmatpush.msra.mxu0 0.0
        %2767 = vmatpush.msra.mxu0 0.0
        %2768 = vmatpush.msra.mxu0 0.0
        %2769 = vmatpush.msra.mxu0 0.0
        %2770 = vmatpush.msra.mxu0 0.0
        %2771 = vmatpush.msra.mxu0 0.0
        %2772 = vmatpush.msra.mxu0 0.0
        %2773 = vmatpush.msra.mxu0 0.0
        %2774 = vmatpush.msra.mxu0 0.0
        %2775 = vmatpush.msra.mxu0 0.0
        %2776 = vmatpush.msra.mxu0 0.0
        %2777 = vmatpush.msra.mxu0 %v2296
        %2778 = vmatpush.msra.mxu0 %v2286
        %2779 = vmatmul.f32.gmra.mxu0 %v2761
        %v2780 = vpop.f32.mrf.mxu0
        %v2781 = vadd.f32 0.0, %v2780
        %2782 = vdwg.mxu0
        %2784 = vrot.lane.b32.xlu0 %v2781, 14
        %v2785 = vpop.permute.xlu0 %2784
        %vm2787 = vcmask 257136
        %2788 = vst.msk [vmem:[#allocation4 + $0x8] sm:$0xf] %vm2787, %v2785
        %v2789 = vld [vmem:[#allocation4] sm:$0xff]
        %v2790 = vld [vmem:[#allocation4 + $0x8] sm:$0xf]
        %2793 = vst [vmem:[#allocation1] ss:$2 sm:$0xff] %v2789
        %s2794 = scalar_lea.vmem [#allocation1], 16
        %2795 = vst [vmem:[%s2794] ss:$2 sm:$0xff] %v2790
        %v2796 = vld.sshfl [vmem:[#allocation1] sm:$0xff pattern:$0x75316420]
        %v2797 = vld.sshfl [vmem:[#allocation1 + $0x8] sm:$0xff pattern:$0x75316420]
        %v2798 = vld.sshfl [vmem:[#allocation1 + $0x10] sm:$0xff pattern:$0x75316420]
        %v2802 = vadd.f32 %v2256, %v2796
        %v2803 = vadd.f32 %v2269, %v2797
        %v2804 = vadd.f32 %v2282, %v2798
        %v2805 = vmul.f32 %v2802, %v1592
        %v2806 = vmul.f32 %v2803, %v1593
        %v2807 = vmul.f32 %v2804, %v1594
        %v2810 = vrot.slane %v2806, 4
        %v2811 = vsel %vm1648, %v2805, %v2810
        %2813 = vst [vmem:[%s471] sm:$0x77] %v2811
        %vm2814 = vcmask 256000
        %2815 = vst.msk [vmem:[%s471 + $0x8] sm:$0x7] %vm2814, %v2807
        %v2816 = vxor.u32 %v2802, 2147483648
        %v2817 = vxor.u32 %v2803, 2147483648
        %v2818 = vxor.u32 %v2804, 2147483648
        %v2819 = vmul.f32 %v2816, 1.442695
        %v2820 = vpow.pop %v2819
        %v2821 = vmul.f32 %v2817, 1.442695
        %v2822 = vpow.pop %v2821
        %v2823 = vmul.f32 %v2818, 1.442695
        %v2824 = vpow.pop %v2823
        %v2825 = vadd.f32 %v2820, 1.0
        %v2826 = vadd.f32 %v2822, 1.0
        %v2827 = vadd.f32 %v2824, 1.0
        %v2828 = vrcp.pop %v2825
        %v2829 = vmul.f32 %v2825, %v2828
        %v2830 = vsub.f32 1.0, %v2829
        %v2831 = vmul.f32 %v2828, %v2830
        %v2832 = vadd.f32 %v2828, %v2831
        %vm2833 = vweird.f32 %v2825
        %vm2834 = vweird.f32 %v2828
        %vm2835 = vmor %vm2833, %vm2834
        %v2836 = vsel %vm2835, %v2828, %v2832
        %v2837 = vand.u32 2147483647, %v2825
        %vm2838 = vcmp.eq.f32.partialorder %v2837, 8.507059e+37
        %v2839 = vand.u32 %v2825, 2147483648
        %v2840 = vor.u32 1.1754944e-38, %v2839
        %v2841 = vsel %vm2838, %v2840, %v2836
        %v2842 = vmul.f32 1.0, %v2841
        %v2843 = vrcp.pop %v2826
        %v2844 = vmul.f32 %v2826, %v2843
        %v2845 = vsub.f32 1.0, %v2844
        %v2846 = vmul.f32 %v2843, %v2845
        %v2847 = vadd.f32 %v2843, %v2846
        %vm2848 = vweird.f32 %v2826
        %vm2849 = vweird.f32 %v2843
        %vm2850 = vmor %vm2848, %vm2849
        %v2851 = vsel %vm2850, %v2843, %v2847
        %v2852 = vand.u32 2147483647, %v2826
        %vm2853 = vcmp.eq.f32.partialorder %v2852, 8.507059e+37
        %v2854 = vand.u32 %v2826, 2147483648
        %v2855 = vor.u32 1.1754944e-38, %v2854
        %v2856 = vsel %vm2853, %v2855, %v2851
        %v2857 = vmul.f32 1.0, %v2856
        %v2858 = vrcp.pop %v2827
        %v2859 = vmul.f32 %v2827, %v2858
        %v2860 = vsub.f32 1.0, %v2859
        %v2861 = vmul.f32 %v2858, %v2860
        %v2862 = vadd.f32 %v2858, %v2861
        %vm2863 = vweird.f32 %v2827
        %vm2864 = vweird.f32 %v2858
        %vm2865 = vmor %vm2863, %vm2864
        %v2866 = vsel %vm2865, %v2858, %v2862
        %v2867 = vand.u32 2147483647, %v2827
        %vm2868 = vcmp.eq.f32.partialorder %v2867, 8.507059e+37
        %v2869 = vand.u32 %v2827, 2147483648
        %v2870 = vor.u32 1.1754944e-38, %v2869
        %v2871 = vsel %vm2868, %v2870, %v2866
        %v2872 = vmul.f32 1.0, %v2871
        %v2873 = vmul.f32 %v2842, %v1592
        %v2874 = vmul.f32 %v2857, %v1593
        %v2875 = vmul.f32 %v2872, %v1594
        %2879 = vst [vmem:[#allocation1] sm:$0xff] %v2873
        %2880 = vst [vmem:[#allocation1 + $0x9] sm:$0xff] %v2874
        %2881 = vst [vmem:[#allocation1 + $0x12] sm:$0xff] %v2875
        %s2882 = scalar_lea.vmem [#allocation1], 3
        %v2883 = vld [vmem:[%s2882] ss:$9 sm:$0xff]
        %v2885 = vlaneseq
        %vm2886 = vcmp.ge.s32.totalorder %v2885, 0
        %vm2887 = vcmp.lt.s32.totalorder %v2885, 288
        %vm2888 = vmand %vm2886, %vm2887
        %s2889 = scalar_lea.vmem %s471, 3
        %2890 = vst.msk [vmem:[%s2889] ss:$4 sm:$0x7] %vm2888, %v2883
        %s2891 = sand.u32 %s269, 1
        %s2892 = scalar_lea.sflag [#allocation6], %s2891
        %s2893 = sand.u32 %s269, 1
        %s2894 = smul.addr %s2893, 12
        %s2895 = scalar_lea.vmem [#allocation5], %s2894
        %p2896 = scmp.lt.s32.totalorder %s26, 1
        %s2897 = scalar_select %p2896, %s26, 1
        %s2898 = smul.addr %s2897, 3
        %s2899 = smul.addr %s2898, 4
        %s2900 = scalar_lea.vmem %s11, %s2899
        // Predicated region
        $region61: #{_lambda_.7} parent=59 // pred_check
          %p2901 = pneg %p279
        $region62: #{_lambda_.7} parent=59 // pred_check_branch
          %2903 = sbr.rel (%p2901) target = $region64
        $region63: #{_lambda_.7} parent=59 // pred_region
          %2905 = vsyncadd %s2892, 0
          %s2906 = smul.addr %s26, 3
          %s2907 = smul.addr %s2906, 4
          %s2908 = scalar_lea.hbm %s10, %s2907
          %s2910 = sshll.u32 %s2895, 4
          %s2911 = int_to_ptr.vmem [resolvable:$true] %s2910
          %s2912 = sshll.u32 %s2908, 4
          %s2913 = int_to_ptr.hbm [resolvable:$true] %s2912
          %2915 = dma.vmem_to_hbm [thread:$0]  %s2911, 192, %s2913, %s2892
        $region64: #{_lambda_.7} parent=59 // pred_fallthru
          _
        // Predicated region
        $region65: #{_lambda_.7} parent=59 // pred_check
          %p2916 = pneg %p305
        $region66: #{_lambda_.7} parent=59 // pred_check_branch
          %2918 = sbr.rel (%p2916) target = $region68
        $region67: #{_lambda_.7} parent=59 // pred_region
          _
        $region68: #{_lambda_.7} parent=59 // pred_fallthru
          _
      $region60: #{_lambda_.7} parent=5 // pred_fallthru
        _
      %p2919 = scmp.le.s32.totalorder 2, %s21
      // Predicated region
      $region69: #{_lambda_.7} parent=5 // pred_check
        %p2920 = pneg %p2919
      $region70: #{_lambda_.7} parent=5 // pred_check_branch
        %2922 = sbr.rel (%p2920) target = $region72
      $region71: #{_lambda_.7} parent=5 // pred_region
        %s2923 = ssub.s32 %s21, 2
        // Predicated region
        $region73: #{_lambda_.7} parent=71 // pred_check
          %p2924 = pneg %p285
        $region74: #{_lambda_.7} parent=71 // pred_check_branch
          %2926 = sbr.rel (%p2924) target = $region76
        $region75: #{_lambda_.7} parent=71 // pred_region
          %s2927 = sand.u32 %s270, 1
          %s2928 = scalar_lea.sflag [#allocation6], %s2927
          %s2929 = sand.u32 %s270, 1
          %s2930 = smul.addr %s2929, 12
          %s2931 = scalar_lea.vmem [#allocation5], %s2930
          %2933 = dma.done %s2928, 192
        $region76: #{_lambda_.7} parent=71 // pred_fallthru
          _
        // Predicated region
        $region77: #{_lambda_.7} parent=71 // pred_check
          %p2934 = pneg %p311
        $region78: #{_lambda_.7} parent=71 // pred_check_branch
          %2936 = sbr.rel (%p2934) target = $region80
        $region79: #{_lambda_.7} parent=71 // pred_region
          %p2937 = scmp.lt.s32.totalorder %s27, 1
          %s2938 = scalar_select %p2937, %s27, 1
          %s2939 = smul.addr %s2938, 3
          %s2940 = smul.addr %s2939, 4
          %s2941 = scalar_lea.vmem %s11, %s2940
        $region80: #{_lambda_.7} parent=71 // pred_fallthru
          _
      $region72: #{_lambda_.7} parent=5 // pred_fallthru
        _
    $region6: #{_lambda_.7} parent=1 // loop_footer
      %s25 = sadd.s32 1, %s21
    $region7: #{_lambda_.7} parent=1 // loop_footer_branch
      %20 = sbr.rel target = $region3
    $region8: #{_lambda_.7} parent=1 // loop_exit
      _
    %2942 = vsyncpa [#allocation6], 1
    %s2943 = scalar_lea.sflag [#allocation6], 1
    %2944 = vsyncpa %s2943, 1

</llo_original>
